<compile_context>
chip_gen: v7x
topology: tpu7x:2x2x1
jax: 0.10.0
libtpu: 0.0.40
codegen_flags: <defaults>
</compile_context>

<pallas_src>
import functools

import jax
import jax.numpy as jnp
from jax import lax
from jax.experimental import pallas as pl
from jax.experimental.pallas import tpu as pltpu


def _round_up(x, m):
    return (x + m - 1) // m * m


def _chip_info():
    """Returns (physical VMEM bytes, is_v5e-like) with safe fallbacks."""
    kind = ""
    try:
        kind = jax.devices()[0].device_kind.lower()
    except Exception:
        pass
    vmem = None
    try:
        vmem = int(pltpu.get_tpu_info().vmem_capacity_bytes)
    except Exception:
        vmem = None
    if vmem is None or vmem <= 0:
        vmem = (128 << 20) if ("v5" in kind or "v6" in kind) else (64 << 20)
    return vmem, ("v5" in kind)


# -----------------------------------------------------------------------------
# Pallas kernel: wide-K conv matmul with fused (bias) + InstanceNorm + activation
# -----------------------------------------------------------------------------
def _conv_in_act_kernel(x_ref, w_ref, b_ref, mask_ref, o_ref, stage_ref, acc_ref=None, *,
                        tap_offsets, cin, chunk, nc, inv_count, use_in, use_bias, act):
    # x_ref:     (1, cin, sp)        bf16  zero-padded input, flattened with width Wp
    # w_ref:     (tco, taps*cin)     bf16  taps stacked along the contraction dim
    # b_ref:     (tco, 1)            f32   bias (unused for IN layers: it cancels exactly)
    # mask_ref:  (1, s_pad)          f32   1.0 on valid output positions (IN layers only)
    # o_ref:     (1, tco, s_pad)           lane-dense output (s_pad multiple of 128)
    # stage_ref: (taps*cin, chunk)   bf16  VMEM staging of the shifted input taps
    # acc_ref:   (tco, s_pad)        f32   scratch, only allocated when nc > 1
    w = w_ref[...]

    def conv_chunk(s0):
        # Stage every tap as a static lane-offset slice of the flat padded input
        # (no HBM im2col), then one wide-K matmul on the MXU with f32 accumulation.
        for t, off in enumerate(tap_offsets):
            stage_ref[pl.ds(t * cin, cin), :] = x_ref[0, :, pl.ds(off + s0, chunk)]
        return jnp.dot(w, stage_ref[...], preferred_element_type=jnp.float32)

    if nc == 1:
        acc = conv_chunk(0)
    else:
        for c in range(nc):
            acc_ref[:, pl.ds(c * chunk, chunk)] = conv_chunk(c * chunk)
        acc = acc_ref[...]

    if use_bias:
        acc = acc + b_ref[...]                       # (tco, 1) broadcast over lanes

    if use_in:
        # InstanceNorm2d (affine=False, eps=1e-5), biased variance over valid positions
        # only; var = E[x^2] - mean^2 so no centering pass before the reduction.
        mask = mask_ref[...]                         # (1, s_pad) f32
        s1 = jnp.sum(acc * mask, axis=-1, keepdims=True)
        s2 = jnp.sum(acc * acc * mask, axis=-1, keepdims=True)
        mean = s1 * inv_count
        var = s2 * inv_count - mean * mean
        scale = lax.rsqrt(var + 1e-5)
        acc = (acc - mean) * scale

    if act == "lrelu":
        acc = jnp.where(acc >= 0.0, acc, 0.2 * acc)
    elif act == "sigmoid":
        acc = jax.nn.sigmoid(acc)

    o_ref[0, :, :] = acc.astype(o_ref.dtype)


# -----------------------------------------------------------------------------
# Plain-JAX glue (layout only: padding, space-to-depth, weight re-ordering)
# -----------------------------------------------------------------------------
def _space_to_depth(xp, w):
    # xp: (N, C, Hp, Wp) already padded, Hp/Wp even.  w: (Cout, C, 4, 4)
    # Returns the stride-1 equivalent: x' (N, 4C, Hp/2, Wp/2), w' (Cout, 4C, 2, 2).
    N, C, Hp, Wp = xp.shape
    x2 = xp.reshape(N, C, Hp // 2, 2, Wp // 2, 2).transpose(0, 1, 3, 5, 2, 4)
    x2 = x2.reshape(N, C * 4, Hp // 2, Wp // 2)
    Cout = w.shape[0]
    w2 = w.reshape(Cout, C, 2, 2, 2, 2).transpose(0, 1, 3, 5, 2, 4)
    w2 = w2.reshape(Cout, C * 4, 2, 2)
    return x2, w2


def conv_block(x, w, b, *, stride, padding, dilation, use_in, act, out_dtype):
    """x: (N, Cin, H, W) -> (N, Cout, Ho, Wo) in `out_dtype`, matching PyTorch Conv2d
    (+ optional InstanceNorm2d) (+ LeakyReLU(0.2) / Sigmoid)."""
    N, C, H, W = x.shape
    xp = jnp.pad(x, ((0, 0), (0, 0), (padding, padding), (padding, padding)))
    w_eff = w
    if stride == 2:
        # Fold stride-2 k=4 into a stride-1 k=2 conv over a space-to-depth input.
        assert (H + 2 * padding) % 2 == 0 and (W + 2 * padding) % 2 == 0, (
            "stride-2 layers require even padded spatial dims")
        xp, w_eff = _space_to_depth(xp, w)
        d = 1
    else:
        assert stride == 1
        d = dilation

    N, Cin, Hp, Wp = xp.shape
    Cout, _, kh, kw = w_eff.shape
    Ho = Hp - (kh - 1) * d
    Wo = Wp - (kw - 1) * d

    # Lane-align the padded width when the waste is small (<= 12.5%): makes row-tap
    # offsets lane-aligned and output stores unmasked at realistic image sizes.
    Wp_al = _round_up(Wp, 128)
    if Wp_al > Wp and Wp_al * 8 <= Wp * 9:
        xp = jnp.pad(xp, ((0, 0), (0, 0), (0, 0), (0, Wp_al - Wp)))
        Wp = Wp_al

    # Pad Cin to a sublane multiple so the in-VMEM tap-staging stores are aligned.
    Cin_p = _round_up(max(Cin, 8), 8)
    if Cin_p > Cin:
        xp = jnp.pad(xp, ((0, 0), (0, Cin_p - Cin), (0, 0), (0, 0)))
        w_eff = jnp.pad(w_eff, ((0, 0), (0, Cin_p - Cin), (0, 0), (0, 0)))
        Cin = Cin_p

    taps = kh * kw
    K = taps * Cin
    s_out = Ho * Wp                          # computed over padded width, cropped below
    max_off = (kh - 1) * d * Wp + (kw - 1) * d
    tap_offsets = tuple(i * d * Wp + j * d for i in range(kh) for j in range(kw))

    out_bytes = jnp.dtype(out_dtype).itemsize
    vmem_phys, is_v5 = _chip_info()
    budget = (vmem_phys * 3) // 4            # ~48 MiB on v7x, ~96 MiB on v5e/v6e
    stage_cap = 8 << 20                      # cap on the bf16 wide-K staging buffer

    def plan(tco):
        chunk1 = _round_up(s_out, 128)
        if K * chunk1 * 2 <= stage_cap:
            chunk, nc = chunk1, 1
        else:
            chunk = max(512, (stage_cap // (2 * K)) // 128 * 128)
            nc = -(-s_out // chunk)
        s_pad = nc * chunk
        sp = s_pad + max_off
        need = (2 * Cin * sp * 2                       # x block (double-buffered, bf16)
                + 2 * tco * K * 2                      # weights
                + 2 * tco * 4                          # bias
                + 2 * s_pad * 4                        # mask
                + 2 * tco * s_pad * out_bytes          # output block
                + K * chunk * 2                        # staging scratch
                + (tco * s_pad * 4 if nc > 1 else 0))  # f32 accumulator scratch
        return chunk, nc, s_pad, sp, need

    tco_max = 128 if is_v5 else 256          # v5e MXU is 128x128; v6e/v7x are 256-wide
    cand = [c for c in (256, 128, 64, 32, 16, 8)
            if c <= min(Cout, tco_max) and Cout % c == 0]
    if not cand:
        cand = [Cout]

    tco = cand[-1]
    chunk, nc, s_pad, sp, need = plan(tco)
    for c in cand:                           # biggest Cout tile that fits the budget
        pc = plan(c)
        if pc[-1] <= budget:
            tco = c
            chunk, nc, s_pad, sp, need = pc
            break
    # TODO(synk): if even the smallest tco exceeds `budget` (very large H*W), switch to a
    #             two-pass spatially-tiled kernel with streamed InstanceNorm statistics.

    x_flat = xp.reshape(N, Cin, Hp * Wp)
    x_flat = jnp.pad(x_flat, ((0, 0), (0, 0), (0, sp - Hp * Wp))).astype(jnp.bfloat16)
    w_wide = jnp.transpose(w_eff, (0, 2, 3, 1)).reshape(Cout, K).astype(jnp.bfloat16)
    bias = b.reshape(Cout, 1).astype(jnp.float32)
    s_idx = jnp.arange(s_pad, dtype=jnp.int32)
    mask = ((s_idx < s_out) & (s_idx % Wp < Wo)).astype(jnp.float32).reshape(1, s_pad)

    kernel = functools.partial(
        _conv_in_act_kernel, tap_offsets=tap_offsets, cin=Cin, chunk=chunk, nc=nc,
        inv_count=1.0 / float(Ho * Wo), use_in=use_in, use_bias=not use_in, act=act)

    scratch = [pltpu.VMEM((K, chunk), jnp.bfloat16)]
    if nc > 1:
        scratch.append(pltpu.VMEM((tco, s_pad), jnp.float32))

    vmem_limit = int(min(max(need + (8 << 20), 32 << 20), budget))
    flops = int(2 * N * Cout * K * Ho * Wo)
    transc = int(N * Cout * Ho * Wo) if act == "sigmoid" else (int(N * Cout) if use_in else 0)
    bytes_acc = int(N * Cin * sp * 2 + Cout * K * 2 + Cout * 4 + s_pad * 4
                    + N * Cout * s_pad * out_bytes)

    out = pl.pallas_call(
        kernel,
        out_shape=jax.ShapeDtypeStruct((N, Cout, s_pad), out_dtype),
        grid=(N, Cout // tco),
        in_specs=[
            # x block index only changes with n, so it is not re-DMA'd across co steps.
            pl.BlockSpec((1, Cin, sp), lambda n, co: (n, 0, 0)),
            pl.BlockSpec((tco, K), lambda n, co: (co, 0)),
            pl.BlockSpec((tco, 1), lambda n, co: (co, 0)),
            pl.BlockSpec((1, s_pad), lambda n, co: (0, 0)),
        ],
        out_specs=pl.BlockSpec((1, tco, s_pad), lambda n, co: (n, co, 0)),
        scratch_shapes=scratch,
        compiler_params=pltpu.CompilerParams(
            dimension_semantics=("parallel", "parallel"),
            vmem_limit_bytes=vmem_limit),
        cost_estimate=pl.CostEstimate(flops=flops, transcendentals=transc,
                                      bytes_accessed=bytes_acc),
    )(x_flat, w_wide, bias, mask)

    # Crop the padded-width garbage columns; XLA fuses this slice with the next layer's
    # pad/space-to-depth/cast into a single copy between the pallas_calls.
    out = out[:, :, :s_out].reshape(N, Cout, Ho, Wp)[:, :, :, :Wo]
    return out


# -----------------------------------------------------------------------------
# Parameters + forward pass (NCHW public API, matches the PyTorch module)
# -----------------------------------------------------------------------------
def init_params(key, input_channels=3, ndf=8, gain=0.02):
    # 'normal' init a la Discriminator.init_weights (mean=0, std=gain, bias=0).
    # InstanceNorm2d layers are non-affine (PyTorch default) => no IN params.
    specs = [
        ("initial", input_channels, ndf, 4),
        ("dilated1", ndf, ndf * 2, 3),
        ("dilated2", ndf * 2, ndf * 4, 3),
        ("dilated3", ndf * 4, ndf * 8, 3),
        ("conv1", ndf * 8, ndf * 8, 4),
        ("classifier", ndf * 8, 1, 4),
    ]
    params = {}
    for name, cin, cout, k in specs:
        key, sub = jax.random.split(key)
        wgt = gain * jax.random.normal(sub, (cout, cin, k, k), jnp.float32)
        bvec = jnp.zeros((cout,), jnp.float32)
        params[name] = (wgt, bvec)
    return params


def discriminator_forward(params, x_nchw):
    x = x_nchw  # internal layout stays NCHW (channels -> sublanes, spatial -> lanes)

    # initial: Conv2d(k4, s2, p1) + LeakyReLU(0.2)
    w, b = params["initial"]
    x = conv_block(x, w, b, stride=2, padding=1, dilation=1,
                   use_in=False, act="lrelu", out_dtype=jnp.bfloat16)

    # dilated1/2/3: Conv2d(k3, s1, p=d, dil=d) + InstanceNorm2d + LeakyReLU(0.2)
    for name, dil in (("dilated1", 1), ("dilated2", 2), ("dilated3", 4)):
        w, b = params[name]
        x = conv_block(x, w, b, stride=1, padding=dil, dilation=dil,
                       use_in=True, act="lrelu", out_dtype=jnp.bfloat16)

    # conv1: Conv2d(k4, s2, p1) + InstanceNorm2d + LeakyReLU(0.2)
    w, b = params["conv1"]
    x = conv_block(x, w, b, stride=2, padding=1, dilation=1,
                   use_in=True, act="lrelu", out_dtype=jnp.bfloat16)

    # classifier: Conv2d(k4, s1, p1) + Sigmoid
    w, b = params["classifier"]
    x = conv_block(x, w, b, stride=1, padding=1, dilation=1,
                   use_in=False, act="sigmoid", out_dtype=jnp.float32)
    return x


# -----------------------------------------------------------------------------
# Pure-JAX f32 reference (lax.conv + hand-written InstanceNorm) for verification
# -----------------------------------------------------------------------------
def _ref_forward(params, x):
    def conv(x, w, b, stride, padding, dilation):
        y = lax.conv_general_dilated(
            x, w, window_strides=(stride, stride),
            padding=[(padding, padding), (padding, padding)],
            rhs_dilation=(dilation, dilation),
            dimension_numbers=("NCHW", "OIHW", "NCHW"),
            precision=lax.Precision.HIGHEST)
        return y + b.reshape(1, -1, 1, 1)

    def inorm(x):
        m = jnp.mean(x, axis=(2, 3), keepdims=True)
        v = jnp.mean(jnp.square(x - m), axis=(2, 3), keepdims=True)
        return (x - m) * lax.rsqrt(v + 1e-5)

    def lrelu(x):
        return jnp.where(x >= 0, x, 0.2 * x)

    w, b = params["initial"]
    x = lrelu(conv(x, w, b, 2, 1, 1))
    for name, d in (("dilated1", 1), ("dilated2", 2), ("dilated3", 4)):
        w, b = params[name]
        x = lrelu(inorm(conv(x, w, b, 1, d, d)))
    w, b = params["conv1"]
    x = lrelu(inorm(conv(x, w, b, 2, 1, 1)))
    w, b = params["classifier"]
    x = jax.nn.sigmoid(conv(x, w, b, 1, 1, 1))
    return x


if __name__ == "__main__":
    key = jax.random.PRNGKey(0)
    pkey, xkey = jax.random.split(key)

    input_channels, ndf = 3, 8               # small ndf for the synthetic test
    params = init_params(pkey, input_channels=input_channels, ndf=ndf)

    x = jax.random.normal(xkey, (2, input_channels, 16, 16), jnp.float32)  # NCHW

    fwd = jax.jit(functools.partial(discriminator_forward, params))
    out = jax.block_until_ready(fwd(x))

    # 16 -> 8 (initial) -> 8 (dilated x3) -> 4 (conv1) -> 3 (classifier, k4 s1 p1)
    assert out.shape == (2, 1, 3, 3), out.shape
    assert bool(jnp.all(jnp.isfinite(out)))
    assert bool(jnp.all((out >= 0.0) & (out <= 1.0)))   # sigmoid output range

    # Numerical check against the f32 XLA reference (bf16 MXU operands => loose tol).
    ref = jax.block_until_ready(jax.jit(functools.partial(_ref_forward, params))(x))
    err = float(jnp.max(jnp.abs(out.astype(jnp.float32) - ref)))
    assert err < 3e-2, f"max|pallas - reference| = {err}"
    print("KERNEL_OK")
</pallas_src>

<mosaic_0001>
module attributes {stable_mosaic.version = 11 : i64} {
  func.func @_conv_in_act_kernel(%arg0: i32, %arg1: i32, %arg2: memref<1x16x138xbf16, #tpu.memory_space<vmem>>, %arg3: memref<8x64xbf16, #tpu.memory_space<vmem>>, %arg4: memref<8x1xf32, #tpu.memory_space<vmem>>, %arg5: memref<1x128xf32, #tpu.memory_space<vmem>>, %arg6: memref<1x8x128xbf16, #tpu.memory_space<vmem>>, %arg7: memref<64x128xbf16, #tpu.memory_space<vmem>>) attributes {dimension_semantics = [#tpu.dimension_semantics<parallel>, #tpu.dimension_semantics<parallel>], iteration_bounds = array<i64: 2, 1>, scalar_prefetch = 0 : i64, scratch_operands = 1 : i64, tpu.core_type = #tpu.core_type<tc>, window_params = [{transform_indices = @transform_0, window_bounds = array<i64: 1, 16, 138>}, {transform_indices = @transform_1, window_bounds = array<i64: 8, 64>}, {transform_indices = @transform_2, window_bounds = array<i64: 8, 1>}, {pipeline_mode = #tpu.pipeline_mode<synchronous>, transform_indices = @transform_3, window_bounds = array<i64: 1, 128>}, {transform_indices = @transform_4, window_bounds = array<i64: 1, 8, 128>}]} {
    %c0 = arith.constant 0 : index
    %c0_0 = arith.constant 0 : index
    %0 = vector.load %arg3[%c0, %c0_0] : memref<8x64xbf16, #tpu.memory_space<vmem>>, vector<8x64xbf16>
    %c0_1 = arith.constant 0 : index
    %c0_2 = arith.constant 0 : index
    %c0_3 = arith.constant 0 : index
    %1 = vector.load %arg2[%c0_1, %c0_2, %c0_3] : memref<1x16x138xbf16, #tpu.memory_space<vmem>>, vector<1x16x128xbf16>
    %2 = vector.shape_cast %1 : vector<1x16x128xbf16> to vector<16x128xbf16>
    %c0_4 = arith.constant 0 : index
    %c0_5 = arith.constant 0 : index
    %3 = vector.load %arg7[%c0_4, %c0_5] : memref<64x128xbf16, #tpu.memory_space<vmem>>, vector<16x128xbf16>
    tpu.vector_store %arg7[%c0_4, %c0_5], %2 {strides = array<i32>} : memref<64x128xbf16, #tpu.memory_space<vmem>>, vector<16x128xbf16>,
    %c0_6 = arith.constant 0 : index
    %c0_7 = arith.constant 0 : index
    %c1 = arith.constant 1 : index
    %4 = vector.load %arg2[%c0_6, %c0_7, %c1] : memref<1x16x138xbf16, #tpu.memory_space<vmem>>, vector<1x16x128xbf16>
    %5 = vector.shape_cast %4 : vector<1x16x128xbf16> to vector<16x128xbf16>
    %c16 = arith.constant 16 : index
    %c0_8 = arith.constant 0 : index
    %6 = vector.load %arg7[%c16, %c0_8] : memref<64x128xbf16, #tpu.memory_space<vmem>>, vector<16x128xbf16>
    tpu.vector_store %arg7[%c16, %c0_8], %5 {strides = array<i32>} : memref<64x128xbf16, #tpu.memory_space<vmem>>, vector<16x128xbf16>,
    %c0_9 = arith.constant 0 : index
    %c0_10 = arith.constant 0 : index
    %c9 = arith.constant 9 : index
    %7 = vector.load %arg2[%c0_9, %c0_10, %c9] : memref<1x16x138xbf16, #tpu.memory_space<vmem>>, vector<1x16x128xbf16>
    %8 = vector.shape_cast %7 : vector<1x16x128xbf16> to vector<16x128xbf16>
    %c32 = arith.constant 32 : index
    %c0_11 = arith.constant 0 : index
    %9 = vector.load %arg7[%c32, %c0_11] : memref<64x128xbf16, #tpu.memory_space<vmem>>, vector<16x128xbf16>
    tpu.vector_store %arg7[%c32, %c0_11], %8 {strides = array<i32>} : memref<64x128xbf16, #tpu.memory_space<vmem>>, vector<16x128xbf16>,
    %c0_12 = arith.constant 0 : index
    %c0_13 = arith.constant 0 : index
    %c10 = arith.constant 10 : index
    %10 = vector.load %arg2[%c0_12, %c0_13, %c10] : memref<1x16x138xbf16, #tpu.memory_space<vmem>>, vector<1x16x128xbf16>
    %11 = vector.shape_cast %10 : vector<1x16x128xbf16> to vector<16x128xbf16>
    %c48 = arith.constant 48 : index
    %c0_14 = arith.constant 0 : index
    %12 = vector.load %arg7[%c48, %c0_14] : memref<64x128xbf16, #tpu.memory_space<vmem>>, vector<16x128xbf16>
    tpu.vector_store %arg7[%c48, %c0_14], %11 {strides = array<i32>} : memref<64x128xbf16, #tpu.memory_space<vmem>>, vector<16x128xbf16>,
    %c0_15 = arith.constant 0 : index
    %c0_16 = arith.constant 0 : index
    %13 = vector.load %arg7[%c0_15, %c0_16] : memref<64x128xbf16, #tpu.memory_space<vmem>>, vector<64x128xbf16>
    %cst = arith.constant dense<0.000000e+00> : vector<8x128xf32>
    %14 = tpu.matmul %0, %13, %cst {dimension_numbers = #tpu.dot_dimension_numbers<[1], [0], [0], [1], [0, 0, 1, 1], [], []>} : vector<8x64xbf16>, vector<64x128xbf16>, vector<8x128xf32> -> vector<8x128xf32>
    %c0_17 = arith.constant 0 : index
    %c0_18 = arith.constant 0 : index
    %15 = vector.load %arg4[%c0_17, %c0_18] : memref<8x1xf32, #tpu.memory_space<vmem>>, vector<8x1xf32>
    %16 = vector.broadcast %15 : vector<8x1xf32> to vector<8x128xf32>
    %17 = arith.addf %14, %16 : vector<8x128xf32>
    %cst_19 = arith.constant 0.000000e+00 : f32
    %18 = vector.broadcast %cst_19 : f32 to vector<8x128xf32>
    %19 = arith.cmpf oge, %17, %18 : vector<8x128xf32>
    %cst_20 = arith.constant 2.000000e-01 : f32
    %20 = vector.broadcast %cst_20 : f32 to vector<8x128xf32>
    %21 = arith.mulf %20, %17 : vector<8x128xf32>
    %22 = arith.select %19, %17, %21 : vector<8x128xi1>, vector<8x128xf32>
    %23 = arith.truncf %22 : vector<8x128xf32> to vector<8x128xbf16>
    %c0_21 = arith.constant 0 : index
    %c0_22 = arith.constant 0 : index
    %c0_23 = arith.constant 0 : index
    %24 = vector.load %arg6[%c0_21, %c0_22, %c0_23] : memref<1x8x128xbf16, #tpu.memory_space<vmem>>, vector<1x8x128xbf16>
    %25 = vector.shape_cast %24 : vector<1x8x128xbf16> to vector<8x128xbf16>
    %26 = vector.shape_cast %23 : vector<8x128xbf16> to vector<1x8x128xbf16>
    tpu.vector_store %arg6[%c0_21, %c0_22, %c0_23], %26 {strides = array<i32>} : memref<1x8x128xbf16, #tpu.memory_space<vmem>>, vector<1x8x128xbf16>,
    return
  }
  func.func @transform_0(%arg0: i32, %arg1: i32) -> (i32, i32, i32) {
    %c0_i32 = arith.constant 0 : i32
    %c0_i32_0 = arith.constant 0 : i32
    %c0_i32_1 = arith.constant 0 : i32
    return %arg0, %c0_i32, %c0_i32_0 : i32, i32, i32
  }
  func.func @transform_1(%arg0: i32, %arg1: i32) -> (i32, i32) {
    %c0_i32 = arith.constant 0 : i32
    %c0_i32_0 = arith.constant 0 : i32
    return %arg1, %c0_i32 : i32, i32
  }
  func.func @transform_2(%arg0: i32, %arg1: i32) -> (i32, i32) {
    %c0_i32 = arith.constant 0 : i32
    %c0_i32_0 = arith.constant 0 : i32
    return %arg1, %c0_i32 : i32, i32
  }
  func.func @transform_3(%arg0: i32, %arg1: i32) -> (i32, i32) {
    %c0_i32 = arith.constant 0 : i32
    %c0_i32_0 = arith.constant 0 : i32
    %c0_i32_1 = arith.constant 0 : i32
    return %c0_i32, %c0_i32_0 : i32, i32
  }
  func.func @transform_4(%arg0: i32, %arg1: i32) -> (i32, i32, i32) {
    %c0_i32 = arith.constant 0 : i32
    %c0_i32_0 = arith.constant 0 : i32
    return %arg0, %arg1, %c0_i32 : i32, i32, i32
  }
}

module attributes {stable_mosaic.version = 11 : i64} {
  func.func @_conv_in_act_kernel(%arg0: i32, %arg1: i32, %arg2: memref<1x8x150xbf16, #tpu.memory_space<vmem>>, %arg3: memref<16x72xbf16, #tpu.memory_space<vmem>>, %arg4: memref<16x1xf32, #tpu.memory_space<vmem>>, %arg5: memref<1x128xf32, #tpu.memory_space<vmem>>, %arg6: memref<1x16x128xbf16, #tpu.memory_space<vmem>>, %arg7: memref<72x128xbf16, #tpu.memory_space<vmem>>) attributes {dimension_semantics = [#tpu.dimension_semantics<parallel>, #tpu.dimension_semantics<parallel>], iteration_bounds = array<i64: 2, 1>, scalar_prefetch = 0 : i64, scratch_operands = 1 : i64, tpu.core_type = #tpu.core_type<tc>, window_params = [{transform_indices = @transform_0, window_bounds = array<i64: 1, 8, 150>}, {transform_indices = @transform_1, window_bounds = array<i64: 16, 72>}, {transform_indices = @transform_2, window_bounds = array<i64: 16, 1>}, {pipeline_mode = #tpu.pipeline_mode<synchronous>, transform_indices = @transform_3, window_bounds = array<i64: 1, 128>}, {transform_indices = @transform_4, window_bounds = array<i64: 1, 16, 128>}]} {
    %c0 = arith.constant 0 : index
    %c0_0 = arith.constant 0 : index
    %0 = vector.load %arg3[%c0, %c0_0] : memref<16x72xbf16, #tpu.memory_space<vmem>>, vector<16x72xbf16>
    %c0_1 = arith.constant 0 : index
    %c0_2 = arith.constant 0 : index
    %c0_3 = arith.constant 0 : index
    %1 = vector.load %arg2[%c0_1, %c0_2, %c0_3] : memref<1x8x150xbf16, #tpu.memory_space<vmem>>, vector<1x8x128xbf16>
    %2 = vector.shape_cast %1 : vector<1x8x128xbf16> to vector<8x128xbf16>
    %c0_4 = arith.constant 0 : index
    %c0_5 = arith.constant 0 : index
    %3 = vector.load %arg7[%c0_4, %c0_5] : memref<72x128xbf16, #tpu.memory_space<vmem>>, vector<8x128xbf16>
    tpu.vector_store %arg7[%c0_4, %c0_5], %2 {strides = array<i32>} : memref<72x128xbf16, #tpu.memory_space<vmem>>, vector<8x128xbf16>,
    %c0_6 = arith.constant 0 : index
    %c0_7 = arith.constant 0 : index
    %c1 = arith.constant 1 : index
    %4 = vector.load %arg2[%c0_6, %c0_7, %c1] : memref<1x8x150xbf16, #tpu.memory_space<vmem>>, vector<1x8x128xbf16>
    %5 = vector.shape_cast %4 : vector<1x8x128xbf16> to vector<8x128xbf16>
    %c8 = arith.constant 8 : index
    %c0_8 = arith.constant 0 : index
    %6 = vector.load %arg7[%c8, %c0_8] : memref<72x128xbf16, #tpu.memory_space<vmem>>, vector<8x128xbf16>
    tpu.vector_store %arg7[%c8, %c0_8], %5 {strides = array<i32>} : memref<72x128xbf16, #tpu.memory_space<vmem>>, vector<8x128xbf16>,
    %c0_9 = arith.constant 0 : index
    %c0_10 = arith.constant 0 : index
    %c2 = arith.constant 2 : index
    %7 = vector.load %arg2[%c0_9, %c0_10, %c2] : memref<1x8x150xbf16, #tpu.memory_space<vmem>>, vector<1x8x128xbf16>
    %8 = vector.shape_cast %7 : vector<1x8x128xbf16> to vector<8x128xbf16>
    %c16 = arith.constant 16 : index
    %c0_11 = arith.constant 0 : index
    %9 = vector.load %arg7[%c16, %c0_11] : memref<72x128xbf16, #tpu.memory_space<vmem>>, vector<8x128xbf16>
    tpu.vector_store %arg7[%c16, %c0_11], %8 {strides = array<i32>} : memref<72x128xbf16, #tpu.memory_space<vmem>>, vector<8x128xbf16>,
    %c0_12 = arith.constant 0 : index
    %c0_13 = arith.constant 0 : index
    %c10 = arith.constant 10 : index
    %10 = vector.load %arg2[%c0_12, %c0_13, %c10] : memref<1x8x150xbf16, #tpu.memory_space<vmem>>, vector<1x8x128xbf16>
    %11 = vector.shape_cast %10 : vector<1x8x128xbf16> to vector<8x128xbf16>
    %c24 = arith.constant 24 : index
    %c0_14 = arith.constant 0 : index
    %12 = vector.load %arg7[%c24, %c0_14] : memref<72x128xbf16, #tpu.memory_space<vmem>>, vector<8x128xbf16>
    tpu.vector_store %arg7[%c24, %c0_14], %11 {strides = array<i32>} : memref<72x128xbf16, #tpu.memory_space<vmem>>, vector<8x128xbf16>,
    %c0_15 = arith.constant 0 : index
    %c0_16 = arith.constant 0 : index
    %c11 = arith.constant 11 : index
    %13 = vector.load %arg2[%c0_15, %c0_16, %c11] : memref<1x8x150xbf16, #tpu.memory_space<vmem>>, vector<1x8x128xbf16>
    %14 = vector.shape_cast %13 : vector<1x8x128xbf16> to vector<8x128xbf16>
    %c32 = arith.constant 32 : index
    %c0_17 = arith.constant 0 : index
    %15 = vector.load %arg7[%c32, %c0_17] : memref<72x128xbf16, #tpu.memory_space<vmem>>, vector<8x128xbf16>
    tpu.vector_store %arg7[%c32, %c0_17], %14 {strides = array<i32>} : memref<72x128xbf16, #tpu.memory_space<vmem>>, vector<8x128xbf16>,
    %c0_18 = arith.constant 0 : index
    %c0_19 = arith.constant 0 : index
    %c12 = arith.constant 12 : index
    %16 = vector.load %arg2[%c0_18, %c0_19, %c12] : memref<1x8x150xbf16, #tpu.memory_space<vmem>>, vector<1x8x128xbf16>
    %17 = vector.shape_cast %16 : vector<1x8x128xbf16> to vector<8x128xbf16>
    %c40 = arith.constant 40 : index
    %c0_20 = arith.constant 0 : index
    %18 = vector.load %arg7[%c40, %c0_20] : memref<72x128xbf16, #tpu.memory_space<vmem>>, vector<8x128xbf16>
    tpu.vector_store %arg7[%c40, %c0_20], %17 {strides = array<i32>} : memref<72x128xbf16, #tpu.memory_space<vmem>>, vector<8x128xbf16>,
    %c0_21 = arith.constant 0 : index
    %c0_22 = arith.constant 0 : index
    %c20 = arith.constant 20 : index
    %19 = vector.load %arg2[%c0_21, %c0_22, %c20] : memref<1x8x150xbf16, #tpu.memory_space<vmem>>, vector<1x8x128xbf16>
    %20 = vector.shape_cast %19 : vector<1x8x128xbf16> to vector<8x128xbf16>
    %c48 = arith.constant 48 : index
    %c0_23 = arith.constant 0 : index
    %21 = vector.load %arg7[%c48, %c0_23] : memref<72x128xbf16, #tpu.memory_space<vmem>>, vector<8x128xbf16>
    tpu.vector_store %arg7[%c48, %c0_23], %20 {strides = array<i32>} : memref<72x128xbf16, #tpu.memory_space<vmem>>, vector<8x128xbf16>,
    %c0_24 = arith.constant 0 : index
    %c0_25 = arith.constant 0 : index
    %c21 = arith.constant 21 : index
    %22 = vector.load %arg2[%c0_24, %c0_25, %c21] : memref<1x8x150xbf16, #tpu.memory_space<vmem>>, vector<1x8x128xbf16>
    %23 = vector.shape_cast %22 : vector<1x8x128xbf16> to vector<8x128xbf16>
    %c56 = arith.constant 56 : index
    %c0_26 = arith.constant 0 : index
    %24 = vector.load %arg7[%c56, %c0_26] : memref<72x128xbf16, #tpu.memory_space<vmem>>, vector<8x128xbf16>
    tpu.vector_store %arg7[%c56, %c0_26], %23 {strides = array<i32>} : memref<72x128xbf16, #tpu.memory_space<vmem>>, vector<8x128xbf16>,
    %c0_27 = arith.constant 0 : index
    %c0_28 = arith.constant 0 : index
    %c22 = arith.constant 22 : index
    %25 = vector.load %arg2[%c0_27, %c0_28, %c22] : memref<1x8x150xbf16, #tpu.memory_space<vmem>>, vector<1x8x128xbf16>
    %26 = vector.shape_cast %25 : vector<1x8x128xbf16> to vector<8x128xbf16>
    %c64 = arith.constant 64 : index
    %c0_29 = arith.constant 0 : index
    %27 = vector.load %arg7[%c64, %c0_29] : memref<72x128xbf16, #tpu.memory_space<vmem>>, vector<8x128xbf16>
    tpu.vector_store %arg7[%c64, %c0_29], %26 {strides = array<i32>} : memref<72x128xbf16, #tpu.memory_space<vmem>>, vector<8x128xbf16>,
    %c0_30 = arith.constant 0 : index
    %c0_31 = arith.constant 0 : index
    %28 = vector.load %arg7[%c0_30, %c0_31] : memref<72x128xbf16, #tpu.memory_space<vmem>>, vector<72x128xbf16>
    %cst = arith.constant dense<0.000000e+00> : vector<16x128xf32>
    %29 = tpu.matmul %0, %28, %cst {dimension_numbers = #tpu.dot_dimension_numbers<[1], [0], [0], [1], [0, 0, 1, 1], [], []>} : vector<16x72xbf16>, vector<72x128xbf16>, vector<16x128xf32> -> vector<16x128xf32>
    %c0_32 = arith.constant 0 : index
    %c0_33 = arith.constant 0 : index
    %30 = vector.load %arg5[%c0_32, %c0_33] : memref<1x128xf32, #tpu.memory_space<vmem>>, vector<1x128xf32>
    %31 = vector.broadcast %30 : vector<1x128xf32> to vector<16x128xf32>
    %32 = arith.mulf %29, %31 : vector<16x128xf32>
    %cst_34 = arith.constant dense<0.000000e+00> : vector<16xf32>
    %33 = vector.multi_reduction <add>, %32, %cst_34 [1] : vector<16x128xf32> to vector<16xf32>
    %34 = vector.shape_cast %33 : vector<16xf32> to vector<16x1xf32>
    %35 = arith.mulf %29, %29 : vector<16x128xf32>
    %36 = vector.broadcast %30 : vector<1x128xf32> to vector<16x128xf32>
    %37 = arith.mulf %35, %36 : vector<16x128xf32>
    %cst_35 = arith.constant dense<0.000000e+00> : vector<16xf32>
    %38 = vector.multi_reduction <add>, %37, %cst_35 [1] : vector<16x128xf32> to vector<16xf32>
    %39 = vector.shape_cast %38 : vector<16xf32> to vector<16x1xf32>
    %cst_36 = arith.constant 1.562500e-02 : f32
    %40 = vector.broadcast %cst_36 : f32 to vector<16x1xf32>
    %41 = arith.mulf %34, %40 : vector<16x1xf32>
    %cst_37 = arith.constant 1.562500e-02 : f32
    %42 = vector.broadcast %cst_37 : f32 to vector<16x1xf32>
    %43 = arith.mulf %39, %42 : vector<16x1xf32>
    %44 = arith.mulf %41, %41 : vector<16x1xf32>
    %45 = arith.subf %43, %44 : vector<16x1xf32>
    %cst_38 = arith.constant 9.99999974E-6 : f32
    %46 = vector.broadcast %cst_38 : f32 to vector<16x1xf32>
    %47 = arith.addf %45, %46 : vector<16x1xf32>
    %48 = math.rsqrt %47 : vector<16x1xf32>
    %49 = vector.broadcast %41 : vector<16x1xf32> to vector<16x128xf32>
    %50 = arith.subf %29, %49 : vector<16x128xf32>
    %51 = vector.broadcast %48 : vector<16x1xf32> to vector<16x128xf32>
    %52 = arith.mulf %50, %51 : vector<16x128xf32>
    %cst_39 = arith.constant 0.000000e+00 : f32
    %53 = vector.broadcast %cst_39 : f32 to vector<16x128xf32>
    %54 = arith.cmpf oge, %52, %53 : vector<16x128xf32>
    %cst_40 = arith.constant 2.000000e-01 : f32
    %55 = vector.broadcast %cst_40 : f32 to vector<16x128xf32>
    %56 = arith.mulf %55, %52 : vector<16x128xf32>
    %57 = arith.select %54, %52, %56 : vector<16x128xi1>, vector<16x128xf32>
    %58 = arith.truncf %57 : vector<16x128xf32> to vector<16x128xbf16>
    %c0_41 = arith.constant 0 : index
    %c0_42 = arith.constant 0 : index
    %c0_43 = arith.constant 0 : index
    %59 = vector.load %arg6[%c0_41, %c0_42, %c0_43] : memref<1x16x128xbf16, #tpu.memory_space<vmem>>, vector<1x16x128xbf16>
    %60 = vector.shape_cast %59 : vector<1x16x128xbf16> to vector<16x128xbf16>
    %61 = vector.shape_cast %58 : vector<16x128xbf16> to vector<1x16x128xbf16>
    tpu.vector_store %arg6[%c0_41, %c0_42, %c0_43], %61 {strides = array<i32>} : memref<1x16x128xbf16, #tpu.memory_space<vmem>>, vector<1x16x128xbf16>,
    return
  }
  func.func @transform_0(%arg0: i32, %arg1: i32) -> (i32, i32, i32) {
    %c0_i32 = arith.constant 0 : i32
    %c0_i32_0 = arith.constant 0 : i32
    %c0_i32_1 = arith.constant 0 : i32
    return %arg0, %c0_i32, %c0_i32_0 : i32, i32, i32
  }
  func.func @transform_1(%arg0: i32, %arg1: i32) -> (i32, i32) {
    %c0_i32 = arith.constant 0 : i32
    %c0_i32_0 = arith.constant 0 : i32
    return %arg1, %c0_i32 : i32, i32
  }
  func.func @transform_2(%arg0: i32, %arg1: i32) -> (i32, i32) {
    %c0_i32 = arith.constant 0 : i32
    %c0_i32_0 = arith.constant 0 : i32
    return %arg1, %c0_i32 : i32, i32
  }
  func.func @transform_3(%arg0: i32, %arg1: i32) -> (i32, i32) {
    %c0_i32 = arith.constant 0 : i32
    %c0_i32_0 = arith.constant 0 : i32
    %c0_i32_1 = arith.constant 0 : i32
    return %c0_i32, %c0_i32_0 : i32, i32
  }
  func.func @transform_4(%arg0: i32, %arg1: i32) -> (i32, i32, i32) {
    %c0_i32 = arith.constant 0 : i32
    %c0_i32_0 = arith.constant 0 : i32
    return %arg0, %arg1, %c0_i32 : i32, i32, i32
  }
}

module attributes {stable_mosaic.version = 11 : i64} {
  func.func @_conv_in_act_kernel(%arg0: i32, %arg1: i32, %arg2: memref<1x16x180xbf16, #tpu.memory_space<vmem>>, %arg3: memref<32x144xbf16, #tpu.memory_space<vmem>>, %arg4: memref<32x1xf32, #tpu.memory_space<vmem>>, %arg5: memref<1x128xf32, #tpu.memory_space<vmem>>, %arg6: memref<1x32x128xbf16, #tpu.memory_space<vmem>>, %arg7: memref<144x128xbf16, #tpu.memory_space<vmem>>) attributes {dimension_semantics = [#tpu.dimension_semantics<parallel>, #tpu.dimension_semantics<parallel>], iteration_bounds = array<i64: 2, 1>, scalar_prefetch = 0 : i64, scratch_operands = 1 : i64, tpu.core_type = #tpu.core_type<tc>, window_params = [{transform_indices = @transform_0, window_bounds = array<i64: 1, 16, 180>}, {transform_indices = @transform_1, window_bounds = array<i64: 32, 144>}, {transform_indices = @transform_2, window_bounds = array<i64: 32, 1>}, {pipeline_mode = #tpu.pipeline_mode<synchronous>, transform_indices = @transform_3, window_bounds = array<i64: 1, 128>}, {transform_indices = @transform_4, window_bounds = array<i64: 1, 32, 128>}]} {
    %c0 = arith.constant 0 : index
    %c0_0 = arith.constant 0 : index
    %0 = vector.load %arg3[%c0, %c0_0] : memref<32x144xbf16, #tpu.memory_space<vmem>>, vector<32x144xbf16>
    %c0_1 = arith.constant 0 : index
    %c0_2 = arith.constant 0 : index
    %c0_3 = arith.constant 0 : index
    %1 = vector.load %arg2[%c0_1, %c0_2, %c0_3] : memref<1x16x180xbf16, #tpu.memory_space<vmem>>, vector<1x16x128xbf16>
    %2 = vector.shape_cast %1 : vector<1x16x128xbf16> to vector<16x128xbf16>
    %c0_4 = arith.constant 0 : index
    %c0_5 = arith.constant 0 : index
    %3 = vector.load %arg7[%c0_4, %c0_5] : memref<144x128xbf16, #tpu.memory_space<vmem>>, vector<16x128xbf16>
    tpu.vector_store %arg7[%c0_4, %c0_5], %2 {strides = array<i32>} : memref<144x128xbf16, #tpu.memory_space<vmem>>, vector<16x128xbf16>,
    %c0_6 = arith.constant 0 : index
    %c0_7 = arith.constant 0 : index
    %c2 = arith.constant 2 : index
    %4 = vector.load %arg2[%c0_6, %c0_7, %c2] : memref<1x16x180xbf16, #tpu.memory_space<vmem>>, vector<1x16x128xbf16>
    %5 = vector.shape_cast %4 : vector<1x16x128xbf16> to vector<16x128xbf16>
    %c16 = arith.constant 16 : index
    %c0_8 = arith.constant 0 : index
    %6 = vector.load %arg7[%c16, %c0_8] : memref<144x128xbf16, #tpu.memory_space<vmem>>, vector<16x128xbf16>
    tpu.vector_store %arg7[%c16, %c0_8], %5 {strides = array<i32>} : memref<144x128xbf16, #tpu.memory_space<vmem>>, vector<16x128xbf16>,
    %c0_9 = arith.constant 0 : index
    %c0_10 = arith.constant 0 : index
    %c4 = arith.constant 4 : index
    %7 = vector.load %arg2[%c0_9, %c0_10, %c4] : memref<1x16x180xbf16, #tpu.memory_space<vmem>>, vector<1x16x128xbf16>
    %8 = vector.shape_cast %7 : vector<1x16x128xbf16> to vector<16x128xbf16>
    %c32 = arith.constant 32 : index
    %c0_11 = arith.constant 0 : index
    %9 = vector.load %arg7[%c32, %c0_11] : memref<144x128xbf16, #tpu.memory_space<vmem>>, vector<16x128xbf16>
    tpu.vector_store %arg7[%c32, %c0_11], %8 {strides = array<i32>} : memref<144x128xbf16, #tpu.memory_space<vmem>>, vector<16x128xbf16>,
    %c0_12 = arith.constant 0 : index
    %c0_13 = arith.constant 0 : index
    %c24 = arith.constant 24 : index
    %10 = vector.load %arg2[%c0_12, %c0_13, %c24] : memref<1x16x180xbf16, #tpu.memory_space<vmem>>, vector<1x16x128xbf16>
    %11 = vector.shape_cast %10 : vector<1x16x128xbf16> to vector<16x128xbf16>
    %c48 = arith.constant 48 : index
    %c0_14 = arith.constant 0 : index
    %12 = vector.load %arg7[%c48, %c0_14] : memref<144x128xbf16, #tpu.memory_space<vmem>>, vector<16x128xbf16>
    tpu.vector_store %arg7[%c48, %c0_14], %11 {strides = array<i32>} : memref<144x128xbf16, #tpu.memory_space<vmem>>, vector<16x128xbf16>,
    %c0_15 = arith.constant 0 : index
    %c0_16 = arith.constant 0 : index
    %c26 = arith.constant 26 : index
    %13 = vector.load %arg2[%c0_15, %c0_16, %c26] : memref<1x16x180xbf16, #tpu.memory_space<vmem>>, vector<1x16x128xbf16>
    %14 = vector.shape_cast %13 : vector<1x16x128xbf16> to vector<16x128xbf16>
    %c64 = arith.constant 64 : index
    %c0_17 = arith.constant 0 : index
    %15 = vector.load %arg7[%c64, %c0_17] : memref<144x128xbf16, #tpu.memory_space<vmem>>, vector<16x128xbf16>
    tpu.vector_store %arg7[%c64, %c0_17], %14 {strides = array<i32>} : memref<144x128xbf16, #tpu.memory_space<vmem>>, vector<16x128xbf16>,
    %c0_18 = arith.constant 0 : index
    %c0_19 = arith.constant 0 : index
    %c28 = arith.constant 28 : index
    %16 = vector.load %arg2[%c0_18, %c0_19, %c28] : memref<1x16x180xbf16, #tpu.memory_space<vmem>>, vector<1x16x128xbf16>
    %17 = vector.shape_cast %16 : vector<1x16x128xbf16> to vector<16x128xbf16>
    %c80 = arith.constant 80 : index
    %c0_20 = arith.constant 0 : index
    %18 = vector.load %arg7[%c80, %c0_20] : memref<144x128xbf16, #tpu.memory_space<vmem>>, vector<16x128xbf16>
    tpu.vector_store %arg7[%c80, %c0_20], %17 {strides = array<i32>} : memref<144x128xbf16, #tpu.memory_space<vmem>>, vector<16x128xbf16>,
    %c0_21 = arith.constant 0 : index
    %c0_22 = arith.constant 0 : index
    %c48_23 = arith.constant 48 : index
    %19 = vector.load %arg2[%c0_21, %c0_22, %c48_23] : memref<1x16x180xbf16, #tpu.memory_space<vmem>>, vector<1x16x128xbf16>
    %20 = vector.shape_cast %19 : vector<1x16x128xbf16> to vector<16x128xbf16>
    %c96 = arith.constant 96 : index
    %c0_24 = arith.constant 0 : index
    %21 = vector.load %arg7[%c96, %c0_24] : memref<144x128xbf16, #tpu.memory_space<vmem>>, vector<16x128xbf16>
    tpu.vector_store %arg7[%c96, %c0_24], %20 {strides = array<i32>} : memref<144x128xbf16, #tpu.memory_space<vmem>>, vector<16x128xbf16>,
    %c0_25 = arith.constant 0 : index
    %c0_26 = arith.constant 0 : index
    %c50 = arith.constant 50 : index
    %22 = vector.load %arg2[%c0_25, %c0_26, %c50] : memref<1x16x180xbf16, #tpu.memory_space<vmem>>, vector<1x16x128xbf16>
    %23 = vector.shape_cast %22 : vector<1x16x128xbf16> to vector<16x128xbf16>
    %c112 = arith.constant 112 : index
    %c0_27 = arith.constant 0 : index
    %24 = vector.load %arg7[%c112, %c0_27] : memref<144x128xbf16, #tpu.memory_space<vmem>>, vector<16x128xbf16>
    tpu.vector_store %arg7[%c112, %c0_27], %23 {strides = array<i32>} : memref<144x128xbf16, #tpu.memory_space<vmem>>, vector<16x128xbf16>,
    %c0_28 = arith.constant 0 : index
    %c0_29 = arith.constant 0 : index
    %c52 = arith.constant 52 : index
    %25 = vector.load %arg2[%c0_28, %c0_29, %c52] : memref<1x16x180xbf16, #tpu.memory_space<vmem>>, vector<1x16x128xbf16>
    %26 = vector.shape_cast %25 : vector<1x16x128xbf16> to vector<16x128xbf16>
    %c128 = arith.constant 128 : index
    %c0_30 = arith.constant 0 : index
    %27 = vector.load %arg7[%c128, %c0_30] : memref<144x128xbf16, #tpu.memory_space<vmem>>, vector<16x128xbf16>
    tpu.vector_store %arg7[%c128, %c0_30], %26 {strides = array<i32>} : memref<144x128xbf16, #tpu.memory_space<vmem>>, vector<16x128xbf16>,
    %c0_31 = arith.constant 0 : index
    %c0_32 = arith.constant 0 : index
    %28 = vector.load %arg7[%c0_31, %c0_32] : memref<144x128xbf16, #tpu.memory_space<vmem>>, vector<144x128xbf16>
    %cst = arith.constant dense<0.000000e+00> : vector<32x128xf32>
    %29 = tpu.matmul %0, %28, %cst {dimension_numbers = #tpu.dot_dimension_numbers<[1], [0], [0], [1], [0, 0, 1, 1], [], []>} : vector<32x144xbf16>, vector<144x128xbf16>, vector<32x128xf32> -> vector<32x128xf32>
    %c0_33 = arith.constant 0 : index
    %c0_34 = arith.constant 0 : index
    %30 = vector.load %arg5[%c0_33, %c0_34] : memref<1x128xf32, #tpu.memory_space<vmem>>, vector<1x128xf32>
    %31 = vector.broadcast %30 : vector<1x128xf32> to vector<32x128xf32>
    %32 = arith.mulf %29, %31 : vector<32x128xf32>
    %cst_35 = arith.constant dense<0.000000e+00> : vector<32xf32>
    %33 = vector.multi_reduction <add>, %32, %cst_35 [1] : vector<32x128xf32> to vector<32xf32>
    %34 = vector.shape_cast %33 : vector<32xf32> to vector<32x1xf32>
    %35 = arith.mulf %29, %29 : vector<32x128xf32>
    %36 = vector.broadcast %30 : vector<1x128xf32> to vector<32x128xf32>
    %37 = arith.mulf %35, %36 : vector<32x128xf32>
    %cst_36 = arith.constant dense<0.000000e+00> : vector<32xf32>
    %38 = vector.multi_reduction <add>, %37, %cst_36 [1] : vector<32x128xf32> to vector<32xf32>
    %39 = vector.shape_cast %38 : vector<32xf32> to vector<32x1xf32>
    %cst_37 = arith.constant 1.562500e-02 : f32
    %40 = vector.broadcast %cst_37 : f32 to vector<32x1xf32>
    %41 = arith.mulf %34, %40 : vector<32x1xf32>
    %cst_38 = arith.constant 1.562500e-02 : f32
    %42 = vector.broadcast %cst_38 : f32 to vector<32x1xf32>
    %43 = arith.mulf %39, %42 : vector<32x1xf32>
    %44 = arith.mulf %41, %41 : vector<32x1xf32>
    %45 = arith.subf %43, %44 : vector<32x1xf32>
    %cst_39 = arith.constant 9.99999974E-6 : f32
    %46 = vector.broadcast %cst_39 : f32 to vector<32x1xf32>
    %47 = arith.addf %45, %46 : vector<32x1xf32>
    %48 = math.rsqrt %47 : vector<32x1xf32>
    %49 = vector.broadcast %41 : vector<32x1xf32> to vector<32x128xf32>
    %50 = arith.subf %29, %49 : vector<32x128xf32>
    %51 = vector.broadcast %48 : vector<32x1xf32> to vector<32x128xf32>
    %52 = arith.mulf %50, %51 : vector<32x128xf32>
    %cst_40 = arith.constant 0.000000e+00 : f32
    %53 = vector.broadcast %cst_40 : f32 to vector<32x128xf32>
    %54 = arith.cmpf oge, %52, %53 : vector<32x128xf32>
    %cst_41 = arith.constant 2.000000e-01 : f32
    %55 = vector.broadcast %cst_41 : f32 to vector<32x128xf32>
    %56 = arith.mulf %55, %52 : vector<32x128xf32>
    %57 = arith.select %54, %52, %56 : vector<32x128xi1>, vector<32x128xf32>
    %58 = arith.truncf %57 : vector<32x128xf32> to vector<32x128xbf16>
    %c0_42 = arith.constant 0 : index
    %c0_43 = arith.constant 0 : index
    %c0_44 = arith.constant 0 : index
    %59 = vector.load %arg6[%c0_42, %c0_43, %c0_44] : memref<1x32x128xbf16, #tpu.memory_space<vmem>>, vector<1x32x128xbf16>
    %60 = vector.shape_cast %59 : vector<1x32x128xbf16> to vector<32x128xbf16>
    %61 = vector.shape_cast %58 : vector<32x128xbf16> to vector<1x32x128xbf16>
    tpu.vector_store %arg6[%c0_42, %c0_43, %c0_44], %61 {strides = array<i32>} : memref<1x32x128xbf16, #tpu.memory_space<vmem>>, vector<1x32x128xbf16>,
    return
  }
  func.func @transform_0(%arg0: i32, %arg1: i32) -> (i32, i32, i32) {
    %c0_i32 = arith.constant 0 : i32
    %c0_i32_0 = arith.constant 0 : i32
    %c0_i32_1 = arith.constant 0 : i32
    return %arg0, %c0_i32, %c0_i32_0 : i32, i32, i32
  }
  func.func @transform_1(%arg0: i32, %arg1: i32) -> (i32, i32) {
    %c0_i32 = arith.constant 0 : i32
    %c0_i32_0 = arith.constant 0 : i32
    return %arg1, %c0_i32 : i32, i32
  }
  func.func @transform_2(%arg0: i32, %arg1: i32) -> (i32, i32) {
    %c0_i32 = arith.constant 0 : i32
    %c0_i32_0 = arith.constant 0 : i32
    return %arg1, %c0_i32 : i32, i32
  }
  func.func @transform_3(%arg0: i32, %arg1: i32) -> (i32, i32) {
    %c0_i32 = arith.constant 0 : i32
    %c0_i32_0 = arith.constant 0 : i32
    %c0_i32_1 = arith.constant 0 : i32
    return %c0_i32, %c0_i32_0 : i32, i32
  }
  func.func @transform_4(%arg0: i32, %arg1: i32) -> (i32, i32, i32) {
    %c0_i32 = arith.constant 0 : i32
    %c0_i32_0 = arith.constant 0 : i32
    return %arg0, %arg1, %c0_i32 : i32, i32, i32
  }
}

module attributes {stable_mosaic.version = 11 : i64} {
  func.func @_conv_in_act_kernel(%arg0: i32, %arg1: i32, %arg2: memref<1x32x264xbf16, #tpu.memory_space<vmem>>, %arg3: memref<64x288xbf16, #tpu.memory_space<vmem>>, %arg4: memref<64x1xf32, #tpu.memory_space<vmem>>, %arg5: memref<1x128xf32, #tpu.memory_space<vmem>>, %arg6: memref<1x64x128xbf16, #tpu.memory_space<vmem>>, %arg7: memref<288x128xbf16, #tpu.memory_space<vmem>>) attributes {dimension_semantics = [#tpu.dimension_semantics<parallel>, #tpu.dimension_semantics<parallel>], iteration_bounds = array<i64: 2, 1>, scalar_prefetch = 0 : i64, scratch_operands = 1 : i64, tpu.core_type = #tpu.core_type<tc>, window_params = [{transform_indices = @transform_0, window_bounds = array<i64: 1, 32, 264>}, {transform_indices = @transform_1, window_bounds = array<i64: 64, 288>}, {transform_indices = @transform_2, window_bounds = array<i64: 64, 1>}, {pipeline_mode = #tpu.pipeline_mode<synchronous>, transform_indices = @transform_3, window_bounds = array<i64: 1, 128>}, {transform_indices = @transform_4, window_bounds = array<i64: 1, 64, 128>}]} {
    %c0 = arith.constant 0 : index
    %c0_0 = arith.constant 0 : index
    %0 = vector.load %arg3[%c0, %c0_0] : memref<64x288xbf16, #tpu.memory_space<vmem>>, vector<64x288xbf16>
    %c0_1 = arith.constant 0 : index
    %c0_2 = arith.constant 0 : index
    %c0_3 = arith.constant 0 : index
    %1 = vector.load %arg2[%c0_1, %c0_2, %c0_3] : memref<1x32x264xbf16, #tpu.memory_space<vmem>>, vector<1x32x128xbf16>
    %2 = vector.shape_cast %1 : vector<1x32x128xbf16> to vector<32x128xbf16>
    %c0_4 = arith.constant 0 : index
    %c0_5 = arith.constant 0 : index
    %3 = vector.load %arg7[%c0_4, %c0_5] : memref<288x128xbf16, #tpu.memory_space<vmem>>, vector<32x128xbf16>
    tpu.vector_store %arg7[%c0_4, %c0_5], %2 {strides = array<i32>} : memref<288x128xbf16, #tpu.memory_space<vmem>>, vector<32x128xbf16>,
    %c0_6 = arith.constant 0 : index
    %c0_7 = arith.constant 0 : index
    %c4 = arith.constant 4 : index
    %4 = vector.load %arg2[%c0_6, %c0_7, %c4] : memref<1x32x264xbf16, #tpu.memory_space<vmem>>, vector<1x32x128xbf16>
    %5 = vector.shape_cast %4 : vector<1x32x128xbf16> to vector<32x128xbf16>
    %c32 = arith.constant 32 : index
    %c0_8 = arith.constant 0 : index
    %6 = vector.load %arg7[%c32, %c0_8] : memref<288x128xbf16, #tpu.memory_space<vmem>>, vector<32x128xbf16>
    tpu.vector_store %arg7[%c32, %c0_8], %5 {strides = array<i32>} : memref<288x128xbf16, #tpu.memory_space<vmem>>, vector<32x128xbf16>,
    %c0_9 = arith.constant 0 : index
    %c0_10 = arith.constant 0 : index
    %c8 = arith.constant 8 : index
    %7 = vector.load %arg2[%c0_9, %c0_10, %c8] : memref<1x32x264xbf16, #tpu.memory_space<vmem>>, vector<1x32x128xbf16>
    %8 = vector.shape_cast %7 : vector<1x32x128xbf16> to vector<32x128xbf16>
    %c64 = arith.constant 64 : index
    %c0_11 = arith.constant 0 : index
    %9 = vector.load %arg7[%c64, %c0_11] : memref<288x128xbf16, #tpu.memory_space<vmem>>, vector<32x128xbf16>
    tpu.vector_store %arg7[%c64, %c0_11], %8 {strides = array<i32>} : memref<288x128xbf16, #tpu.memory_space<vmem>>, vector<32x128xbf16>,
    %c0_12 = arith.constant 0 : index
    %c0_13 = arith.constant 0 : index
    %c64_14 = arith.constant 64 : index
    %10 = vector.load %arg2[%c0_12, %c0_13, %c64_14] : memref<1x32x264xbf16, #tpu.memory_space<vmem>>, vector<1x32x128xbf16>
    %11 = vector.shape_cast %10 : vector<1x32x128xbf16> to vector<32x128xbf16>
    %c96 = arith.constant 96 : index
    %c0_15 = arith.constant 0 : index
    %12 = vector.load %arg7[%c96, %c0_15] : memref<288x128xbf16, #tpu.memory_space<vmem>>, vector<32x128xbf16>
    tpu.vector_store %arg7[%c96, %c0_15], %11 {strides = array<i32>} : memref<288x128xbf16, #tpu.memory_space<vmem>>, vector<32x128xbf16>,
    %c0_16 = arith.constant 0 : index
    %c0_17 = arith.constant 0 : index
    %c68 = arith.constant 68 : index
    %13 = vector.load %arg2[%c0_16, %c0_17, %c68] : memref<1x32x264xbf16, #tpu.memory_space<vmem>>, vector<1x32x128xbf16>
    %14 = vector.shape_cast %13 : vector<1x32x128xbf16> to vector<32x128xbf16>
    %c128 = arith.constant 128 : index
    %c0_18 = arith.constant 0 : index
    %15 = vector.load %arg7[%c128, %c0_18] : memref<288x128xbf16, #tpu.memory_space<vmem>>, vector<32x128xbf16>
    tpu.vector_store %arg7[%c128, %c0_18], %14 {strides = array<i32>} : memref<288x128xbf16, #tpu.memory_space<vmem>>, vector<32x128xbf16>,
    %c0_19 = arith.constant 0 : index
    %c0_20 = arith.constant 0 : index
    %c72 = arith.constant 72 : index
    %16 = vector.load %arg2[%c0_19, %c0_20, %c72] : memref<1x32x264xbf16, #tpu.memory_space<vmem>>, vector<1x32x128xbf16>
    %17 = vector.shape_cast %16 : vector<1x32x128xbf16> to vector<32x128xbf16>
    %c160 = arith.constant 160 : index
    %c0_21 = arith.constant 0 : index
    %18 = vector.load %arg7[%c160, %c0_21] : memref<288x128xbf16, #tpu.memory_space<vmem>>, vector<32x128xbf16>
    tpu.vector_store %arg7[%c160, %c0_21], %17 {strides = array<i32>} : memref<288x128xbf16, #tpu.memory_space<vmem>>, vector<32x128xbf16>,
    %c0_22 = arith.constant 0 : index
    %c0_23 = arith.constant 0 : index
    %c128_24 = arith.constant 128 : index
    %19 = vector.load %arg2[%c0_22, %c0_23, %c128_24] : memref<1x32x264xbf16, #tpu.memory_space<vmem>>, vector<1x32x128xbf16>
    %20 = vector.shape_cast %19 : vector<1x32x128xbf16> to vector<32x128xbf16>
    %c192 = arith.constant 192 : index
    %c0_25 = arith.constant 0 : index
    %21 = vector.load %arg7[%c192, %c0_25] : memref<288x128xbf16, #tpu.memory_space<vmem>>, vector<32x128xbf16>
    tpu.vector_store %arg7[%c192, %c0_25], %20 {strides = array<i32>} : memref<288x128xbf16, #tpu.memory_space<vmem>>, vector<32x128xbf16>,
    %c0_26 = arith.constant 0 : index
    %c0_27 = arith.constant 0 : index
    %c132 = arith.constant 132 : index
    %22 = vector.load %arg2[%c0_26, %c0_27, %c132] : memref<1x32x264xbf16, #tpu.memory_space<vmem>>, vector<1x32x128xbf16>
    %23 = vector.shape_cast %22 : vector<1x32x128xbf16> to vector<32x128xbf16>
    %c224 = arith.constant 224 : index
    %c0_28 = arith.constant 0 : index
    %24 = vector.load %arg7[%c224, %c0_28] : memref<288x128xbf16, #tpu.memory_space<vmem>>, vector<32x128xbf16>
    tpu.vector_store %arg7[%c224, %c0_28], %23 {strides = array<i32>} : memref<288x128xbf16, #tpu.memory_space<vmem>>, vector<32x128xbf16>,
    %c0_29 = arith.constant 0 : index
    %c0_30 = arith.constant 0 : index
    %c136 = arith.constant 136 : index
    %25 = vector.load %arg2[%c0_29, %c0_30, %c136] : memref<1x32x264xbf16, #tpu.memory_space<vmem>>, vector<1x32x128xbf16>
    %26 = vector.shape_cast %25 : vector<1x32x128xbf16> to vector<32x128xbf16>
    %c256 = arith.constant 256 : index
    %c0_31 = arith.constant 0 : index
    %27 = vector.load %arg7[%c256, %c0_31] : memref<288x128xbf16, #tpu.memory_space<vmem>>, vector<32x128xbf16>
    tpu.vector_store %arg7[%c256, %c0_31], %26 {strides = array<i32>} : memref<288x128xbf16, #tpu.memory_space<vmem>>, vector<32x128xbf16>,
    %c0_32 = arith.constant 0 : index
    %c0_33 = arith.constant 0 : index
    %28 = vector.load %arg7[%c0_32, %c0_33] : memref<288x128xbf16, #tpu.memory_space<vmem>>, vector<288x128xbf16>
    %cst = arith.constant dense<0.000000e+00> : vector<64x128xf32>
    %29 = tpu.matmul %0, %28, %cst {dimension_numbers = #tpu.dot_dimension_numbers<[1], [0], [0], [1], [0, 0, 1, 1], [], []>} : vector<64x288xbf16>, vector<288x128xbf16>, vector<64x128xf32> -> vector<64x128xf32>
    %c0_34 = arith.constant 0 : index
    %c0_35 = arith.constant 0 : index
    %30 = vector.load %arg5[%c0_34, %c0_35] : memref<1x128xf32, #tpu.memory_space<vmem>>, vector<1x128xf32>
    %31 = vector.broadcast %30 : vector<1x128xf32> to vector<64x128xf32>
    %32 = arith.mulf %29, %31 : vector<64x128xf32>
    %cst_36 = arith.constant dense<0.000000e+00> : vector<64xf32>
    %33 = vector.multi_reduction <add>, %32, %cst_36 [1] : vector<64x128xf32> to vector<64xf32>
    %34 = vector.shape_cast %33 : vector<64xf32> to vector<64x1xf32>
    %35 = arith.mulf %29, %29 : vector<64x128xf32>
    %36 = vector.broadcast %30 : vector<1x128xf32> to vector<64x128xf32>
    %37 = arith.mulf %35, %36 : vector<64x128xf32>
    %cst_37 = arith.constant dense<0.000000e+00> : vector<64xf32>
    %38 = vector.multi_reduction <add>, %37, %cst_37 [1] : vector<64x128xf32> to vector<64xf32>
    %39 = vector.shape_cast %38 : vector<64xf32> to vector<64x1xf32>
    %cst_38 = arith.constant 1.562500e-02 : f32
    %40 = vector.broadcast %cst_38 : f32 to vector<64x1xf32>
    %41 = arith.mulf %34, %40 : vector<64x1xf32>
    %cst_39 = arith.constant 1.562500e-02 : f32
    %42 = vector.broadcast %cst_39 : f32 to vector<64x1xf32>
    %43 = arith.mulf %39, %42 : vector<64x1xf32>
    %44 = arith.mulf %41, %41 : vector<64x1xf32>
    %45 = arith.subf %43, %44 : vector<64x1xf32>
    %cst_40 = arith.constant 9.99999974E-6 : f32
    %46 = vector.broadcast %cst_40 : f32 to vector<64x1xf32>
    %47 = arith.addf %45, %46 : vector<64x1xf32>
    %48 = math.rsqrt %47 : vector<64x1xf32>
    %49 = vector.broadcast %41 : vector<64x1xf32> to vector<64x128xf32>
    %50 = arith.subf %29, %49 : vector<64x128xf32>
    %51 = vector.broadcast %48 : vector<64x1xf32> to vector<64x128xf32>
    %52 = arith.mulf %50, %51 : vector<64x128xf32>
    %cst_41 = arith.constant 0.000000e+00 : f32
    %53 = vector.broadcast %cst_41 : f32 to vector<64x128xf32>
    %54 = arith.cmpf oge, %52, %53 : vector<64x128xf32>
    %cst_42 = arith.constant 2.000000e-01 : f32
    %55 = vector.broadcast %cst_42 : f32 to vector<64x128xf32>
    %56 = arith.mulf %55, %52 : vector<64x128xf32>
    %57 = arith.select %54, %52, %56 : vector<64x128xi1>, vector<64x128xf32>
    %58 = arith.truncf %57 : vector<64x128xf32> to vector<64x128xbf16>
    %c0_43 = arith.constant 0 : index
    %c0_44 = arith.constant 0 : index
    %c0_45 = arith.constant 0 : index
    %59 = vector.load %arg6[%c0_43, %c0_44, %c0_45] : memref<1x64x128xbf16, #tpu.memory_space<vmem>>, vector<1x64x128xbf16>
    %60 = vector.shape_cast %59 : vector<1x64x128xbf16> to vector<64x128xbf16>
    %61 = vector.shape_cast %58 : vector<64x128xbf16> to vector<1x64x128xbf16>
    tpu.vector_store %arg6[%c0_43, %c0_44, %c0_45], %61 {strides = array<i32>} : memref<1x64x128xbf16, #tpu.memory_space<vmem>>, vector<1x64x128xbf16>,
    return
  }
  func.func @transform_0(%arg0: i32, %arg1: i32) -> (i32, i32, i32) {
    %c0_i32 = arith.constant 0 : i32
    %c0_i32_0 = arith.constant 0 : i32
    %c0_i32_1 = arith.constant 0 : i32
    return %arg0, %c0_i32, %c0_i32_0 : i32, i32, i32
  }
  func.func @transform_1(%arg0: i32, %arg1: i32) -> (i32, i32) {
    %c0_i32 = arith.constant 0 : i32
    %c0_i32_0 = arith.constant 0 : i32
    return %arg1, %c0_i32 : i32, i32
  }
  func.func @transform_2(%arg0: i32, %arg1: i32) -> (i32, i32) {
    %c0_i32 = arith.constant 0 : i32
    %c0_i32_0 = arith.constant 0 : i32
    return %arg1, %c0_i32 : i32, i32
  }
  func.func @transform_3(%arg0: i32, %arg1: i32) -> (i32, i32) {
    %c0_i32 = arith.constant 0 : i32
    %c0_i32_0 = arith.constant 0 : i32
    %c0_i32_1 = arith.constant 0 : i32
    return %c0_i32, %c0_i32_0 : i32, i32
  }
  func.func @transform_4(%arg0: i32, %arg1: i32) -> (i32, i32, i32) {
    %c0_i32 = arith.constant 0 : i32
    %c0_i32_0 = arith.constant 0 : i32
    return %arg0, %arg1, %c0_i32 : i32, i32, i32
  }
}

module attributes {stable_mosaic.version = 11 : i64} {
  func.func @_conv_in_act_kernel(%arg0: i32, %arg1: i32, %arg2: memref<1x256x134xbf16, #tpu.memory_space<vmem>>, %arg3: memref<64x1024xbf16, #tpu.memory_space<vmem>>, %arg4: memref<64x1xf32, #tpu.memory_space<vmem>>, %arg5: memref<1x128xf32, #tpu.memory_space<vmem>>, %arg6: memref<1x64x128xbf16, #tpu.memory_space<vmem>>, %arg7: memref<1024x128xbf16, #tpu.memory_space<vmem>>) attributes {dimension_semantics = [#tpu.dimension_semantics<parallel>, #tpu.dimension_semantics<parallel>], iteration_bounds = array<i64: 2, 1>, scalar_prefetch = 0 : i64, scratch_operands = 1 : i64, tpu.core_type = #tpu.core_type<tc>, window_params = [{transform_indices = @transform_0, window_bounds = array<i64: 1, 256, 134>}, {transform_indices = @transform_1, window_bounds = array<i64: 64, 1024>}, {transform_indices = @transform_2, window_bounds = array<i64: 64, 1>}, {pipeline_mode = #tpu.pipeline_mode<synchronous>, transform_indices = @transform_3, window_bounds = array<i64: 1, 128>}, {transform_indices = @transform_4, window_bounds = array<i64: 1, 64, 128>}]} {
    %c0 = arith.constant 0 : index
    %c0_0 = arith.constant 0 : index
    %0 = vector.load %arg3[%c0, %c0_0] : memref<64x1024xbf16, #tpu.memory_space<vmem>>, vector<64x1024xbf16>
    %c0_1 = arith.constant 0 : index
    %c0_2 = arith.constant 0 : index
    %c0_3 = arith.constant 0 : index
    %1 = vector.load %arg2[%c0_1, %c0_2, %c0_3] : memref<1x256x134xbf16, #tpu.memory_space<vmem>>, vector<1x256x128xbf16>
    %2 = vector.shape_cast %1 : vector<1x256x128xbf16> to vector<256x128xbf16>
    %c0_4 = arith.constant 0 : index
    %c0_5 = arith.constant 0 : index
    %3 = vector.load %arg7[%c0_4, %c0_5] : memref<1024x128xbf16, #tpu.memory_space<vmem>>, vector<256x128xbf16>
    tpu.vector_store %arg7[%c0_4, %c0_5], %2 {strides = array<i32>} : memref<1024x128xbf16, #tpu.memory_space<vmem>>, vector<256x128xbf16>,
    %c0_6 = arith.constant 0 : index
    %c0_7 = arith.constant 0 : index
    %c1 = arith.constant 1 : index
    %4 = vector.load %arg2[%c0_6, %c0_7, %c1] : memref<1x256x134xbf16, #tpu.memory_space<vmem>>, vector<1x256x128xbf16>
    %5 = vector.shape_cast %4 : vector<1x256x128xbf16> to vector<256x128xbf16>
    %c256 = arith.constant 256 : index
    %c0_8 = arith.constant 0 : index
    %6 = vector.load %arg7[%c256, %c0_8] : memref<1024x128xbf16, #tpu.memory_space<vmem>>, vector<256x128xbf16>
    tpu.vector_store %arg7[%c256, %c0_8], %5 {strides = array<i32>} : memref<1024x128xbf16, #tpu.memory_space<vmem>>, vector<256x128xbf16>,
    %c0_9 = arith.constant 0 : index
    %c0_10 = arith.constant 0 : index
    %c5 = arith.constant 5 : index
    %7 = vector.load %arg2[%c0_9, %c0_10, %c5] : memref<1x256x134xbf16, #tpu.memory_space<vmem>>, vector<1x256x128xbf16>
    %8 = vector.shape_cast %7 : vector<1x256x128xbf16> to vector<256x128xbf16>
    %c512 = arith.constant 512 : index
    %c0_11 = arith.constant 0 : index
    %9 = vector.load %arg7[%c512, %c0_11] : memref<1024x128xbf16, #tpu.memory_space<vmem>>, vector<256x128xbf16>
    tpu.vector_store %arg7[%c512, %c0_11], %8 {strides = array<i32>} : memref<1024x128xbf16, #tpu.memory_space<vmem>>, vector<256x128xbf16>,
    %c0_12 = arith.constant 0 : index
    %c0_13 = arith.constant 0 : index
    %c6 = arith.constant 6 : index
    %10 = vector.load %arg2[%c0_12, %c0_13, %c6] : memref<1x256x134xbf16, #tpu.memory_space<vmem>>, vector<1x256x128xbf16>
    %11 = vector.shape_cast %10 : vector<1x256x128xbf16> to vector<256x128xbf16>
    %c768 = arith.constant 768 : index
    %c0_14 = arith.constant 0 : index
    %12 = vector.load %arg7[%c768, %c0_14] : memref<1024x128xbf16, #tpu.memory_space<vmem>>, vector<256x128xbf16>
    tpu.vector_store %arg7[%c768, %c0_14], %11 {strides = array<i32>} : memref<1024x128xbf16, #tpu.memory_space<vmem>>, vector<256x128xbf16>,
    %c0_15 = arith.constant 0 : index
    %c0_16 = arith.constant 0 : index
    %13 = vector.load %arg7[%c0_15, %c0_16] : memref<1024x128xbf16, #tpu.memory_space<vmem>>, vector<1024x128xbf16>
    %cst = arith.constant dense<0.000000e+00> : vector<64x128xf32>
    %14 = tpu.matmul %0, %13, %cst {dimension_numbers = #tpu.dot_dimension_numbers<[1], [0], [0], [1], [0, 0, 1, 1], [], []>} : vector<64x1024xbf16>, vector<1024x128xbf16>, vector<64x128xf32> -> vector<64x128xf32>
    %c0_17 = arith.constant 0 : index
    %c0_18 = arith.constant 0 : index
    %15 = vector.load %arg5[%c0_17, %c0_18] : memref<1x128xf32, #tpu.memory_space<vmem>>, vector<1x128xf32>
    %16 = vector.broadcast %15 : vector<1x128xf32> to vector<64x128xf32>
    %17 = arith.mulf %14, %16 : vector<64x128xf32>
    %cst_19 = arith.constant dense<0.000000e+00> : vector<64xf32>
    %18 = vector.multi_reduction <add>, %17, %cst_19 [1] : vector<64x128xf32> to vector<64xf32>
    %19 = vector.shape_cast %18 : vector<64xf32> to vector<64x1xf32>
    %20 = arith.mulf %14, %14 : vector<64x128xf32>
    %21 = vector.broadcast %15 : vector<1x128xf32> to vector<64x128xf32>
    %22 = arith.mulf %20, %21 : vector<64x128xf32>
    %cst_20 = arith.constant dense<0.000000e+00> : vector<64xf32>
    %23 = vector.multi_reduction <add>, %22, %cst_20 [1] : vector<64x128xf32> to vector<64xf32>
    %24 = vector.shape_cast %23 : vector<64xf32> to vector<64x1xf32>
    %cst_21 = arith.constant 6.250000e-02 : f32
    %25 = vector.broadcast %cst_21 : f32 to vector<64x1xf32>
    %26 = arith.mulf %19, %25 : vector<64x1xf32>
    %cst_22 = arith.constant 6.250000e-02 : f32
    %27 = vector.broadcast %cst_22 : f32 to vector<64x1xf32>
    %28 = arith.mulf %24, %27 : vector<64x1xf32>
    %29 = arith.mulf %26, %26 : vector<64x1xf32>
    %30 = arith.subf %28, %29 : vector<64x1xf32>
    %cst_23 = arith.constant 9.99999974E-6 : f32
    %31 = vector.broadcast %cst_23 : f32 to vector<64x1xf32>
    %32 = arith.addf %30, %31 : vector<64x1xf32>
    %33 = math.rsqrt %32 : vector<64x1xf32>
    %34 = vector.broadcast %26 : vector<64x1xf32> to vector<64x128xf32>
    %35 = arith.subf %14, %34 : vector<64x128xf32>
    %36 = vector.broadcast %33 : vector<64x1xf32> to vector<64x128xf32>
    %37 = arith.mulf %35, %36 : vector<64x128xf32>
    %cst_24 = arith.constant 0.000000e+00 : f32
    %38 = vector.broadcast %cst_24 : f32 to vector<64x128xf32>
    %39 = arith.cmpf oge, %37, %38 : vector<64x128xf32>
    %cst_25 = arith.constant 2.000000e-01 : f32
    %40 = vector.broadcast %cst_25 : f32 to vector<64x128xf32>
    %41 = arith.mulf %40, %37 : vector<64x128xf32>
    %42 = arith.select %39, %37, %41 : vector<64x128xi1>, vector<64x128xf32>
    %43 = arith.truncf %42 : vector<64x128xf32> to vector<64x128xbf16>
    %c0_26 = arith.constant 0 : index
    %c0_27 = arith.constant 0 : index
    %c0_28 = arith.constant 0 : index
    %44 = vector.load %arg6[%c0_26, %c0_27, %c0_28] : memref<1x64x128xbf16, #tpu.memory_space<vmem>>, vector<1x64x128xbf16>
    %45 = vector.shape_cast %44 : vector<1x64x128xbf16> to vector<64x128xbf16>
    %46 = vector.shape_cast %43 : vector<64x128xbf16> to vector<1x64x128xbf16>
    tpu.vector_store %arg6[%c0_26, %c0_27, %c0_28], %46 {strides = array<i32>} : memref<1x64x128xbf16, #tpu.memory_space<vmem>>, vector<1x64x128xbf16>,
    return
  }
  func.func @transform_0(%arg0: i32, %arg1: i32) -> (i32, i32, i32) {
    %c0_i32 = arith.constant 0 : i32
    %c0_i32_0 = arith.constant 0 : i32
    %c0_i32_1 = arith.constant 0 : i32
    return %arg0, %c0_i32, %c0_i32_0 : i32, i32, i32
  }
  func.func @transform_1(%arg0: i32, %arg1: i32) -> (i32, i32) {
    %c0_i32 = arith.constant 0 : i32
    %c0_i32_0 = arith.constant 0 : i32
    return %arg1, %c0_i32 : i32, i32
  }
  func.func @transform_2(%arg0: i32, %arg1: i32) -> (i32, i32) {
    %c0_i32 = arith.constant 0 : i32
    %c0_i32_0 = arith.constant 0 : i32
    return %arg1, %c0_i32 : i32, i32
  }
  func.func @transform_3(%arg0: i32, %arg1: i32) -> (i32, i32) {
    %c0_i32 = arith.constant 0 : i32
    %c0_i32_0 = arith.constant 0 : i32
    %c0_i32_1 = arith.constant 0 : i32
    return %c0_i32, %c0_i32_0 : i32, i32
  }
  func.func @transform_4(%arg0: i32, %arg1: i32) -> (i32, i32, i32) {
    %c0_i32 = arith.constant 0 : i32
    %c0_i32_0 = arith.constant 0 : i32
    return %arg0, %arg1, %c0_i32 : i32, i32, i32
  }
}

module attributes {stable_mosaic.version = 11 : i64} {
  func.func @_conv_in_act_kernel(%arg0: i32, %arg1: i32, %arg2: memref<1x64x149xbf16, #tpu.memory_space<vmem>>, %arg3: memref<1x1024xbf16, #tpu.memory_space<vmem>>, %arg4: memref<1x1xf32, #tpu.memory_space<vmem>>, %arg5: memref<1x128xf32, #tpu.memory_space<vmem>>, %arg6: memref<1x1x128xf32, #tpu.memory_space<vmem>>, %arg7: memref<1024x128xbf16, #tpu.memory_space<vmem>>) attributes {dimension_semantics = [#tpu.dimension_semantics<parallel>, #tpu.dimension_semantics<parallel>], iteration_bounds = array<i64: 2, 1>, scalar_prefetch = 0 : i64, scratch_operands = 1 : i64, tpu.core_type = #tpu.core_type<tc>, window_params = [{transform_indices = @transform_0, window_bounds = array<i64: 1, 64, 149>}, {transform_indices = @transform_1, window_bounds = array<i64: 1, 1024>}, {transform_indices = @transform_2, window_bounds = array<i64: 1, 1>}, {pipeline_mode = #tpu.pipeline_mode<synchronous>, transform_indices = @transform_3, window_bounds = array<i64: 1, 128>}, {transform_indices = @transform_4, window_bounds = array<i64: 1, 1, 128>}]} {
    %c0 = arith.constant 0 : index
    %c0_0 = arith.constant 0 : index
    %0 = vector.load %arg3[%c0, %c0_0] : memref<1x1024xbf16, #tpu.memory_space<vmem>>, vector<1x1024xbf16>
    %c0_1 = arith.constant 0 : index
    %c0_2 = arith.constant 0 : index
    %c0_3 = arith.constant 0 : index
    %1 = vector.load %arg2[%c0_1, %c0_2, %c0_3] : memref<1x64x149xbf16, #tpu.memory_space<vmem>>, vector<1x64x128xbf16>
    %2 = vector.shape_cast %1 : vector<1x64x128xbf16> to vector<64x128xbf16>
    %c0_4 = arith.constant 0 : index
    %c0_5 = arith.constant 0 : index
    %3 = vector.load %arg7[%c0_4, %c0_5] : memref<1024x128xbf16, #tpu.memory_space<vmem>>, vector<64x128xbf16>
    tpu.vector_store %arg7[%c0_4, %c0_5], %2 {strides = array<i32>} : memref<1024x128xbf16, #tpu.memory_space<vmem>>, vector<64x128xbf16>,
    %c0_6 = arith.constant 0 : index
    %c0_7 = arith.constant 0 : index
    %c1 = arith.constant 1 : index
    %4 = vector.load %arg2[%c0_6, %c0_7, %c1] : memref<1x64x149xbf16, #tpu.memory_space<vmem>>, vector<1x64x128xbf16>
    %5 = vector.shape_cast %4 : vector<1x64x128xbf16> to vector<64x128xbf16>
    %c64 = arith.constant 64 : index
    %c0_8 = arith.constant 0 : index
    %6 = vector.load %arg7[%c64, %c0_8] : memref<1024x128xbf16, #tpu.memory_space<vmem>>, vector<64x128xbf16>
    tpu.vector_store %arg7[%c64, %c0_8], %5 {strides = array<i32>} : memref<1024x128xbf16, #tpu.memory_space<vmem>>, vector<64x128xbf16>,
    %c0_9 = arith.constant 0 : index
    %c0_10 = arith.constant 0 : index
    %c2 = arith.constant 2 : index
    %7 = vector.load %arg2[%c0_9, %c0_10, %c2] : memref<1x64x149xbf16, #tpu.memory_space<vmem>>, vector<1x64x128xbf16>
    %8 = vector.shape_cast %7 : vector<1x64x128xbf16> to vector<64x128xbf16>
    %c128 = arith.constant 128 : index
    %c0_11 = arith.constant 0 : index
    %9 = vector.load %arg7[%c128, %c0_11] : memref<1024x128xbf16, #tpu.memory_space<vmem>>, vector<64x128xbf16>
    tpu.vector_store %arg7[%c128, %c0_11], %8 {strides = array<i32>} : memref<1024x128xbf16, #tpu.memory_space<vmem>>, vector<64x128xbf16>,
    %c0_12 = arith.constant 0 : index
    %c0_13 = arith.constant 0 : index
    %c3 = arith.constant 3 : index
    %10 = vector.load %arg2[%c0_12, %c0_13, %c3] : memref<1x64x149xbf16, #tpu.memory_space<vmem>>, vector<1x64x128xbf16>
    %11 = vector.shape_cast %10 : vector<1x64x128xbf16> to vector<64x128xbf16>
    %c192 = arith.constant 192 : index
    %c0_14 = arith.constant 0 : index
    %12 = vector.load %arg7[%c192, %c0_14] : memref<1024x128xbf16, #tpu.memory_space<vmem>>, vector<64x128xbf16>
    tpu.vector_store %arg7[%c192, %c0_14], %11 {strides = array<i32>} : memref<1024x128xbf16, #tpu.memory_space<vmem>>, vector<64x128xbf16>,
    %c0_15 = arith.constant 0 : index
    %c0_16 = arith.constant 0 : index
    %c6 = arith.constant 6 : index
    %13 = vector.load %arg2[%c0_15, %c0_16, %c6] : memref<1x64x149xbf16, #tpu.memory_space<vmem>>, vector<1x64x128xbf16>
    %14 = vector.shape_cast %13 : vector<1x64x128xbf16> to vector<64x128xbf16>
    %c256 = arith.constant 256 : index
    %c0_17 = arith.constant 0 : index
    %15 = vector.load %arg7[%c256, %c0_17] : memref<1024x128xbf16, #tpu.memory_space<vmem>>, vector<64x128xbf16>
    tpu.vector_store %arg7[%c256, %c0_17], %14 {strides = array<i32>} : memref<1024x128xbf16, #tpu.memory_space<vmem>>, vector<64x128xbf16>,
    %c0_18 = arith.constant 0 : index
    %c0_19 = arith.constant 0 : index
    %c7 = arith.constant 7 : index
    %16 = vector.load %arg2[%c0_18, %c0_19, %c7] : memref<1x64x149xbf16, #tpu.memory_space<vmem>>, vector<1x64x128xbf16>
    %17 = vector.shape_cast %16 : vector<1x64x128xbf16> to vector<64x128xbf16>
    %c320 = arith.constant 320 : index
    %c0_20 = arith.constant 0 : index
    %18 = vector.load %arg7[%c320, %c0_20] : memref<1024x128xbf16, #tpu.memory_space<vmem>>, vector<64x128xbf16>
    tpu.vector_store %arg7[%c320, %c0_20], %17 {strides = array<i32>} : memref<1024x128xbf16, #tpu.memory_space<vmem>>, vector<64x128xbf16>,
    %c0_21 = arith.constant 0 : index
    %c0_22 = arith.constant 0 : index
    %c8 = arith.constant 8 : index
    %19 = vector.load %arg2[%c0_21, %c0_22, %c8] : memref<1x64x149xbf16, #tpu.memory_space<vmem>>, vector<1x64x128xbf16>
    %20 = vector.shape_cast %19 : vector<1x64x128xbf16> to vector<64x128xbf16>
    %c384 = arith.constant 384 : index
    %c0_23 = arith.constant 0 : index
    %21 = vector.load %arg7[%c384, %c0_23] : memref<1024x128xbf16, #tpu.memory_space<vmem>>, vector<64x128xbf16>
    tpu.vector_store %arg7[%c384, %c0_23], %20 {strides = array<i32>} : memref<1024x128xbf16, #tpu.memory_space<vmem>>, vector<64x128xbf16>,
    %c0_24 = arith.constant 0 : index
    %c0_25 = arith.constant 0 : index
    %c9 = arith.constant 9 : index
    %22 = vector.load %arg2[%c0_24, %c0_25, %c9] : memref<1x64x149xbf16, #tpu.memory_space<vmem>>, vector<1x64x128xbf16>
    %23 = vector.shape_cast %22 : vector<1x64x128xbf16> to vector<64x128xbf16>
    %c448 = arith.constant 448 : index
    %c0_26 = arith.constant 0 : index
    %24 = vector.load %arg7[%c448, %c0_26] : memref<1024x128xbf16, #tpu.memory_space<vmem>>, vector<64x128xbf16>
    tpu.vector_store %arg7[%c448, %c0_26], %23 {strides = array<i32>} : memref<1024x128xbf16, #tpu.memory_space<vmem>>, vector<64x128xbf16>,
    %c0_27 = arith.constant 0 : index
    %c0_28 = arith.constant 0 : index
    %c12 = arith.constant 12 : index
    %25 = vector.load %arg2[%c0_27, %c0_28, %c12] : memref<1x64x149xbf16, #tpu.memory_space<vmem>>, vector<1x64x128xbf16>
    %26 = vector.shape_cast %25 : vector<1x64x128xbf16> to vector<64x128xbf16>
    %c512 = arith.constant 512 : index
    %c0_29 = arith.constant 0 : index
    %27 = vector.load %arg7[%c512, %c0_29] : memref<1024x128xbf16, #tpu.memory_space<vmem>>, vector<64x128xbf16>
    tpu.vector_store %arg7[%c512, %c0_29], %26 {strides = array<i32>} : memref<1024x128xbf16, #tpu.memory_space<vmem>>, vector<64x128xbf16>,
    %c0_30 = arith.constant 0 : index
    %c0_31 = arith.constant 0 : index
    %c13 = arith.constant 13 : index
    %28 = vector.load %arg2[%c0_30, %c0_31, %c13] : memref<1x64x149xbf16, #tpu.memory_space<vmem>>, vector<1x64x128xbf16>
    %29 = vector.shape_cast %28 : vector<1x64x128xbf16> to vector<64x128xbf16>
    %c576 = arith.constant 576 : index
    %c0_32 = arith.constant 0 : index
    %30 = vector.load %arg7[%c576, %c0_32] : memref<1024x128xbf16, #tpu.memory_space<vmem>>, vector<64x128xbf16>
    tpu.vector_store %arg7[%c576, %c0_32], %29 {strides = array<i32>} : memref<1024x128xbf16, #tpu.memory_space<vmem>>, vector<64x128xbf16>,
    %c0_33 = arith.constant 0 : index
    %c0_34 = arith.constant 0 : index
    %c14 = arith.constant 14 : index
    %31 = vector.load %arg2[%c0_33, %c0_34, %c14] : memref<1x64x149xbf16, #tpu.memory_space<vmem>>, vector<1x64x128xbf16>
    %32 = vector.shape_cast %31 : vector<1x64x128xbf16> to vector<64x128xbf16>
    %c640 = arith.constant 640 : index
    %c0_35 = arith.constant 0 : index
    %33 = vector.load %arg7[%c640, %c0_35] : memref<1024x128xbf16, #tpu.memory_space<vmem>>, vector<64x128xbf16>
    tpu.vector_store %arg7[%c640, %c0_35], %32 {strides = array<i32>} : memref<1024x128xbf16, #tpu.memory_space<vmem>>, vector<64x128xbf16>,
    %c0_36 = arith.constant 0 : index
    %c0_37 = arith.constant 0 : index
    %c15 = arith.constant 15 : index
    %34 = vector.load %arg2[%c0_36, %c0_37, %c15] : memref<1x64x149xbf16, #tpu.memory_space<vmem>>, vector<1x64x128xbf16>
    %35 = vector.shape_cast %34 : vector<1x64x128xbf16> to vector<64x128xbf16>
    %c704 = arith.constant 704 : index
    %c0_38 = arith.constant 0 : index
    %36 = vector.load %arg7[%c704, %c0_38] : memref<1024x128xbf16, #tpu.memory_space<vmem>>, vector<64x128xbf16>
    tpu.vector_store %arg7[%c704, %c0_38], %35 {strides = array<i32>} : memref<1024x128xbf16, #tpu.memory_space<vmem>>, vector<64x128xbf16>,
    %c0_39 = arith.constant 0 : index
    %c0_40 = arith.constant 0 : index
    %c18 = arith.constant 18 : index
    %37 = vector.load %arg2[%c0_39, %c0_40, %c18] : memref<1x64x149xbf16, #tpu.memory_space<vmem>>, vector<1x64x128xbf16>
    %38 = vector.shape_cast %37 : vector<1x64x128xbf16> to vector<64x128xbf16>
    %c768 = arith.constant 768 : index
    %c0_41 = arith.constant 0 : index
    %39 = vector.load %arg7[%c768, %c0_41] : memref<1024x128xbf16, #tpu.memory_space<vmem>>, vector<64x128xbf16>
    tpu.vector_store %arg7[%c768, %c0_41], %38 {strides = array<i32>} : memref<1024x128xbf16, #tpu.memory_space<vmem>>, vector<64x128xbf16>,
    %c0_42 = arith.constant 0 : index
    %c0_43 = arith.constant 0 : index
    %c19 = arith.constant 19 : index
    %40 = vector.load %arg2[%c0_42, %c0_43, %c19] : memref<1x64x149xbf16, #tpu.memory_space<vmem>>, vector<1x64x128xbf16>
    %41 = vector.shape_cast %40 : vector<1x64x128xbf16> to vector<64x128xbf16>
    %c832 = arith.constant 832 : index
    %c0_44 = arith.constant 0 : index
    %42 = vector.load %arg7[%c832, %c0_44] : memref<1024x128xbf16, #tpu.memory_space<vmem>>, vector<64x128xbf16>
    tpu.vector_store %arg7[%c832, %c0_44], %41 {strides = array<i32>} : memref<1024x128xbf16, #tpu.memory_space<vmem>>, vector<64x128xbf16>,
    %c0_45 = arith.constant 0 : index
    %c0_46 = arith.constant 0 : index
    %c20 = arith.constant 20 : index
    %43 = vector.load %arg2[%c0_45, %c0_46, %c20] : memref<1x64x149xbf16, #tpu.memory_space<vmem>>, vector<1x64x128xbf16>
    %44 = vector.shape_cast %43 : vector<1x64x128xbf16> to vector<64x128xbf16>
    %c896 = arith.constant 896 : index
    %c0_47 = arith.constant 0 : index
    %45 = vector.load %arg7[%c896, %c0_47] : memref<1024x128xbf16, #tpu.memory_space<vmem>>, vector<64x128xbf16>
    tpu.vector_store %arg7[%c896, %c0_47], %44 {strides = array<i32>} : memref<1024x128xbf16, #tpu.memory_space<vmem>>, vector<64x128xbf16>,
    %c0_48 = arith.constant 0 : index
    %c0_49 = arith.constant 0 : index
    %c21 = arith.constant 21 : index
    %46 = vector.load %arg2[%c0_48, %c0_49, %c21] : memref<1x64x149xbf16, #tpu.memory_space<vmem>>, vector<1x64x128xbf16>
    %47 = vector.shape_cast %46 : vector<1x64x128xbf16> to vector<64x128xbf16>
    %c960 = arith.constant 960 : index
    %c0_50 = arith.constant 0 : index
    %48 = vector.load %arg7[%c960, %c0_50] : memref<1024x128xbf16, #tpu.memory_space<vmem>>, vector<64x128xbf16>
    tpu.vector_store %arg7[%c960, %c0_50], %47 {strides = array<i32>} : memref<1024x128xbf16, #tpu.memory_space<vmem>>, vector<64x128xbf16>,
    %c0_51 = arith.constant 0 : index
    %c0_52 = arith.constant 0 : index
    %49 = vector.load %arg7[%c0_51, %c0_52] : memref<1024x128xbf16, #tpu.memory_space<vmem>>, vector<1024x128xbf16>
    %cst = arith.constant dense<0.000000e+00> : vector<1x128xf32>
    %50 = tpu.matmul %0, %49, %cst {dimension_numbers = #tpu.dot_dimension_numbers<[1], [0], [0], [1], [0, 0, 1, 1], [], []>} : vector<1x1024xbf16>, vector<1024x128xbf16>, vector<1x128xf32> -> vector<1x128xf32>
    %c0_53 = arith.constant 0 : index
    %c0_54 = arith.constant 0 : index
    %51 = vector.load %arg4[%c0_53, %c0_54] : memref<1x1xf32, #tpu.memory_space<vmem>>, vector<1x1xf32>
    %52 = vector.broadcast %51 : vector<1x1xf32> to vector<1x128xf32>
    %53 = arith.addf %50, %52 : vector<1x128xf32>
    %54 = arith.negf %53 : vector<1x128xf32>
    %55 = math.exp %54 : vector<1x128xf32>
    %cst_55 = arith.constant 1.000000e+00 : f32
    %56 = vector.broadcast %cst_55 : f32 to vector<1x128xf32>
    %57 = arith.addf %56, %55 : vector<1x128xf32>
    %58 = arith.divf %56, %57 : vector<1x128xf32>
    %c0_56 = arith.constant 0 : index
    %c0_57 = arith.constant 0 : index
    %c0_58 = arith.constant 0 : index
    %59 = vector.load %arg6[%c0_56, %c0_57, %c0_58] : memref<1x1x128xf32, #tpu.memory_space<vmem>>, vector<1x1x128xf32>
    %60 = vector.shape_cast %59 : vector<1x1x128xf32> to vector<1x128xf32>
    %61 = vector.shape_cast %58 : vector<1x128xf32> to vector<1x1x128xf32>
    tpu.vector_store %arg6[%c0_56, %c0_57, %c0_58], %61 {strides = array<i32>} : memref<1x1x128xf32, #tpu.memory_space<vmem>>, vector<1x1x128xf32>,
    return
  }
  func.func @transform_0(%arg0: i32, %arg1: i32) -> (i32, i32, i32) {
    %c0_i32 = arith.constant 0 : i32
    %c0_i32_0 = arith.constant 0 : i32
    %c0_i32_1 = arith.constant 0 : i32
    return %arg0, %c0_i32, %c0_i32_0 : i32, i32, i32
  }
  func.func @transform_1(%arg0: i32, %arg1: i32) -> (i32, i32) {
    %c0_i32 = arith.constant 0 : i32
    %c0_i32_0 = arith.constant 0 : i32
    return %arg1, %c0_i32 : i32, i32
  }
  func.func @transform_2(%arg0: i32, %arg1: i32) -> (i32, i32) {
    %c0_i32 = arith.constant 0 : i32
    %c0_i32_0 = arith.constant 0 : i32
    return %arg1, %c0_i32 : i32, i32
  }
  func.func @transform_3(%arg0: i32, %arg1: i32) -> (i32, i32) {
    %c0_i32 = arith.constant 0 : i32
    %c0_i32_0 = arith.constant 0 : i32
    %c0_i32_1 = arith.constant 0 : i32
    return %c0_i32, %c0_i32_0 : i32, i32
  }
  func.func @transform_4(%arg0: i32, %arg1: i32) -> (i32, i32, i32) {
    %c0_i32 = arith.constant 0 : i32
    %c0_i32_0 = arith.constant 0 : i32
    return %arg0, %arg1, %c0_i32 : i32, i32, i32
  }
}

</mosaic_0001>

<llo_original>
// kernel: discriminator_forward.6
$region0: #{discriminator_forward.6}
  #allocation0 [shape = 'u32[]', space=smem, size = 0x4, offset = 0x4, fixed_abs, tag = 'smem constant byte address 0x4 - core index']
  #allocation1 [shape = 'u32[144,128]{1,0:T(1,128)}', space=vmem, size = 0x12000, scoped, tag = 'internal scratch']
  #allocation2 [shape = 'bf16[64,128]{1,0:T(16,128)(2,1)}', space=vmem, size = 0x4000, scoped, tag = 'scratch operand']
  %s0 = inlined_call_operand.vmem [shape: bf16[2,16,138], index: 0, kind: input, shape index: {}]
  %s1 = inlined_call_operand.vmem [shape: bf16[8,64], index: 1, kind: input, shape index: {}]
  %s2 = inlined_call_operand.vmem [shape: f32[8,1], index: 2, kind: input, shape index: {}]
  %s3 = inlined_call_operand.vmem [shape: f32[1,128], index: 3, kind: input, shape index: {}]
  %s4 = inlined_call_operand.vmem [shape: bf16[2,8,128], index: 4, kind: output, shape index: {}]
  %s5 = sld [smem:[#allocation0]]
  $region49: #{discriminator_forward.6} parent=0
    _
  %s7 = ssub.s32 1, %s5
  %s8 = scalar_select 0, %s7, %s5
  loop: start=0, step=1, limit=4
  $region2: #{discriminator_forward.6} parent=0 // loop_pre_header
    _
  $region3: #{discriminator_forward.6} parent=0 // loop_header
    %s10 = sphi 0, %s14
    %p11 = scmp.ge.s32.totalorder %s10, 4
    %s17 = sphi 0, %s29
    %s18 = sphi 0, %s25
    %s19 = sphi 0, %s17
    %s20 = sphi 0, %s18
    %s21 = sphi 0, %s19
    %s22 = sphi 0, %s20
    %s32 = sphi 0, %s34
    %s35 = sphi 0, %s32
    %s36 = sphi 0, %s35
    %s52 = sphi 0, %s36
    %s58 = sphi 0, %s60
    %s61 = sphi 0, %s58
    %s62 = sphi 0, %s61
    %s78 = sphi 0, %s62
    %s84 = sphi 0, %s86
    %s87 = sphi 0, %s84
    %s88 = sphi 0, %s87
    %s104 = sphi 0, %s88
    %s108 = sphi 0, %s108
    %s110 = sphi 0, %s108
    %s111 = sphi 0, %s110
    %s125 = sphi 0, %s111
    %s133 = sphi 0, %s135
    %s136 = sphi 0, %s133
    %s137 = sphi 0, %s136
    %s153 = sphi 0, %s137
  $region4: #{discriminator_forward.6} parent=0 // loop_header_branch
    %13 = sbr.rel (%p11) target = $region8
  $region5: #{discriminator_forward.6} parent=0 // loop_body
    %s15 = ssub.s32 %s10, 1
    %s16 = ssub.s32 %s10, 2
    %s23 = sadd.s32 1, %s18
    %p24 = scmp.ge.s32.totalorder %s23, 1
    %s25 = scalar_select %p24, 0, %s23
    %s26 = sadd.s32 1, %s17
    %s27 = scalar_select %p24, %s26, %s17
    %p28 = scmp.ge.s32.totalorder %s27, 2
    %s29 = scalar_select %p28, 0, %s27
    %s30 = ssub.s32 %s17, %s29
    %p31 = scmp.eq.s32.totalorder %s30, 0
    %s33 = sadd.s32 %s32, 1
    %s34 = scalar_select %p31, %s32, %s33
    %p37 = pneg %p31
    %p38 = scmp.eq.s32.totalorder %s10, 1
    %p39 = por %p37, %p38
    %p40 = scmp.ne.s32.totalorder %s32, %s35
    %p41 = scmp.eq.s32.totalorder %s10, 0
    %p42 = por %p40, %p41
    %p43 = scmp.ne.s32.totalorder %s32, %s35
    %p44 = scmp.eq.s32.totalorder %s15, 1
    %p45 = por %p43, %p44
    %p46 = scmp.ne.s32.totalorder %s35, %s36
    %p47 = scmp.eq.s32.totalorder %s15, 0
    %p48 = por %p46, %p47
    %p49 = scmp.ne.s32.totalorder %s35, %s36
    %p50 = scmp.eq.s32.totalorder %s16, 1
    %p51 = por %p49, %p50
    %p53 = scmp.ne.s32.totalorder %s36, %s52
    %p54 = scmp.eq.s32.totalorder %s16, 0
    %p55 = por %p53, %p54
    %s56 = ssub.s32 %s18, %s25
    %p57 = scmp.eq.s32.totalorder %s56, 0
    %s59 = sadd.s32 %s58, 1
    %s60 = scalar_select %p57, %s58, %s59
    %p63 = pneg %p57
    %p64 = scmp.eq.s32.totalorder %s10, 1
    %p65 = por %p63, %p64
    %p66 = scmp.ne.s32.totalorder %s58, %s61
    %p67 = scmp.eq.s32.totalorder %s10, 0
    %p68 = por %p66, %p67
    %p69 = scmp.ne.s32.totalorder %s58, %s61
    %p70 = scmp.eq.s32.totalorder %s15, 1
    %p71 = por %p69, %p70
    %p72 = scmp.ne.s32.totalorder %s61, %s62
    %p73 = scmp.eq.s32.totalorder %s15, 0
    %p74 = por %p72, %p73
    %p75 = scmp.ne.s32.totalorder %s61, %s62
    %p76 = scmp.eq.s32.totalorder %s16, 1
    %p77 = por %p75, %p76
    %p79 = scmp.ne.s32.totalorder %s62, %s78
    %p80 = scmp.eq.s32.totalorder %s16, 0
    %p81 = por %p79, %p80
    %s82 = ssub.s32 %s18, %s25
    %p83 = scmp.eq.s32.totalorder %s82, 0
    %s85 = sadd.s32 %s84, 1
    %s86 = scalar_select %p83, %s84, %s85
    %p89 = pneg %p83
    %p90 = scmp.eq.s32.totalorder %s10, 1
    %p91 = por %p89, %p90
    %p92 = scmp.ne.s32.totalorder %s84, %s87
    %p93 = scmp.eq.s32.totalorder %s10, 0
    %p94 = por %p92, %p93
    %p95 = scmp.ne.s32.totalorder %s84, %s87
    %p96 = scmp.eq.s32.totalorder %s15, 1
    %p97 = por %p95, %p96
    %p98 = scmp.ne.s32.totalorder %s87, %s88
    %p99 = scmp.eq.s32.totalorder %s15, 0
    %p100 = por %p98, %p99
    %p101 = scmp.ne.s32.totalorder %s87, %s88
    %p102 = scmp.eq.s32.totalorder %s16, 1
    %p103 = por %p101, %p102
    %p105 = scmp.ne.s32.totalorder %s88, %s104
    %p106 = scmp.eq.s32.totalorder %s16, 0
    %p107 = por %p105, %p106
    %s109 = sadd.s32 %s108, 1
    %p112 = scmp.eq.s32.totalorder %s10, 1
    %p113 = scmp.ne.s32.totalorder %s108, %s110
    %p114 = scmp.eq.s32.totalorder %s10, 0
    %p115 = por %p113, %p114
    %p116 = scmp.ne.s32.totalorder %s108, %s110
    %p117 = scmp.eq.s32.totalorder %s15, 1
    %p118 = por %p116, %p117
    %p119 = scmp.ne.s32.totalorder %s110, %s111
    %p120 = scmp.eq.s32.totalorder %s15, 0
    %p121 = por %p119, %p120
    %p122 = scmp.ne.s32.totalorder %s110, %s111
    %p123 = scmp.eq.s32.totalorder %s16, 1
    %p124 = por %p122, %p123
    %p126 = scmp.ne.s32.totalorder %s111, %s125
    %p127 = scmp.eq.s32.totalorder %s16, 0
    %p128 = por %p126, %p127
    %s129 = ssub.s32 %s17, %s29
    %s130 = ssub.s32 %s18, %s25
    %s131 = sor.u32 %s129, %s130
    %p132 = scmp.eq.s32.totalorder %s131, 0
    %s134 = sadd.s32 %s133, 1
    %s135 = scalar_select %p132, %s133, %s134
    %p138 = pneg %p132
    %p139 = scmp.eq.s32.totalorder %s10, 1
    %p140 = por %p138, %p139
    %p141 = scmp.ne.s32.totalorder %s133, %s136
    %p142 = scmp.eq.s32.totalorder %s10, 0
    %p143 = por %p141, %p142
    %p144 = scmp.ne.s32.totalorder %s133, %s136
    %p145 = scmp.eq.s32.totalorder %s15, 1
    %p146 = por %p144, %p145
    %p147 = scmp.ne.s32.totalorder %s136, %s137
    %p148 = scmp.eq.s32.totalorder %s15, 0
    %p149 = por %p147, %p148
    %p150 = scmp.ne.s32.totalorder %s136, %s137
    %p151 = scmp.eq.s32.totalorder %s16, 1
    %p152 = por %p150, %p151
    %p154 = scmp.ne.s32.totalorder %s137, %s153
    %p155 = scmp.eq.s32.totalorder %s16, 0
    %p156 = por %p154, %p155
    %p157 = scmp.le.s32.totalorder 1, %s10
    %p158 = scmp.lt.s32.totalorder %s10, 3
    %p159 = pnand %p157, %p158
    %p160 = pneg %p159
    // Predicated region
    $region9: #{discriminator_forward.6} parent=5 // pred_check
      _
    $region10: #{discriminator_forward.6} parent=5 // pred_check_branch
      %162 = sbr.rel (%p159) target = $region12
    $region11: #{discriminator_forward.6} parent=5 // pred_region
      %s163 = ssub.s32 %s10, 1
      // Predicated region
      $region13: #{discriminator_forward.6} parent=11 // pred_check
        %p164 = pneg %p74
      $region14: #{discriminator_forward.6} parent=11 // pred_check_branch
        %166 = sbr.rel (%p164) target = $region16
      $region15: #{discriminator_forward.6} parent=11 // pred_region
        %p167 = scmp.lt.s32.totalorder %s20, 0
        %s168 = scalar_select %p167, %s20, 0
        %s169 = smul.addr %s168, 4
        %s170 = scalar_lea.vmem %s1, %s169
      $region16: #{discriminator_forward.6} parent=11 // pred_fallthru
        _
      // Predicated region
      $region17: #{discriminator_forward.6} parent=11 // pred_check
        %p171 = pneg %p100
      $region18: #{discriminator_forward.6} parent=11 // pred_check_branch
        %173 = sbr.rel (%p171) target = $region20
      $region19: #{discriminator_forward.6} parent=11 // pred_region
        %p174 = scmp.lt.s32.totalorder %s20, 0
        %s175 = scalar_select %p174, %s20, 0
        %s176 = smul.addr %s175, 8
        %s177 = scalar_lea.vmem %s2, %s176
      $region20: #{discriminator_forward.6} parent=11 // pred_fallthru
        _
      // Predicated region
      $region21: #{discriminator_forward.6} parent=11 // pred_check
        %p178 = pneg %p121
      $region22: #{discriminator_forward.6} parent=11 // pred_check_branch
        %180 = sbr.rel (%p178) target = $region24
      $region23: #{discriminator_forward.6} parent=11 // pred_region
        _
      $region24: #{discriminator_forward.6} parent=11 // pred_fallthru
        _
    $region12: #{discriminator_forward.6} parent=5 // pred_fallthru
      _
    %p181 = scmp.lt.s32.totalorder %s10, 2
    // Predicated region
    $region25: #{discriminator_forward.6} parent=5 // pred_check
      %p182 = pneg %p181
    $region26: #{discriminator_forward.6} parent=5 // pred_check_branch
      %184 = sbr.rel (%p182) target = $region28
    $region27: #{discriminator_forward.6} parent=5 // pred_region
      // Predicated region
      $region29: #{discriminator_forward.6} parent=27 // pred_check
        %p185 = pneg %p42
      $region30: #{discriminator_forward.6} parent=27 // pred_check_branch
        %187 = sbr.rel (%p185) target = $region32
      $region31: #{discriminator_forward.6} parent=27 // pred_region
        %p188 = scmp.lt.s32.totalorder %s17, 1
        %s189 = scalar_select %p188, %s17, 1
        %s190 = smul.addr %s189, 4
        %s191 = smul.addr %s190, 4
        %s192 = scalar_lea.vmem %s0, %s191
      $region32: #{discriminator_forward.6} parent=27 // pred_fallthru
        _
    $region28: #{discriminator_forward.6} parent=5 // pred_fallthru
      _
    %p193 = scmp.le.s32.totalorder 1, %s10
    %p194 = scmp.lt.s32.totalorder %s10, 3
    %p195 = pnand %p193, %p194
    %p196 = pneg %p195
    // Predicated region
    $region33: #{discriminator_forward.6} parent=5 // pred_check
      _
    $region34: #{discriminator_forward.6} parent=5 // pred_check_branch
      %198 = sbr.rel (%p195) target = $region36
    $region35: #{discriminator_forward.6} parent=5 // pred_region
      %s199 = ssub.s32 %s10, 1
      %p200 = scmp.lt.s32.totalorder %s19, 1
      %s201 = scalar_select %p200, %s19, 1
      %s202 = smul.addr %s201, 4
      %s203 = smul.addr %s202, 4
      %s204 = scalar_lea.vmem %s0, %s203
      %p205 = pneg %p48
      %p206 = pneg %p45
      %p207 = scmp.lt.s32.totalorder %s20, 0
      %s208 = scalar_select %p207, %s20, 0
      %s209 = smul.addr %s208, 4
      %s210 = scalar_lea.vmem %s1, %s209
      %p211 = pneg %p74
      %p212 = pneg %p71
      %p213 = scmp.lt.s32.totalorder %s20, 0
      %s214 = scalar_select %p213, %s20, 0
      %s215 = smul.addr %s214, 8
      %s216 = scalar_lea.vmem %s2, %s215
      %p217 = pneg %p100
      %p218 = pneg %p97
      %p219 = pneg %p121
      %p220 = pneg %p118
      %p221 = pneg %p149
      %p222 = pneg %p146
      %p223 = scmp.lt.s32.totalorder %s19, 1
      %s224 = scalar_select %p223, %s19, 1
      %p225 = scmp.lt.s32.totalorder %s20, 0
      %s226 = scalar_select %p225, %s20, 0
      %s227 = sadd.s32 %s226, %s224
      %s228 = smul.addr %s227, 4
      %s229 = scalar_lea.vmem %s4, %s228
      %p230 = scmp.lt.s32.totalorder %s19, 1
      %s231 = scalar_select %p230, %s19, 1
      %s232 = smul.addr %s231, 4
      %s233 = smul.addr %s232, 4
      %s234 = scalar_lea.vmem %s0, %s233
      %p235 = scmp.lt.s32.totalorder %s20, 0
      %s236 = scalar_select %p235, %s20, 0
      %s237 = smul.addr %s236, 4
      %s238 = scalar_lea.vmem %s1, %s237
      %p239 = scmp.lt.s32.totalorder %s20, 0
      %s240 = scalar_select %p239, %s20, 0
      %s241 = smul.addr %s240, 8
      %s242 = scalar_lea.vmem %s2, %s241
      %p243 = scmp.lt.s32.totalorder %s19, 1
      %s244 = scalar_select %p243, %s19, 1
      %p245 = scmp.lt.s32.totalorder %s20, 0
      %s246 = scalar_select %p245, %s20, 0
      %s247 = sadd.s32 %s246, %s244
      %s248 = smul.addr %s247, 4
      %s249 = scalar_lea.vmem %s4, %s248
      %v251 = vld [vmem:[%s238] sm:$0xf]
      %v252 = vld [vmem:[%s234] sm:$0xf]
      %v253 = vld [vmem:[%s234 + $0x8] sm:$0xf]
      %v256 = vunpack.c.l.b16 %v252
      %v257 = vunpack.c.l.b16 %v253
      %v258 = vpack.c.b16 %v257, %v256
      %260 = vst [vmem:[#allocation2] sm:$0xff] %v258
      %v261 = vld [vmem:[%s234] sm:$0xff]
      %v262 = vld [vmem:[%s234 + $0x8] sm:$0xff]
      %v265 = vunpack.c.l.b16 %v261
      %v266 = vunpack.c.h.b16 %v261
      %v267 = vunpack.c.l.b16 %v262
      %v268 = vunpack.c.h.b16 %v262
      %v269 = vpack.c.b16 %v267, %v265
      %v270 = vpack.c.b16 %v268, %v266
      %271 = vrot.lane.b32.xlu0 %v269, 127
      %v272 = vpop.permute.xlu0 %271
      %273 = vrot.lane.b32.xlu0 %v270, 127
      %v274 = vpop.permute.xlu0 %273
      %vm275 = vcmask 1039360
      %v276 = vsel %vm275, %v272, %v274
      %278 = vst [vmem:[#allocation2 + $0x8] sm:$0xff] %v276
      %v279 = vld [vmem:[%s234] sm:$0xff]
      %v280 = vld [vmem:[%s234 + $0x8] sm:$0xff]
      %v283 = vunpack.c.l.b16 %v279
      %v284 = vunpack.c.h.b16 %v279
      %v285 = vunpack.c.l.b16 %v280
      %v286 = vunpack.c.h.b16 %v280
      %v287 = vpack.c.b16 %v285, %v283
      %v288 = vpack.c.b16 %v286, %v284
      %289 = vrot.lane.b32.xlu0 %v287, 119
      %v290 = vpop.permute.xlu0 %289
      %291 = vrot.lane.b32.xlu0 %v288, 119
      %v292 = vpop.permute.xlu0 %291
      %vm293 = vcmask 973824
      %v294 = vsel %vm293, %v290, %v292
      %296 = vst [vmem:[#allocation2 + $0x10] sm:$0xff] %v294
      %v297 = vld [vmem:[%s234] sm:$0xff]
      %v298 = vld [vmem:[%s234 + $0x8] sm:$0xff]
      %v301 = vunpack.c.l.b16 %v297
      %v302 = vunpack.c.h.b16 %v297
      %v303 = vunpack.c.l.b16 %v298
      %v304 = vunpack.c.h.b16 %v298
      %v305 = vpack.c.b16 %v303, %v301
      %v306 = vpack.c.b16 %v304, %v302
      %307 = vrot.lane.b32.xlu0 %v305, 118
      %v308 = vpop.permute.xlu0 %307
      %309 = vrot.lane.b32.xlu0 %v306, 118
      %v310 = vpop.permute.xlu0 %309
      %vm311 = vcmask 965632
      %v312 = vsel %vm311, %v308, %v310
      %314 = vst [vmem:[#allocation2 + $0x18] sm:$0xff] %v312
      %v315 = vld [vmem:[#allocation2] sm:$0xff]
      %v316 = vld [vmem:[#allocation2 + $0x8] sm:$0xff]
      %v317 = vld [vmem:[#allocation2 + $0x10] sm:$0xff]
      %v318 = vld [vmem:[#allocation2 + $0x18] sm:$0xff]
      %v319 = vld [vmem:[%s242] sm:$0xff]
      %321 = vset.pattern.permute.xlu0 0
      %322 = vperm.xlu0 %321, %v319
      %v323 = vpop.permute.xlu0 %322
      %vm325 = vcmask 523264
      %v327 = vsel %vm325, %v251, 0
      %329 = vmatprep.subr.bf16.mxu0 0
      %330 = vmatpush1.bf16.msra.mxu0 %v315
      %331 = vmatprep.subr.bf16.mxu0 0
      %332 = vmatpush1.bf16.msra.mxu0 %v316
      %333 = vmatprep.subr.bf16.mxu0 0
      %334 = vmatpush1.bf16.msra.mxu0 %v317
      %335 = vmatprep.subr.bf16.mxu0 0
      %336 = vmatpush1.bf16.msra.mxu0 %v318
      %337 = vmatprep.subr.bf16.mxu0 0
      %338 = vmatpush1.bf16.msra.mxu0 0
      %339 = vmatprep.subr.bf16.mxu0 0
      %340 = vmatpush1.bf16.msra.mxu0 0
      %341 = vmatprep.subr.bf16.mxu0 0
      %342 = vmatpush1.bf16.msra.mxu0 0
      %343 = vmatprep.subr.bf16.mxu0 0
      %344 = vmatpush1.bf16.msra.mxu0 0
      %345 = vmatprep.subr.bf16.mxu0 0
      %346 = vmatpush1.bf16.msra.mxu0 0
      %347 = vmatprep.subr.bf16.mxu0 0
      %348 = vmatpush1.bf16.msra.mxu0 0
      %349 = vmatprep.subr.bf16.mxu0 0
      %350 = vmatpush1.bf16.msra.mxu0 0
      %351 = vmatprep.subr.bf16.mxu0 0
      %352 = vmatpush1.bf16.msra.mxu0 0
      %353 = vmatprep.subr.bf16.mxu0 0
      %354 = vmatpush1.bf16.msra.mxu0 0
      %355 = vmatprep.subr.bf16.mxu0 0
      %356 = vmatpush1.bf16.msra.mxu0 0
      %357 = vmatprep.subr.bf16.mxu0 0
      %358 = vmatpush1.bf16.msra.mxu0 0
      %359 = vmatprep.subr.bf16.mxu0 0
      %360 = vmatpush1.bf16.msra.mxu0 0
      %361 = vmatprep.mubr.bf16.mxu0 0
      %362 = vmatmul.mubr.bf16.gmra.mrb[0].mxu0 %v327
      %v363 = vpop.f32.mrb[0].mxu0
      %v364 = vadd.f32 %v323, %v363
      %v365 = vpop.f32.mrb[0].mxu0
      %v366 = vpop.f32.mrb[0].mxu0
      %v367 = vpop.f32.mrb[0].mxu0
      %368 = vdwg.mxu0
      %vm369 = vcmp.ge.f32.partialorder %v364, 0.0
      %v370 = vmul.f32 %v364, 0.2
      %v371 = vsel %vm369, %v364, %v370
      %v372 = vpack.c.bf16 %v371, %v371
      %373 = vst [vmem:[%s249] sm:$0xf] %v372
      %p374 = scmp.lt.s32.totalorder %s19, 1
      %s375 = scalar_select %p374, %s19, 1
      %p376 = scmp.lt.s32.totalorder %s20, 0
      %s377 = scalar_select %p376, %s20, 0
      %s378 = sadd.s32 %s377, %s375
      %s379 = smul.addr %s378, 4
      %s380 = scalar_lea.vmem %s4, %s379
      // Predicated region
      $region37: #{discriminator_forward.6} parent=35 // pred_check
        %p381 = pneg %p146
      $region38: #{discriminator_forward.6} parent=35 // pred_check_branch
        %383 = sbr.rel (%p381) target = $region40
      $region39: #{discriminator_forward.6} parent=35 // pred_region
        _
      $region40: #{discriminator_forward.6} parent=35 // pred_fallthru
        _
    $region36: #{discriminator_forward.6} parent=5 // pred_fallthru
      _
    %p384 = scmp.le.s32.totalorder 2, %s10
    // Predicated region
    $region41: #{discriminator_forward.6} parent=5 // pred_check
      %p385 = pneg %p384
    $region42: #{discriminator_forward.6} parent=5 // pred_check_branch
      %387 = sbr.rel (%p385) target = $region44
    $region43: #{discriminator_forward.6} parent=5 // pred_region
      %s388 = ssub.s32 %s10, 2
      // Predicated region
      $region45: #{discriminator_forward.6} parent=43 // pred_check
        %p389 = pneg %p152
      $region46: #{discriminator_forward.6} parent=43 // pred_check_branch
        %391 = sbr.rel (%p389) target = $region48
      $region47: #{discriminator_forward.6} parent=43 // pred_region
        %p392 = scmp.lt.s32.totalorder %s21, 1
        %s393 = scalar_select %p392, %s21, 1
        %p394 = scmp.lt.s32.totalorder %s22, 0
        %s395 = scalar_select %p394, %s22, 0
        %s396 = sadd.s32 %s395, %s393
        %s397 = smul.addr %s396, 4
        %s398 = scalar_lea.vmem %s4, %s397
      $region48: #{discriminator_forward.6} parent=43 // pred_fallthru
        _
    $region44: #{discriminator_forward.6} parent=5 // pred_fallthru
      _
  $region6: #{discriminator_forward.6} parent=0 // loop_footer
    %s14 = sadd.s32 1, %s10
  $region7: #{discriminator_forward.6} parent=0 // loop_footer_branch
    %9 = sbr.rel target = $region3
  $region8: #{discriminator_forward.6} parent=0 // loop_exit
    _

// kernel: discriminator_forward.7
$region0: #{discriminator_forward.7}
  #allocation0 [shape = 'u32[]', space=smem, size = 0x4, offset = 0x4, fixed_abs, tag = 'smem constant byte address 0x4 - core index']
  #allocation1 [shape = 'u32[144,128]{1,0:T(1,128)}', space=vmem, size = 0x12000, scoped, tag = 'internal scratch']
  #allocation2 [shape = 'bf16[72,128]{1,0:T(8,128)(2,1)}', space=vmem, size = 0x4800, scoped, tag = 'scratch operand']
  %s0 = inlined_call_operand.vmem [shape: bf16[2,8,150], index: 0, kind: input, shape index: {}]
  %s1 = inlined_call_operand.vmem [shape: bf16[16,72], index: 1, kind: input, shape index: {}]
  %s2 = inlined_call_operand.vmem [shape: f32[16,1], index: 2, kind: input, shape index: {}]
  %s3 = inlined_call_operand.vmem [shape: f32[1,128], index: 3, kind: input, shape index: {}]
  %s4 = inlined_call_operand.vmem [shape: bf16[2,16,128], index: 4, kind: output, shape index: {}]
  %s5 = sld [smem:[#allocation0]]
  $region49: #{discriminator_forward.7} parent=0
    _
  %s7 = ssub.s32 1, %s5
  %s8 = scalar_select 0, %s7, %s5
  loop: start=0, step=1, limit=4
  $region2: #{discriminator_forward.7} parent=0 // loop_pre_header
    _
  $region3: #{discriminator_forward.7} parent=0 // loop_header
    %s10 = sphi 0, %s14
    %p11 = scmp.ge.s32.totalorder %s10, 4
    %s17 = sphi 0, %s29
    %s18 = sphi 0, %s25
    %s19 = sphi 0, %s17
    %s20 = sphi 0, %s18
    %s21 = sphi 0, %s19
    %s22 = sphi 0, %s20
    %s32 = sphi 0, %s34
    %s35 = sphi 0, %s32
    %s36 = sphi 0, %s35
    %s52 = sphi 0, %s36
    %s58 = sphi 0, %s60
    %s61 = sphi 0, %s58
    %s62 = sphi 0, %s61
    %s78 = sphi 0, %s62
    %s84 = sphi 0, %s86
    %s87 = sphi 0, %s84
    %s88 = sphi 0, %s87
    %s104 = sphi 0, %s88
    %s108 = sphi 0, %s108
    %s110 = sphi 0, %s108
    %s111 = sphi 0, %s110
    %s125 = sphi 0, %s111
    %s133 = sphi 0, %s135
    %s136 = sphi 0, %s133
    %s137 = sphi 0, %s136
    %s153 = sphi 0, %s137
  $region4: #{discriminator_forward.7} parent=0 // loop_header_branch
    %13 = sbr.rel (%p11) target = $region8
  $region5: #{discriminator_forward.7} parent=0 // loop_body
    %s15 = ssub.s32 %s10, 1
    %s16 = ssub.s32 %s10, 2
    %s23 = sadd.s32 1, %s18
    %p24 = scmp.ge.s32.totalorder %s23, 1
    %s25 = scalar_select %p24, 0, %s23
    %s26 = sadd.s32 1, %s17
    %s27 = scalar_select %p24, %s26, %s17
    %p28 = scmp.ge.s32.totalorder %s27, 2
    %s29 = scalar_select %p28, 0, %s27
    %s30 = ssub.s32 %s17, %s29
    %p31 = scmp.eq.s32.totalorder %s30, 0
    %s33 = sadd.s32 %s32, 1
    %s34 = scalar_select %p31, %s32, %s33
    %p37 = pneg %p31
    %p38 = scmp.eq.s32.totalorder %s10, 1
    %p39 = por %p37, %p38
    %p40 = scmp.ne.s32.totalorder %s32, %s35
    %p41 = scmp.eq.s32.totalorder %s10, 0
    %p42 = por %p40, %p41
    %p43 = scmp.ne.s32.totalorder %s32, %s35
    %p44 = scmp.eq.s32.totalorder %s15, 1
    %p45 = por %p43, %p44
    %p46 = scmp.ne.s32.totalorder %s35, %s36
    %p47 = scmp.eq.s32.totalorder %s15, 0
    %p48 = por %p46, %p47
    %p49 = scmp.ne.s32.totalorder %s35, %s36
    %p50 = scmp.eq.s32.totalorder %s16, 1
    %p51 = por %p49, %p50
    %p53 = scmp.ne.s32.totalorder %s36, %s52
    %p54 = scmp.eq.s32.totalorder %s16, 0
    %p55 = por %p53, %p54
    %s56 = ssub.s32 %s18, %s25
    %p57 = scmp.eq.s32.totalorder %s56, 0
    %s59 = sadd.s32 %s58, 1
    %s60 = scalar_select %p57, %s58, %s59
    %p63 = pneg %p57
    %p64 = scmp.eq.s32.totalorder %s10, 1
    %p65 = por %p63, %p64
    %p66 = scmp.ne.s32.totalorder %s58, %s61
    %p67 = scmp.eq.s32.totalorder %s10, 0
    %p68 = por %p66, %p67
    %p69 = scmp.ne.s32.totalorder %s58, %s61
    %p70 = scmp.eq.s32.totalorder %s15, 1
    %p71 = por %p69, %p70
    %p72 = scmp.ne.s32.totalorder %s61, %s62
    %p73 = scmp.eq.s32.totalorder %s15, 0
    %p74 = por %p72, %p73
    %p75 = scmp.ne.s32.totalorder %s61, %s62
    %p76 = scmp.eq.s32.totalorder %s16, 1
    %p77 = por %p75, %p76
    %p79 = scmp.ne.s32.totalorder %s62, %s78
    %p80 = scmp.eq.s32.totalorder %s16, 0
    %p81 = por %p79, %p80
    %s82 = ssub.s32 %s18, %s25
    %p83 = scmp.eq.s32.totalorder %s82, 0
    %s85 = sadd.s32 %s84, 1
    %s86 = scalar_select %p83, %s84, %s85
    %p89 = pneg %p83
    %p90 = scmp.eq.s32.totalorder %s10, 1
    %p91 = por %p89, %p90
    %p92 = scmp.ne.s32.totalorder %s84, %s87
    %p93 = scmp.eq.s32.totalorder %s10, 0
    %p94 = por %p92, %p93
    %p95 = scmp.ne.s32.totalorder %s84, %s87
    %p96 = scmp.eq.s32.totalorder %s15, 1
    %p97 = por %p95, %p96
    %p98 = scmp.ne.s32.totalorder %s87, %s88
    %p99 = scmp.eq.s32.totalorder %s15, 0
    %p100 = por %p98, %p99
    %p101 = scmp.ne.s32.totalorder %s87, %s88
    %p102 = scmp.eq.s32.totalorder %s16, 1
    %p103 = por %p101, %p102
    %p105 = scmp.ne.s32.totalorder %s88, %s104
    %p106 = scmp.eq.s32.totalorder %s16, 0
    %p107 = por %p105, %p106
    %s109 = sadd.s32 %s108, 1
    %p112 = scmp.eq.s32.totalorder %s10, 1
    %p113 = scmp.ne.s32.totalorder %s108, %s110
    %p114 = scmp.eq.s32.totalorder %s10, 0
    %p115 = por %p113, %p114
    %p116 = scmp.ne.s32.totalorder %s108, %s110
    %p117 = scmp.eq.s32.totalorder %s15, 1
    %p118 = por %p116, %p117
    %p119 = scmp.ne.s32.totalorder %s110, %s111
    %p120 = scmp.eq.s32.totalorder %s15, 0
    %p121 = por %p119, %p120
    %p122 = scmp.ne.s32.totalorder %s110, %s111
    %p123 = scmp.eq.s32.totalorder %s16, 1
    %p124 = por %p122, %p123
    %p126 = scmp.ne.s32.totalorder %s111, %s125
    %p127 = scmp.eq.s32.totalorder %s16, 0
    %p128 = por %p126, %p127
    %s129 = ssub.s32 %s17, %s29
    %s130 = ssub.s32 %s18, %s25
    %s131 = sor.u32 %s129, %s130
    %p132 = scmp.eq.s32.totalorder %s131, 0
    %s134 = sadd.s32 %s133, 1
    %s135 = scalar_select %p132, %s133, %s134
    %p138 = pneg %p132
    %p139 = scmp.eq.s32.totalorder %s10, 1
    %p140 = por %p138, %p139
    %p141 = scmp.ne.s32.totalorder %s133, %s136
    %p142 = scmp.eq.s32.totalorder %s10, 0
    %p143 = por %p141, %p142
    %p144 = scmp.ne.s32.totalorder %s133, %s136
    %p145 = scmp.eq.s32.totalorder %s15, 1
    %p146 = por %p144, %p145
    %p147 = scmp.ne.s32.totalorder %s136, %s137
    %p148 = scmp.eq.s32.totalorder %s15, 0
    %p149 = por %p147, %p148
    %p150 = scmp.ne.s32.totalorder %s136, %s137
    %p151 = scmp.eq.s32.totalorder %s16, 1
    %p152 = por %p150, %p151
    %p154 = scmp.ne.s32.totalorder %s137, %s153
    %p155 = scmp.eq.s32.totalorder %s16, 0
    %p156 = por %p154, %p155
    %p157 = scmp.le.s32.totalorder 1, %s10
    %p158 = scmp.lt.s32.totalorder %s10, 3
    %p159 = pnand %p157, %p158
    %p160 = pneg %p159
    // Predicated region
    $region9: #{discriminator_forward.7} parent=5 // pred_check
      _
    $region10: #{discriminator_forward.7} parent=5 // pred_check_branch
      %162 = sbr.rel (%p159) target = $region12
    $region11: #{discriminator_forward.7} parent=5 // pred_region
      %s163 = ssub.s32 %s10, 1
      // Predicated region
      $region13: #{discriminator_forward.7} parent=11 // pred_check
        %p164 = pneg %p74
      $region14: #{discriminator_forward.7} parent=11 // pred_check_branch
        %166 = sbr.rel (%p164) target = $region16
      $region15: #{discriminator_forward.7} parent=11 // pred_region
        %s167 = smul.u32 2, %s20
        %p168 = scmp.lt.s32.totalorder %s167, 1
        %s169 = scalar_select %p168, %s167, 1
        %s170 = smul.addr %s169, 4
        %s171 = scalar_lea.vmem %s1, %s170
        %s172 = smul.u32 2, %s20
      $region16: #{discriminator_forward.7} parent=11 // pred_fallthru
        _
      // Predicated region
      $region17: #{discriminator_forward.7} parent=11 // pred_check
        %p173 = pneg %p100
      $region18: #{discriminator_forward.7} parent=11 // pred_check_branch
        %175 = sbr.rel (%p173) target = $region20
      $region19: #{discriminator_forward.7} parent=11 // pred_region
        %s176 = smul.u32 2, %s20
        %p177 = scmp.lt.s32.totalorder %s176, 1
        %s178 = scalar_select %p177, %s176, 1
        %s179 = smul.addr %s178, 8
        %s180 = scalar_lea.vmem %s2, %s179
        %s181 = smul.u32 2, %s20
      $region20: #{discriminator_forward.7} parent=11 // pred_fallthru
        _
      // Predicated region
      $region21: #{discriminator_forward.7} parent=11 // pred_check
        %p182 = pneg %p121
      $region22: #{discriminator_forward.7} parent=11 // pred_check_branch
        %184 = sbr.rel (%p182) target = $region24
      $region23: #{discriminator_forward.7} parent=11 // pred_region
        _
      $region24: #{discriminator_forward.7} parent=11 // pred_fallthru
        _
    $region12: #{discriminator_forward.7} parent=5 // pred_fallthru
      _
    %p185 = scmp.lt.s32.totalorder %s10, 2
    // Predicated region
    $region25: #{discriminator_forward.7} parent=5 // pred_check
      %p186 = pneg %p185
    $region26: #{discriminator_forward.7} parent=5 // pred_check_branch
      %188 = sbr.rel (%p186) target = $region28
    $region27: #{discriminator_forward.7} parent=5 // pred_region
      // Predicated region
      $region29: #{discriminator_forward.7} parent=27 // pred_check
        %p189 = pneg %p42
      $region30: #{discriminator_forward.7} parent=27 // pred_check_branch
        %191 = sbr.rel (%p189) target = $region32
      $region31: #{discriminator_forward.7} parent=27 // pred_region
        %p192 = scmp.lt.s32.totalorder %s17, 1
        %s193 = scalar_select %p192, %s17, 1
        %s194 = smul.addr %s193, 2
        %s195 = smul.addr %s194, 4
        %s196 = scalar_lea.vmem %s0, %s195
      $region32: #{discriminator_forward.7} parent=27 // pred_fallthru
        _
    $region28: #{discriminator_forward.7} parent=5 // pred_fallthru
      _
    %p197 = scmp.le.s32.totalorder 1, %s10
    %p198 = scmp.lt.s32.totalorder %s10, 3
    %p199 = pnand %p197, %p198
    %p200 = pneg %p199
    // Predicated region
    $region33: #{discriminator_forward.7} parent=5 // pred_check
      _
    $region34: #{discriminator_forward.7} parent=5 // pred_check_branch
      %202 = sbr.rel (%p199) target = $region36
    $region35: #{discriminator_forward.7} parent=5 // pred_region
      %s203 = ssub.s32 %s10, 1
      %p204 = scmp.lt.s32.totalorder %s19, 1
      %s205 = scalar_select %p204, %s19, 1
      %s206 = smul.addr %s205, 2
      %s207 = smul.addr %s206, 4
      %s208 = scalar_lea.vmem %s0, %s207
      %p209 = pneg %p48
      %p210 = pneg %p45
      %s211 = smul.u32 2, %s20
      %p212 = scmp.lt.s32.totalorder %s211, 1
      %s213 = scalar_select %p212, %s211, 1
      %s214 = smul.addr %s213, 4
      %s215 = scalar_lea.vmem %s1, %s214
      %p216 = pneg %p74
      %p217 = pneg %p71
      %s218 = smul.u32 2, %s20
      %p219 = scmp.lt.s32.totalorder %s218, 1
      %s220 = scalar_select %p219, %s218, 1
      %s221 = smul.addr %s220, 8
      %s222 = scalar_lea.vmem %s2, %s221
      %p223 = pneg %p100
      %p224 = pneg %p97
      %p225 = pneg %p121
      %p226 = pneg %p118
      %p227 = pneg %p149
      %p228 = pneg %p146
      %s229 = smul.u32 2, %s20
      %p230 = scmp.lt.s32.totalorder %s19, 1
      %s231 = scalar_select %p230, %s19, 1
      %p232 = scmp.lt.s32.totalorder %s229, 1
      %s233 = scalar_select %p232, %s229, 1
      %s234 = smul.addr %s231, 2
      %s235 = sadd.s32 %s233, %s234
      %s236 = smul.addr %s235, 4
      %s237 = scalar_lea.vmem %s4, %s236
      %p238 = scmp.lt.s32.totalorder %s19, 1
      %s239 = scalar_select %p238, %s19, 1
      %s240 = smul.addr %s239, 2
      %s241 = smul.addr %s240, 4
      %s242 = scalar_lea.vmem %s0, %s241
      %s243 = smul.u32 2, %s20
      %p244 = scmp.lt.s32.totalorder %s243, 1
      %s245 = scalar_select %p244, %s243, 1
      %s246 = smul.addr %s245, 4
      %s247 = scalar_lea.vmem %s1, %s246
      %s248 = smul.u32 2, %s20
      %s249 = smul.u32 2, %s20
      %p250 = scmp.lt.s32.totalorder %s249, 1
      %s251 = scalar_select %p250, %s249, 1
      %s252 = smul.addr %s251, 8
      %s253 = scalar_lea.vmem %s2, %s252
      %s254 = smul.u32 2, %s20
      %s255 = smul.u32 2, %s20
      %p256 = scmp.lt.s32.totalorder %s19, 1
      %s257 = scalar_select %p256, %s19, 1
      %p258 = scmp.lt.s32.totalorder %s255, 1
      %s259 = scalar_select %p258, %s255, 1
      %s260 = smul.addr %s257, 2
      %s261 = sadd.s32 %s259, %s260
      %s262 = smul.addr %s261, 4
      %s263 = scalar_lea.vmem %s4, %s262
      %s264 = smul.u32 2, %s20
      %v266 = vld [vmem:[%s247] sm:$0xf]
      %v267 = vld [vmem:[%s247 + $0x4] sm:$0xf]
      %v268 = vld [vmem:[%s242] sm:$0xf]
      %269 = vst [vmem:[#allocation2] sm:$0xf] %v268
      %v270 = vld [vmem:[%s242] sm:$0xff]
      %272 = vrot.lane.b32.xlu0 %v270, 127
      %v273 = vpop.permute.xlu0 %272
      %v274 = vrot.slane %v273, 4
      %vm275 = vcmask 1039360
      %v276 = vsel %vm275, %v273, %v274
      %278 = vst [vmem:[#allocation2 + $0x4] sm:$0xf] %v276
      %v279 = vld [vmem:[%s242] sm:$0xff]
      %281 = vrot.lane.b32.xlu0 %v279, 126
      %v282 = vpop.permute.xlu0 %281
      %v283 = vrot.slane %v282, 4
      %vm284 = vcmask 1031168
      %v285 = vsel %vm284, %v282, %v283
      %287 = vst [vmem:[#allocation2 + $0x8] sm:$0xf] %v285
      %v288 = vld [vmem:[%s242] sm:$0xff]
      %290 = vrot.lane.b32.xlu0 %v288, 118
      %v291 = vpop.permute.xlu0 %290
      %v292 = vrot.slane %v291, 4
      %vm293 = vcmask 965632
      %v294 = vsel %vm293, %v291, %v292
      %296 = vst [vmem:[#allocation2 + $0xc] sm:$0xf] %v294
      %v297 = vld [vmem:[%s242] sm:$0xff]
      %299 = vrot.lane.b32.xlu0 %v297, 117
      %v300 = vpop.permute.xlu0 %299
      %v301 = vrot.slane %v300, 4
      %vm302 = vcmask 957440
      %v303 = vsel %vm302, %v300, %v301
      %305 = vst [vmem:[#allocation2 + $0x10] sm:$0xf] %v303
      %v306 = vld [vmem:[%s242] sm:$0xff]
      %308 = vrot.lane.b32.xlu0 %v306, 116
      %v309 = vpop.permute.xlu0 %308
      %v310 = vrot.slane %v309, 4
      %vm311 = vcmask 949248
      %v312 = vsel %vm311, %v309, %v310
      %314 = vst [vmem:[#allocation2 + $0x14] sm:$0xf] %v312
      %v315 = vld [vmem:[%s242] sm:$0xff]
      %317 = vrot.lane.b32.xlu0 %v315, 108
      %v318 = vpop.permute.xlu0 %317
      %v319 = vrot.slane %v318, 4
      %vm320 = vcmask 883712
      %v321 = vsel %vm320, %v318, %v319
      %323 = vst [vmem:[#allocation2 + $0x18] sm:$0xf] %v321
      %v324 = vld [vmem:[%s242] sm:$0xff]
      %326 = vrot.lane.b32.xlu0 %v324, 107
      %v327 = vpop.permute.xlu0 %326
      %v328 = vrot.slane %v327, 4
      %vm329 = vcmask 875520
      %v330 = vsel %vm329, %v327, %v328
      %332 = vst [vmem:[#allocation2 + $0x1c] sm:$0xf] %v330
      %v333 = vld [vmem:[%s242] sm:$0xff]
      %335 = vrot.lane.b32.xlu0 %v333, 106
      %v336 = vpop.permute.xlu0 %335
      %v337 = vrot.slane %v336, 4
      %vm338 = vcmask 867328
      %v339 = vsel %vm338, %v336, %v337
      %341 = vst [vmem:[#allocation2 + $0x20] sm:$0xf] %v339
      %v342 = vld [vmem:[#allocation2] sm:$0xf]
      %v343 = vld [vmem:[#allocation2 + $0x4] sm:$0xf]
      %v344 = vld [vmem:[#allocation2 + $0x8] sm:$0xf]
      %v345 = vld [vmem:[#allocation2 + $0xc] sm:$0xf]
      %v346 = vld [vmem:[#allocation2 + $0x10] sm:$0xf]
      %v347 = vld [vmem:[#allocation2 + $0x14] sm:$0xf]
      %v348 = vld [vmem:[#allocation2 + $0x18] sm:$0xf]
      %v349 = vld [vmem:[#allocation2 + $0x1c] sm:$0xf]
      %v350 = vld [vmem:[#allocation2 + $0x20] sm:$0xf]
      %v353 = vunpack.c.l.b16 %v266
      %v354 = vunpack.c.l.b16 %v267
      %v355 = vpack.c.b16 %v354, %v353
      %v365 = vunpack.c.l.b16 %v342
      %v366 = vunpack.c.l.b16 %v343
      %v367 = vunpack.c.l.b16 %v344
      %v368 = vunpack.c.l.b16 %v345
      %v369 = vunpack.c.l.b16 %v346
      %v370 = vunpack.c.l.b16 %v347
      %v371 = vunpack.c.l.b16 %v348
      %v372 = vunpack.c.l.b16 %v349
      %v373 = vunpack.c.l.b16 %v350
      %v374 = vpack.c.b16 %v366, %v365
      %v375 = vpack.c.b16 %v368, %v367
      %v376 = vpack.c.b16 %v370, %v369
      %v377 = vpack.c.b16 %v372, %v371
      %v378 = vpack.c.b16 %v373, %v373
      %vm383 = vcmask 588800
      %v385 = vsel %vm383, %v355, 0
      %vm387 = vcmask 1043456
      %v389 = vsel %vm387, %v378, 0
      %391 = vmatprep.subr.bf16.mxu0 0
      %392 = vmatpush1.bf16.msra.mxu0 %v374
      %393 = vmatprep.subr.bf16.mxu0 0
      %394 = vmatpush1.bf16.msra.mxu0 %v375
      %395 = vmatprep.subr.bf16.mxu0 0
      %396 = vmatpush1.bf16.msra.mxu0 %v376
      %397 = vmatprep.subr.bf16.mxu0 0
      %398 = vmatpush1.bf16.msra.mxu0 %v377
      %399 = vmatprep.subr.bf16.mxu0 0
      %400 = vmatpush1.bf16.msra.mxu0 %v389
      %401 = vmatprep.subr.bf16.mxu0 0
      %402 = vmatpush1.bf16.msra.mxu0 0
      %403 = vmatprep.subr.bf16.mxu0 0
      %404 = vmatpush1.bf16.msra.mxu0 0
      %405 = vmatprep.subr.bf16.mxu0 0
      %406 = vmatpush1.bf16.msra.mxu0 0
      %407 = vmatprep.subr.bf16.mxu0 0
      %408 = vmatpush1.bf16.msra.mxu0 0
      %409 = vmatprep.subr.bf16.mxu0 0
      %410 = vmatpush1.bf16.msra.mxu0 0
      %411 = vmatprep.subr.bf16.mxu0 0
      %412 = vmatpush1.bf16.msra.mxu0 0
      %413 = vmatprep.subr.bf16.mxu0 0
      %414 = vmatpush1.bf16.msra.mxu0 0
      %415 = vmatprep.subr.bf16.mxu0 0
      %416 = vmatpush1.bf16.msra.mxu0 0
      %417 = vmatprep.subr.bf16.mxu0 0
      %418 = vmatpush1.bf16.msra.mxu0 0
      %419 = vmatprep.subr.bf16.mxu0 0
      %420 = vmatpush1.bf16.msra.mxu0 0
      %421 = vmatprep.subr.bf16.mxu0 0
      %422 = vmatpush1.bf16.msra.mxu0 0
      %423 = vmatprep.mubr.bf16.mxu0 0
      %424 = vmatmul.mubr.bf16.gmra.mrb[0].mxu0 %v385
      %v425 = vpop.f32.mrb[0].mxu0
      %v426 = vadd.f32 0.0, %v425
      %v427 = vpop.f32.mrb[0].mxu0
      %v428 = vpop.f32.mrb[0].mxu0
      %v429 = vadd.f32 0.0, %v428
      %v430 = vpop.f32.mrb[0].mxu0
      %431 = vdwg.mxu0
      %v432 = vld [vmem:[%s3] sm:$0x1]
      %v434 = vlaneseq
      %v435 = vshrl.u32 %v434, 7
      %v436 = vsub.s32 0, %v435
      %v437 = vrot.slane %v432, %v436
      %v439 = vmul.f32 %v426, %v437
      %v440 = vmul.f32 %v429, %v437
      %441 = vadd.xlane.f32.xlu0 %v439
      %v442 = vpop.xlane.xlu0 %441
      %443 = vadd.xlane.f32.xlu0 %v440
      %v444 = vpop.xlane.xlu0 %443
      %v445 = vmul.f32 %v426, %v426
      %v446 = vmul.f32 %v429, %v429
      %v447 = vmul.f32 %v445, %v437
      %v448 = vmul.f32 %v446, %v437
      %449 = vadd.xlane.f32.xlu0 %v447
      %v450 = vpop.xlane.xlu0 %449
      %451 = vadd.xlane.f32.xlu0 %v448
      %v452 = vpop.xlane.xlu0 %451
      %v453 = vmul.f32 %v442, 0.015625
      %v454 = vmul.f32 %v444, 0.015625
      %v455 = vmul.f32 %v450, 0.015625
      %v456 = vmul.f32 %v452, 0.015625
      %v457 = vmul.f32 %v453, %v453
      %v458 = vmul.f32 %v454, %v454
      %v459 = vsub.f32 %v455, %v457
      %v460 = vsub.f32 %v456, %v458
      %v461 = vadd.f32 %v459, 1e-05
      %v462 = vadd.f32 %v460, 1e-05
      %v463 = vrsqrt.pop %v461
      %v464 = vrsqrt.pop %v462
      %v465 = vsub.f32 %v426, %v453
      %v466 = vsub.f32 %v429, %v454
      %v467 = vmul.f32 %v465, %v463
      %v468 = vmul.f32 %v466, %v464
      %vm469 = vcmp.ge.f32.partialorder %v467, 0.0
      %vm470 = vcmp.ge.f32.partialorder %v468, 0.0
      %v471 = vmul.f32 %v467, 0.2
      %v472 = vmul.f32 %v468, 0.2
      %v473 = vsel %vm469, %v467, %v471
      %v474 = vsel %vm470, %v468, %v472
      %v475 = vpack.c.bf16 %v474, %v473
      %v477 = vunpack.c.l.b16 %v475
      %v478 = vunpack.c.h.b16 %v475
      %v479 = vpack.c.b16 %v477, %v477
      %v480 = vpack.c.b16 %v478, %v478
      %483 = vst [vmem:[%s263] sm:$0xf] %v479
      %484 = vst [vmem:[%s263 + $0x4] sm:$0xf] %v480
      %s485 = smul.u32 2, %s20
      %p486 = scmp.lt.s32.totalorder %s19, 1
      %s487 = scalar_select %p486, %s19, 1
      %p488 = scmp.lt.s32.totalorder %s485, 1
      %s489 = scalar_select %p488, %s485, 1
      %s490 = smul.addr %s487, 2
      %s491 = sadd.s32 %s489, %s490
      %s492 = smul.addr %s491, 4
      %s493 = scalar_lea.vmem %s4, %s492
      // Predicated region
      $region37: #{discriminator_forward.7} parent=35 // pred_check
        %p494 = pneg %p146
      $region38: #{discriminator_forward.7} parent=35 // pred_check_branch
        %496 = sbr.rel (%p494) target = $region40
      $region39: #{discriminator_forward.7} parent=35 // pred_region
        %s497 = smul.u32 2, %s20
      $region40: #{discriminator_forward.7} parent=35 // pred_fallthru
        _
    $region36: #{discriminator_forward.7} parent=5 // pred_fallthru
      _
    %p498 = scmp.le.s32.totalorder 2, %s10
    // Predicated region
    $region41: #{discriminator_forward.7} parent=5 // pred_check
      %p499 = pneg %p498
    $region42: #{discriminator_forward.7} parent=5 // pred_check_branch
      %501 = sbr.rel (%p499) target = $region44
    $region43: #{discriminator_forward.7} parent=5 // pred_region
      %s502 = ssub.s32 %s10, 2
      // Predicated region
      $region45: #{discriminator_forward.7} parent=43 // pred_check
        %p503 = pneg %p152
      $region46: #{discriminator_forward.7} parent=43 // pred_check_branch
        %505 = sbr.rel (%p503) target = $region48
      $region47: #{discriminator_forward.7} parent=43 // pred_region
        %s506 = smul.u32 2, %s22
        %p507 = scmp.lt.s32.totalorder %s21, 1
        %s508 = scalar_select %p507, %s21, 1
        %p509 = scmp.lt.s32.totalorder %s506, 1
        %s510 = scalar_select %p509, %s506, 1
        %s511 = smul.addr %s508, 2
        %s512 = sadd.s32 %s510, %s511
        %s513 = smul.addr %s512, 4
        %s514 = scalar_lea.vmem %s4, %s513
      $region48: #{discriminator_forward.7} parent=43 // pred_fallthru
        _
    $region44: #{discriminator_forward.7} parent=5 // pred_fallthru
      _
  $region6: #{discriminator_forward.7} parent=0 // loop_footer
    %s14 = sadd.s32 1, %s10
  $region7: #{discriminator_forward.7} parent=0 // loop_footer_branch
    %9 = sbr.rel target = $region3
  $region8: #{discriminator_forward.7} parent=0 // loop_exit
    _

// kernel: discriminator_forward.8
$region0: #{discriminator_forward.8}
  #allocation0 [shape = 'u32[]', space=smem, size = 0x4, offset = 0x4, fixed_abs, tag = 'smem constant byte address 0x4 - core index']
  #allocation1 [shape = 'u32[144,128]{1,0:T(1,128)}', space=vmem, size = 0x12000, scoped, tag = 'internal scratch']
  #allocation2 [shape = 'bf16[144,128]{1,0:T(16,128)(2,1)}', space=vmem, size = 0x9000, scoped, tag = 'scratch operand']
  %s0 = inlined_call_operand.vmem [shape: bf16[2,16,180], index: 0, kind: input, shape index: {}]
  %s1 = inlined_call_operand.vmem [shape: bf16[32,144], index: 1, kind: input, shape index: {}]
  %s2 = inlined_call_operand.vmem [shape: f32[32,1], index: 2, kind: input, shape index: {}]
  %s3 = inlined_call_operand.vmem [shape: f32[1,128], index: 3, kind: input, shape index: {}]
  %s4 = inlined_call_operand.vmem [shape: bf16[2,32,128], index: 4, kind: output, shape index: {}]
  %s5 = sld [smem:[#allocation0]]
  $region49: #{discriminator_forward.8} parent=0
    _
  %s7 = ssub.s32 1, %s5
  %s8 = scalar_select 0, %s7, %s5
  loop: start=0, step=1, limit=4
  $region2: #{discriminator_forward.8} parent=0 // loop_pre_header
    _
  $region3: #{discriminator_forward.8} parent=0 // loop_header
    %s10 = sphi 0, %s14
    %p11 = scmp.ge.s32.totalorder %s10, 4
    %s17 = sphi 0, %s29
    %s18 = sphi 0, %s25
    %s19 = sphi 0, %s17
    %s20 = sphi 0, %s18
    %s21 = sphi 0, %s19
    %s22 = sphi 0, %s20
    %s32 = sphi 0, %s34
    %s35 = sphi 0, %s32
    %s36 = sphi 0, %s35
    %s52 = sphi 0, %s36
    %s58 = sphi 0, %s60
    %s61 = sphi 0, %s58
    %s62 = sphi 0, %s61
    %s78 = sphi 0, %s62
    %s84 = sphi 0, %s86
    %s87 = sphi 0, %s84
    %s88 = sphi 0, %s87
    %s104 = sphi 0, %s88
    %s108 = sphi 0, %s108
    %s110 = sphi 0, %s108
    %s111 = sphi 0, %s110
    %s125 = sphi 0, %s111
    %s133 = sphi 0, %s135
    %s136 = sphi 0, %s133
    %s137 = sphi 0, %s136
    %s153 = sphi 0, %s137
  $region4: #{discriminator_forward.8} parent=0 // loop_header_branch
    %13 = sbr.rel (%p11) target = $region8
  $region5: #{discriminator_forward.8} parent=0 // loop_body
    %s15 = ssub.s32 %s10, 1
    %s16 = ssub.s32 %s10, 2
    %s23 = sadd.s32 1, %s18
    %p24 = scmp.ge.s32.totalorder %s23, 1
    %s25 = scalar_select %p24, 0, %s23
    %s26 = sadd.s32 1, %s17
    %s27 = scalar_select %p24, %s26, %s17
    %p28 = scmp.ge.s32.totalorder %s27, 2
    %s29 = scalar_select %p28, 0, %s27
    %s30 = ssub.s32 %s17, %s29
    %p31 = scmp.eq.s32.totalorder %s30, 0
    %s33 = sadd.s32 %s32, 1
    %s34 = scalar_select %p31, %s32, %s33
    %p37 = pneg %p31
    %p38 = scmp.eq.s32.totalorder %s10, 1
    %p39 = por %p37, %p38
    %p40 = scmp.ne.s32.totalorder %s32, %s35
    %p41 = scmp.eq.s32.totalorder %s10, 0
    %p42 = por %p40, %p41
    %p43 = scmp.ne.s32.totalorder %s32, %s35
    %p44 = scmp.eq.s32.totalorder %s15, 1
    %p45 = por %p43, %p44
    %p46 = scmp.ne.s32.totalorder %s35, %s36
    %p47 = scmp.eq.s32.totalorder %s15, 0
    %p48 = por %p46, %p47
    %p49 = scmp.ne.s32.totalorder %s35, %s36
    %p50 = scmp.eq.s32.totalorder %s16, 1
    %p51 = por %p49, %p50
    %p53 = scmp.ne.s32.totalorder %s36, %s52
    %p54 = scmp.eq.s32.totalorder %s16, 0
    %p55 = por %p53, %p54
    %s56 = ssub.s32 %s18, %s25
    %p57 = scmp.eq.s32.totalorder %s56, 0
    %s59 = sadd.s32 %s58, 1
    %s60 = scalar_select %p57, %s58, %s59
    %p63 = pneg %p57
    %p64 = scmp.eq.s32.totalorder %s10, 1
    %p65 = por %p63, %p64
    %p66 = scmp.ne.s32.totalorder %s58, %s61
    %p67 = scmp.eq.s32.totalorder %s10, 0
    %p68 = por %p66, %p67
    %p69 = scmp.ne.s32.totalorder %s58, %s61
    %p70 = scmp.eq.s32.totalorder %s15, 1
    %p71 = por %p69, %p70
    %p72 = scmp.ne.s32.totalorder %s61, %s62
    %p73 = scmp.eq.s32.totalorder %s15, 0
    %p74 = por %p72, %p73
    %p75 = scmp.ne.s32.totalorder %s61, %s62
    %p76 = scmp.eq.s32.totalorder %s16, 1
    %p77 = por %p75, %p76
    %p79 = scmp.ne.s32.totalorder %s62, %s78
    %p80 = scmp.eq.s32.totalorder %s16, 0
    %p81 = por %p79, %p80
    %s82 = ssub.s32 %s18, %s25
    %p83 = scmp.eq.s32.totalorder %s82, 0
    %s85 = sadd.s32 %s84, 1
    %s86 = scalar_select %p83, %s84, %s85
    %p89 = pneg %p83
    %p90 = scmp.eq.s32.totalorder %s10, 1
    %p91 = por %p89, %p90
    %p92 = scmp.ne.s32.totalorder %s84, %s87
    %p93 = scmp.eq.s32.totalorder %s10, 0
    %p94 = por %p92, %p93
    %p95 = scmp.ne.s32.totalorder %s84, %s87
    %p96 = scmp.eq.s32.totalorder %s15, 1
    %p97 = por %p95, %p96
    %p98 = scmp.ne.s32.totalorder %s87, %s88
    %p99 = scmp.eq.s32.totalorder %s15, 0
    %p100 = por %p98, %p99
    %p101 = scmp.ne.s32.totalorder %s87, %s88
    %p102 = scmp.eq.s32.totalorder %s16, 1
    %p103 = por %p101, %p102
    %p105 = scmp.ne.s32.totalorder %s88, %s104
    %p106 = scmp.eq.s32.totalorder %s16, 0
    %p107 = por %p105, %p106
    %s109 = sadd.s32 %s108, 1
    %p112 = scmp.eq.s32.totalorder %s10, 1
    %p113 = scmp.ne.s32.totalorder %s108, %s110
    %p114 = scmp.eq.s32.totalorder %s10, 0
    %p115 = por %p113, %p114
    %p116 = scmp.ne.s32.totalorder %s108, %s110
    %p117 = scmp.eq.s32.totalorder %s15, 1
    %p118 = por %p116, %p117
    %p119 = scmp.ne.s32.totalorder %s110, %s111
    %p120 = scmp.eq.s32.totalorder %s15, 0
    %p121 = por %p119, %p120
    %p122 = scmp.ne.s32.totalorder %s110, %s111
    %p123 = scmp.eq.s32.totalorder %s16, 1
    %p124 = por %p122, %p123
    %p126 = scmp.ne.s32.totalorder %s111, %s125
    %p127 = scmp.eq.s32.totalorder %s16, 0
    %p128 = por %p126, %p127
    %s129 = ssub.s32 %s17, %s29
    %s130 = ssub.s32 %s18, %s25
    %s131 = sor.u32 %s129, %s130
    %p132 = scmp.eq.s32.totalorder %s131, 0
    %s134 = sadd.s32 %s133, 1
    %s135 = scalar_select %p132, %s133, %s134
    %p138 = pneg %p132
    %p139 = scmp.eq.s32.totalorder %s10, 1
    %p140 = por %p138, %p139
    %p141 = scmp.ne.s32.totalorder %s133, %s136
    %p142 = scmp.eq.s32.totalorder %s10, 0
    %p143 = por %p141, %p142
    %p144 = scmp.ne.s32.totalorder %s133, %s136
    %p145 = scmp.eq.s32.totalorder %s15, 1
    %p146 = por %p144, %p145
    %p147 = scmp.ne.s32.totalorder %s136, %s137
    %p148 = scmp.eq.s32.totalorder %s15, 0
    %p149 = por %p147, %p148
    %p150 = scmp.ne.s32.totalorder %s136, %s137
    %p151 = scmp.eq.s32.totalorder %s16, 1
    %p152 = por %p150, %p151
    %p154 = scmp.ne.s32.totalorder %s137, %s153
    %p155 = scmp.eq.s32.totalorder %s16, 0
    %p156 = por %p154, %p155
    %p157 = scmp.le.s32.totalorder 1, %s10
    %p158 = scmp.lt.s32.totalorder %s10, 3
    %p159 = pnand %p157, %p158
    %p160 = pneg %p159
    // Predicated region
    $region9: #{discriminator_forward.8} parent=5 // pred_check
      _
    $region10: #{discriminator_forward.8} parent=5 // pred_check_branch
      %162 = sbr.rel (%p159) target = $region12
    $region11: #{discriminator_forward.8} parent=5 // pred_region
      %s163 = ssub.s32 %s10, 1
      // Predicated region
      $region13: #{discriminator_forward.8} parent=11 // pred_check
        %p164 = pneg %p74
      $region14: #{discriminator_forward.8} parent=11 // pred_check_branch
        %166 = sbr.rel (%p164) target = $region16
      $region15: #{discriminator_forward.8} parent=11 // pred_region
        %s167 = smul.u32 4, %s20
        %p168 = scmp.lt.s32.totalorder %s167, 3
        %s169 = scalar_select %p168, %s167, 3
        %s170 = smul.addr %s169, 2
        %s171 = smul.addr %s170, 4
        %s172 = scalar_lea.vmem %s1, %s171
        %s173 = smul.u32 4, %s20
      $region16: #{discriminator_forward.8} parent=11 // pred_fallthru
        _
      // Predicated region
      $region17: #{discriminator_forward.8} parent=11 // pred_check
        %p174 = pneg %p100
      $region18: #{discriminator_forward.8} parent=11 // pred_check_branch
        %176 = sbr.rel (%p174) target = $region20
      $region19: #{discriminator_forward.8} parent=11 // pred_region
        %s177 = smul.u32 4, %s20
        %p178 = scmp.lt.s32.totalorder %s177, 3
        %s179 = scalar_select %p178, %s177, 3
        %s180 = smul.addr %s179, 8
        %s181 = scalar_lea.vmem %s2, %s180
        %s182 = smul.u32 4, %s20
      $region20: #{discriminator_forward.8} parent=11 // pred_fallthru
        _
      // Predicated region
      $region21: #{discriminator_forward.8} parent=11 // pred_check
        %p183 = pneg %p121
      $region22: #{discriminator_forward.8} parent=11 // pred_check_branch
        %185 = sbr.rel (%p183) target = $region24
      $region23: #{discriminator_forward.8} parent=11 // pred_region
        _
      $region24: #{discriminator_forward.8} parent=11 // pred_fallthru
        _
    $region12: #{discriminator_forward.8} parent=5 // pred_fallthru
      _
    %p186 = scmp.lt.s32.totalorder %s10, 2
    // Predicated region
    $region25: #{discriminator_forward.8} parent=5 // pred_check
      %p187 = pneg %p186
    $region26: #{discriminator_forward.8} parent=5 // pred_check_branch
      %189 = sbr.rel (%p187) target = $region28
    $region27: #{discriminator_forward.8} parent=5 // pred_region
      // Predicated region
      $region29: #{discriminator_forward.8} parent=27 // pred_check
        %p190 = pneg %p42
      $region30: #{discriminator_forward.8} parent=27 // pred_check_branch
        %192 = sbr.rel (%p190) target = $region32
      $region31: #{discriminator_forward.8} parent=27 // pred_region
        %p193 = scmp.lt.s32.totalorder %s17, 1
        %s194 = scalar_select %p193, %s17, 1
        %s195 = smul.addr %s194, 4
        %s196 = smul.addr %s195, 4
        %s197 = scalar_lea.vmem %s0, %s196
      $region32: #{discriminator_forward.8} parent=27 // pred_fallthru
        _
    $region28: #{discriminator_forward.8} parent=5 // pred_fallthru
      _
    %p198 = scmp.le.s32.totalorder 1, %s10
    %p199 = scmp.lt.s32.totalorder %s10, 3
    %p200 = pnand %p198, %p199
    %p201 = pneg %p200
    // Predicated region
    $region33: #{discriminator_forward.8} parent=5 // pred_check
      _
    $region34: #{discriminator_forward.8} parent=5 // pred_check_branch
      %203 = sbr.rel (%p200) target = $region36
    $region35: #{discriminator_forward.8} parent=5 // pred_region
      %s204 = ssub.s32 %s10, 1
      %p205 = scmp.lt.s32.totalorder %s19, 1
      %s206 = scalar_select %p205, %s19, 1
      %s207 = smul.addr %s206, 4
      %s208 = smul.addr %s207, 4
      %s209 = scalar_lea.vmem %s0, %s208
      %p210 = pneg %p48
      %p211 = pneg %p45
      %s212 = smul.u32 4, %s20
      %p213 = scmp.lt.s32.totalorder %s212, 3
      %s214 = scalar_select %p213, %s212, 3
      %s215 = smul.addr %s214, 2
      %s216 = smul.addr %s215, 4
      %s217 = scalar_lea.vmem %s1, %s216
      %p218 = pneg %p74
      %p219 = pneg %p71
      %s220 = smul.u32 4, %s20
      %p221 = scmp.lt.s32.totalorder %s220, 3
      %s222 = scalar_select %p221, %s220, 3
      %s223 = smul.addr %s222, 8
      %s224 = scalar_lea.vmem %s2, %s223
      %p225 = pneg %p100
      %p226 = pneg %p97
      %p227 = pneg %p121
      %p228 = pneg %p118
      %p229 = pneg %p149
      %p230 = pneg %p146
      %s231 = smul.u32 4, %s20
      %p232 = scmp.lt.s32.totalorder %s19, 1
      %s233 = scalar_select %p232, %s19, 1
      %p234 = scmp.lt.s32.totalorder %s231, 3
      %s235 = scalar_select %p234, %s231, 3
      %s236 = smul.addr %s233, 4
      %s237 = sadd.s32 %s235, %s236
      %s238 = smul.addr %s237, 4
      %s239 = scalar_lea.vmem %s4, %s238
      %p240 = scmp.lt.s32.totalorder %s19, 1
      %s241 = scalar_select %p240, %s19, 1
      %s242 = smul.addr %s241, 4
      %s243 = smul.addr %s242, 4
      %s244 = scalar_lea.vmem %s0, %s243
      %s245 = smul.u32 4, %s20
      %p246 = scmp.lt.s32.totalorder %s245, 3
      %s247 = scalar_select %p246, %s245, 3
      %s248 = smul.addr %s247, 2
      %s249 = smul.addr %s248, 4
      %s250 = scalar_lea.vmem %s1, %s249
      %s251 = smul.u32 4, %s20
      %s252 = smul.u32 4, %s20
      %p253 = scmp.lt.s32.totalorder %s252, 3
      %s254 = scalar_select %p253, %s252, 3
      %s255 = smul.addr %s254, 8
      %s256 = scalar_lea.vmem %s2, %s255
      %s257 = smul.u32 4, %s20
      %s258 = smul.u32 4, %s20
      %p259 = scmp.lt.s32.totalorder %s19, 1
      %s260 = scalar_select %p259, %s19, 1
      %p261 = scmp.lt.s32.totalorder %s258, 3
      %s262 = scalar_select %p261, %s258, 3
      %s263 = smul.addr %s260, 4
      %s264 = sadd.s32 %s262, %s263
      %s265 = smul.addr %s264, 4
      %s266 = scalar_lea.vmem %s4, %s265
      %s267 = smul.u32 4, %s20
      %v269 = vld [vmem:[%s250] sm:$0xff]
      %v270 = vld [vmem:[%s250 + $0x8] sm:$0xff]
      %v271 = vld [vmem:[%s250 + $0x10] sm:$0xff]
      %v272 = vld [vmem:[%s250 + $0x18] sm:$0xff]
      %v273 = vld [vmem:[%s244] sm:$0xf]
      %v274 = vld [vmem:[%s244 + $0x8] sm:$0xf]
      %v277 = vunpack.c.l.b16 %v273
      %v278 = vunpack.c.l.b16 %v274
      %v279 = vpack.c.b16 %v278, %v277
      %281 = vst [vmem:[#allocation2] sm:$0xff] %v279
      %v282 = vld [vmem:[%s244] sm:$0xff]
      %v283 = vld [vmem:[%s244 + $0x8] sm:$0xff]
      %v286 = vunpack.c.l.b16 %v282
      %v287 = vunpack.c.h.b16 %v282
      %v288 = vunpack.c.l.b16 %v283
      %v289 = vunpack.c.h.b16 %v283
      %v290 = vpack.c.b16 %v288, %v286
      %v291 = vpack.c.b16 %v289, %v287
      %292 = vrot.lane.b32.xlu0 %v290, 126
      %v293 = vpop.permute.xlu0 %292
      %294 = vrot.lane.b32.xlu0 %v291, 126
      %v295 = vpop.permute.xlu0 %294
      %vm296 = vcmask 1031168
      %v297 = vsel %vm296, %v293, %v295
      %299 = vst [vmem:[#allocation2 + $0x8] sm:$0xff] %v297
      %v300 = vld [vmem:[%s244] sm:$0xff]
      %v301 = vld [vmem:[%s244 + $0x8] sm:$0xff]
      %v304 = vunpack.c.l.b16 %v300
      %v305 = vunpack.c.h.b16 %v300
      %v306 = vunpack.c.l.b16 %v301
      %v307 = vunpack.c.h.b16 %v301
      %v308 = vpack.c.b16 %v306, %v304
      %v309 = vpack.c.b16 %v307, %v305
      %310 = vrot.lane.b32.xlu0 %v308, 124
      %v311 = vpop.permute.xlu0 %310
      %312 = vrot.lane.b32.xlu0 %v309, 124
      %v313 = vpop.permute.xlu0 %312
      %vm314 = vcmask 1014784
      %v315 = vsel %vm314, %v311, %v313
      %317 = vst [vmem:[#allocation2 + $0x10] sm:$0xff] %v315
      %v318 = vld [vmem:[%s244] sm:$0xff]
      %v319 = vld [vmem:[%s244 + $0x8] sm:$0xff]
      %v322 = vunpack.c.l.b16 %v318
      %v323 = vunpack.c.h.b16 %v318
      %v324 = vunpack.c.l.b16 %v319
      %v325 = vunpack.c.h.b16 %v319
      %v326 = vpack.c.b16 %v324, %v322
      %v327 = vpack.c.b16 %v325, %v323
      %328 = vrot.lane.b32.xlu0 %v326, 104
      %v329 = vpop.permute.xlu0 %328
      %330 = vrot.lane.b32.xlu0 %v327, 104
      %v331 = vpop.permute.xlu0 %330
      %vm332 = vcmask 850944
      %v333 = vsel %vm332, %v329, %v331
      %335 = vst [vmem:[#allocation2 + $0x18] sm:$0xff] %v333
      %v336 = vld [vmem:[%s244] sm:$0xff]
      %v337 = vld [vmem:[%s244 + $0x8] sm:$0xff]
      %v340 = vunpack.c.l.b16 %v336
      %v341 = vunpack.c.h.b16 %v336
      %v342 = vunpack.c.l.b16 %v337
      %v343 = vunpack.c.h.b16 %v337
      %v344 = vpack.c.b16 %v342, %v340
      %v345 = vpack.c.b16 %v343, %v341
      %346 = vrot.lane.b32.xlu0 %v344, 102
      %v347 = vpop.permute.xlu0 %346
      %348 = vrot.lane.b32.xlu0 %v345, 102
      %v349 = vpop.permute.xlu0 %348
      %vm350 = vcmask 834560
      %v351 = vsel %vm350, %v347, %v349
      %353 = vst [vmem:[#allocation2 + $0x20] sm:$0xff] %v351
      %v354 = vld [vmem:[%s244] sm:$0xff]
      %v355 = vld [vmem:[%s244 + $0x8] sm:$0xff]
      %v358 = vunpack.c.l.b16 %v354
      %v359 = vunpack.c.h.b16 %v354
      %v360 = vunpack.c.l.b16 %v355
      %v361 = vunpack.c.h.b16 %v355
      %v362 = vpack.c.b16 %v360, %v358
      %v363 = vpack.c.b16 %v361, %v359
      %364 = vrot.lane.b32.xlu0 %v362, 100
      %v365 = vpop.permute.xlu0 %364
      %366 = vrot.lane.b32.xlu0 %v363, 100
      %v367 = vpop.permute.xlu0 %366
      %vm368 = vcmask 818176
      %v369 = vsel %vm368, %v365, %v367
      %371 = vst [vmem:[#allocation2 + $0x28] sm:$0xff] %v369
      %v372 = vld [vmem:[%s244] sm:$0xff]
      %v373 = vld [vmem:[%s244 + $0x8] sm:$0xff]
      %v376 = vunpack.c.l.b16 %v372
      %v377 = vunpack.c.h.b16 %v372
      %v378 = vunpack.c.l.b16 %v373
      %v379 = vunpack.c.h.b16 %v373
      %v380 = vpack.c.b16 %v378, %v376
      %v381 = vpack.c.b16 %v379, %v377
      %382 = vrot.lane.b32.xlu0 %v380, 80
      %v383 = vpop.permute.xlu0 %382
      %384 = vrot.lane.b32.xlu0 %v381, 80
      %v385 = vpop.permute.xlu0 %384
      %vm386 = vcmask 654336
      %v387 = vsel %vm386, %v383, %v385
      %389 = vst [vmem:[#allocation2 + $0x30] sm:$0xff] %v387
      %v390 = vld [vmem:[%s244] sm:$0xff]
      %v391 = vld [vmem:[%s244 + $0x8] sm:$0xff]
      %v394 = vunpack.c.l.b16 %v390
      %v395 = vunpack.c.h.b16 %v390
      %v396 = vunpack.c.l.b16 %v391
      %v397 = vunpack.c.h.b16 %v391
      %v398 = vpack.c.b16 %v396, %v394
      %v399 = vpack.c.b16 %v397, %v395
      %400 = vrot.lane.b32.xlu0 %v398, 78
      %v401 = vpop.permute.xlu0 %400
      %402 = vrot.lane.b32.xlu0 %v399, 78
      %v403 = vpop.permute.xlu0 %402
      %vm404 = vcmask 637952
      %v405 = vsel %vm404, %v401, %v403
      %407 = vst [vmem:[#allocation2 + $0x38] sm:$0xff] %v405
      %v408 = vld [vmem:[%s244] sm:$0xff]
      %v409 = vld [vmem:[%s244 + $0x8] sm:$0xff]
      %v412 = vunpack.c.l.b16 %v408
      %v413 = vunpack.c.h.b16 %v408
      %v414 = vunpack.c.l.b16 %v409
      %v415 = vunpack.c.h.b16 %v409
      %v416 = vpack.c.b16 %v414, %v412
      %v417 = vpack.c.b16 %v415, %v413
      %418 = vrot.lane.b32.xlu0 %v416, 76
      %v419 = vpop.permute.xlu0 %418
      %420 = vrot.lane.b32.xlu0 %v417, 76
      %v421 = vpop.permute.xlu0 %420
      %vm422 = vcmask 621568
      %v423 = vsel %vm422, %v419, %v421
      %425 = vst [vmem:[#allocation2 + $0x40] sm:$0xff] %v423
      %v426 = vld [vmem:[#allocation2] sm:$0xff]
      %v427 = vld [vmem:[#allocation2 + $0x8] sm:$0xff]
      %v428 = vld [vmem:[#allocation2 + $0x10] sm:$0xff]
      %v429 = vld [vmem:[#allocation2 + $0x18] sm:$0xff]
      %v430 = vld [vmem:[#allocation2 + $0x20] sm:$0xff]
      %v431 = vld [vmem:[#allocation2 + $0x28] sm:$0xff]
      %v432 = vld [vmem:[#allocation2 + $0x30] sm:$0xff]
      %v433 = vld [vmem:[#allocation2 + $0x38] sm:$0xff]
      %v434 = vld [vmem:[#allocation2 + $0x40] sm:$0xff]
      %v439 = vunpack.c.l.b16 %v269
      %v440 = vunpack.c.h.b16 %v269
      %v441 = vunpack.c.l.b16 %v270
      %v442 = vunpack.c.h.b16 %v270
      %v443 = vunpack.c.l.b16 %v271
      %v444 = vunpack.c.h.b16 %v271
      %v445 = vunpack.c.l.b16 %v272
      %v446 = vunpack.c.h.b16 %v272
      %v447 = vpack.c.b16 %v441, %v439
      %v448 = vpack.c.b16 %v442, %v440
      %v449 = vpack.c.b16 %v445, %v443
      %v450 = vpack.c.b16 %v446, %v444
      %vm453 = vcmask 130048
      %v455 = vsel %vm453, %v448, 0
      %v458 = vsel %vm453, %v450, 0
      %460 = vmatprep.subr.bf16.mxu0 0
      %461 = vmatpush1.bf16.msra.mxu0 %v426
      %462 = vmatprep.subr.bf16.mxu0 0
      %463 = vmatpush1.bf16.msra.mxu0 %v427
      %464 = vmatprep.subr.bf16.mxu0 0
      %465 = vmatpush1.bf16.msra.mxu0 %v428
      %466 = vmatprep.subr.bf16.mxu0 0
      %467 = vmatpush1.bf16.msra.mxu0 %v429
      %468 = vmatprep.subr.bf16.mxu0 0
      %469 = vmatpush1.bf16.msra.mxu0 %v430
      %470 = vmatprep.subr.bf16.mxu0 0
      %471 = vmatpush1.bf16.msra.mxu0 %v431
      %472 = vmatprep.subr.bf16.mxu0 0
      %473 = vmatpush1.bf16.msra.mxu0 %v432
      %474 = vmatprep.subr.bf16.mxu0 0
      %475 = vmatpush1.bf16.msra.mxu0 %v433
      %476 = vmatprep.subr.bf16.mxu0 0
      %477 = vmatpush1.bf16.msra.mxu0 %v434
      %478 = vmatprep.subr.bf16.mxu0 0
      %479 = vmatpush1.bf16.msra.mxu0 0
      %480 = vmatprep.subr.bf16.mxu0 0
      %481 = vmatpush1.bf16.msra.mxu0 0
      %482 = vmatprep.subr.bf16.mxu0 0
      %483 = vmatpush1.bf16.msra.mxu0 0
      %484 = vmatprep.subr.bf16.mxu0 0
      %485 = vmatpush1.bf16.msra.mxu0 0
      %486 = vmatprep.subr.bf16.mxu0 0
      %487 = vmatpush1.bf16.msra.mxu0 0
      %488 = vmatprep.subr.bf16.mxu0 0
      %489 = vmatpush1.bf16.msra.mxu0 0
      %490 = vmatprep.subr.bf16.mxu0 0
      %491 = vmatpush1.bf16.msra.mxu0 0
      %492 = vmatprep.mubr.bf16.mxu0 %v455
      %493 = vmatmul.mubr.bf16.gmra.mrb[0].mxu0 %v447
      %v494 = vpop.f32.mrb[0].mxu0
      %v495 = vadd.f32 0.0, %v494
      %v496 = vpop.f32.mrb[0].mxu0
      %v497 = vpop.f32.mrb[0].mxu0
      %v498 = vadd.f32 0.0, %v497
      %v499 = vpop.f32.mrb[0].mxu0
      %500 = vmatprep.mubr.bf16.mxu0 %v458
      %501 = vmatmul.mubr.bf16.gmra.mrb[0].mxu0 %v449
      %v502 = vpop.f32.mrb[0].mxu0
      %v503 = vadd.f32 0.0, %v502
      %v504 = vpop.f32.mrb[0].mxu0
      %v505 = vpop.f32.mrb[0].mxu0
      %v506 = vadd.f32 0.0, %v505
      %v507 = vpop.f32.mrb[0].mxu0
      %508 = vdwg.mxu0
      %v509 = vld [vmem:[%s3] sm:$0x1]
      %v511 = vlaneseq
      %v512 = vshrl.u32 %v511, 7
      %v513 = vsub.s32 0, %v512
      %v514 = vrot.slane %v509, %v513
      %v516 = vmul.f32 %v495, %v514
      %v517 = vmul.f32 %v498, %v514
      %v518 = vmul.f32 %v503, %v514
      %v519 = vmul.f32 %v506, %v514
      %520 = vadd.xlane.f32.xlu0 %v516
      %v521 = vpop.xlane.xlu0 %520
      %522 = vadd.xlane.f32.xlu0 %v517
      %v523 = vpop.xlane.xlu0 %522
      %524 = vadd.xlane.f32.xlu0 %v518
      %v525 = vpop.xlane.xlu0 %524
      %526 = vadd.xlane.f32.xlu0 %v519
      %v527 = vpop.xlane.xlu0 %526
      %v528 = vmul.f32 %v495, %v495
      %v529 = vmul.f32 %v498, %v498
      %v530 = vmul.f32 %v503, %v503
      %v531 = vmul.f32 %v506, %v506
      %v532 = vmul.f32 %v528, %v514
      %v533 = vmul.f32 %v529, %v514
      %v534 = vmul.f32 %v530, %v514
      %v535 = vmul.f32 %v531, %v514
      %536 = vadd.xlane.f32.xlu0 %v532
      %v537 = vpop.xlane.xlu0 %536
      %538 = vadd.xlane.f32.xlu0 %v533
      %v539 = vpop.xlane.xlu0 %538
      %540 = vadd.xlane.f32.xlu0 %v534
      %v541 = vpop.xlane.xlu0 %540
      %542 = vadd.xlane.f32.xlu0 %v535
      %v543 = vpop.xlane.xlu0 %542
      %v544 = vmul.f32 %v521, 0.015625
      %v545 = vmul.f32 %v523, 0.015625
      %v546 = vmul.f32 %v525, 0.015625
      %v547 = vmul.f32 %v527, 0.015625
      %v548 = vmul.f32 %v537, 0.015625
      %v549 = vmul.f32 %v539, 0.015625
      %v550 = vmul.f32 %v541, 0.015625
      %v551 = vmul.f32 %v543, 0.015625
      %v552 = vmul.f32 %v544, %v544
      %v553 = vmul.f32 %v545, %v545
      %v554 = vmul.f32 %v546, %v546
      %v555 = vmul.f32 %v547, %v547
      %v556 = vsub.f32 %v548, %v552
      %v557 = vsub.f32 %v549, %v553
      %v558 = vsub.f32 %v550, %v554
      %v559 = vsub.f32 %v551, %v555
      %v560 = vadd.f32 %v556, 1e-05
      %v561 = vadd.f32 %v557, 1e-05
      %v562 = vadd.f32 %v558, 1e-05
      %v563 = vadd.f32 %v559, 1e-05
      %v564 = vrsqrt.pop %v560
      %v565 = vrsqrt.pop %v561
      %v566 = vrsqrt.pop %v562
      %v567 = vrsqrt.pop %v563
      %v568 = vsub.f32 %v495, %v544
      %v569 = vsub.f32 %v498, %v545
      %v570 = vsub.f32 %v503, %v546
      %v571 = vsub.f32 %v506, %v547
      %v572 = vmul.f32 %v568, %v564
      %v573 = vmul.f32 %v569, %v565
      %v574 = vmul.f32 %v570, %v566
      %v575 = vmul.f32 %v571, %v567
      %vm576 = vcmp.ge.f32.partialorder %v572, 0.0
      %vm577 = vcmp.ge.f32.partialorder %v573, 0.0
      %vm578 = vcmp.ge.f32.partialorder %v574, 0.0
      %vm579 = vcmp.ge.f32.partialorder %v575, 0.0
      %v580 = vmul.f32 %v572, 0.2
      %v581 = vmul.f32 %v573, 0.2
      %v582 = vmul.f32 %v574, 0.2
      %v583 = vmul.f32 %v575, 0.2
      %v584 = vsel %vm576, %v572, %v580
      %v585 = vsel %vm577, %v573, %v581
      %v586 = vsel %vm578, %v574, %v582
      %v587 = vsel %vm579, %v575, %v583
      %v588 = vpack.c.bf16 %v585, %v584
      %v589 = vpack.c.bf16 %v587, %v586
      %v592 = vunpack.c.l.b16 %v588
      %v593 = vunpack.c.h.b16 %v588
      %v594 = vunpack.c.l.b16 %v589
      %v595 = vunpack.c.h.b16 %v589
      %v596 = vpack.c.b16 %v592, %v592
      %v597 = vpack.c.b16 %v593, %v593
      %v598 = vpack.c.b16 %v594, %v594
      %v599 = vpack.c.b16 %v595, %v595
      %604 = vst [vmem:[%s266] sm:$0xf] %v596
      %605 = vst [vmem:[%s266 + $0x4] sm:$0xf] %v597
      %606 = vst [vmem:[%s266 + $0x8] sm:$0xf] %v598
      %607 = vst [vmem:[%s266 + $0xc] sm:$0xf] %v599
      %s608 = smul.u32 4, %s20
      %p609 = scmp.lt.s32.totalorder %s19, 1
      %s610 = scalar_select %p609, %s19, 1
      %p611 = scmp.lt.s32.totalorder %s608, 3
      %s612 = scalar_select %p611, %s608, 3
      %s613 = smul.addr %s610, 4
      %s614 = sadd.s32 %s612, %s613
      %s615 = smul.addr %s614, 4
      %s616 = scalar_lea.vmem %s4, %s615
      // Predicated region
      $region37: #{discriminator_forward.8} parent=35 // pred_check
        %p617 = pneg %p146
      $region38: #{discriminator_forward.8} parent=35 // pred_check_branch
        %619 = sbr.rel (%p617) target = $region40
      $region39: #{discriminator_forward.8} parent=35 // pred_region
        %s620 = smul.u32 4, %s20
      $region40: #{discriminator_forward.8} parent=35 // pred_fallthru
        _
    $region36: #{discriminator_forward.8} parent=5 // pred_fallthru
      _
    %p621 = scmp.le.s32.totalorder 2, %s10
    // Predicated region
    $region41: #{discriminator_forward.8} parent=5 // pred_check
      %p622 = pneg %p621
    $region42: #{discriminator_forward.8} parent=5 // pred_check_branch
      %624 = sbr.rel (%p622) target = $region44
    $region43: #{discriminator_forward.8} parent=5 // pred_region
      %s625 = ssub.s32 %s10, 2
      // Predicated region
      $region45: #{discriminator_forward.8} parent=43 // pred_check
        %p626 = pneg %p152
      $region46: #{discriminator_forward.8} parent=43 // pred_check_branch
        %628 = sbr.rel (%p626) target = $region48
      $region47: #{discriminator_forward.8} parent=43 // pred_region
        %s629 = smul.u32 4, %s22
        %p630 = scmp.lt.s32.totalorder %s21, 1
        %s631 = scalar_select %p630, %s21, 1
        %p632 = scmp.lt.s32.totalorder %s629, 3
        %s633 = scalar_select %p632, %s629, 3
        %s634 = smul.addr %s631, 4
        %s635 = sadd.s32 %s633, %s634
        %s636 = smul.addr %s635, 4
        %s637 = scalar_lea.vmem %s4, %s636
      $region48: #{discriminator_forward.8} parent=43 // pred_fallthru
        _
    $region44: #{discriminator_forward.8} parent=5 // pred_fallthru
      _
  $region6: #{discriminator_forward.8} parent=0 // loop_footer
    %s14 = sadd.s32 1, %s10
  $region7: #{discriminator_forward.8} parent=0 // loop_footer_branch
    %9 = sbr.rel target = $region3
  $region8: #{discriminator_forward.8} parent=0 // loop_exit
    _

// kernel: discriminator_forward.9
$region0: #{discriminator_forward.9}
  #allocation0 [shape = 'u32[]', space=smem, size = 0x4, offset = 0x4, fixed_abs, tag = 'smem constant byte address 0x4 - core index']
  #allocation1 [shape = 'u32[144,128]{1,0:T(1,128)}', space=vmem, size = 0x12000, scoped, tag = 'internal scratch']
  #allocation2 [shape = 'bf16[288,128]{1,0:T(16,128)(2,1)}', space=vmem, size = 0x12000, scoped, tag = 'scratch operand']
  %s0 = inlined_call_operand.vmem [shape: bf16[2,32,264], index: 0, kind: input, shape index: {}]
  %s1 = inlined_call_operand.vmem [shape: bf16[64,288], index: 1, kind: input, shape index: {}]
  %s2 = inlined_call_operand.vmem [shape: f32[64,1], index: 2, kind: input, shape index: {}]
  %s3 = inlined_call_operand.vmem [shape: f32[1,128], index: 3, kind: input, shape index: {}]
  %s4 = inlined_call_operand.vmem [shape: bf16[2,64,128], index: 4, kind: output, shape index: {}]
  %s5 = sld [smem:[#allocation0]]
  $region49: #{discriminator_forward.9} parent=0
    _
  %s7 = ssub.s32 1, %s5
  %s8 = scalar_select 0, %s7, %s5
  loop: start=0, step=1, limit=4
  $region2: #{discriminator_forward.9} parent=0 // loop_pre_header
    _
  $region3: #{discriminator_forward.9} parent=0 // loop_header
    %s10 = sphi 0, %s14
    %p11 = scmp.ge.s32.totalorder %s10, 4
    %s17 = sphi 0, %s29
    %s18 = sphi 0, %s25
    %s19 = sphi 0, %s17
    %s20 = sphi 0, %s18
    %s21 = sphi 0, %s19
    %s22 = sphi 0, %s20
    %s32 = sphi 0, %s34
    %s35 = sphi 0, %s32
    %s36 = sphi 0, %s35
    %s52 = sphi 0, %s36
    %s58 = sphi 0, %s60
    %s61 = sphi 0, %s58
    %s62 = sphi 0, %s61
    %s78 = sphi 0, %s62
    %s84 = sphi 0, %s86
    %s87 = sphi 0, %s84
    %s88 = sphi 0, %s87
    %s104 = sphi 0, %s88
    %s108 = sphi 0, %s108
    %s110 = sphi 0, %s108
    %s111 = sphi 0, %s110
    %s125 = sphi 0, %s111
    %s133 = sphi 0, %s135
    %s136 = sphi 0, %s133
    %s137 = sphi 0, %s136
    %s153 = sphi 0, %s137
  $region4: #{discriminator_forward.9} parent=0 // loop_header_branch
    %13 = sbr.rel (%p11) target = $region8
  $region5: #{discriminator_forward.9} parent=0 // loop_body
    %s15 = ssub.s32 %s10, 1
    %s16 = ssub.s32 %s10, 2
    %s23 = sadd.s32 1, %s18
    %p24 = scmp.ge.s32.totalorder %s23, 1
    %s25 = scalar_select %p24, 0, %s23
    %s26 = sadd.s32 1, %s17
    %s27 = scalar_select %p24, %s26, %s17
    %p28 = scmp.ge.s32.totalorder %s27, 2
    %s29 = scalar_select %p28, 0, %s27
    %s30 = ssub.s32 %s17, %s29
    %p31 = scmp.eq.s32.totalorder %s30, 0
    %s33 = sadd.s32 %s32, 1
    %s34 = scalar_select %p31, %s32, %s33
    %p37 = pneg %p31
    %p38 = scmp.eq.s32.totalorder %s10, 1
    %p39 = por %p37, %p38
    %p40 = scmp.ne.s32.totalorder %s32, %s35
    %p41 = scmp.eq.s32.totalorder %s10, 0
    %p42 = por %p40, %p41
    %p43 = scmp.ne.s32.totalorder %s32, %s35
    %p44 = scmp.eq.s32.totalorder %s15, 1
    %p45 = por %p43, %p44
    %p46 = scmp.ne.s32.totalorder %s35, %s36
    %p47 = scmp.eq.s32.totalorder %s15, 0
    %p48 = por %p46, %p47
    %p49 = scmp.ne.s32.totalorder %s35, %s36
    %p50 = scmp.eq.s32.totalorder %s16, 1
    %p51 = por %p49, %p50
    %p53 = scmp.ne.s32.totalorder %s36, %s52
    %p54 = scmp.eq.s32.totalorder %s16, 0
    %p55 = por %p53, %p54
    %s56 = ssub.s32 %s18, %s25
    %p57 = scmp.eq.s32.totalorder %s56, 0
    %s59 = sadd.s32 %s58, 1
    %s60 = scalar_select %p57, %s58, %s59
    %p63 = pneg %p57
    %p64 = scmp.eq.s32.totalorder %s10, 1
    %p65 = por %p63, %p64
    %p66 = scmp.ne.s32.totalorder %s58, %s61
    %p67 = scmp.eq.s32.totalorder %s10, 0
    %p68 = por %p66, %p67
    %p69 = scmp.ne.s32.totalorder %s58, %s61
    %p70 = scmp.eq.s32.totalorder %s15, 1
    %p71 = por %p69, %p70
    %p72 = scmp.ne.s32.totalorder %s61, %s62
    %p73 = scmp.eq.s32.totalorder %s15, 0
    %p74 = por %p72, %p73
    %p75 = scmp.ne.s32.totalorder %s61, %s62
    %p76 = scmp.eq.s32.totalorder %s16, 1
    %p77 = por %p75, %p76
    %p79 = scmp.ne.s32.totalorder %s62, %s78
    %p80 = scmp.eq.s32.totalorder %s16, 0
    %p81 = por %p79, %p80
    %s82 = ssub.s32 %s18, %s25
    %p83 = scmp.eq.s32.totalorder %s82, 0
    %s85 = sadd.s32 %s84, 1
    %s86 = scalar_select %p83, %s84, %s85
    %p89 = pneg %p83
    %p90 = scmp.eq.s32.totalorder %s10, 1
    %p91 = por %p89, %p90
    %p92 = scmp.ne.s32.totalorder %s84, %s87
    %p93 = scmp.eq.s32.totalorder %s10, 0
    %p94 = por %p92, %p93
    %p95 = scmp.ne.s32.totalorder %s84, %s87
    %p96 = scmp.eq.s32.totalorder %s15, 1
    %p97 = por %p95, %p96
    %p98 = scmp.ne.s32.totalorder %s87, %s88
    %p99 = scmp.eq.s32.totalorder %s15, 0
    %p100 = por %p98, %p99
    %p101 = scmp.ne.s32.totalorder %s87, %s88
    %p102 = scmp.eq.s32.totalorder %s16, 1
    %p103 = por %p101, %p102
    %p105 = scmp.ne.s32.totalorder %s88, %s104
    %p106 = scmp.eq.s32.totalorder %s16, 0
    %p107 = por %p105, %p106
    %s109 = sadd.s32 %s108, 1
    %p112 = scmp.eq.s32.totalorder %s10, 1
    %p113 = scmp.ne.s32.totalorder %s108, %s110
    %p114 = scmp.eq.s32.totalorder %s10, 0
    %p115 = por %p113, %p114
    %p116 = scmp.ne.s32.totalorder %s108, %s110
    %p117 = scmp.eq.s32.totalorder %s15, 1
    %p118 = por %p116, %p117
    %p119 = scmp.ne.s32.totalorder %s110, %s111
    %p120 = scmp.eq.s32.totalorder %s15, 0
    %p121 = por %p119, %p120
    %p122 = scmp.ne.s32.totalorder %s110, %s111
    %p123 = scmp.eq.s32.totalorder %s16, 1
    %p124 = por %p122, %p123
    %p126 = scmp.ne.s32.totalorder %s111, %s125
    %p127 = scmp.eq.s32.totalorder %s16, 0
    %p128 = por %p126, %p127
    %s129 = ssub.s32 %s17, %s29
    %s130 = ssub.s32 %s18, %s25
    %s131 = sor.u32 %s129, %s130
    %p132 = scmp.eq.s32.totalorder %s131, 0
    %s134 = sadd.s32 %s133, 1
    %s135 = scalar_select %p132, %s133, %s134
    %p138 = pneg %p132
    %p139 = scmp.eq.s32.totalorder %s10, 1
    %p140 = por %p138, %p139
    %p141 = scmp.ne.s32.totalorder %s133, %s136
    %p142 = scmp.eq.s32.totalorder %s10, 0
    %p143 = por %p141, %p142
    %p144 = scmp.ne.s32.totalorder %s133, %s136
    %p145 = scmp.eq.s32.totalorder %s15, 1
    %p146 = por %p144, %p145
    %p147 = scmp.ne.s32.totalorder %s136, %s137
    %p148 = scmp.eq.s32.totalorder %s15, 0
    %p149 = por %p147, %p148
    %p150 = scmp.ne.s32.totalorder %s136, %s137
    %p151 = scmp.eq.s32.totalorder %s16, 1
    %p152 = por %p150, %p151
    %p154 = scmp.ne.s32.totalorder %s137, %s153
    %p155 = scmp.eq.s32.totalorder %s16, 0
    %p156 = por %p154, %p155
    %p157 = scmp.le.s32.totalorder 1, %s10
    %p158 = scmp.lt.s32.totalorder %s10, 3
    %p159 = pnand %p157, %p158
    %p160 = pneg %p159
    // Predicated region
    $region9: #{discriminator_forward.9} parent=5 // pred_check
      _
    $region10: #{discriminator_forward.9} parent=5 // pred_check_branch
      %162 = sbr.rel (%p159) target = $region12
    $region11: #{discriminator_forward.9} parent=5 // pred_region
      %s163 = ssub.s32 %s10, 1
      // Predicated region
      $region13: #{discriminator_forward.9} parent=11 // pred_check
        %p164 = pneg %p74
      $region14: #{discriminator_forward.9} parent=11 // pred_check_branch
        %166 = sbr.rel (%p164) target = $region16
      $region15: #{discriminator_forward.9} parent=11 // pred_region
        %s167 = smul.u32 8, %s20
        %p168 = scmp.lt.s32.totalorder %s167, 7
        %s169 = scalar_select %p168, %s167, 7
        %s170 = smul.addr %s169, 3
        %s171 = smul.addr %s170, 4
        %s172 = scalar_lea.vmem %s1, %s171
        %s173 = smul.u32 8, %s20
      $region16: #{discriminator_forward.9} parent=11 // pred_fallthru
        _
      // Predicated region
      $region17: #{discriminator_forward.9} parent=11 // pred_check
        %p174 = pneg %p100
      $region18: #{discriminator_forward.9} parent=11 // pred_check_branch
        %176 = sbr.rel (%p174) target = $region20
      $region19: #{discriminator_forward.9} parent=11 // pred_region
        %s177 = smul.u32 8, %s20
        %p178 = scmp.lt.s32.totalorder %s177, 7
        %s179 = scalar_select %p178, %s177, 7
        %s180 = smul.addr %s179, 8
        %s181 = scalar_lea.vmem %s2, %s180
        %s182 = smul.u32 8, %s20
      $region20: #{discriminator_forward.9} parent=11 // pred_fallthru
        _
      // Predicated region
      $region21: #{discriminator_forward.9} parent=11 // pred_check
        %p183 = pneg %p121
      $region22: #{discriminator_forward.9} parent=11 // pred_check_branch
        %185 = sbr.rel (%p183) target = $region24
      $region23: #{discriminator_forward.9} parent=11 // pred_region
        _
      $region24: #{discriminator_forward.9} parent=11 // pred_fallthru
        _
    $region12: #{discriminator_forward.9} parent=5 // pred_fallthru
      _
    %p186 = scmp.lt.s32.totalorder %s10, 2
    // Predicated region
    $region25: #{discriminator_forward.9} parent=5 // pred_check
      %p187 = pneg %p186
    $region26: #{discriminator_forward.9} parent=5 // pred_check_branch
      %189 = sbr.rel (%p187) target = $region28
    $region27: #{discriminator_forward.9} parent=5 // pred_region
      // Predicated region
      $region29: #{discriminator_forward.9} parent=27 // pred_check
        %p190 = pneg %p42
      $region30: #{discriminator_forward.9} parent=27 // pred_check_branch
        %192 = sbr.rel (%p190) target = $region32
      $region31: #{discriminator_forward.9} parent=27 // pred_region
        %p193 = scmp.lt.s32.totalorder %s17, 1
        %s194 = scalar_select %p193, %s17, 1
        %s195 = smul.addr %s194, 12
        %s196 = smul.addr %s195, 4
        %s197 = scalar_lea.vmem %s0, %s196
      $region32: #{discriminator_forward.9} parent=27 // pred_fallthru
        _
    $region28: #{discriminator_forward.9} parent=5 // pred_fallthru
      _
    %p198 = scmp.le.s32.totalorder 1, %s10
    %p199 = scmp.lt.s32.totalorder %s10, 3
    %p200 = pnand %p198, %p199
    %p201 = pneg %p200
    // Predicated region
    $region33: #{discriminator_forward.9} parent=5 // pred_check
      _
    $region34: #{discriminator_forward.9} parent=5 // pred_check_branch
      %203 = sbr.rel (%p200) target = $region36
    $region35: #{discriminator_forward.9} parent=5 // pred_region
      %s204 = ssub.s32 %s10, 1
      %p205 = scmp.lt.s32.totalorder %s19, 1
      %s206 = scalar_select %p205, %s19, 1
      %s207 = smul.addr %s206, 12
      %s208 = smul.addr %s207, 4
      %s209 = scalar_lea.vmem %s0, %s208
      %p210 = pneg %p48
      %p211 = pneg %p45
      %s212 = smul.u32 8, %s20
      %p213 = scmp.lt.s32.totalorder %s212, 7
      %s214 = scalar_select %p213, %s212, 7
      %s215 = smul.addr %s214, 3
      %s216 = smul.addr %s215, 4
      %s217 = scalar_lea.vmem %s1, %s216
      %p218 = pneg %p74
      %p219 = pneg %p71
      %s220 = smul.u32 8, %s20
      %p221 = scmp.lt.s32.totalorder %s220, 7
      %s222 = scalar_select %p221, %s220, 7
      %s223 = smul.addr %s222, 8
      %s224 = scalar_lea.vmem %s2, %s223
      %p225 = pneg %p100
      %p226 = pneg %p97
      %p227 = pneg %p121
      %p228 = pneg %p118
      %p229 = pneg %p149
      %p230 = pneg %p146
      %s231 = smul.u32 8, %s20
      %p232 = scmp.lt.s32.totalorder %s19, 1
      %s233 = scalar_select %p232, %s19, 1
      %p234 = scmp.lt.s32.totalorder %s231, 7
      %s235 = scalar_select %p234, %s231, 7
      %s236 = smul.addr %s233, 8
      %s237 = sadd.s32 %s235, %s236
      %s238 = smul.addr %s237, 4
      %s239 = scalar_lea.vmem %s4, %s238
      %p240 = scmp.lt.s32.totalorder %s19, 1
      %s241 = scalar_select %p240, %s19, 1
      %s242 = smul.addr %s241, 12
      %s243 = smul.addr %s242, 4
      %s244 = scalar_lea.vmem %s0, %s243
      %s245 = smul.u32 8, %s20
      %p246 = scmp.lt.s32.totalorder %s245, 7
      %s247 = scalar_select %p246, %s245, 7
      %s248 = smul.addr %s247, 3
      %s249 = smul.addr %s248, 4
      %s250 = scalar_lea.vmem %s1, %s249
      %s251 = smul.u32 8, %s20
      %s252 = smul.u32 8, %s20
      %p253 = scmp.lt.s32.totalorder %s252, 7
      %s254 = scalar_select %p253, %s252, 7
      %s255 = smul.addr %s254, 8
      %s256 = scalar_lea.vmem %s2, %s255
      %s257 = smul.u32 8, %s20
      %s258 = smul.u32 8, %s20
      %p259 = scmp.lt.s32.totalorder %s19, 1
      %s260 = scalar_select %p259, %s19, 1
      %p261 = scmp.lt.s32.totalorder %s258, 7
      %s262 = scalar_select %p261, %s258, 7
      %s263 = smul.addr %s260, 8
      %s264 = sadd.s32 %s262, %s263
      %s265 = smul.addr %s264, 4
      %s266 = scalar_lea.vmem %s4, %s265
      %s267 = smul.u32 8, %s20
      %v269 = vld [vmem:[%s250] sm:$0xff]
      %v270 = vld [vmem:[%s250 + $0x8] sm:$0xf]
      %v271 = vld [vmem:[%s250 + $0xc] sm:$0xff]
      %v272 = vld [vmem:[%s250 + $0x14] sm:$0xf]
      %v273 = vld [vmem:[%s250 + $0x18] sm:$0xff]
      %v274 = vld [vmem:[%s250 + $0x20] sm:$0xf]
      %v275 = vld [vmem:[%s250 + $0x24] sm:$0xff]
      %v276 = vld [vmem:[%s250 + $0x2c] sm:$0xf]
      %v277 = vld [vmem:[%s250 + $0x30] sm:$0xff]
      %v278 = vld [vmem:[%s250 + $0x38] sm:$0xf]
      %v279 = vld [vmem:[%s250 + $0x3c] sm:$0xff]
      %v280 = vld [vmem:[%s250 + $0x44] sm:$0xf]
      %v281 = vld [vmem:[%s250 + $0x48] sm:$0xff]
      %v282 = vld [vmem:[%s250 + $0x50] sm:$0xf]
      %v283 = vld [vmem:[%s250 + $0x54] sm:$0xff]
      %v284 = vld [vmem:[%s250 + $0x5c] sm:$0xf]
      %v285 = vld [vmem:[%s244] sm:$0xf]
      %v286 = vld [vmem:[%s244 + $0xc] sm:$0xf]
      %v287 = vld [vmem:[%s244 + $0x18] sm:$0xf]
      %v288 = vld [vmem:[%s244 + $0x24] sm:$0xf]
      %v293 = vunpack.c.l.b16 %v285
      %v294 = vunpack.c.l.b16 %v286
      %v295 = vunpack.c.l.b16 %v287
      %v296 = vunpack.c.l.b16 %v288
      %v297 = vpack.c.b16 %v294, %v293
      %v298 = vpack.c.b16 %v296, %v295
      %301 = vst [vmem:[#allocation2] sm:$0xff] %v297
      %302 = vst [vmem:[#allocation2 + $0x8] sm:$0xff] %v298
      %v303 = vld [vmem:[%s244] sm:$0xff]
      %v304 = vld [vmem:[%s244 + $0xc] sm:$0xff]
      %v305 = vld [vmem:[%s244 + $0x18] sm:$0xff]
      %v306 = vld [vmem:[%s244 + $0x24] sm:$0xff]
      %v311 = vunpack.c.l.b16 %v303
      %v312 = vunpack.c.h.b16 %v303
      %v313 = vunpack.c.l.b16 %v304
      %v314 = vunpack.c.h.b16 %v304
      %v315 = vunpack.c.l.b16 %v305
      %v316 = vunpack.c.h.b16 %v305
      %v317 = vunpack.c.l.b16 %v306
      %v318 = vunpack.c.h.b16 %v306
      %v319 = vpack.c.b16 %v313, %v311
      %v320 = vpack.c.b16 %v314, %v312
      %v321 = vpack.c.b16 %v317, %v315
      %v322 = vpack.c.b16 %v318, %v316
      %323 = vrot.lane.b32.xlu0 %v319, 124
      %v324 = vpop.permute.xlu0 %323
      %325 = vrot.lane.b32.xlu0 %v320, 124
      %v326 = vpop.permute.xlu0 %325
      %327 = vrot.lane.b32.xlu0 %v321, 124
      %v328 = vpop.permute.xlu0 %327
      %329 = vrot.lane.b32.xlu0 %v322, 124
      %v330 = vpop.permute.xlu0 %329
      %vm331 = vcmask 1014784
      %v332 = vsel %vm331, %v324, %v326
      %v333 = vsel %vm331, %v328, %v330
      %336 = vst [vmem:[#allocation2 + $0x10] sm:$0xff] %v332
      %337 = vst [vmem:[#allocation2 + $0x18] sm:$0xff] %v333
      %v338 = vld [vmem:[%s244] sm:$0xff]
      %v339 = vld [vmem:[%s244 + $0xc] sm:$0xff]
      %v340 = vld [vmem:[%s244 + $0x18] sm:$0xff]
      %v341 = vld [vmem:[%s244 + $0x24] sm:$0xff]
      %v346 = vunpack.c.l.b16 %v338
      %v347 = vunpack.c.h.b16 %v338
      %v348 = vunpack.c.l.b16 %v339
      %v349 = vunpack.c.h.b16 %v339
      %v350 = vunpack.c.l.b16 %v340
      %v351 = vunpack.c.h.b16 %v340
      %v352 = vunpack.c.l.b16 %v341
      %v353 = vunpack.c.h.b16 %v341
      %v354 = vpack.c.b16 %v348, %v346
      %v355 = vpack.c.b16 %v349, %v347
      %v356 = vpack.c.b16 %v352, %v350
      %v357 = vpack.c.b16 %v353, %v351
      %358 = vrot.lane.b32.xlu0 %v354, 120
      %v359 = vpop.permute.xlu0 %358
      %360 = vrot.lane.b32.xlu0 %v355, 120
      %v361 = vpop.permute.xlu0 %360
      %362 = vrot.lane.b32.xlu0 %v356, 120
      %v363 = vpop.permute.xlu0 %362
      %364 = vrot.lane.b32.xlu0 %v357, 120
      %v365 = vpop.permute.xlu0 %364
      %vm366 = vcmask 982016
      %v367 = vsel %vm366, %v359, %v361
      %v368 = vsel %vm366, %v363, %v365
      %371 = vst [vmem:[#allocation2 + $0x20] sm:$0xff] %v367
      %372 = vst [vmem:[#allocation2 + $0x28] sm:$0xff] %v368
      %v373 = vld [vmem:[%s244] sm:$0xff]
      %v374 = vld [vmem:[%s244 + $0xc] sm:$0xff]
      %v375 = vld [vmem:[%s244 + $0x18] sm:$0xff]
      %v376 = vld [vmem:[%s244 + $0x24] sm:$0xff]
      %v381 = vunpack.c.l.b16 %v373
      %v382 = vunpack.c.h.b16 %v373
      %v383 = vunpack.c.l.b16 %v374
      %v384 = vunpack.c.h.b16 %v374
      %v385 = vunpack.c.l.b16 %v375
      %v386 = vunpack.c.h.b16 %v375
      %v387 = vunpack.c.l.b16 %v376
      %v388 = vunpack.c.h.b16 %v376
      %v389 = vpack.c.b16 %v383, %v381
      %v390 = vpack.c.b16 %v384, %v382
      %v391 = vpack.c.b16 %v387, %v385
      %v392 = vpack.c.b16 %v388, %v386
      %393 = vrot.lane.b32.xlu0 %v389, 64
      %v394 = vpop.permute.xlu0 %393
      %395 = vrot.lane.b32.xlu0 %v390, 64
      %v396 = vpop.permute.xlu0 %395
      %397 = vrot.lane.b32.xlu0 %v391, 64
      %v398 = vpop.permute.xlu0 %397
      %399 = vrot.lane.b32.xlu0 %v392, 64
      %v400 = vpop.permute.xlu0 %399
      %vm401 = vcmask 523264
      %v402 = vsel %vm401, %v394, %v396
      %v403 = vsel %vm401, %v398, %v400
      %406 = vst [vmem:[#allocation2 + $0x30] sm:$0xff] %v402
      %407 = vst [vmem:[#allocation2 + $0x38] sm:$0xff] %v403
      %v408 = vld [vmem:[%s244] sm:$0xff]
      %v409 = vld [vmem:[%s244 + $0xc] sm:$0xff]
      %v410 = vld [vmem:[%s244 + $0x18] sm:$0xff]
      %v411 = vld [vmem:[%s244 + $0x24] sm:$0xff]
      %v416 = vunpack.c.l.b16 %v408
      %v417 = vunpack.c.h.b16 %v408
      %v418 = vunpack.c.l.b16 %v409
      %v419 = vunpack.c.h.b16 %v409
      %v420 = vunpack.c.l.b16 %v410
      %v421 = vunpack.c.h.b16 %v410
      %v422 = vunpack.c.l.b16 %v411
      %v423 = vunpack.c.h.b16 %v411
      %v424 = vpack.c.b16 %v418, %v416
      %v425 = vpack.c.b16 %v419, %v417
      %v426 = vpack.c.b16 %v422, %v420
      %v427 = vpack.c.b16 %v423, %v421
      %428 = vrot.lane.b32.xlu0 %v424, 60
      %v429 = vpop.permute.xlu0 %428
      %430 = vrot.lane.b32.xlu0 %v425, 60
      %v431 = vpop.permute.xlu0 %430
      %432 = vrot.lane.b32.xlu0 %v426, 60
      %v433 = vpop.permute.xlu0 %432
      %434 = vrot.lane.b32.xlu0 %v427, 60
      %v435 = vpop.permute.xlu0 %434
      %vm436 = vcmask 490496
      %v437 = vsel %vm436, %v429, %v431
      %v438 = vsel %vm436, %v433, %v435
      %441 = vst [vmem:[#allocation2 + $0x40] sm:$0xff] %v437
      %442 = vst [vmem:[#allocation2 + $0x48] sm:$0xff] %v438
      %v443 = vld [vmem:[%s244] sm:$0xff]
      %v444 = vld [vmem:[%s244 + $0xc] sm:$0xff]
      %v445 = vld [vmem:[%s244 + $0x18] sm:$0xff]
      %v446 = vld [vmem:[%s244 + $0x24] sm:$0xff]
      %v451 = vunpack.c.l.b16 %v443
      %v452 = vunpack.c.h.b16 %v443
      %v453 = vunpack.c.l.b16 %v444
      %v454 = vunpack.c.h.b16 %v444
      %v455 = vunpack.c.l.b16 %v445
      %v456 = vunpack.c.h.b16 %v445
      %v457 = vunpack.c.l.b16 %v446
      %v458 = vunpack.c.h.b16 %v446
      %v459 = vpack.c.b16 %v453, %v451
      %v460 = vpack.c.b16 %v454, %v452
      %v461 = vpack.c.b16 %v457, %v455
      %v462 = vpack.c.b16 %v458, %v456
      %463 = vrot.lane.b32.xlu0 %v459, 56
      %v464 = vpop.permute.xlu0 %463
      %465 = vrot.lane.b32.xlu0 %v460, 56
      %v466 = vpop.permute.xlu0 %465
      %467 = vrot.lane.b32.xlu0 %v461, 56
      %v468 = vpop.permute.xlu0 %467
      %469 = vrot.lane.b32.xlu0 %v462, 56
      %v470 = vpop.permute.xlu0 %469
      %vm471 = vcmask 457728
      %v472 = vsel %vm471, %v464, %v466
      %v473 = vsel %vm471, %v468, %v470
      %476 = vst [vmem:[#allocation2 + $0x50] sm:$0xff] %v472
      %477 = vst [vmem:[#allocation2 + $0x58] sm:$0xff] %v473
      %v478 = vld [vmem:[%s244 + $0x4] sm:$0xf]
      %v479 = vld [vmem:[%s244 + $0x10] sm:$0xf]
      %v480 = vld [vmem:[%s244 + $0x1c] sm:$0xf]
      %v481 = vld [vmem:[%s244 + $0x28] sm:$0xf]
      %v486 = vunpack.c.l.b16 %v478
      %v487 = vunpack.c.l.b16 %v479
      %v488 = vunpack.c.l.b16 %v480
      %v489 = vunpack.c.l.b16 %v481
      %v490 = vpack.c.b16 %v487, %v486
      %v491 = vpack.c.b16 %v489, %v488
      %494 = vst [vmem:[#allocation2 + $0x60] sm:$0xff] %v490
      %495 = vst [vmem:[#allocation2 + $0x68] sm:$0xff] %v491
      %v496 = vld [vmem:[%s244 + $0x4] sm:$0xff]
      %v497 = vld [vmem:[%s244 + $0x10] sm:$0xff]
      %v498 = vld [vmem:[%s244 + $0x1c] sm:$0xff]
      %v499 = vld [vmem:[%s244 + $0x28] sm:$0xff]
      %v504 = vunpack.c.l.b16 %v496
      %v505 = vunpack.c.h.b16 %v496
      %v506 = vunpack.c.l.b16 %v497
      %v507 = vunpack.c.h.b16 %v497
      %v508 = vunpack.c.l.b16 %v498
      %v509 = vunpack.c.h.b16 %v498
      %v510 = vunpack.c.l.b16 %v499
      %v511 = vunpack.c.h.b16 %v499
      %v512 = vpack.c.b16 %v506, %v504
      %v513 = vpack.c.b16 %v507, %v505
      %v514 = vpack.c.b16 %v510, %v508
      %v515 = vpack.c.b16 %v511, %v509
      %516 = vrot.lane.b32.xlu0 %v512, 124
      %v517 = vpop.permute.xlu0 %516
      %518 = vrot.lane.b32.xlu0 %v513, 124
      %v519 = vpop.permute.xlu0 %518
      %520 = vrot.lane.b32.xlu0 %v514, 124
      %v521 = vpop.permute.xlu0 %520
      %522 = vrot.lane.b32.xlu0 %v515, 124
      %v523 = vpop.permute.xlu0 %522
      %v524 = vsel %vm331, %v517, %v519
      %v525 = vsel %vm331, %v521, %v523
      %528 = vst [vmem:[#allocation2 + $0x70] sm:$0xff] %v524
      %529 = vst [vmem:[#allocation2 + $0x78] sm:$0xff] %v525
      %v530 = vld [vmem:[%s244 + $0x4] sm:$0xff]
      %v531 = vld [vmem:[%s244 + $0x10] sm:$0xff]
      %v532 = vld [vmem:[%s244 + $0x1c] sm:$0xff]
      %v533 = vld [vmem:[%s244 + $0x28] sm:$0xff]
      %v538 = vunpack.c.l.b16 %v530
      %v539 = vunpack.c.h.b16 %v530
      %v540 = vunpack.c.l.b16 %v531
      %v541 = vunpack.c.h.b16 %v531
      %v542 = vunpack.c.l.b16 %v532
      %v543 = vunpack.c.h.b16 %v532
      %v544 = vunpack.c.l.b16 %v533
      %v545 = vunpack.c.h.b16 %v533
      %v546 = vpack.c.b16 %v540, %v538
      %v547 = vpack.c.b16 %v541, %v539
      %v548 = vpack.c.b16 %v544, %v542
      %v549 = vpack.c.b16 %v545, %v543
      %550 = vrot.lane.b32.xlu0 %v546, 120
      %v551 = vpop.permute.xlu0 %550
      %552 = vrot.lane.b32.xlu0 %v547, 120
      %v553 = vpop.permute.xlu0 %552
      %554 = vrot.lane.b32.xlu0 %v548, 120
      %v555 = vpop.permute.xlu0 %554
      %556 = vrot.lane.b32.xlu0 %v549, 120
      %v557 = vpop.permute.xlu0 %556
      %v558 = vsel %vm366, %v551, %v553
      %v559 = vsel %vm366, %v555, %v557
      %562 = vst [vmem:[#allocation2 + $0x80] sm:$0xff] %v558
      %563 = vst [vmem:[#allocation2 + $0x88] sm:$0xff] %v559
      %v564 = vld [vmem:[#allocation2] sm:$0xff]
      %v565 = vld [vmem:[#allocation2 + $0x8] sm:$0xff]
      %v566 = vld [vmem:[#allocation2 + $0x10] sm:$0xff]
      %v567 = vld [vmem:[#allocation2 + $0x18] sm:$0xff]
      %v568 = vld [vmem:[#allocation2 + $0x20] sm:$0xff]
      %v569 = vld [vmem:[#allocation2 + $0x28] sm:$0xff]
      %v570 = vld [vmem:[#allocation2 + $0x30] sm:$0xff]
      %v571 = vld [vmem:[#allocation2 + $0x38] sm:$0xff]
      %v572 = vld [vmem:[#allocation2 + $0x40] sm:$0xff]
      %v573 = vld [vmem:[#allocation2 + $0x48] sm:$0xff]
      %v574 = vld [vmem:[#allocation2 + $0x50] sm:$0xff]
      %v575 = vld [vmem:[#allocation2 + $0x58] sm:$0xff]
      %v576 = vld [vmem:[#allocation2 + $0x60] sm:$0xff]
      %v577 = vld [vmem:[#allocation2 + $0x68] sm:$0xff]
      %v578 = vld [vmem:[#allocation2 + $0x70] sm:$0xff]
      %v579 = vld [vmem:[#allocation2 + $0x78] sm:$0xff]
      %v580 = vld [vmem:[#allocation2 + $0x80] sm:$0xff]
      %v581 = vld [vmem:[#allocation2 + $0x88] sm:$0xff]
      %v598 = vunpack.c.l.b16 %v269
      %v599 = vunpack.c.h.b16 %v269
      %v600 = vunpack.c.l.b16 %v270
      %v601 = vunpack.c.l.b16 %v271
      %v602 = vunpack.c.h.b16 %v271
      %v603 = vunpack.c.l.b16 %v272
      %v604 = vunpack.c.l.b16 %v273
      %v605 = vunpack.c.h.b16 %v273
      %v606 = vunpack.c.l.b16 %v274
      %v607 = vunpack.c.l.b16 %v275
      %v608 = vunpack.c.h.b16 %v275
      %v609 = vunpack.c.l.b16 %v276
      %v610 = vunpack.c.l.b16 %v277
      %v611 = vunpack.c.h.b16 %v277
      %v612 = vunpack.c.l.b16 %v278
      %v613 = vunpack.c.l.b16 %v279
      %v614 = vunpack.c.h.b16 %v279
      %v615 = vunpack.c.l.b16 %v280
      %v616 = vunpack.c.l.b16 %v281
      %v617 = vunpack.c.h.b16 %v281
      %v618 = vunpack.c.l.b16 %v282
      %v619 = vunpack.c.l.b16 %v283
      %v620 = vunpack.c.h.b16 %v283
      %v621 = vunpack.c.l.b16 %v284
      %v622 = vpack.c.b16 %v601, %v598
      %v623 = vpack.c.b16 %v602, %v599
      %v624 = vpack.c.b16 %v603, %v600
      %v625 = vpack.c.b16 %v607, %v604
      %v626 = vpack.c.b16 %v608, %v605
      %v627 = vpack.c.b16 %v609, %v606
      %v628 = vpack.c.b16 %v613, %v610
      %v629 = vpack.c.b16 %v614, %v611
      %v630 = vpack.c.b16 %v615, %v612
      %v631 = vpack.c.b16 %v619, %v616
      %v632 = vpack.c.b16 %v620, %v617
      %v633 = vpack.c.b16 %v621, %v618
      %vm642 = vcmask 261120
      %v644 = vsel %vm642, %v624, 0
      %v647 = vsel %vm642, %v627, 0
      %v650 = vsel %vm642, %v630, 0
      %v653 = vsel %vm642, %v633, 0
      %655 = vmatprep.subr.bf16.mxu0 0
      %656 = vmatpush1.bf16.msra.mxu0 %v564
      %657 = vmatprep.subr.bf16.mxu0 0
      %658 = vmatpush1.bf16.msra.mxu0 %v565
      %659 = vmatprep.subr.bf16.mxu0 0
      %660 = vmatpush1.bf16.msra.mxu0 %v566
      %661 = vmatprep.subr.bf16.mxu0 0
      %662 = vmatpush1.bf16.msra.mxu0 %v567
      %663 = vmatprep.subr.bf16.mxu0 0
      %664 = vmatpush1.bf16.msra.mxu0 %v568
      %665 = vmatprep.subr.bf16.mxu0 0
      %666 = vmatpush1.bf16.msra.mxu0 %v569
      %667 = vmatprep.subr.bf16.mxu0 0
      %668 = vmatpush1.bf16.msra.mxu0 %v570
      %669 = vmatprep.subr.bf16.mxu0 0
      %670 = vmatpush1.bf16.msra.mxu0 %v571
      %671 = vmatprep.subr.bf16.mxu0 0
      %672 = vmatpush1.bf16.msra.mxu0 %v572
      %673 = vmatprep.subr.bf16.mxu0 0
      %674 = vmatpush1.bf16.msra.mxu0 %v573
      %675 = vmatprep.subr.bf16.mxu0 0
      %676 = vmatpush1.bf16.msra.mxu0 %v574
      %677 = vmatprep.subr.bf16.mxu0 0
      %678 = vmatpush1.bf16.msra.mxu0 %v575
      %679 = vmatprep.subr.bf16.mxu0 0
      %680 = vmatpush1.bf16.msra.mxu0 %v576
      %681 = vmatprep.subr.bf16.mxu0 0
      %682 = vmatpush1.bf16.msra.mxu0 %v577
      %683 = vmatprep.subr.bf16.mxu0 0
      %684 = vmatpush1.bf16.msra.mxu0 %v578
      %685 = vmatprep.subr.bf16.mxu0 0
      %686 = vmatpush1.bf16.msra.mxu0 %v579
      %687 = vmatprep.mubr.bf16.mxu0 %v623
      %688 = vmatmul.mubr.bf16.gmra.mrb[0].mxu0 %v622
      %v689 = vpop.f32.mrb[0].mxu0
      %v690 = vadd.f32 0.0, %v689
      %v691 = vpop.f32.mrb[0].mxu0
      %v692 = vpop.f32.mrb[0].mxu0
      %v693 = vadd.f32 0.0, %v692
      %v694 = vpop.f32.mrb[0].mxu0
      %695 = vmatprep.mubr.bf16.mxu0 %v626
      %696 = vmatmul.mubr.bf16.gmra.mrb[0].mxu0 %v625
      %v697 = vpop.f32.mrb[0].mxu0
      %v698 = vadd.f32 0.0, %v697
      %v699 = vpop.f32.mrb[0].mxu0
      %v700 = vpop.f32.mrb[0].mxu0
      %v701 = vadd.f32 0.0, %v700
      %v702 = vpop.f32.mrb[0].mxu0
      %703 = vmatprep.mubr.bf16.mxu0 %v629
      %704 = vmatmul.mubr.bf16.gmra.mrb[0].mxu0 %v628
      %v705 = vpop.f32.mrb[0].mxu0
      %v706 = vadd.f32 0.0, %v705
      %v707 = vpop.f32.mrb[0].mxu0
      %v708 = vpop.f32.mrb[0].mxu0
      %v709 = vadd.f32 0.0, %v708
      %v710 = vpop.f32.mrb[0].mxu0
      %711 = vmatprep.mubr.bf16.mxu0 %v632
      %712 = vmatmul.mubr.bf16.gmra.mrb[0].mxu0 %v631
      %v713 = vpop.f32.mrb[0].mxu0
      %v714 = vadd.f32 0.0, %v713
      %v715 = vpop.f32.mrb[0].mxu0
      %v716 = vpop.f32.mrb[0].mxu0
      %v717 = vadd.f32 0.0, %v716
      %v718 = vpop.f32.mrb[0].mxu0
      %719 = vdwg.mxu0
      %720 = vmatprep.subr.bf16.mxu0 0
      %721 = vmatpush1.bf16.msra.mxu0 %v580
      %722 = vmatprep.subr.bf16.mxu0 0
      %723 = vmatpush1.bf16.msra.mxu0 %v581
      %724 = vmatprep.subr.bf16.mxu0 0
      %725 = vmatpush1.bf16.msra.mxu0 0
      %726 = vmatprep.subr.bf16.mxu0 0
      %727 = vmatpush1.bf16.msra.mxu0 0
      %728 = vmatprep.subr.bf16.mxu0 0
      %729 = vmatpush1.bf16.msra.mxu0 0
      %730 = vmatprep.subr.bf16.mxu0 0
      %731 = vmatpush1.bf16.msra.mxu0 0
      %732 = vmatprep.subr.bf16.mxu0 0
      %733 = vmatpush1.bf16.msra.mxu0 0
      %734 = vmatprep.subr.bf16.mxu0 0
      %735 = vmatpush1.bf16.msra.mxu0 0
      %736 = vmatprep.subr.bf16.mxu0 0
      %737 = vmatpush1.bf16.msra.mxu0 0
      %738 = vmatprep.subr.bf16.mxu0 0
      %739 = vmatpush1.bf16.msra.mxu0 0
      %740 = vmatprep.subr.bf16.mxu0 0
      %741 = vmatpush1.bf16.msra.mxu0 0
      %742 = vmatprep.subr.bf16.mxu0 0
      %743 = vmatpush1.bf16.msra.mxu0 0
      %744 = vmatprep.subr.bf16.mxu0 0
      %745 = vmatpush1.bf16.msra.mxu0 0
      %746 = vmatprep.subr.bf16.mxu0 0
      %747 = vmatpush1.bf16.msra.mxu0 0
      %748 = vmatprep.subr.bf16.mxu0 0
      %749 = vmatpush1.bf16.msra.mxu0 0
      %750 = vmatprep.subr.bf16.mxu0 0
      %751 = vmatpush1.bf16.msra.mxu0 0
      %752 = vmatprep.mubr.bf16.mxu0 0
      %753 = vmatmul.mubr.bf16.gmra.mrb[0].mxu0 %v644
      %v754 = vpop.f32.mrb[0].mxu0
      %v755 = vadd.f32 %v690, %v754
      %v756 = vpop.f32.mrb[0].mxu0
      %v757 = vpop.f32.mrb[0].mxu0
      %v758 = vadd.f32 %v693, %v757
      %v759 = vpop.f32.mrb[0].mxu0
      %760 = vmatprep.mubr.bf16.mxu0 0
      %761 = vmatmul.mubr.bf16.gmra.mrb[0].mxu0 %v647
      %v762 = vpop.f32.mrb[0].mxu0
      %v763 = vadd.f32 %v698, %v762
      %v764 = vpop.f32.mrb[0].mxu0
      %v765 = vpop.f32.mrb[0].mxu0
      %v766 = vadd.f32 %v701, %v765
      %v767 = vpop.f32.mrb[0].mxu0
      %768 = vmatprep.mubr.bf16.mxu0 0
      %769 = vmatmul.mubr.bf16.gmra.mrb[0].mxu0 %v650
      %v770 = vpop.f32.mrb[0].mxu0
      %v771 = vadd.f32 %v706, %v770
      %v772 = vpop.f32.mrb[0].mxu0
      %v773 = vpop.f32.mrb[0].mxu0
      %v774 = vadd.f32 %v709, %v773
      %v775 = vpop.f32.mrb[0].mxu0
      %776 = vmatprep.mubr.bf16.mxu0 0
      %777 = vmatmul.mubr.bf16.gmra.mrb[0].mxu0 %v653
      %v778 = vpop.f32.mrb[0].mxu0
      %v779 = vadd.f32 %v714, %v778
      %v780 = vpop.f32.mrb[0].mxu0
      %v781 = vpop.f32.mrb[0].mxu0
      %v782 = vadd.f32 %v717, %v781
      %v783 = vpop.f32.mrb[0].mxu0
      %784 = vdwg.mxu0
      %v785 = vld [vmem:[%s3] sm:$0x1]
      %v787 = vlaneseq
      %v788 = vshrl.u32 %v787, 7
      %v789 = vsub.s32 0, %v788
      %v790 = vrot.slane %v785, %v789
      %v792 = vmul.f32 %v755, %v790
      %v793 = vmul.f32 %v758, %v790
      %v794 = vmul.f32 %v763, %v790
      %v795 = vmul.f32 %v766, %v790
      %v796 = vmul.f32 %v771, %v790
      %v797 = vmul.f32 %v774, %v790
      %v798 = vmul.f32 %v779, %v790
      %v799 = vmul.f32 %v782, %v790
      %800 = vadd.xlane.f32.xlu0 %v792
      %v801 = vpop.xlane.xlu0 %800
      %802 = vadd.xlane.f32.xlu0 %v793
      %v803 = vpop.xlane.xlu0 %802
      %804 = vadd.xlane.f32.xlu0 %v794
      %v805 = vpop.xlane.xlu0 %804
      %806 = vadd.xlane.f32.xlu0 %v795
      %v807 = vpop.xlane.xlu0 %806
      %808 = vadd.xlane.f32.xlu0 %v796
      %v809 = vpop.xlane.xlu0 %808
      %810 = vadd.xlane.f32.xlu0 %v797
      %v811 = vpop.xlane.xlu0 %810
      %812 = vadd.xlane.f32.xlu0 %v798
      %v813 = vpop.xlane.xlu0 %812
      %814 = vadd.xlane.f32.xlu0 %v799
      %v815 = vpop.xlane.xlu0 %814
      %v816 = vmul.f32 %v755, %v755
      %v817 = vmul.f32 %v758, %v758
      %v818 = vmul.f32 %v763, %v763
      %v819 = vmul.f32 %v766, %v766
      %v820 = vmul.f32 %v771, %v771
      %v821 = vmul.f32 %v774, %v774
      %v822 = vmul.f32 %v779, %v779
      %v823 = vmul.f32 %v782, %v782
      %v824 = vmul.f32 %v816, %v790
      %v825 = vmul.f32 %v817, %v790
      %v826 = vmul.f32 %v818, %v790
      %v827 = vmul.f32 %v819, %v790
      %v828 = vmul.f32 %v820, %v790
      %v829 = vmul.f32 %v821, %v790
      %v830 = vmul.f32 %v822, %v790
      %v831 = vmul.f32 %v823, %v790
      %832 = vadd.xlane.f32.xlu0 %v824
      %v833 = vpop.xlane.xlu0 %832
      %834 = vadd.xlane.f32.xlu0 %v825
      %v835 = vpop.xlane.xlu0 %834
      %836 = vadd.xlane.f32.xlu0 %v826
      %v837 = vpop.xlane.xlu0 %836
      %838 = vadd.xlane.f32.xlu0 %v827
      %v839 = vpop.xlane.xlu0 %838
      %840 = vadd.xlane.f32.xlu0 %v828
      %v841 = vpop.xlane.xlu0 %840
      %842 = vadd.xlane.f32.xlu0 %v829
      %v843 = vpop.xlane.xlu0 %842
      %844 = vadd.xlane.f32.xlu0 %v830
      %v845 = vpop.xlane.xlu0 %844
      %846 = vadd.xlane.f32.xlu0 %v831
      %v847 = vpop.xlane.xlu0 %846
      %v848 = vmul.f32 %v801, 0.015625
      %v849 = vmul.f32 %v803, 0.015625
      %v850 = vmul.f32 %v805, 0.015625
      %v851 = vmul.f32 %v807, 0.015625
      %v852 = vmul.f32 %v809, 0.015625
      %v853 = vmul.f32 %v811, 0.015625
      %v854 = vmul.f32 %v813, 0.015625
      %v855 = vmul.f32 %v815, 0.015625
      %v856 = vmul.f32 %v833, 0.015625
      %v857 = vmul.f32 %v835, 0.015625
      %v858 = vmul.f32 %v837, 0.015625
      %v859 = vmul.f32 %v839, 0.015625
      %v860 = vmul.f32 %v841, 0.015625
      %v861 = vmul.f32 %v843, 0.015625
      %v862 = vmul.f32 %v845, 0.015625
      %v863 = vmul.f32 %v847, 0.015625
      %v864 = vmul.f32 %v848, %v848
      %v865 = vmul.f32 %v849, %v849
      %v866 = vmul.f32 %v850, %v850
      %v867 = vmul.f32 %v851, %v851
      %v868 = vmul.f32 %v852, %v852
      %v869 = vmul.f32 %v853, %v853
      %v870 = vmul.f32 %v854, %v854
      %v871 = vmul.f32 %v855, %v855
      %v872 = vsub.f32 %v856, %v864
      %v873 = vsub.f32 %v857, %v865
      %v874 = vsub.f32 %v858, %v866
      %v875 = vsub.f32 %v859, %v867
      %v876 = vsub.f32 %v860, %v868
      %v877 = vsub.f32 %v861, %v869
      %v878 = vsub.f32 %v862, %v870
      %v879 = vsub.f32 %v863, %v871
      %v880 = vadd.f32 %v872, 1e-05
      %v881 = vadd.f32 %v873, 1e-05
      %v882 = vadd.f32 %v874, 1e-05
      %v883 = vadd.f32 %v875, 1e-05
      %v884 = vadd.f32 %v876, 1e-05
      %v885 = vadd.f32 %v877, 1e-05
      %v886 = vadd.f32 %v878, 1e-05
      %v887 = vadd.f32 %v879, 1e-05
      %v888 = vrsqrt.pop %v880
      %v889 = vrsqrt.pop %v881
      %v890 = vrsqrt.pop %v882
      %v891 = vrsqrt.pop %v883
      %v892 = vrsqrt.pop %v884
      %v893 = vrsqrt.pop %v885
      %v894 = vrsqrt.pop %v886
      %v895 = vrsqrt.pop %v887
      %v896 = vsub.f32 %v755, %v848
      %v897 = vsub.f32 %v758, %v849
      %v898 = vsub.f32 %v763, %v850
      %v899 = vsub.f32 %v766, %v851
      %v900 = vsub.f32 %v771, %v852
      %v901 = vsub.f32 %v774, %v853
      %v902 = vsub.f32 %v779, %v854
      %v903 = vsub.f32 %v782, %v855
      %v904 = vmul.f32 %v896, %v888
      %v905 = vmul.f32 %v897, %v889
      %v906 = vmul.f32 %v898, %v890
      %v907 = vmul.f32 %v899, %v891
      %v908 = vmul.f32 %v900, %v892
      %v909 = vmul.f32 %v901, %v893
      %v910 = vmul.f32 %v902, %v894
      %v911 = vmul.f32 %v903, %v895
      %vm912 = vcmp.ge.f32.partialorder %v904, 0.0
      %vm913 = vcmp.ge.f32.partialorder %v905, 0.0
      %vm914 = vcmp.ge.f32.partialorder %v906, 0.0
      %vm915 = vcmp.ge.f32.partialorder %v907, 0.0
      %vm916 = vcmp.ge.f32.partialorder %v908, 0.0
      %vm917 = vcmp.ge.f32.partialorder %v909, 0.0
      %vm918 = vcmp.ge.f32.partialorder %v910, 0.0
      %vm919 = vcmp.ge.f32.partialorder %v911, 0.0
      %v920 = vmul.f32 %v904, 0.2
      %v921 = vmul.f32 %v905, 0.2
      %v922 = vmul.f32 %v906, 0.2
      %v923 = vmul.f32 %v907, 0.2
      %v924 = vmul.f32 %v908, 0.2
      %v925 = vmul.f32 %v909, 0.2
      %v926 = vmul.f32 %v910, 0.2
      %v927 = vmul.f32 %v911, 0.2
      %v928 = vsel %vm912, %v904, %v920
      %v929 = vsel %vm913, %v905, %v921
      %v930 = vsel %vm914, %v906, %v922
      %v931 = vsel %vm915, %v907, %v923
      %v932 = vsel %vm916, %v908, %v924
      %v933 = vsel %vm917, %v909, %v925
      %v934 = vsel %vm918, %v910, %v926
      %v935 = vsel %vm919, %v911, %v927
      %v936 = vpack.c.bf16 %v929, %v928
      %v937 = vpack.c.bf16 %v931, %v930
      %v938 = vpack.c.bf16 %v933, %v932
      %v939 = vpack.c.bf16 %v935, %v934
      %v944 = vunpack.c.l.b16 %v936
      %v945 = vunpack.c.h.b16 %v936
      %v946 = vunpack.c.l.b16 %v937
      %v947 = vunpack.c.h.b16 %v937
      %v948 = vunpack.c.l.b16 %v938
      %v949 = vunpack.c.h.b16 %v938
      %v950 = vunpack.c.l.b16 %v939
      %v951 = vunpack.c.h.b16 %v939
      %v952 = vpack.c.b16 %v944, %v944
      %v953 = vpack.c.b16 %v945, %v945
      %v954 = vpack.c.b16 %v946, %v946
      %v955 = vpack.c.b16 %v947, %v947
      %v956 = vpack.c.b16 %v948, %v948
      %v957 = vpack.c.b16 %v949, %v949
      %v958 = vpack.c.b16 %v950, %v950
      %v959 = vpack.c.b16 %v951, %v951
      %968 = vst [vmem:[%s266] sm:$0xf] %v952
      %969 = vst [vmem:[%s266 + $0x4] sm:$0xf] %v953
      %970 = vst [vmem:[%s266 + $0x8] sm:$0xf] %v954
      %971 = vst [vmem:[%s266 + $0xc] sm:$0xf] %v955
      %972 = vst [vmem:[%s266 + $0x10] sm:$0xf] %v956
      %973 = vst [vmem:[%s266 + $0x14] sm:$0xf] %v957
      %974 = vst [vmem:[%s266 + $0x18] sm:$0xf] %v958
      %975 = vst [vmem:[%s266 + $0x1c] sm:$0xf] %v959
      %s976 = smul.u32 8, %s20
      %p977 = scmp.lt.s32.totalorder %s19, 1
      %s978 = scalar_select %p977, %s19, 1
      %p979 = scmp.lt.s32.totalorder %s976, 7
      %s980 = scalar_select %p979, %s976, 7
      %s981 = smul.addr %s978, 8
      %s982 = sadd.s32 %s980, %s981
      %s983 = smul.addr %s982, 4
      %s984 = scalar_lea.vmem %s4, %s983
      // Predicated region
      $region37: #{discriminator_forward.9} parent=35 // pred_check
        %p985 = pneg %p146
      $region38: #{discriminator_forward.9} parent=35 // pred_check_branch
        %987 = sbr.rel (%p985) target = $region40
      $region39: #{discriminator_forward.9} parent=35 // pred_region
        %s988 = smul.u32 8, %s20
      $region40: #{discriminator_forward.9} parent=35 // pred_fallthru
        _
    $region36: #{discriminator_forward.9} parent=5 // pred_fallthru
      _
    %p989 = scmp.le.s32.totalorder 2, %s10
    // Predicated region
    $region41: #{discriminator_forward.9} parent=5 // pred_check
      %p990 = pneg %p989
    $region42: #{discriminator_forward.9} parent=5 // pred_check_branch
      %992 = sbr.rel (%p990) target = $region44
    $region43: #{discriminator_forward.9} parent=5 // pred_region
      %s993 = ssub.s32 %s10, 2
      // Predicated region
      $region45: #{discriminator_forward.9} parent=43 // pred_check
        %p994 = pneg %p152
      $region46: #{discriminator_forward.9} parent=43 // pred_check_branch
        %996 = sbr.rel (%p994) target = $region48
      $region47: #{discriminator_forward.9} parent=43 // pred_region
        %s997 = smul.u32 8, %s22
        %p998 = scmp.lt.s32.totalorder %s21, 1
        %s999 = scalar_select %p998, %s21, 1
        %p1000 = scmp.lt.s32.totalorder %s997, 7
        %s1001 = scalar_select %p1000, %s997, 7
        %s1002 = smul.addr %s999, 8
        %s1003 = sadd.s32 %s1001, %s1002
        %s1004 = smul.addr %s1003, 4
        %s1005 = scalar_lea.vmem %s4, %s1004
      $region48: #{discriminator_forward.9} parent=43 // pred_fallthru
        _
    $region44: #{discriminator_forward.9} parent=5 // pred_fallthru
      _
  $region6: #{discriminator_forward.9} parent=0 // loop_footer
    %s14 = sadd.s32 1, %s10
  $region7: #{discriminator_forward.9} parent=0 // loop_footer_branch
    %9 = sbr.rel target = $region3
  $region8: #{discriminator_forward.9} parent=0 // loop_exit
    _

// kernel: discriminator_forward.10
$region0: #{discriminator_forward.10}
  #allocation0 [shape = 'u32[]', space=smem, size = 0x4, offset = 0x4, fixed_abs, tag = 'smem constant byte address 0x4 - core index']
  #allocation1 [shape = 'u32[144,128]{1,0:T(1,128)}', space=vmem, size = 0x12000, scoped, tag = 'internal scratch']
  #allocation2 [shape = 'bf16[1024,128]{1,0:T(16,128)(2,1)}', space=vmem, size = 0x40000, scoped, tag = 'scratch operand']
  %s0 = inlined_call_operand.vmem [shape: bf16[2,256,134], index: 0, kind: input, shape index: {}]
  %s1 = inlined_call_operand.vmem [shape: bf16[64,1024], index: 1, kind: input, shape index: {}]
  %s2 = inlined_call_operand.vmem [shape: f32[64,1], index: 2, kind: input, shape index: {}]
  %s3 = inlined_call_operand.vmem [shape: f32[1,128], index: 3, kind: input, shape index: {}]
  %s4 = inlined_call_operand.vmem [shape: bf16[2,64,128], index: 4, kind: output, shape index: {}]
  %s5 = sld [smem:[#allocation0]]
  $region49: #{discriminator_forward.10} parent=0
    _
  %s7 = ssub.s32 1, %s5
  %s8 = scalar_select 0, %s7, %s5
  loop: start=0, step=1, limit=4
  $region2: #{discriminator_forward.10} parent=0 // loop_pre_header
    _
  $region3: #{discriminator_forward.10} parent=0 // loop_header
    %s10 = sphi 0, %s14
    %p11 = scmp.ge.s32.totalorder %s10, 4
    %s17 = sphi 0, %s29
    %s18 = sphi 0, %s25
    %s19 = sphi 0, %s17
    %s20 = sphi 0, %s18
    %s21 = sphi 0, %s19
    %s22 = sphi 0, %s20
    %s32 = sphi 0, %s34
    %s35 = sphi 0, %s32
    %s36 = sphi 0, %s35
    %s52 = sphi 0, %s36
    %s58 = sphi 0, %s60
    %s61 = sphi 0, %s58
    %s62 = sphi 0, %s61
    %s78 = sphi 0, %s62
    %s84 = sphi 0, %s86
    %s87 = sphi 0, %s84
    %s88 = sphi 0, %s87
    %s104 = sphi 0, %s88
    %s108 = sphi 0, %s108
    %s110 = sphi 0, %s108
    %s111 = sphi 0, %s110
    %s125 = sphi 0, %s111
    %s133 = sphi 0, %s135
    %s136 = sphi 0, %s133
    %s137 = sphi 0, %s136
    %s153 = sphi 0, %s137
  $region4: #{discriminator_forward.10} parent=0 // loop_header_branch
    %13 = sbr.rel (%p11) target = $region8
  $region5: #{discriminator_forward.10} parent=0 // loop_body
    %s15 = ssub.s32 %s10, 1
    %s16 = ssub.s32 %s10, 2
    %s23 = sadd.s32 1, %s18
    %p24 = scmp.ge.s32.totalorder %s23, 1
    %s25 = scalar_select %p24, 0, %s23
    %s26 = sadd.s32 1, %s17
    %s27 = scalar_select %p24, %s26, %s17
    %p28 = scmp.ge.s32.totalorder %s27, 2
    %s29 = scalar_select %p28, 0, %s27
    %s30 = ssub.s32 %s17, %s29
    %p31 = scmp.eq.s32.totalorder %s30, 0
    %s33 = sadd.s32 %s32, 1
    %s34 = scalar_select %p31, %s32, %s33
    %p37 = pneg %p31
    %p38 = scmp.eq.s32.totalorder %s10, 1
    %p39 = por %p37, %p38
    %p40 = scmp.ne.s32.totalorder %s32, %s35
    %p41 = scmp.eq.s32.totalorder %s10, 0
    %p42 = por %p40, %p41
    %p43 = scmp.ne.s32.totalorder %s32, %s35
    %p44 = scmp.eq.s32.totalorder %s15, 1
    %p45 = por %p43, %p44
    %p46 = scmp.ne.s32.totalorder %s35, %s36
    %p47 = scmp.eq.s32.totalorder %s15, 0
    %p48 = por %p46, %p47
    %p49 = scmp.ne.s32.totalorder %s35, %s36
    %p50 = scmp.eq.s32.totalorder %s16, 1
    %p51 = por %p49, %p50
    %p53 = scmp.ne.s32.totalorder %s36, %s52
    %p54 = scmp.eq.s32.totalorder %s16, 0
    %p55 = por %p53, %p54
    %s56 = ssub.s32 %s18, %s25
    %p57 = scmp.eq.s32.totalorder %s56, 0
    %s59 = sadd.s32 %s58, 1
    %s60 = scalar_select %p57, %s58, %s59
    %p63 = pneg %p57
    %p64 = scmp.eq.s32.totalorder %s10, 1
    %p65 = por %p63, %p64
    %p66 = scmp.ne.s32.totalorder %s58, %s61
    %p67 = scmp.eq.s32.totalorder %s10, 0
    %p68 = por %p66, %p67
    %p69 = scmp.ne.s32.totalorder %s58, %s61
    %p70 = scmp.eq.s32.totalorder %s15, 1
    %p71 = por %p69, %p70
    %p72 = scmp.ne.s32.totalorder %s61, %s62
    %p73 = scmp.eq.s32.totalorder %s15, 0
    %p74 = por %p72, %p73
    %p75 = scmp.ne.s32.totalorder %s61, %s62
    %p76 = scmp.eq.s32.totalorder %s16, 1
    %p77 = por %p75, %p76
    %p79 = scmp.ne.s32.totalorder %s62, %s78
    %p80 = scmp.eq.s32.totalorder %s16, 0
    %p81 = por %p79, %p80
    %s82 = ssub.s32 %s18, %s25
    %p83 = scmp.eq.s32.totalorder %s82, 0
    %s85 = sadd.s32 %s84, 1
    %s86 = scalar_select %p83, %s84, %s85
    %p89 = pneg %p83
    %p90 = scmp.eq.s32.totalorder %s10, 1
    %p91 = por %p89, %p90
    %p92 = scmp.ne.s32.totalorder %s84, %s87
    %p93 = scmp.eq.s32.totalorder %s10, 0
    %p94 = por %p92, %p93
    %p95 = scmp.ne.s32.totalorder %s84, %s87
    %p96 = scmp.eq.s32.totalorder %s15, 1
    %p97 = por %p95, %p96
    %p98 = scmp.ne.s32.totalorder %s87, %s88
    %p99 = scmp.eq.s32.totalorder %s15, 0
    %p100 = por %p98, %p99
    %p101 = scmp.ne.s32.totalorder %s87, %s88
    %p102 = scmp.eq.s32.totalorder %s16, 1
    %p103 = por %p101, %p102
    %p105 = scmp.ne.s32.totalorder %s88, %s104
    %p106 = scmp.eq.s32.totalorder %s16, 0
    %p107 = por %p105, %p106
    %s109 = sadd.s32 %s108, 1
    %p112 = scmp.eq.s32.totalorder %s10, 1
    %p113 = scmp.ne.s32.totalorder %s108, %s110
    %p114 = scmp.eq.s32.totalorder %s10, 0
    %p115 = por %p113, %p114
    %p116 = scmp.ne.s32.totalorder %s108, %s110
    %p117 = scmp.eq.s32.totalorder %s15, 1
    %p118 = por %p116, %p117
    %p119 = scmp.ne.s32.totalorder %s110, %s111
    %p120 = scmp.eq.s32.totalorder %s15, 0
    %p121 = por %p119, %p120
    %p122 = scmp.ne.s32.totalorder %s110, %s111
    %p123 = scmp.eq.s32.totalorder %s16, 1
    %p124 = por %p122, %p123
    %p126 = scmp.ne.s32.totalorder %s111, %s125
    %p127 = scmp.eq.s32.totalorder %s16, 0
    %p128 = por %p126, %p127
    %s129 = ssub.s32 %s17, %s29
    %s130 = ssub.s32 %s18, %s25
    %s131 = sor.u32 %s129, %s130
    %p132 = scmp.eq.s32.totalorder %s131, 0
    %s134 = sadd.s32 %s133, 1
    %s135 = scalar_select %p132, %s133, %s134
    %p138 = pneg %p132
    %p139 = scmp.eq.s32.totalorder %s10, 1
    %p140 = por %p138, %p139
    %p141 = scmp.ne.s32.totalorder %s133, %s136
    %p142 = scmp.eq.s32.totalorder %s10, 0
    %p143 = por %p141, %p142
    %p144 = scmp.ne.s32.totalorder %s133, %s136
    %p145 = scmp.eq.s32.totalorder %s15, 1
    %p146 = por %p144, %p145
    %p147 = scmp.ne.s32.totalorder %s136, %s137
    %p148 = scmp.eq.s32.totalorder %s15, 0
    %p149 = por %p147, %p148
    %p150 = scmp.ne.s32.totalorder %s136, %s137
    %p151 = scmp.eq.s32.totalorder %s16, 1
    %p152 = por %p150, %p151
    %p154 = scmp.ne.s32.totalorder %s137, %s153
    %p155 = scmp.eq.s32.totalorder %s16, 0
    %p156 = por %p154, %p155
    %p157 = scmp.le.s32.totalorder 1, %s10
    %p158 = scmp.lt.s32.totalorder %s10, 3
    %p159 = pnand %p157, %p158
    %p160 = pneg %p159
    // Predicated region
    $region9: #{discriminator_forward.10} parent=5 // pred_check
      _
    $region10: #{discriminator_forward.10} parent=5 // pred_check_branch
      %162 = sbr.rel (%p159) target = $region12
    $region11: #{discriminator_forward.10} parent=5 // pred_region
      %s163 = ssub.s32 %s10, 1
      // Predicated region
      $region13: #{discriminator_forward.10} parent=11 // pred_check
        %p164 = pneg %p74
      $region14: #{discriminator_forward.10} parent=11 // pred_check_branch
        %166 = sbr.rel (%p164) target = $region16
      $region15: #{discriminator_forward.10} parent=11 // pred_region
        %s167 = smul.u32 8, %s20
        %p168 = scmp.lt.s32.totalorder %s167, 7
        %s169 = scalar_select %p168, %s167, 7
        %s170 = smul.addr %s169, 8
        %s171 = smul.addr %s170, 4
        %s172 = scalar_lea.vmem %s1, %s171
        %s173 = smul.u32 8, %s20
      $region16: #{discriminator_forward.10} parent=11 // pred_fallthru
        _
      // Predicated region
      $region17: #{discriminator_forward.10} parent=11 // pred_check
        %p174 = pneg %p100
      $region18: #{discriminator_forward.10} parent=11 // pred_check_branch
        %176 = sbr.rel (%p174) target = $region20
      $region19: #{discriminator_forward.10} parent=11 // pred_region
        %s177 = smul.u32 8, %s20
        %p178 = scmp.lt.s32.totalorder %s177, 7
        %s179 = scalar_select %p178, %s177, 7
        %s180 = smul.addr %s179, 8
        %s181 = scalar_lea.vmem %s2, %s180
        %s182 = smul.u32 8, %s20
      $region20: #{discriminator_forward.10} parent=11 // pred_fallthru
        _
      // Predicated region
      $region21: #{discriminator_forward.10} parent=11 // pred_check
        %p183 = pneg %p121
      $region22: #{discriminator_forward.10} parent=11 // pred_check_branch
        %185 = sbr.rel (%p183) target = $region24
      $region23: #{discriminator_forward.10} parent=11 // pred_region
        _
      $region24: #{discriminator_forward.10} parent=11 // pred_fallthru
        _
    $region12: #{discriminator_forward.10} parent=5 // pred_fallthru
      _
    %p186 = scmp.lt.s32.totalorder %s10, 2
    // Predicated region
    $region25: #{discriminator_forward.10} parent=5 // pred_check
      %p187 = pneg %p186
    $region26: #{discriminator_forward.10} parent=5 // pred_check_branch
      %189 = sbr.rel (%p187) target = $region28
    $region27: #{discriminator_forward.10} parent=5 // pred_region
      // Predicated region
      $region29: #{discriminator_forward.10} parent=27 // pred_check
        %p190 = pneg %p42
      $region30: #{discriminator_forward.10} parent=27 // pred_check_branch
        %192 = sbr.rel (%p190) target = $region32
      $region31: #{discriminator_forward.10} parent=27 // pred_region
        %p193 = scmp.lt.s32.totalorder %s17, 1
        %s194 = scalar_select %p193, %s17, 1
        %s195 = smul.addr %s194, 64
        %s196 = smul.addr %s195, 4
        %s197 = scalar_lea.vmem %s0, %s196
      $region32: #{discriminator_forward.10} parent=27 // pred_fallthru
        _
    $region28: #{discriminator_forward.10} parent=5 // pred_fallthru
      _
    %p198 = scmp.le.s32.totalorder 1, %s10
    %p199 = scmp.lt.s32.totalorder %s10, 3
    %p200 = pnand %p198, %p199
    %p201 = pneg %p200
    // Predicated region
    $region33: #{discriminator_forward.10} parent=5 // pred_check
      _
    $region34: #{discriminator_forward.10} parent=5 // pred_check_branch
      %203 = sbr.rel (%p200) target = $region36
    $region35: #{discriminator_forward.10} parent=5 // pred_region
      %s204 = ssub.s32 %s10, 1
      %p205 = scmp.lt.s32.totalorder %s19, 1
      %s206 = scalar_select %p205, %s19, 1
      %s207 = smul.addr %s206, 64
      %s208 = smul.addr %s207, 4
      %s209 = scalar_lea.vmem %s0, %s208
      %p210 = pneg %p48
      %p211 = pneg %p45
      %s212 = smul.u32 8, %s20
      %p213 = scmp.lt.s32.totalorder %s212, 7
      %s214 = scalar_select %p213, %s212, 7
      %s215 = smul.addr %s214, 8
      %s216 = smul.addr %s215, 4
      %s217 = scalar_lea.vmem %s1, %s216
      %p218 = pneg %p74
      %p219 = pneg %p71
      %s220 = smul.u32 8, %s20
      %p221 = scmp.lt.s32.totalorder %s220, 7
      %s222 = scalar_select %p221, %s220, 7
      %s223 = smul.addr %s222, 8
      %s224 = scalar_lea.vmem %s2, %s223
      %p225 = pneg %p100
      %p226 = pneg %p97
      %p227 = pneg %p121
      %p228 = pneg %p118
      %p229 = pneg %p149
      %p230 = pneg %p146
      %s231 = smul.u32 8, %s20
      %p232 = scmp.lt.s32.totalorder %s19, 1
      %s233 = scalar_select %p232, %s19, 1
      %p234 = scmp.lt.s32.totalorder %s231, 7
      %s235 = scalar_select %p234, %s231, 7
      %s236 = smul.addr %s233, 8
      %s237 = sadd.s32 %s235, %s236
      %s238 = smul.addr %s237, 4
      %s239 = scalar_lea.vmem %s4, %s238
      %p240 = scmp.lt.s32.totalorder %s19, 1
      %s241 = scalar_select %p240, %s19, 1
      %s242 = smul.addr %s241, 64
      %s243 = smul.addr %s242, 4
      %s244 = scalar_lea.vmem %s0, %s243
      %s245 = smul.u32 8, %s20
      %p246 = scmp.lt.s32.totalorder %s245, 7
      %s247 = scalar_select %p246, %s245, 7
      %s248 = smul.addr %s247, 8
      %s249 = smul.addr %s248, 4
      %s250 = scalar_lea.vmem %s1, %s249
      %s251 = smul.u32 8, %s20
      %s252 = smul.u32 8, %s20
      %p253 = scmp.lt.s32.totalorder %s252, 7
      %s254 = scalar_select %p253, %s252, 7
      %s255 = smul.addr %s254, 8
      %s256 = scalar_lea.vmem %s2, %s255
      %s257 = smul.u32 8, %s20
      %s258 = smul.u32 8, %s20
      %p259 = scmp.lt.s32.totalorder %s19, 1
      %s260 = scalar_select %p259, %s19, 1
      %p261 = scmp.lt.s32.totalorder %s258, 7
      %s262 = scalar_select %p261, %s258, 7
      %s263 = smul.addr %s260, 8
      %s264 = sadd.s32 %s262, %s263
      %s265 = smul.addr %s264, 4
      %s266 = scalar_lea.vmem %s4, %s265
      %s267 = smul.u32 8, %s20
      %v269 = vld [vmem:[%s250] sm:$0xff]
      %v270 = vld [vmem:[%s250 + $0x8] sm:$0xff]
      %v271 = vld [vmem:[%s250 + $0x10] sm:$0xff]
      %v272 = vld [vmem:[%s250 + $0x18] sm:$0xff]
      %v273 = vld [vmem:[%s250 + $0x20] sm:$0xff]
      %v274 = vld [vmem:[%s250 + $0x28] sm:$0xff]
      %v275 = vld [vmem:[%s250 + $0x30] sm:$0xff]
      %v276 = vld [vmem:[%s250 + $0x38] sm:$0xff]
      %v277 = vld [vmem:[%s250 + $0x40] sm:$0xff]
      %v278 = vld [vmem:[%s250 + $0x48] sm:$0xff]
      %v279 = vld [vmem:[%s250 + $0x50] sm:$0xff]
      %v280 = vld [vmem:[%s250 + $0x58] sm:$0xff]
      %v281 = vld [vmem:[%s250 + $0x60] sm:$0xff]
      %v282 = vld [vmem:[%s250 + $0x68] sm:$0xff]
      %v283 = vld [vmem:[%s250 + $0x70] sm:$0xff]
      %v284 = vld [vmem:[%s250 + $0x78] sm:$0xff]
      %v285 = vld [vmem:[%s250 + $0x80] sm:$0xff]
      %v286 = vld [vmem:[%s250 + $0x88] sm:$0xff]
      %v287 = vld [vmem:[%s250 + $0x90] sm:$0xff]
      %v288 = vld [vmem:[%s250 + $0x98] sm:$0xff]
      %v289 = vld [vmem:[%s250 + $0xa0] sm:$0xff]
      %v290 = vld [vmem:[%s250 + $0xa8] sm:$0xff]
      %v291 = vld [vmem:[%s250 + $0xb0] sm:$0xff]
      %v292 = vld [vmem:[%s250 + $0xb8] sm:$0xff]
      %v293 = vld [vmem:[%s250 + $0xc0] sm:$0xff]
      %v294 = vld [vmem:[%s250 + $0xc8] sm:$0xff]
      %v295 = vld [vmem:[%s250 + $0xd0] sm:$0xff]
      %v296 = vld [vmem:[%s250 + $0xd8] sm:$0xff]
      %v297 = vld [vmem:[%s250 + $0xe0] sm:$0xff]
      %v298 = vld [vmem:[%s250 + $0xe8] sm:$0xff]
      %v299 = vld [vmem:[%s250 + $0xf0] sm:$0xff]
      %v300 = vld [vmem:[%s250 + $0xf8] sm:$0xff]
      %v301 = vld [vmem:[%s244] sm:$0xf]
      %v302 = vld [vmem:[%s244 + $0x8] sm:$0xf]
      %v303 = vld [vmem:[%s244 + $0x10] sm:$0xf]
      %v304 = vld [vmem:[%s244 + $0x18] sm:$0xf]
      %v305 = vld [vmem:[%s244 + $0x20] sm:$0xf]
      %v306 = vld [vmem:[%s244 + $0x28] sm:$0xf]
      %v307 = vld [vmem:[%s244 + $0x30] sm:$0xf]
      %v308 = vld [vmem:[%s244 + $0x38] sm:$0xf]
      %v309 = vld [vmem:[%s244 + $0x40] sm:$0xf]
      %v310 = vld [vmem:[%s244 + $0x48] sm:$0xf]
      %v311 = vld [vmem:[%s244 + $0x50] sm:$0xf]
      %v312 = vld [vmem:[%s244 + $0x58] sm:$0xf]
      %v313 = vld [vmem:[%s244 + $0x60] sm:$0xf]
      %v314 = vld [vmem:[%s244 + $0x68] sm:$0xf]
      %v315 = vld [vmem:[%s244 + $0x70] sm:$0xf]
      %v316 = vld [vmem:[%s244 + $0x78] sm:$0xf]
      %v317 = vld [vmem:[%s244 + $0x80] sm:$0xf]
      %v318 = vld [vmem:[%s244 + $0x88] sm:$0xf]
      %v319 = vld [vmem:[%s244 + $0x90] sm:$0xf]
      %v320 = vld [vmem:[%s244 + $0x98] sm:$0xf]
      %v321 = vld [vmem:[%s244 + $0xa0] sm:$0xf]
      %v322 = vld [vmem:[%s244 + $0xa8] sm:$0xf]
      %v323 = vld [vmem:[%s244 + $0xb0] sm:$0xf]
      %v324 = vld [vmem:[%s244 + $0xb8] sm:$0xf]
      %v325 = vld [vmem:[%s244 + $0xc0] sm:$0xf]
      %v326 = vld [vmem:[%s244 + $0xc8] sm:$0xf]
      %v327 = vld [vmem:[%s244 + $0xd0] sm:$0xf]
      %v328 = vld [vmem:[%s244 + $0xd8] sm:$0xf]
      %v329 = vld [vmem:[%s244 + $0xe0] sm:$0xf]
      %v330 = vld [vmem:[%s244 + $0xe8] sm:$0xf]
      %v331 = vld [vmem:[%s244 + $0xf0] sm:$0xf]
      %v332 = vld [vmem:[%s244 + $0xf8] sm:$0xf]
      %v365 = vunpack.c.l.b16 %v301
      %v366 = vunpack.c.l.b16 %v302
      %v367 = vunpack.c.l.b16 %v303
      %v368 = vunpack.c.l.b16 %v304
      %v369 = vunpack.c.l.b16 %v305
      %v370 = vunpack.c.l.b16 %v306
      %v371 = vunpack.c.l.b16 %v307
      %v372 = vunpack.c.l.b16 %v308
      %v373 = vunpack.c.l.b16 %v309
      %v374 = vunpack.c.l.b16 %v310
      %v375 = vunpack.c.l.b16 %v311
      %v376 = vunpack.c.l.b16 %v312
      %v377 = vunpack.c.l.b16 %v313
      %v378 = vunpack.c.l.b16 %v314
      %v379 = vunpack.c.l.b16 %v315
      %v380 = vunpack.c.l.b16 %v316
      %v381 = vunpack.c.l.b16 %v317
      %v382 = vunpack.c.l.b16 %v318
      %v383 = vunpack.c.l.b16 %v319
      %v384 = vunpack.c.l.b16 %v320
      %v385 = vunpack.c.l.b16 %v321
      %v386 = vunpack.c.l.b16 %v322
      %v387 = vunpack.c.l.b16 %v323
      %v388 = vunpack.c.l.b16 %v324
      %v389 = vunpack.c.l.b16 %v325
      %v390 = vunpack.c.l.b16 %v326
      %v391 = vunpack.c.l.b16 %v327
      %v392 = vunpack.c.l.b16 %v328
      %v393 = vunpack.c.l.b16 %v329
      %v394 = vunpack.c.l.b16 %v330
      %v395 = vunpack.c.l.b16 %v331
      %v396 = vunpack.c.l.b16 %v332
      %v397 = vpack.c.b16 %v366, %v365
      %v398 = vpack.c.b16 %v368, %v367
      %v399 = vpack.c.b16 %v370, %v369
      %v400 = vpack.c.b16 %v372, %v371
      %v401 = vpack.c.b16 %v374, %v373
      %v402 = vpack.c.b16 %v376, %v375
      %v403 = vpack.c.b16 %v378, %v377
      %v404 = vpack.c.b16 %v380, %v379
      %v405 = vpack.c.b16 %v382, %v381
      %v406 = vpack.c.b16 %v384, %v383
      %v407 = vpack.c.b16 %v386, %v385
      %v408 = vpack.c.b16 %v388, %v387
      %v409 = vpack.c.b16 %v390, %v389
      %v410 = vpack.c.b16 %v392, %v391
      %v411 = vpack.c.b16 %v394, %v393
      %v412 = vpack.c.b16 %v396, %v395
      %429 = vst [vmem:[#allocation2] sm:$0xff] %v397
      %430 = vst [vmem:[#allocation2 + $0x8] sm:$0xff] %v398
      %431 = vst [vmem:[#allocation2 + $0x10] sm:$0xff] %v399
      %432 = vst [vmem:[#allocation2 + $0x18] sm:$0xff] %v400
      %433 = vst [vmem:[#allocation2 + $0x20] sm:$0xff] %v401
      %434 = vst [vmem:[#allocation2 + $0x28] sm:$0xff] %v402
      %435 = vst [vmem:[#allocation2 + $0x30] sm:$0xff] %v403
      %436 = vst [vmem:[#allocation2 + $0x38] sm:$0xff] %v404
      %437 = vst [vmem:[#allocation2 + $0x40] sm:$0xff] %v405
      %438 = vst [vmem:[#allocation2 + $0x48] sm:$0xff] %v406
      %439 = vst [vmem:[#allocation2 + $0x50] sm:$0xff] %v407
      %440 = vst [vmem:[#allocation2 + $0x58] sm:$0xff] %v408
      %441 = vst [vmem:[#allocation2 + $0x60] sm:$0xff] %v409
      %442 = vst [vmem:[#allocation2 + $0x68] sm:$0xff] %v410
      %443 = vst [vmem:[#allocation2 + $0x70] sm:$0xff] %v411
      %444 = vst [vmem:[#allocation2 + $0x78] sm:$0xff] %v412
      %v445 = vld [vmem:[%s244] sm:$0xff]
      %v446 = vld [vmem:[%s244 + $0x8] sm:$0xff]
      %v447 = vld [vmem:[%s244 + $0x10] sm:$0xff]
      %v448 = vld [vmem:[%s244 + $0x18] sm:$0xff]
      %v449 = vld [vmem:[%s244 + $0x20] sm:$0xff]
      %v450 = vld [vmem:[%s244 + $0x28] sm:$0xff]
      %v451 = vld [vmem:[%s244 + $0x30] sm:$0xff]
      %v452 = vld [vmem:[%s244 + $0x38] sm:$0xff]
      %v453 = vld [vmem:[%s244 + $0x40] sm:$0xff]
      %v454 = vld [vmem:[%s244 + $0x48] sm:$0xff]
      %v455 = vld [vmem:[%s244 + $0x50] sm:$0xff]
      %v456 = vld [vmem:[%s244 + $0x58] sm:$0xff]
      %v457 = vld [vmem:[%s244 + $0x60] sm:$0xff]
      %v458 = vld [vmem:[%s244 + $0x68] sm:$0xff]
      %v459 = vld [vmem:[%s244 + $0x70] sm:$0xff]
      %v460 = vld [vmem:[%s244 + $0x78] sm:$0xff]
      %v461 = vld [vmem:[%s244 + $0x80] sm:$0xff]
      %v462 = vld [vmem:[%s244 + $0x88] sm:$0xff]
      %v463 = vld [vmem:[%s244 + $0x90] sm:$0xff]
      %v464 = vld [vmem:[%s244 + $0x98] sm:$0xff]
      %v465 = vld [vmem:[%s244 + $0xa0] sm:$0xff]
      %v466 = vld [vmem:[%s244 + $0xa8] sm:$0xff]
      %v467 = vld [vmem:[%s244 + $0xb0] sm:$0xff]
      %v468 = vld [vmem:[%s244 + $0xb8] sm:$0xff]
      %v469 = vld [vmem:[%s244 + $0xc0] sm:$0xff]
      %v470 = vld [vmem:[%s244 + $0xc8] sm:$0xff]
      %v471 = vld [vmem:[%s244 + $0xd0] sm:$0xff]
      %v472 = vld [vmem:[%s244 + $0xd8] sm:$0xff]
      %v473 = vld [vmem:[%s244 + $0xe0] sm:$0xff]
      %v474 = vld [vmem:[%s244 + $0xe8] sm:$0xff]
      %v475 = vld [vmem:[%s244 + $0xf0] sm:$0xff]
      %v476 = vld [vmem:[%s244 + $0xf8] sm:$0xff]
      %v509 = vunpack.c.l.b16 %v445
      %v510 = vunpack.c.h.b16 %v445
      %v511 = vunpack.c.l.b16 %v446
      %v512 = vunpack.c.h.b16 %v446
      %v513 = vunpack.c.l.b16 %v447
      %v514 = vunpack.c.h.b16 %v447
      %v515 = vunpack.c.l.b16 %v448
      %v516 = vunpack.c.h.b16 %v448
      %v517 = vunpack.c.l.b16 %v449
      %v518 = vunpack.c.h.b16 %v449
      %v519 = vunpack.c.l.b16 %v450
      %v520 = vunpack.c.h.b16 %v450
      %v521 = vunpack.c.l.b16 %v451
      %v522 = vunpack.c.h.b16 %v451
      %v523 = vunpack.c.l.b16 %v452
      %v524 = vunpack.c.h.b16 %v452
      %v525 = vunpack.c.l.b16 %v453
      %v526 = vunpack.c.h.b16 %v453
      %v527 = vunpack.c.l.b16 %v454
      %v528 = vunpack.c.h.b16 %v454
      %v529 = vunpack.c.l.b16 %v455
      %v530 = vunpack.c.h.b16 %v455
      %v531 = vunpack.c.l.b16 %v456
      %v532 = vunpack.c.h.b16 %v456
      %v533 = vunpack.c.l.b16 %v457
      %v534 = vunpack.c.h.b16 %v457
      %v535 = vunpack.c.l.b16 %v458
      %v536 = vunpack.c.h.b16 %v458
      %v537 = vunpack.c.l.b16 %v459
      %v538 = vunpack.c.h.b16 %v459
      %v539 = vunpack.c.l.b16 %v460
      %v540 = vunpack.c.h.b16 %v460
      %v541 = vunpack.c.l.b16 %v461
      %v542 = vunpack.c.h.b16 %v461
      %v543 = vunpack.c.l.b16 %v462
      %v544 = vunpack.c.h.b16 %v462
      %v545 = vunpack.c.l.b16 %v463
      %v546 = vunpack.c.h.b16 %v463
      %v547 = vunpack.c.l.b16 %v464
      %v548 = vunpack.c.h.b16 %v464
      %v549 = vunpack.c.l.b16 %v465
      %v550 = vunpack.c.h.b16 %v465
      %v551 = vunpack.c.l.b16 %v466
      %v552 = vunpack.c.h.b16 %v466
      %v553 = vunpack.c.l.b16 %v467
      %v554 = vunpack.c.h.b16 %v467
      %v555 = vunpack.c.l.b16 %v468
      %v556 = vunpack.c.h.b16 %v468
      %v557 = vunpack.c.l.b16 %v469
      %v558 = vunpack.c.h.b16 %v469
      %v559 = vunpack.c.l.b16 %v470
      %v560 = vunpack.c.h.b16 %v470
      %v561 = vunpack.c.l.b16 %v471
      %v562 = vunpack.c.h.b16 %v471
      %v563 = vunpack.c.l.b16 %v472
      %v564 = vunpack.c.h.b16 %v472
      %v565 = vunpack.c.l.b16 %v473
      %v566 = vunpack.c.h.b16 %v473
      %v567 = vunpack.c.l.b16 %v474
      %v568 = vunpack.c.h.b16 %v474
      %v569 = vunpack.c.l.b16 %v475
      %v570 = vunpack.c.h.b16 %v475
      %v571 = vunpack.c.l.b16 %v476
      %v572 = vunpack.c.h.b16 %v476
      %v573 = vpack.c.b16 %v511, %v509
      %v574 = vpack.c.b16 %v512, %v510
      %v575 = vpack.c.b16 %v515, %v513
      %v576 = vpack.c.b16 %v516, %v514
      %v577 = vpack.c.b16 %v519, %v517
      %v578 = vpack.c.b16 %v520, %v518
      %v579 = vpack.c.b16 %v523, %v521
      %v580 = vpack.c.b16 %v524, %v522
      %v581 = vpack.c.b16 %v527, %v525
      %v582 = vpack.c.b16 %v528, %v526
      %v583 = vpack.c.b16 %v531, %v529
      %v584 = vpack.c.b16 %v532, %v530
      %v585 = vpack.c.b16 %v535, %v533
      %v586 = vpack.c.b16 %v536, %v534
      %v587 = vpack.c.b16 %v539, %v537
      %v588 = vpack.c.b16 %v540, %v538
      %v589 = vpack.c.b16 %v543, %v541
      %v590 = vpack.c.b16 %v544, %v542
      %v591 = vpack.c.b16 %v547, %v545
      %v592 = vpack.c.b16 %v548, %v546
      %v593 = vpack.c.b16 %v551, %v549
      %v594 = vpack.c.b16 %v552, %v550
      %v595 = vpack.c.b16 %v555, %v553
      %v596 = vpack.c.b16 %v556, %v554
      %v597 = vpack.c.b16 %v559, %v557
      %v598 = vpack.c.b16 %v560, %v558
      %v599 = vpack.c.b16 %v563, %v561
      %v600 = vpack.c.b16 %v564, %v562
      %v601 = vpack.c.b16 %v567, %v565
      %v602 = vpack.c.b16 %v568, %v566
      %v603 = vpack.c.b16 %v571, %v569
      %v604 = vpack.c.b16 %v572, %v570
      %605 = vrot.lane.b32.xlu0 %v573, 127
      %v606 = vpop.permute.xlu0 %605
      %607 = vrot.lane.b32.xlu0 %v574, 127
      %v608 = vpop.permute.xlu0 %607
      %609 = vrot.lane.b32.xlu0 %v575, 127
      %v610 = vpop.permute.xlu0 %609
      %611 = vrot.lane.b32.xlu0 %v576, 127
      %v612 = vpop.permute.xlu0 %611
      %613 = vrot.lane.b32.xlu0 %v577, 127
      %v614 = vpop.permute.xlu0 %613
      %615 = vrot.lane.b32.xlu0 %v578, 127
      %v616 = vpop.permute.xlu0 %615
      %617 = vrot.lane.b32.xlu0 %v579, 127
      %v618 = vpop.permute.xlu0 %617
      %619 = vrot.lane.b32.xlu0 %v580, 127
      %v620 = vpop.permute.xlu0 %619
      %621 = vrot.lane.b32.xlu0 %v581, 127
      %v622 = vpop.permute.xlu0 %621
      %623 = vrot.lane.b32.xlu0 %v582, 127
      %v624 = vpop.permute.xlu0 %623
      %625 = vrot.lane.b32.xlu0 %v583, 127
      %v626 = vpop.permute.xlu0 %625
      %627 = vrot.lane.b32.xlu0 %v584, 127
      %v628 = vpop.permute.xlu0 %627
      %629 = vrot.lane.b32.xlu0 %v585, 127
      %v630 = vpop.permute.xlu0 %629
      %631 = vrot.lane.b32.xlu0 %v586, 127
      %v632 = vpop.permute.xlu0 %631
      %633 = vrot.lane.b32.xlu0 %v587, 127
      %v634 = vpop.permute.xlu0 %633
      %635 = vrot.lane.b32.xlu0 %v588, 127
      %v636 = vpop.permute.xlu0 %635
      %637 = vrot.lane.b32.xlu0 %v589, 127
      %v638 = vpop.permute.xlu0 %637
      %639 = vrot.lane.b32.xlu0 %v590, 127
      %v640 = vpop.permute.xlu0 %639
      %641 = vrot.lane.b32.xlu0 %v591, 127
      %v642 = vpop.permute.xlu0 %641
      %643 = vrot.lane.b32.xlu0 %v592, 127
      %v644 = vpop.permute.xlu0 %643
      %645 = vrot.lane.b32.xlu0 %v593, 127
      %v646 = vpop.permute.xlu0 %645
      %647 = vrot.lane.b32.xlu0 %v594, 127
      %v648 = vpop.permute.xlu0 %647
      %649 = vrot.lane.b32.xlu0 %v595, 127
      %v650 = vpop.permute.xlu0 %649
      %651 = vrot.lane.b32.xlu0 %v596, 127
      %v652 = vpop.permute.xlu0 %651
      %653 = vrot.lane.b32.xlu0 %v597, 127
      %v654 = vpop.permute.xlu0 %653
      %655 = vrot.lane.b32.xlu0 %v598, 127
      %v656 = vpop.permute.xlu0 %655
      %657 = vrot.lane.b32.xlu0 %v599, 127
      %v658 = vpop.permute.xlu0 %657
      %659 = vrot.lane.b32.xlu0 %v600, 127
      %v660 = vpop.permute.xlu0 %659
      %661 = vrot.lane.b32.xlu0 %v601, 127
      %v662 = vpop.permute.xlu0 %661
      %663 = vrot.lane.b32.xlu0 %v602, 127
      %v664 = vpop.permute.xlu0 %663
      %665 = vrot.lane.b32.xlu0 %v603, 127
      %v666 = vpop.permute.xlu0 %665
      %667 = vrot.lane.b32.xlu0 %v604, 127
      %v668 = vpop.permute.xlu0 %667
      %vm669 = vcmask 1039360
      %v670 = vsel %vm669, %v606, %v608
      %v671 = vsel %vm669, %v610, %v612
      %v672 = vsel %vm669, %v614, %v616
      %v673 = vsel %vm669, %v618, %v620
      %v674 = vsel %vm669, %v622, %v624
      %v675 = vsel %vm669, %v626, %v628
      %v676 = vsel %vm669, %v630, %v632
      %v677 = vsel %vm669, %v634, %v636
      %v678 = vsel %vm669, %v638, %v640
      %v679 = vsel %vm669, %v642, %v644
      %v680 = vsel %vm669, %v646, %v648
      %v681 = vsel %vm669, %v650, %v652
      %v682 = vsel %vm669, %v654, %v656
      %v683 = vsel %vm669, %v658, %v660
      %v684 = vsel %vm669, %v662, %v664
      %v685 = vsel %vm669, %v666, %v668
      %702 = vst [vmem:[#allocation2 + $0x80] sm:$0xff] %v670
      %703 = vst [vmem:[#allocation2 + $0x88] sm:$0xff] %v671
      %704 = vst [vmem:[#allocation2 + $0x90] sm:$0xff] %v672
      %705 = vst [vmem:[#allocation2 + $0x98] sm:$0xff] %v673
      %706 = vst [vmem:[#allocation2 + $0xa0] sm:$0xff] %v674
      %707 = vst [vmem:[#allocation2 + $0xa8] sm:$0xff] %v675
      %708 = vst [vmem:[#allocation2 + $0xb0] sm:$0xff] %v676
      %709 = vst [vmem:[#allocation2 + $0xb8] sm:$0xff] %v677
      %710 = vst [vmem:[#allocation2 + $0xc0] sm:$0xff] %v678
      %711 = vst [vmem:[#allocation2 + $0xc8] sm:$0xff] %v679
      %712 = vst [vmem:[#allocation2 + $0xd0] sm:$0xff] %v680
      %713 = vst [vmem:[#allocation2 + $0xd8] sm:$0xff] %v681
      %714 = vst [vmem:[#allocation2 + $0xe0] sm:$0xff] %v682
      %715 = vst [vmem:[#allocation2 + $0xe8] sm:$0xff] %v683
      %716 = vst [vmem:[#allocation2 + $0xf0] sm:$0xff] %v684
      %717 = vst [vmem:[#allocation2 + $0xf8] sm:$0xff] %v685
      %v718 = vld [vmem:[%s244] sm:$0xff]
      %v719 = vld [vmem:[%s244 + $0x8] sm:$0xff]
      %v720 = vld [vmem:[%s244 + $0x10] sm:$0xff]
      %v721 = vld [vmem:[%s244 + $0x18] sm:$0xff]
      %v722 = vld [vmem:[%s244 + $0x20] sm:$0xff]
      %v723 = vld [vmem:[%s244 + $0x28] sm:$0xff]
      %v724 = vld [vmem:[%s244 + $0x30] sm:$0xff]
      %v725 = vld [vmem:[%s244 + $0x38] sm:$0xff]
      %v726 = vld [vmem:[%s244 + $0x40] sm:$0xff]
      %v727 = vld [vmem:[%s244 + $0x48] sm:$0xff]
      %v728 = vld [vmem:[%s244 + $0x50] sm:$0xff]
      %v729 = vld [vmem:[%s244 + $0x58] sm:$0xff]
      %v730 = vld [vmem:[%s244 + $0x60] sm:$0xff]
      %v731 = vld [vmem:[%s244 + $0x68] sm:$0xff]
      %v732 = vld [vmem:[%s244 + $0x70] sm:$0xff]
      %v733 = vld [vmem:[%s244 + $0x78] sm:$0xff]
      %v734 = vld [vmem:[%s244 + $0x80] sm:$0xff]
      %v735 = vld [vmem:[%s244 + $0x88] sm:$0xff]
      %v736 = vld [vmem:[%s244 + $0x90] sm:$0xff]
      %v737 = vld [vmem:[%s244 + $0x98] sm:$0xff]
      %v738 = vld [vmem:[%s244 + $0xa0] sm:$0xff]
      %v739 = vld [vmem:[%s244 + $0xa8] sm:$0xff]
      %v740 = vld [vmem:[%s244 + $0xb0] sm:$0xff]
      %v741 = vld [vmem:[%s244 + $0xb8] sm:$0xff]
      %v742 = vld [vmem:[%s244 + $0xc0] sm:$0xff]
      %v743 = vld [vmem:[%s244 + $0xc8] sm:$0xff]
      %v744 = vld [vmem:[%s244 + $0xd0] sm:$0xff]
      %v745 = vld [vmem:[%s244 + $0xd8] sm:$0xff]
      %v746 = vld [vmem:[%s244 + $0xe0] sm:$0xff]
      %v747 = vld [vmem:[%s244 + $0xe8] sm:$0xff]
      %v748 = vld [vmem:[%s244 + $0xf0] sm:$0xff]
      %v749 = vld [vmem:[%s244 + $0xf8] sm:$0xff]
      %v782 = vunpack.c.l.b16 %v718
      %v783 = vunpack.c.h.b16 %v718
      %v784 = vunpack.c.l.b16 %v719
      %v785 = vunpack.c.h.b16 %v719
      %v786 = vunpack.c.l.b16 %v720
      %v787 = vunpack.c.h.b16 %v720
      %v788 = vunpack.c.l.b16 %v721
      %v789 = vunpack.c.h.b16 %v721
      %v790 = vunpack.c.l.b16 %v722
      %v791 = vunpack.c.h.b16 %v722
      %v792 = vunpack.c.l.b16 %v723
      %v793 = vunpack.c.h.b16 %v723
      %v794 = vunpack.c.l.b16 %v724
      %v795 = vunpack.c.h.b16 %v724
      %v796 = vunpack.c.l.b16 %v725
      %v797 = vunpack.c.h.b16 %v725
      %v798 = vunpack.c.l.b16 %v726
      %v799 = vunpack.c.h.b16 %v726
      %v800 = vunpack.c.l.b16 %v727
      %v801 = vunpack.c.h.b16 %v727
      %v802 = vunpack.c.l.b16 %v728
      %v803 = vunpack.c.h.b16 %v728
      %v804 = vunpack.c.l.b16 %v729
      %v805 = vunpack.c.h.b16 %v729
      %v806 = vunpack.c.l.b16 %v730
      %v807 = vunpack.c.h.b16 %v730
      %v808 = vunpack.c.l.b16 %v731
      %v809 = vunpack.c.h.b16 %v731
      %v810 = vunpack.c.l.b16 %v732
      %v811 = vunpack.c.h.b16 %v732
      %v812 = vunpack.c.l.b16 %v733
      %v813 = vunpack.c.h.b16 %v733
      %v814 = vunpack.c.l.b16 %v734
      %v815 = vunpack.c.h.b16 %v734
      %v816 = vunpack.c.l.b16 %v735
      %v817 = vunpack.c.h.b16 %v735
      %v818 = vunpack.c.l.b16 %v736
      %v819 = vunpack.c.h.b16 %v736
      %v820 = vunpack.c.l.b16 %v737
      %v821 = vunpack.c.h.b16 %v737
      %v822 = vunpack.c.l.b16 %v738
      %v823 = vunpack.c.h.b16 %v738
      %v824 = vunpack.c.l.b16 %v739
      %v825 = vunpack.c.h.b16 %v739
      %v826 = vunpack.c.l.b16 %v740
      %v827 = vunpack.c.h.b16 %v740
      %v828 = vunpack.c.l.b16 %v741
      %v829 = vunpack.c.h.b16 %v741
      %v830 = vunpack.c.l.b16 %v742
      %v831 = vunpack.c.h.b16 %v742
      %v832 = vunpack.c.l.b16 %v743
      %v833 = vunpack.c.h.b16 %v743
      %v834 = vunpack.c.l.b16 %v744
      %v835 = vunpack.c.h.b16 %v744
      %v836 = vunpack.c.l.b16 %v745
      %v837 = vunpack.c.h.b16 %v745
      %v838 = vunpack.c.l.b16 %v746
      %v839 = vunpack.c.h.b16 %v746
      %v840 = vunpack.c.l.b16 %v747
      %v841 = vunpack.c.h.b16 %v747
      %v842 = vunpack.c.l.b16 %v748
      %v843 = vunpack.c.h.b16 %v748
      %v844 = vunpack.c.l.b16 %v749
      %v845 = vunpack.c.h.b16 %v749
      %v846 = vpack.c.b16 %v784, %v782
      %v847 = vpack.c.b16 %v785, %v783
      %v848 = vpack.c.b16 %v788, %v786
      %v849 = vpack.c.b16 %v789, %v787
      %v850 = vpack.c.b16 %v792, %v790
      %v851 = vpack.c.b16 %v793, %v791
      %v852 = vpack.c.b16 %v796, %v794
      %v853 = vpack.c.b16 %v797, %v795
      %v854 = vpack.c.b16 %v800, %v798
      %v855 = vpack.c.b16 %v801, %v799
      %v856 = vpack.c.b16 %v804, %v802
      %v857 = vpack.c.b16 %v805, %v803
      %v858 = vpack.c.b16 %v808, %v806
      %v859 = vpack.c.b16 %v809, %v807
      %v860 = vpack.c.b16 %v812, %v810
      %v861 = vpack.c.b16 %v813, %v811
      %v862 = vpack.c.b16 %v816, %v814
      %v863 = vpack.c.b16 %v817, %v815
      %v864 = vpack.c.b16 %v820, %v818
      %v865 = vpack.c.b16 %v821, %v819
      %v866 = vpack.c.b16 %v824, %v822
      %v867 = vpack.c.b16 %v825, %v823
      %v868 = vpack.c.b16 %v828, %v826
      %v869 = vpack.c.b16 %v829, %v827
      %v870 = vpack.c.b16 %v832, %v830
      %v871 = vpack.c.b16 %v833, %v831
      %v872 = vpack.c.b16 %v836, %v834
      %v873 = vpack.c.b16 %v837, %v835
      %v874 = vpack.c.b16 %v840, %v838
      %v875 = vpack.c.b16 %v841, %v839
      %v876 = vpack.c.b16 %v844, %v842
      %v877 = vpack.c.b16 %v845, %v843
      %878 = vrot.lane.b32.xlu0 %v846, 123
      %v879 = vpop.permute.xlu0 %878
      %880 = vrot.lane.b32.xlu0 %v847, 123
      %v881 = vpop.permute.xlu0 %880
      %882 = vrot.lane.b32.xlu0 %v848, 123
      %v883 = vpop.permute.xlu0 %882
      %884 = vrot.lane.b32.xlu0 %v849, 123
      %v885 = vpop.permute.xlu0 %884
      %886 = vrot.lane.b32.xlu0 %v850, 123
      %v887 = vpop.permute.xlu0 %886
      %888 = vrot.lane.b32.xlu0 %v851, 123
      %v889 = vpop.permute.xlu0 %888
      %890 = vrot.lane.b32.xlu0 %v852, 123
      %v891 = vpop.permute.xlu0 %890
      %892 = vrot.lane.b32.xlu0 %v853, 123
      %v893 = vpop.permute.xlu0 %892
      %894 = vrot.lane.b32.xlu0 %v854, 123
      %v895 = vpop.permute.xlu0 %894
      %896 = vrot.lane.b32.xlu0 %v855, 123
      %v897 = vpop.permute.xlu0 %896
      %898 = vrot.lane.b32.xlu0 %v856, 123
      %v899 = vpop.permute.xlu0 %898
      %900 = vrot.lane.b32.xlu0 %v857, 123
      %v901 = vpop.permute.xlu0 %900
      %902 = vrot.lane.b32.xlu0 %v858, 123
      %v903 = vpop.permute.xlu0 %902
      %904 = vrot.lane.b32.xlu0 %v859, 123
      %v905 = vpop.permute.xlu0 %904
      %906 = vrot.lane.b32.xlu0 %v860, 123
      %v907 = vpop.permute.xlu0 %906
      %908 = vrot.lane.b32.xlu0 %v861, 123
      %v909 = vpop.permute.xlu0 %908
      %910 = vrot.lane.b32.xlu0 %v862, 123
      %v911 = vpop.permute.xlu0 %910
      %912 = vrot.lane.b32.xlu0 %v863, 123
      %v913 = vpop.permute.xlu0 %912
      %914 = vrot.lane.b32.xlu0 %v864, 123
      %v915 = vpop.permute.xlu0 %914
      %916 = vrot.lane.b32.xlu0 %v865, 123
      %v917 = vpop.permute.xlu0 %916
      %918 = vrot.lane.b32.xlu0 %v866, 123
      %v919 = vpop.permute.xlu0 %918
      %920 = vrot.lane.b32.xlu0 %v867, 123
      %v921 = vpop.permute.xlu0 %920
      %922 = vrot.lane.b32.xlu0 %v868, 123
      %v923 = vpop.permute.xlu0 %922
      %924 = vrot.lane.b32.xlu0 %v869, 123
      %v925 = vpop.permute.xlu0 %924
      %926 = vrot.lane.b32.xlu0 %v870, 123
      %v927 = vpop.permute.xlu0 %926
      %928 = vrot.lane.b32.xlu0 %v871, 123
      %v929 = vpop.permute.xlu0 %928
      %930 = vrot.lane.b32.xlu0 %v872, 123
      %v931 = vpop.permute.xlu0 %930
      %932 = vrot.lane.b32.xlu0 %v873, 123
      %v933 = vpop.permute.xlu0 %932
      %934 = vrot.lane.b32.xlu0 %v874, 123
      %v935 = vpop.permute.xlu0 %934
      %936 = vrot.lane.b32.xlu0 %v875, 123
      %v937 = vpop.permute.xlu0 %936
      %938 = vrot.lane.b32.xlu0 %v876, 123
      %v939 = vpop.permute.xlu0 %938
      %940 = vrot.lane.b32.xlu0 %v877, 123
      %v941 = vpop.permute.xlu0 %940
      %vm942 = vcmask 1006592
      %v943 = vsel %vm942, %v879, %v881
      %v944 = vsel %vm942, %v883, %v885
      %v945 = vsel %vm942, %v887, %v889
      %v946 = vsel %vm942, %v891, %v893
      %v947 = vsel %vm942, %v895, %v897
      %v948 = vsel %vm942, %v899, %v901
      %v949 = vsel %vm942, %v903, %v905
      %v950 = vsel %vm942, %v907, %v909
      %v951 = vsel %vm942, %v911, %v913
      %v952 = vsel %vm942, %v915, %v917
      %v953 = vsel %vm942, %v919, %v921
      %v954 = vsel %vm942, %v923, %v925
      %v955 = vsel %vm942, %v927, %v929
      %v956 = vsel %vm942, %v931, %v933
      %v957 = vsel %vm942, %v935, %v937
      %v958 = vsel %vm942, %v939, %v941
      %975 = vst [vmem:[#allocation2 + $0x100] sm:$0xff] %v943
      %976 = vst [vmem:[#allocation2 + $0x108] sm:$0xff] %v944
      %977 = vst [vmem:[#allocation2 + $0x110] sm:$0xff] %v945
      %978 = vst [vmem:[#allocation2 + $0x118] sm:$0xff] %v946
      %979 = vst [vmem:[#allocation2 + $0x120] sm:$0xff] %v947
      %980 = vst [vmem:[#allocation2 + $0x128] sm:$0xff] %v948
      %981 = vst [vmem:[#allocation2 + $0x130] sm:$0xff] %v949
      %982 = vst [vmem:[#allocation2 + $0x138] sm:$0xff] %v950
      %983 = vst [vmem:[#allocation2 + $0x140] sm:$0xff] %v951
      %984 = vst [vmem:[#allocation2 + $0x148] sm:$0xff] %v952
      %985 = vst [vmem:[#allocation2 + $0x150] sm:$0xff] %v953
      %986 = vst [vmem:[#allocation2 + $0x158] sm:$0xff] %v954
      %987 = vst [vmem:[#allocation2 + $0x160] sm:$0xff] %v955
      %988 = vst [vmem:[#allocation2 + $0x168] sm:$0xff] %v956
      %989 = vst [vmem:[#allocation2 + $0x170] sm:$0xff] %v957
      %990 = vst [vmem:[#allocation2 + $0x178] sm:$0xff] %v958
      %v991 = vld [vmem:[%s244] sm:$0xff]
      %v992 = vld [vmem:[%s244 + $0x8] sm:$0xff]
      %v993 = vld [vmem:[%s244 + $0x10] sm:$0xff]
      %v994 = vld [vmem:[%s244 + $0x18] sm:$0xff]
      %v995 = vld [vmem:[%s244 + $0x20] sm:$0xff]
      %v996 = vld [vmem:[%s244 + $0x28] sm:$0xff]
      %v997 = vld [vmem:[%s244 + $0x30] sm:$0xff]
      %v998 = vld [vmem:[%s244 + $0x38] sm:$0xff]
      %v999 = vld [vmem:[%s244 + $0x40] sm:$0xff]
      %v1000 = vld [vmem:[%s244 + $0x48] sm:$0xff]
      %v1001 = vld [vmem:[%s244 + $0x50] sm:$0xff]
      %v1002 = vld [vmem:[%s244 + $0x58] sm:$0xff]
      %v1003 = vld [vmem:[%s244 + $0x60] sm:$0xff]
      %v1004 = vld [vmem:[%s244 + $0x68] sm:$0xff]
      %v1005 = vld [vmem:[%s244 + $0x70] sm:$0xff]
      %v1006 = vld [vmem:[%s244 + $0x78] sm:$0xff]
      %v1007 = vld [vmem:[%s244 + $0x80] sm:$0xff]
      %v1008 = vld [vmem:[%s244 + $0x88] sm:$0xff]
      %v1009 = vld [vmem:[%s244 + $0x90] sm:$0xff]
      %v1010 = vld [vmem:[%s244 + $0x98] sm:$0xff]
      %v1011 = vld [vmem:[%s244 + $0xa0] sm:$0xff]
      %v1012 = vld [vmem:[%s244 + $0xa8] sm:$0xff]
      %v1013 = vld [vmem:[%s244 + $0xb0] sm:$0xff]
      %v1014 = vld [vmem:[%s244 + $0xb8] sm:$0xff]
      %v1015 = vld [vmem:[%s244 + $0xc0] sm:$0xff]
      %v1016 = vld [vmem:[%s244 + $0xc8] sm:$0xff]
      %v1017 = vld [vmem:[%s244 + $0xd0] sm:$0xff]
      %v1018 = vld [vmem:[%s244 + $0xd8] sm:$0xff]
      %v1019 = vld [vmem:[%s244 + $0xe0] sm:$0xff]
      %v1020 = vld [vmem:[%s244 + $0xe8] sm:$0xff]
      %v1021 = vld [vmem:[%s244 + $0xf0] sm:$0xff]
      %v1022 = vld [vmem:[%s244 + $0xf8] sm:$0xff]
      %v1055 = vunpack.c.l.b16 %v991
      %v1056 = vunpack.c.h.b16 %v991
      %v1057 = vunpack.c.l.b16 %v992
      %v1058 = vunpack.c.h.b16 %v992
      %v1059 = vunpack.c.l.b16 %v993
      %v1060 = vunpack.c.h.b16 %v993
      %v1061 = vunpack.c.l.b16 %v994
      %v1062 = vunpack.c.h.b16 %v994
      %v1063 = vunpack.c.l.b16 %v995
      %v1064 = vunpack.c.h.b16 %v995
      %v1065 = vunpack.c.l.b16 %v996
      %v1066 = vunpack.c.h.b16 %v996
      %v1067 = vunpack.c.l.b16 %v997
      %v1068 = vunpack.c.h.b16 %v997
      %v1069 = vunpack.c.l.b16 %v998
      %v1070 = vunpack.c.h.b16 %v998
      %v1071 = vunpack.c.l.b16 %v999
      %v1072 = vunpack.c.h.b16 %v999
      %v1073 = vunpack.c.l.b16 %v1000
      %v1074 = vunpack.c.h.b16 %v1000
      %v1075 = vunpack.c.l.b16 %v1001
      %v1076 = vunpack.c.h.b16 %v1001
      %v1077 = vunpack.c.l.b16 %v1002
      %v1078 = vunpack.c.h.b16 %v1002
      %v1079 = vunpack.c.l.b16 %v1003
      %v1080 = vunpack.c.h.b16 %v1003
      %v1081 = vunpack.c.l.b16 %v1004
      %v1082 = vunpack.c.h.b16 %v1004
      %v1083 = vunpack.c.l.b16 %v1005
      %v1084 = vunpack.c.h.b16 %v1005
      %v1085 = vunpack.c.l.b16 %v1006
      %v1086 = vunpack.c.h.b16 %v1006
      %v1087 = vunpack.c.l.b16 %v1007
      %v1088 = vunpack.c.h.b16 %v1007
      %v1089 = vunpack.c.l.b16 %v1008
      %v1090 = vunpack.c.h.b16 %v1008
      %v1091 = vunpack.c.l.b16 %v1009
      %v1092 = vunpack.c.h.b16 %v1009
      %v1093 = vunpack.c.l.b16 %v1010
      %v1094 = vunpack.c.h.b16 %v1010
      %v1095 = vunpack.c.l.b16 %v1011
      %v1096 = vunpack.c.h.b16 %v1011
      %v1097 = vunpack.c.l.b16 %v1012
      %v1098 = vunpack.c.h.b16 %v1012
      %v1099 = vunpack.c.l.b16 %v1013
      %v1100 = vunpack.c.h.b16 %v1013
      %v1101 = vunpack.c.l.b16 %v1014
      %v1102 = vunpack.c.h.b16 %v1014
      %v1103 = vunpack.c.l.b16 %v1015
      %v1104 = vunpack.c.h.b16 %v1015
      %v1105 = vunpack.c.l.b16 %v1016
      %v1106 = vunpack.c.h.b16 %v1016
      %v1107 = vunpack.c.l.b16 %v1017
      %v1108 = vunpack.c.h.b16 %v1017
      %v1109 = vunpack.c.l.b16 %v1018
      %v1110 = vunpack.c.h.b16 %v1018
      %v1111 = vunpack.c.l.b16 %v1019
      %v1112 = vunpack.c.h.b16 %v1019
      %v1113 = vunpack.c.l.b16 %v1020
      %v1114 = vunpack.c.h.b16 %v1020
      %v1115 = vunpack.c.l.b16 %v1021
      %v1116 = vunpack.c.h.b16 %v1021
      %v1117 = vunpack.c.l.b16 %v1022
      %v1118 = vunpack.c.h.b16 %v1022
      %v1119 = vpack.c.b16 %v1057, %v1055
      %v1120 = vpack.c.b16 %v1058, %v1056
      %v1121 = vpack.c.b16 %v1061, %v1059
      %v1122 = vpack.c.b16 %v1062, %v1060
      %v1123 = vpack.c.b16 %v1065, %v1063
      %v1124 = vpack.c.b16 %v1066, %v1064
      %v1125 = vpack.c.b16 %v1069, %v1067
      %v1126 = vpack.c.b16 %v1070, %v1068
      %v1127 = vpack.c.b16 %v1073, %v1071
      %v1128 = vpack.c.b16 %v1074, %v1072
      %v1129 = vpack.c.b16 %v1077, %v1075
      %v1130 = vpack.c.b16 %v1078, %v1076
      %v1131 = vpack.c.b16 %v1081, %v1079
      %v1132 = vpack.c.b16 %v1082, %v1080
      %v1133 = vpack.c.b16 %v1085, %v1083
      %v1134 = vpack.c.b16 %v1086, %v1084
      %v1135 = vpack.c.b16 %v1089, %v1087
      %v1136 = vpack.c.b16 %v1090, %v1088
      %v1137 = vpack.c.b16 %v1093, %v1091
      %v1138 = vpack.c.b16 %v1094, %v1092
      %v1139 = vpack.c.b16 %v1097, %v1095
      %v1140 = vpack.c.b16 %v1098, %v1096
      %v1141 = vpack.c.b16 %v1101, %v1099
      %v1142 = vpack.c.b16 %v1102, %v1100
      %v1143 = vpack.c.b16 %v1105, %v1103
      %v1144 = vpack.c.b16 %v1106, %v1104
      %v1145 = vpack.c.b16 %v1109, %v1107
      %v1146 = vpack.c.b16 %v1110, %v1108
      %v1147 = vpack.c.b16 %v1113, %v1111
      %v1148 = vpack.c.b16 %v1114, %v1112
      %v1149 = vpack.c.b16 %v1117, %v1115
      %v1150 = vpack.c.b16 %v1118, %v1116
      %1151 = vrot.lane.b32.xlu0 %v1119, 122
      %v1152 = vpop.permute.xlu0 %1151
      %1153 = vrot.lane.b32.xlu0 %v1120, 122
      %v1154 = vpop.permute.xlu0 %1153
      %1155 = vrot.lane.b32.xlu0 %v1121, 122
      %v1156 = vpop.permute.xlu0 %1155
      %1157 = vrot.lane.b32.xlu0 %v1122, 122
      %v1158 = vpop.permute.xlu0 %1157
      %1159 = vrot.lane.b32.xlu0 %v1123, 122
      %v1160 = vpop.permute.xlu0 %1159
      %1161 = vrot.lane.b32.xlu0 %v1124, 122
      %v1162 = vpop.permute.xlu0 %1161
      %1163 = vrot.lane.b32.xlu0 %v1125, 122
      %v1164 = vpop.permute.xlu0 %1163
      %1165 = vrot.lane.b32.xlu0 %v1126, 122
      %v1166 = vpop.permute.xlu0 %1165
      %1167 = vrot.lane.b32.xlu0 %v1127, 122
      %v1168 = vpop.permute.xlu0 %1167
      %1169 = vrot.lane.b32.xlu0 %v1128, 122
      %v1170 = vpop.permute.xlu0 %1169
      %1171 = vrot.lane.b32.xlu0 %v1129, 122
      %v1172 = vpop.permute.xlu0 %1171
      %1173 = vrot.lane.b32.xlu0 %v1130, 122
      %v1174 = vpop.permute.xlu0 %1173
      %1175 = vrot.lane.b32.xlu0 %v1131, 122
      %v1176 = vpop.permute.xlu0 %1175
      %1177 = vrot.lane.b32.xlu0 %v1132, 122
      %v1178 = vpop.permute.xlu0 %1177
      %1179 = vrot.lane.b32.xlu0 %v1133, 122
      %v1180 = vpop.permute.xlu0 %1179
      %1181 = vrot.lane.b32.xlu0 %v1134, 122
      %v1182 = vpop.permute.xlu0 %1181
      %1183 = vrot.lane.b32.xlu0 %v1135, 122
      %v1184 = vpop.permute.xlu0 %1183
      %1185 = vrot.lane.b32.xlu0 %v1136, 122
      %v1186 = vpop.permute.xlu0 %1185
      %1187 = vrot.lane.b32.xlu0 %v1137, 122
      %v1188 = vpop.permute.xlu0 %1187
      %1189 = vrot.lane.b32.xlu0 %v1138, 122
      %v1190 = vpop.permute.xlu0 %1189
      %1191 = vrot.lane.b32.xlu0 %v1139, 122
      %v1192 = vpop.permute.xlu0 %1191
      %1193 = vrot.lane.b32.xlu0 %v1140, 122
      %v1194 = vpop.permute.xlu0 %1193
      %1195 = vrot.lane.b32.xlu0 %v1141, 122
      %v1196 = vpop.permute.xlu0 %1195
      %1197 = vrot.lane.b32.xlu0 %v1142, 122
      %v1198 = vpop.permute.xlu0 %1197
      %1199 = vrot.lane.b32.xlu0 %v1143, 122
      %v1200 = vpop.permute.xlu0 %1199
      %1201 = vrot.lane.b32.xlu0 %v1144, 122
      %v1202 = vpop.permute.xlu0 %1201
      %1203 = vrot.lane.b32.xlu0 %v1145, 122
      %v1204 = vpop.permute.xlu0 %1203
      %1205 = vrot.lane.b32.xlu0 %v1146, 122
      %v1206 = vpop.permute.xlu0 %1205
      %1207 = vrot.lane.b32.xlu0 %v1147, 122
      %v1208 = vpop.permute.xlu0 %1207
      %1209 = vrot.lane.b32.xlu0 %v1148, 122
      %v1210 = vpop.permute.xlu0 %1209
      %1211 = vrot.lane.b32.xlu0 %v1149, 122
      %v1212 = vpop.permute.xlu0 %1211
      %1213 = vrot.lane.b32.xlu0 %v1150, 122
      %v1214 = vpop.permute.xlu0 %1213
      %vm1215 = vcmask 998400
      %v1216 = vsel %vm1215, %v1152, %v1154
      %v1217 = vsel %vm1215, %v1156, %v1158
      %v1218 = vsel %vm1215, %v1160, %v1162
      %v1219 = vsel %vm1215, %v1164, %v1166
      %v1220 = vsel %vm1215, %v1168, %v1170
      %v1221 = vsel %vm1215, %v1172, %v1174
      %v1222 = vsel %vm1215, %v1176, %v1178
      %v1223 = vsel %vm1215, %v1180, %v1182
      %v1224 = vsel %vm1215, %v1184, %v1186
      %v1225 = vsel %vm1215, %v1188, %v1190
      %v1226 = vsel %vm1215, %v1192, %v1194
      %v1227 = vsel %vm1215, %v1196, %v1198
      %v1228 = vsel %vm1215, %v1200, %v1202
      %v1229 = vsel %vm1215, %v1204, %v1206
      %v1230 = vsel %vm1215, %v1208, %v1210
      %v1231 = vsel %vm1215, %v1212, %v1214
      %1248 = vst [vmem:[#allocation2 + $0x180] sm:$0xff] %v1216
      %1249 = vst [vmem:[#allocation2 + $0x188] sm:$0xff] %v1217
      %1250 = vst [vmem:[#allocation2 + $0x190] sm:$0xff] %v1218
      %1251 = vst [vmem:[#allocation2 + $0x198] sm:$0xff] %v1219
      %1252 = vst [vmem:[#allocation2 + $0x1a0] sm:$0xff] %v1220
      %1253 = vst [vmem:[#allocation2 + $0x1a8] sm:$0xff] %v1221
      %1254 = vst [vmem:[#allocation2 + $0x1b0] sm:$0xff] %v1222
      %1255 = vst [vmem:[#allocation2 + $0x1b8] sm:$0xff] %v1223
      %1256 = vst [vmem:[#allocation2 + $0x1c0] sm:$0xff] %v1224
      %1257 = vst [vmem:[#allocation2 + $0x1c8] sm:$0xff] %v1225
      %1258 = vst [vmem:[#allocation2 + $0x1d0] sm:$0xff] %v1226
      %1259 = vst [vmem:[#allocation2 + $0x1d8] sm:$0xff] %v1227
      %1260 = vst [vmem:[#allocation2 + $0x1e0] sm:$0xff] %v1228
      %1261 = vst [vmem:[#allocation2 + $0x1e8] sm:$0xff] %v1229
      %1262 = vst [vmem:[#allocation2 + $0x1f0] sm:$0xff] %v1230
      %1263 = vst [vmem:[#allocation2 + $0x1f8] sm:$0xff] %v1231
      %v1264 = vld [vmem:[#allocation2] sm:$0xff]
      %v1265 = vld [vmem:[#allocation2 + $0x8] sm:$0xff]
      %v1266 = vld [vmem:[#allocation2 + $0x10] sm:$0xff]
      %v1267 = vld [vmem:[#allocation2 + $0x18] sm:$0xff]
      %v1268 = vld [vmem:[#allocation2 + $0x20] sm:$0xff]
      %v1269 = vld [vmem:[#allocation2 + $0x28] sm:$0xff]
      %v1270 = vld [vmem:[#allocation2 + $0x30] sm:$0xff]
      %v1271 = vld [vmem:[#allocation2 + $0x38] sm:$0xff]
      %v1272 = vld [vmem:[#allocation2 + $0x40] sm:$0xff]
      %v1273 = vld [vmem:[#allocation2 + $0x48] sm:$0xff]
      %v1274 = vld [vmem:[#allocation2 + $0x50] sm:$0xff]
      %v1275 = vld [vmem:[#allocation2 + $0x58] sm:$0xff]
      %v1276 = vld [vmem:[#allocation2 + $0x60] sm:$0xff]
      %v1277 = vld [vmem:[#allocation2 + $0x68] sm:$0xff]
      %v1278 = vld [vmem:[#allocation2 + $0x70] sm:$0xff]
      %v1279 = vld [vmem:[#allocation2 + $0x78] sm:$0xff]
      %v1280 = vld [vmem:[#allocation2 + $0x80] sm:$0xff]
      %v1281 = vld [vmem:[#allocation2 + $0x88] sm:$0xff]
      %v1282 = vld [vmem:[#allocation2 + $0x90] sm:$0xff]
      %v1283 = vld [vmem:[#allocation2 + $0x98] sm:$0xff]
      %v1284 = vld [vmem:[#allocation2 + $0xa0] sm:$0xff]
      %v1285 = vld [vmem:[#allocation2 + $0xa8] sm:$0xff]
      %v1286 = vld [vmem:[#allocation2 + $0xb0] sm:$0xff]
      %v1287 = vld [vmem:[#allocation2 + $0xb8] sm:$0xff]
      %v1288 = vld [vmem:[#allocation2 + $0xc0] sm:$0xff]
      %v1289 = vld [vmem:[#allocation2 + $0xc8] sm:$0xff]
      %v1290 = vld [vmem:[#allocation2 + $0xd0] sm:$0xff]
      %v1291 = vld [vmem:[#allocation2 + $0xd8] sm:$0xff]
      %v1292 = vld [vmem:[#allocation2 + $0xe0] sm:$0xff]
      %v1293 = vld [vmem:[#allocation2 + $0xe8] sm:$0xff]
      %v1294 = vld [vmem:[#allocation2 + $0xf0] sm:$0xff]
      %v1295 = vld [vmem:[#allocation2 + $0xf8] sm:$0xff]
      %v1296 = vld [vmem:[#allocation2 + $0x100] sm:$0xff]
      %v1297 = vld [vmem:[#allocation2 + $0x108] sm:$0xff]
      %v1298 = vld [vmem:[#allocation2 + $0x110] sm:$0xff]
      %v1299 = vld [vmem:[#allocation2 + $0x118] sm:$0xff]
      %v1300 = vld [vmem:[#allocation2 + $0x120] sm:$0xff]
      %v1301 = vld [vmem:[#allocation2 + $0x128] sm:$0xff]
      %v1302 = vld [vmem:[#allocation2 + $0x130] sm:$0xff]
      %v1303 = vld [vmem:[#allocation2 + $0x138] sm:$0xff]
      %v1304 = vld [vmem:[#allocation2 + $0x140] sm:$0xff]
      %v1305 = vld [vmem:[#allocation2 + $0x148] sm:$0xff]
      %v1306 = vld [vmem:[#allocation2 + $0x150] sm:$0xff]
      %v1307 = vld [vmem:[#allocation2 + $0x158] sm:$0xff]
      %v1308 = vld [vmem:[#allocation2 + $0x160] sm:$0xff]
      %v1309 = vld [vmem:[#allocation2 + $0x168] sm:$0xff]
      %v1310 = vld [vmem:[#allocation2 + $0x170] sm:$0xff]
      %v1311 = vld [vmem:[#allocation2 + $0x178] sm:$0xff]
      %v1312 = vld [vmem:[#allocation2 + $0x180] sm:$0xff]
      %v1313 = vld [vmem:[#allocation2 + $0x188] sm:$0xff]
      %v1314 = vld [vmem:[#allocation2 + $0x190] sm:$0xff]
      %v1315 = vld [vmem:[#allocation2 + $0x198] sm:$0xff]
      %v1316 = vld [vmem:[#allocation2 + $0x1a0] sm:$0xff]
      %v1317 = vld [vmem:[#allocation2 + $0x1a8] sm:$0xff]
      %v1318 = vld [vmem:[#allocation2 + $0x1b0] sm:$0xff]
      %v1319 = vld [vmem:[#allocation2 + $0x1b8] sm:$0xff]
      %v1320 = vld [vmem:[#allocation2 + $0x1c0] sm:$0xff]
      %v1321 = vld [vmem:[#allocation2 + $0x1c8] sm:$0xff]
      %v1322 = vld [vmem:[#allocation2 + $0x1d0] sm:$0xff]
      %v1323 = vld [vmem:[#allocation2 + $0x1d8] sm:$0xff]
      %v1324 = vld [vmem:[#allocation2 + $0x1e0] sm:$0xff]
      %v1325 = vld [vmem:[#allocation2 + $0x1e8] sm:$0xff]
      %v1326 = vld [vmem:[#allocation2 + $0x1f0] sm:$0xff]
      %v1327 = vld [vmem:[#allocation2 + $0x1f8] sm:$0xff]
      %v1360 = vunpack.c.l.b16 %v269
      %v1361 = vunpack.c.h.b16 %v269
      %v1362 = vunpack.c.l.b16 %v270
      %v1363 = vunpack.c.h.b16 %v270
      %v1364 = vunpack.c.l.b16 %v271
      %v1365 = vunpack.c.h.b16 %v271
      %v1366 = vunpack.c.l.b16 %v272
      %v1367 = vunpack.c.h.b16 %v272
      %v1368 = vunpack.c.l.b16 %v273
      %v1369 = vunpack.c.h.b16 %v273
      %v1370 = vunpack.c.l.b16 %v274
      %v1371 = vunpack.c.h.b16 %v274
      %v1372 = vunpack.c.l.b16 %v275
      %v1373 = vunpack.c.h.b16 %v275
      %v1374 = vunpack.c.l.b16 %v276
      %v1375 = vunpack.c.h.b16 %v276
      %v1376 = vunpack.c.l.b16 %v277
      %v1377 = vunpack.c.h.b16 %v277
      %v1378 = vunpack.c.l.b16 %v278
      %v1379 = vunpack.c.h.b16 %v278
      %v1380 = vunpack.c.l.b16 %v279
      %v1381 = vunpack.c.h.b16 %v279
      %v1382 = vunpack.c.l.b16 %v280
      %v1383 = vunpack.c.h.b16 %v280
      %v1384 = vunpack.c.l.b16 %v281
      %v1385 = vunpack.c.h.b16 %v281
      %v1386 = vunpack.c.l.b16 %v282
      %v1387 = vunpack.c.h.b16 %v282
      %v1388 = vunpack.c.l.b16 %v283
      %v1389 = vunpack.c.h.b16 %v283
      %v1390 = vunpack.c.l.b16 %v284
      %v1391 = vunpack.c.h.b16 %v284
      %v1392 = vunpack.c.l.b16 %v285
      %v1393 = vunpack.c.h.b16 %v285
      %v1394 = vunpack.c.l.b16 %v286
      %v1395 = vunpack.c.h.b16 %v286
      %v1396 = vunpack.c.l.b16 %v287
      %v1397 = vunpack.c.h.b16 %v287
      %v1398 = vunpack.c.l.b16 %v288
      %v1399 = vunpack.c.h.b16 %v288
      %v1400 = vunpack.c.l.b16 %v289
      %v1401 = vunpack.c.h.b16 %v289
      %v1402 = vunpack.c.l.b16 %v290
      %v1403 = vunpack.c.h.b16 %v290
      %v1404 = vunpack.c.l.b16 %v291
      %v1405 = vunpack.c.h.b16 %v291
      %v1406 = vunpack.c.l.b16 %v292
      %v1407 = vunpack.c.h.b16 %v292
      %v1408 = vunpack.c.l.b16 %v293
      %v1409 = vunpack.c.h.b16 %v293
      %v1410 = vunpack.c.l.b16 %v294
      %v1411 = vunpack.c.h.b16 %v294
      %v1412 = vunpack.c.l.b16 %v295
      %v1413 = vunpack.c.h.b16 %v295
      %v1414 = vunpack.c.l.b16 %v296
      %v1415 = vunpack.c.h.b16 %v296
      %v1416 = vunpack.c.l.b16 %v297
      %v1417 = vunpack.c.h.b16 %v297
      %v1418 = vunpack.c.l.b16 %v298
      %v1419 = vunpack.c.h.b16 %v298
      %v1420 = vunpack.c.l.b16 %v299
      %v1421 = vunpack.c.h.b16 %v299
      %v1422 = vunpack.c.l.b16 %v300
      %v1423 = vunpack.c.h.b16 %v300
      %v1424 = vpack.c.b16 %v1368, %v1360
      %v1425 = vpack.c.b16 %v1369, %v1361
      %v1426 = vpack.c.b16 %v1370, %v1362
      %v1427 = vpack.c.b16 %v1371, %v1363
      %v1428 = vpack.c.b16 %v1372, %v1364
      %v1429 = vpack.c.b16 %v1373, %v1365
      %v1430 = vpack.c.b16 %v1374, %v1366
      %v1431 = vpack.c.b16 %v1375, %v1367
      %v1432 = vpack.c.b16 %v1384, %v1376
      %v1433 = vpack.c.b16 %v1385, %v1377
      %v1434 = vpack.c.b16 %v1386, %v1378
      %v1435 = vpack.c.b16 %v1387, %v1379
      %v1436 = vpack.c.b16 %v1388, %v1380
      %v1437 = vpack.c.b16 %v1389, %v1381
      %v1438 = vpack.c.b16 %v1390, %v1382
      %v1439 = vpack.c.b16 %v1391, %v1383
      %v1440 = vpack.c.b16 %v1400, %v1392
      %v1441 = vpack.c.b16 %v1401, %v1393
      %v1442 = vpack.c.b16 %v1402, %v1394
      %v1443 = vpack.c.b16 %v1403, %v1395
      %v1444 = vpack.c.b16 %v1404, %v1396
      %v1445 = vpack.c.b16 %v1405, %v1397
      %v1446 = vpack.c.b16 %v1406, %v1398
      %v1447 = vpack.c.b16 %v1407, %v1399
      %v1448 = vpack.c.b16 %v1416, %v1408
      %v1449 = vpack.c.b16 %v1417, %v1409
      %v1450 = vpack.c.b16 %v1418, %v1410
      %v1451 = vpack.c.b16 %v1419, %v1411
      %v1452 = vpack.c.b16 %v1420, %v1412
      %v1453 = vpack.c.b16 %v1421, %v1413
      %v1454 = vpack.c.b16 %v1422, %v1414
      %v1455 = vpack.c.b16 %v1423, %v1415
      %1488 = vmatprep.subr.bf16.mxu0 0
      %1489 = vmatpush1.bf16.msra.mxu0 %v1264
      %1490 = vmatprep.subr.bf16.mxu0 0
      %1491 = vmatpush1.bf16.msra.mxu0 %v1265
      %1492 = vmatprep.subr.bf16.mxu0 0
      %1493 = vmatpush1.bf16.msra.mxu0 %v1266
      %1494 = vmatprep.subr.bf16.mxu0 0
      %1495 = vmatpush1.bf16.msra.mxu0 %v1267
      %1496 = vmatprep.subr.bf16.mxu0 0
      %1497 = vmatpush1.bf16.msra.mxu0 %v1268
      %1498 = vmatprep.subr.bf16.mxu0 0
      %1499 = vmatpush1.bf16.msra.mxu0 %v1269
      %1500 = vmatprep.subr.bf16.mxu0 0
      %1501 = vmatpush1.bf16.msra.mxu0 %v1270
      %1502 = vmatprep.subr.bf16.mxu0 0
      %1503 = vmatpush1.bf16.msra.mxu0 %v1271
      %1504 = vmatprep.subr.bf16.mxu0 0
      %1505 = vmatpush1.bf16.msra.mxu0 %v1272
      %1506 = vmatprep.subr.bf16.mxu0 0
      %1507 = vmatpush1.bf16.msra.mxu0 %v1273
      %1508 = vmatprep.subr.bf16.mxu0 0
      %1509 = vmatpush1.bf16.msra.mxu0 %v1274
      %1510 = vmatprep.subr.bf16.mxu0 0
      %1511 = vmatpush1.bf16.msra.mxu0 %v1275
      %1512 = vmatprep.subr.bf16.mxu0 0
      %1513 = vmatpush1.bf16.msra.mxu0 %v1276
      %1514 = vmatprep.subr.bf16.mxu0 0
      %1515 = vmatpush1.bf16.msra.mxu0 %v1277
      %1516 = vmatprep.subr.bf16.mxu0 0
      %1517 = vmatpush1.bf16.msra.mxu0 %v1278
      %1518 = vmatprep.subr.bf16.mxu0 0
      %1519 = vmatpush1.bf16.msra.mxu0 %v1279
      %1520 = vmatprep.mubr.bf16.mxu0 %v1425
      %1521 = vmatmul.mubr.bf16.gmra.mrb[0].mxu0 %v1424
      %v1522 = vpop.f32.mrb[0].mxu0
      %v1523 = vadd.f32 0.0, %v1522
      %v1524 = vpop.f32.mrb[0].mxu0
      %v1525 = vpop.f32.mrb[0].mxu0
      %v1526 = vadd.f32 0.0, %v1525
      %v1527 = vpop.f32.mrb[0].mxu0
      %1528 = vmatprep.mubr.bf16.mxu0 %v1433
      %1529 = vmatmul.mubr.bf16.gmra.mrb[0].mxu0 %v1432
      %v1530 = vpop.f32.mrb[0].mxu0
      %v1531 = vadd.f32 0.0, %v1530
      %v1532 = vpop.f32.mrb[0].mxu0
      %v1533 = vpop.f32.mrb[0].mxu0
      %v1534 = vadd.f32 0.0, %v1533
      %v1535 = vpop.f32.mrb[0].mxu0
      %1536 = vmatprep.mubr.bf16.mxu0 %v1441
      %1537 = vmatmul.mubr.bf16.gmra.mrb[0].mxu0 %v1440
      %v1538 = vpop.f32.mrb[0].mxu0
      %v1539 = vadd.f32 0.0, %v1538
      %v1540 = vpop.f32.mrb[0].mxu0
      %v1541 = vpop.f32.mrb[0].mxu0
      %v1542 = vadd.f32 0.0, %v1541
      %v1543 = vpop.f32.mrb[0].mxu0
      %1544 = vmatprep.mubr.bf16.mxu0 %v1449
      %1545 = vmatmul.mubr.bf16.gmra.mrb[0].mxu0 %v1448
      %v1546 = vpop.f32.mrb[0].mxu0
      %v1547 = vadd.f32 0.0, %v1546
      %v1548 = vpop.f32.mrb[0].mxu0
      %v1549 = vpop.f32.mrb[0].mxu0
      %v1550 = vadd.f32 0.0, %v1549
      %v1551 = vpop.f32.mrb[0].mxu0
      %1552 = vdwg.mxu0
      %1553 = vmatprep.subr.bf16.mxu0 0
      %1554 = vmatpush1.bf16.msra.mxu0 %v1280
      %1555 = vmatprep.subr.bf16.mxu0 0
      %1556 = vmatpush1.bf16.msra.mxu0 %v1281
      %1557 = vmatprep.subr.bf16.mxu0 0
      %1558 = vmatpush1.bf16.msra.mxu0 %v1282
      %1559 = vmatprep.subr.bf16.mxu0 0
      %1560 = vmatpush1.bf16.msra.mxu0 %v1283
      %1561 = vmatprep.subr.bf16.mxu0 0
      %1562 = vmatpush1.bf16.msra.mxu0 %v1284
      %1563 = vmatprep.subr.bf16.mxu0 0
      %1564 = vmatpush1.bf16.msra.mxu0 %v1285
      %1565 = vmatprep.subr.bf16.mxu0 0
      %1566 = vmatpush1.bf16.msra.mxu0 %v1286
      %1567 = vmatprep.subr.bf16.mxu0 0
      %1568 = vmatpush1.bf16.msra.mxu0 %v1287
      %1569 = vmatprep.subr.bf16.mxu0 0
      %1570 = vmatpush1.bf16.msra.mxu0 %v1288
      %1571 = vmatprep.subr.bf16.mxu0 0
      %1572 = vmatpush1.bf16.msra.mxu0 %v1289
      %1573 = vmatprep.subr.bf16.mxu0 0
      %1574 = vmatpush1.bf16.msra.mxu0 %v1290
      %1575 = vmatprep.subr.bf16.mxu0 0
      %1576 = vmatpush1.bf16.msra.mxu0 %v1291
      %1577 = vmatprep.subr.bf16.mxu0 0
      %1578 = vmatpush1.bf16.msra.mxu0 %v1292
      %1579 = vmatprep.subr.bf16.mxu0 0
      %1580 = vmatpush1.bf16.msra.mxu0 %v1293
      %1581 = vmatprep.subr.bf16.mxu0 0
      %1582 = vmatpush1.bf16.msra.mxu0 %v1294
      %1583 = vmatprep.subr.bf16.mxu0 0
      %1584 = vmatpush1.bf16.msra.mxu0 %v1295
      %1585 = vmatprep.mubr.bf16.mxu0 %v1427
      %1586 = vmatmul.mubr.bf16.gmra.mrb[0].mxu0 %v1426
      %v1587 = vpop.f32.mrb[0].mxu0
      %v1588 = vadd.f32 %v1523, %v1587
      %v1589 = vpop.f32.mrb[0].mxu0
      %v1590 = vpop.f32.mrb[0].mxu0
      %v1591 = vadd.f32 %v1526, %v1590
      %v1592 = vpop.f32.mrb[0].mxu0
      %1593 = vmatprep.mubr.bf16.mxu0 %v1435
      %1594 = vmatmul.mubr.bf16.gmra.mrb[0].mxu0 %v1434
      %v1595 = vpop.f32.mrb[0].mxu0
      %v1596 = vadd.f32 %v1531, %v1595
      %v1597 = vpop.f32.mrb[0].mxu0
      %v1598 = vpop.f32.mrb[0].mxu0
      %v1599 = vadd.f32 %v1534, %v1598
      %v1600 = vpop.f32.mrb[0].mxu0
      %1601 = vmatprep.mubr.bf16.mxu0 %v1443
      %1602 = vmatmul.mubr.bf16.gmra.mrb[0].mxu0 %v1442
      %v1603 = vpop.f32.mrb[0].mxu0
      %v1604 = vadd.f32 %v1539, %v1603
      %v1605 = vpop.f32.mrb[0].mxu0
      %v1606 = vpop.f32.mrb[0].mxu0
      %v1607 = vadd.f32 %v1542, %v1606
      %v1608 = vpop.f32.mrb[0].mxu0
      %1609 = vmatprep.mubr.bf16.mxu0 %v1451
      %1610 = vmatmul.mubr.bf16.gmra.mrb[0].mxu0 %v1450
      %v1611 = vpop.f32.mrb[0].mxu0
      %v1612 = vadd.f32 %v1547, %v1611
      %v1613 = vpop.f32.mrb[0].mxu0
      %v1614 = vpop.f32.mrb[0].mxu0
      %v1615 = vadd.f32 %v1550, %v1614
      %v1616 = vpop.f32.mrb[0].mxu0
      %1617 = vdwg.mxu0
      %1618 = vmatprep.subr.bf16.mxu0 0
      %1619 = vmatpush1.bf16.msra.mxu0 %v1296
      %1620 = vmatprep.subr.bf16.mxu0 0
      %1621 = vmatpush1.bf16.msra.mxu0 %v1297
      %1622 = vmatprep.subr.bf16.mxu0 0
      %1623 = vmatpush1.bf16.msra.mxu0 %v1298
      %1624 = vmatprep.subr.bf16.mxu0 0
      %1625 = vmatpush1.bf16.msra.mxu0 %v1299
      %1626 = vmatprep.subr.bf16.mxu0 0
      %1627 = vmatpush1.bf16.msra.mxu0 %v1300
      %1628 = vmatprep.subr.bf16.mxu0 0
      %1629 = vmatpush1.bf16.msra.mxu0 %v1301
      %1630 = vmatprep.subr.bf16.mxu0 0
      %1631 = vmatpush1.bf16.msra.mxu0 %v1302
      %1632 = vmatprep.subr.bf16.mxu0 0
      %1633 = vmatpush1.bf16.msra.mxu0 %v1303
      %1634 = vmatprep.subr.bf16.mxu0 0
      %1635 = vmatpush1.bf16.msra.mxu0 %v1304
      %1636 = vmatprep.subr.bf16.mxu0 0
      %1637 = vmatpush1.bf16.msra.mxu0 %v1305
      %1638 = vmatprep.subr.bf16.mxu0 0
      %1639 = vmatpush1.bf16.msra.mxu0 %v1306
      %1640 = vmatprep.subr.bf16.mxu0 0
      %1641 = vmatpush1.bf16.msra.mxu0 %v1307
      %1642 = vmatprep.subr.bf16.mxu0 0
      %1643 = vmatpush1.bf16.msra.mxu0 %v1308
      %1644 = vmatprep.subr.bf16.mxu0 0
      %1645 = vmatpush1.bf16.msra.mxu0 %v1309
      %1646 = vmatprep.subr.bf16.mxu0 0
      %1647 = vmatpush1.bf16.msra.mxu0 %v1310
      %1648 = vmatprep.subr.bf16.mxu0 0
      %1649 = vmatpush1.bf16.msra.mxu0 %v1311
      %1650 = vmatprep.mubr.bf16.mxu0 %v1429
      %1651 = vmatmul.mubr.bf16.gmra.mrb[0].mxu0 %v1428
      %v1652 = vpop.f32.mrb[0].mxu0
      %v1653 = vadd.f32 %v1588, %v1652
      %v1654 = vpop.f32.mrb[0].mxu0
      %v1655 = vpop.f32.mrb[0].mxu0
      %v1656 = vadd.f32 %v1591, %v1655
      %v1657 = vpop.f32.mrb[0].mxu0
      %1658 = vmatprep.mubr.bf16.mxu0 %v1437
      %1659 = vmatmul.mubr.bf16.gmra.mrb[0].mxu0 %v1436
      %v1660 = vpop.f32.mrb[0].mxu0
      %v1661 = vadd.f32 %v1596, %v1660
      %v1662 = vpop.f32.mrb[0].mxu0
      %v1663 = vpop.f32.mrb[0].mxu0
      %v1664 = vadd.f32 %v1599, %v1663
      %v1665 = vpop.f32.mrb[0].mxu0
      %1666 = vmatprep.mubr.bf16.mxu0 %v1445
      %1667 = vmatmul.mubr.bf16.gmra.mrb[0].mxu0 %v1444
      %v1668 = vpop.f32.mrb[0].mxu0
      %v1669 = vadd.f32 %v1604, %v1668
      %v1670 = vpop.f32.mrb[0].mxu0
      %v1671 = vpop.f32.mrb[0].mxu0
      %v1672 = vadd.f32 %v1607, %v1671
      %v1673 = vpop.f32.mrb[0].mxu0
      %1674 = vmatprep.mubr.bf16.mxu0 %v1453
      %1675 = vmatmul.mubr.bf16.gmra.mrb[0].mxu0 %v1452
      %v1676 = vpop.f32.mrb[0].mxu0
      %v1677 = vadd.f32 %v1612, %v1676
      %v1678 = vpop.f32.mrb[0].mxu0
      %v1679 = vpop.f32.mrb[0].mxu0
      %v1680 = vadd.f32 %v1615, %v1679
      %v1681 = vpop.f32.mrb[0].mxu0
      %1682 = vdwg.mxu0
      %1683 = vmatprep.subr.bf16.mxu0 0
      %1684 = vmatpush1.bf16.msra.mxu0 %v1312
      %1685 = vmatprep.subr.bf16.mxu0 0
      %1686 = vmatpush1.bf16.msra.mxu0 %v1313
      %1687 = vmatprep.subr.bf16.mxu0 0
      %1688 = vmatpush1.bf16.msra.mxu0 %v1314
      %1689 = vmatprep.subr.bf16.mxu0 0
      %1690 = vmatpush1.bf16.msra.mxu0 %v1315
      %1691 = vmatprep.subr.bf16.mxu0 0
      %1692 = vmatpush1.bf16.msra.mxu0 %v1316
      %1693 = vmatprep.subr.bf16.mxu0 0
      %1694 = vmatpush1.bf16.msra.mxu0 %v1317
      %1695 = vmatprep.subr.bf16.mxu0 0
      %1696 = vmatpush1.bf16.msra.mxu0 %v1318
      %1697 = vmatprep.subr.bf16.mxu0 0
      %1698 = vmatpush1.bf16.msra.mxu0 %v1319
      %1699 = vmatprep.subr.bf16.mxu0 0
      %1700 = vmatpush1.bf16.msra.mxu0 %v1320
      %1701 = vmatprep.subr.bf16.mxu0 0
      %1702 = vmatpush1.bf16.msra.mxu0 %v1321
      %1703 = vmatprep.subr.bf16.mxu0 0
      %1704 = vmatpush1.bf16.msra.mxu0 %v1322
      %1705 = vmatprep.subr.bf16.mxu0 0
      %1706 = vmatpush1.bf16.msra.mxu0 %v1323
      %1707 = vmatprep.subr.bf16.mxu0 0
      %1708 = vmatpush1.bf16.msra.mxu0 %v1324
      %1709 = vmatprep.subr.bf16.mxu0 0
      %1710 = vmatpush1.bf16.msra.mxu0 %v1325
      %1711 = vmatprep.subr.bf16.mxu0 0
      %1712 = vmatpush1.bf16.msra.mxu0 %v1326
      %1713 = vmatprep.subr.bf16.mxu0 0
      %1714 = vmatpush1.bf16.msra.mxu0 %v1327
      %1715 = vmatprep.mubr.bf16.mxu0 %v1431
      %1716 = vmatmul.mubr.bf16.gmra.mrb[0].mxu0 %v1430
      %v1717 = vpop.f32.mrb[0].mxu0
      %v1718 = vadd.f32 %v1653, %v1717
      %v1719 = vpop.f32.mrb[0].mxu0
      %v1720 = vpop.f32.mrb[0].mxu0
      %v1721 = vadd.f32 %v1656, %v1720
      %v1722 = vpop.f32.mrb[0].mxu0
      %1723 = vmatprep.mubr.bf16.mxu0 %v1439
      %1724 = vmatmul.mubr.bf16.gmra.mrb[0].mxu0 %v1438
      %v1725 = vpop.f32.mrb[0].mxu0
      %v1726 = vadd.f32 %v1661, %v1725
      %v1727 = vpop.f32.mrb[0].mxu0
      %v1728 = vpop.f32.mrb[0].mxu0
      %v1729 = vadd.f32 %v1664, %v1728
      %v1730 = vpop.f32.mrb[0].mxu0
      %1731 = vmatprep.mubr.bf16.mxu0 %v1447
      %1732 = vmatmul.mubr.bf16.gmra.mrb[0].mxu0 %v1446
      %v1733 = vpop.f32.mrb[0].mxu0
      %v1734 = vadd.f32 %v1669, %v1733
      %v1735 = vpop.f32.mrb[0].mxu0
      %v1736 = vpop.f32.mrb[0].mxu0
      %v1737 = vadd.f32 %v1672, %v1736
      %v1738 = vpop.f32.mrb[0].mxu0
      %1739 = vmatprep.mubr.bf16.mxu0 %v1455
      %1740 = vmatmul.mubr.bf16.gmra.mrb[0].mxu0 %v1454
      %v1741 = vpop.f32.mrb[0].mxu0
      %v1742 = vadd.f32 %v1677, %v1741
      %v1743 = vpop.f32.mrb[0].mxu0
      %v1744 = vpop.f32.mrb[0].mxu0
      %v1745 = vadd.f32 %v1680, %v1744
      %v1746 = vpop.f32.mrb[0].mxu0
      %1747 = vdwg.mxu0
      %v1748 = vld [vmem:[%s3] sm:$0x1]
      %v1750 = vlaneseq
      %v1751 = vshrl.u32 %v1750, 7
      %v1752 = vsub.s32 0, %v1751
      %v1753 = vrot.slane %v1748, %v1752
      %v1755 = vmul.f32 %v1718, %v1753
      %v1756 = vmul.f32 %v1721, %v1753
      %v1757 = vmul.f32 %v1726, %v1753
      %v1758 = vmul.f32 %v1729, %v1753
      %v1759 = vmul.f32 %v1734, %v1753
      %v1760 = vmul.f32 %v1737, %v1753
      %v1761 = vmul.f32 %v1742, %v1753
      %v1762 = vmul.f32 %v1745, %v1753
      %1763 = vadd.xlane.f32.xlu0 %v1755
      %v1764 = vpop.xlane.xlu0 %1763
      %1765 = vadd.xlane.f32.xlu0 %v1756
      %v1766 = vpop.xlane.xlu0 %1765
      %1767 = vadd.xlane.f32.xlu0 %v1757
      %v1768 = vpop.xlane.xlu0 %1767
      %1769 = vadd.xlane.f32.xlu0 %v1758
      %v1770 = vpop.xlane.xlu0 %1769
      %1771 = vadd.xlane.f32.xlu0 %v1759
      %v1772 = vpop.xlane.xlu0 %1771
      %1773 = vadd.xlane.f32.xlu0 %v1760
      %v1774 = vpop.xlane.xlu0 %1773
      %1775 = vadd.xlane.f32.xlu0 %v1761
      %v1776 = vpop.xlane.xlu0 %1775
      %1777 = vadd.xlane.f32.xlu0 %v1762
      %v1778 = vpop.xlane.xlu0 %1777
      %v1779 = vmul.f32 %v1718, %v1718
      %v1780 = vmul.f32 %v1721, %v1721
      %v1781 = vmul.f32 %v1726, %v1726
      %v1782 = vmul.f32 %v1729, %v1729
      %v1783 = vmul.f32 %v1734, %v1734
      %v1784 = vmul.f32 %v1737, %v1737
      %v1785 = vmul.f32 %v1742, %v1742
      %v1786 = vmul.f32 %v1745, %v1745
      %v1787 = vmul.f32 %v1779, %v1753
      %v1788 = vmul.f32 %v1780, %v1753
      %v1789 = vmul.f32 %v1781, %v1753
      %v1790 = vmul.f32 %v1782, %v1753
      %v1791 = vmul.f32 %v1783, %v1753
      %v1792 = vmul.f32 %v1784, %v1753
      %v1793 = vmul.f32 %v1785, %v1753
      %v1794 = vmul.f32 %v1786, %v1753
      %1795 = vadd.xlane.f32.xlu0 %v1787
      %v1796 = vpop.xlane.xlu0 %1795
      %1797 = vadd.xlane.f32.xlu0 %v1788
      %v1798 = vpop.xlane.xlu0 %1797
      %1799 = vadd.xlane.f32.xlu0 %v1789
      %v1800 = vpop.xlane.xlu0 %1799
      %1801 = vadd.xlane.f32.xlu0 %v1790
      %v1802 = vpop.xlane.xlu0 %1801
      %1803 = vadd.xlane.f32.xlu0 %v1791
      %v1804 = vpop.xlane.xlu0 %1803
      %1805 = vadd.xlane.f32.xlu0 %v1792
      %v1806 = vpop.xlane.xlu0 %1805
      %1807 = vadd.xlane.f32.xlu0 %v1793
      %v1808 = vpop.xlane.xlu0 %1807
      %1809 = vadd.xlane.f32.xlu0 %v1794
      %v1810 = vpop.xlane.xlu0 %1809
      %v1811 = vmul.f32 %v1764, 0.0625
      %v1812 = vmul.f32 %v1766, 0.0625
      %v1813 = vmul.f32 %v1768, 0.0625
      %v1814 = vmul.f32 %v1770, 0.0625
      %v1815 = vmul.f32 %v1772, 0.0625
      %v1816 = vmul.f32 %v1774, 0.0625
      %v1817 = vmul.f32 %v1776, 0.0625
      %v1818 = vmul.f32 %v1778, 0.0625
      %v1819 = vmul.f32 %v1796, 0.0625
      %v1820 = vmul.f32 %v1798, 0.0625
      %v1821 = vmul.f32 %v1800, 0.0625
      %v1822 = vmul.f32 %v1802, 0.0625
      %v1823 = vmul.f32 %v1804, 0.0625
      %v1824 = vmul.f32 %v1806, 0.0625
      %v1825 = vmul.f32 %v1808, 0.0625
      %v1826 = vmul.f32 %v1810, 0.0625
      %v1827 = vmul.f32 %v1811, %v1811
      %v1828 = vmul.f32 %v1812, %v1812
      %v1829 = vmul.f32 %v1813, %v1813
      %v1830 = vmul.f32 %v1814, %v1814
      %v1831 = vmul.f32 %v1815, %v1815
      %v1832 = vmul.f32 %v1816, %v1816
      %v1833 = vmul.f32 %v1817, %v1817
      %v1834 = vmul.f32 %v1818, %v1818
      %v1835 = vsub.f32 %v1819, %v1827
      %v1836 = vsub.f32 %v1820, %v1828
      %v1837 = vsub.f32 %v1821, %v1829
      %v1838 = vsub.f32 %v1822, %v1830
      %v1839 = vsub.f32 %v1823, %v1831
      %v1840 = vsub.f32 %v1824, %v1832
      %v1841 = vsub.f32 %v1825, %v1833
      %v1842 = vsub.f32 %v1826, %v1834
      %v1843 = vadd.f32 %v1835, 1e-05
      %v1844 = vadd.f32 %v1836, 1e-05
      %v1845 = vadd.f32 %v1837, 1e-05
      %v1846 = vadd.f32 %v1838, 1e-05
      %v1847 = vadd.f32 %v1839, 1e-05
      %v1848 = vadd.f32 %v1840, 1e-05
      %v1849 = vadd.f32 %v1841, 1e-05
      %v1850 = vadd.f32 %v1842, 1e-05
      %v1851 = vrsqrt.pop %v1843
      %v1852 = vrsqrt.pop %v1844
      %v1853 = vrsqrt.pop %v1845
      %v1854 = vrsqrt.pop %v1846
      %v1855 = vrsqrt.pop %v1847
      %v1856 = vrsqrt.pop %v1848
      %v1857 = vrsqrt.pop %v1849
      %v1858 = vrsqrt.pop %v1850
      %v1859 = vsub.f32 %v1718, %v1811
      %v1860 = vsub.f32 %v1721, %v1812
      %v1861 = vsub.f32 %v1726, %v1813
      %v1862 = vsub.f32 %v1729, %v1814
      %v1863 = vsub.f32 %v1734, %v1815
      %v1864 = vsub.f32 %v1737, %v1816
      %v1865 = vsub.f32 %v1742, %v1817
      %v1866 = vsub.f32 %v1745, %v1818
      %v1867 = vmul.f32 %v1859, %v1851
      %v1868 = vmul.f32 %v1860, %v1852
      %v1869 = vmul.f32 %v1861, %v1853
      %v1870 = vmul.f32 %v1862, %v1854
      %v1871 = vmul.f32 %v1863, %v1855
      %v1872 = vmul.f32 %v1864, %v1856
      %v1873 = vmul.f32 %v1865, %v1857
      %v1874 = vmul.f32 %v1866, %v1858
      %vm1875 = vcmp.ge.f32.partialorder %v1867, 0.0
      %vm1876 = vcmp.ge.f32.partialorder %v1868, 0.0
      %vm1877 = vcmp.ge.f32.partialorder %v1869, 0.0
      %vm1878 = vcmp.ge.f32.partialorder %v1870, 0.0
      %vm1879 = vcmp.ge.f32.partialorder %v1871, 0.0
      %vm1880 = vcmp.ge.f32.partialorder %v1872, 0.0
      %vm1881 = vcmp.ge.f32.partialorder %v1873, 0.0
      %vm1882 = vcmp.ge.f32.partialorder %v1874, 0.0
      %v1883 = vmul.f32 %v1867, 0.2
      %v1884 = vmul.f32 %v1868, 0.2
      %v1885 = vmul.f32 %v1869, 0.2
      %v1886 = vmul.f32 %v1870, 0.2
      %v1887 = vmul.f32 %v1871, 0.2
      %v1888 = vmul.f32 %v1872, 0.2
      %v1889 = vmul.f32 %v1873, 0.2
      %v1890 = vmul.f32 %v1874, 0.2
      %v1891 = vsel %vm1875, %v1867, %v1883
      %v1892 = vsel %vm1876, %v1868, %v1884
      %v1893 = vsel %vm1877, %v1869, %v1885
      %v1894 = vsel %vm1878, %v1870, %v1886
      %v1895 = vsel %vm1879, %v1871, %v1887
      %v1896 = vsel %vm1880, %v1872, %v1888
      %v1897 = vsel %vm1881, %v1873, %v1889
      %v1898 = vsel %vm1882, %v1874, %v1890
      %v1899 = vpack.c.bf16 %v1892, %v1891
      %v1900 = vpack.c.bf16 %v1894, %v1893
      %v1901 = vpack.c.bf16 %v1896, %v1895
      %v1902 = vpack.c.bf16 %v1898, %v1897
      %v1907 = vunpack.c.l.b16 %v1899
      %v1908 = vunpack.c.h.b16 %v1899
      %v1909 = vunpack.c.l.b16 %v1900
      %v1910 = vunpack.c.h.b16 %v1900
      %v1911 = vunpack.c.l.b16 %v1901
      %v1912 = vunpack.c.h.b16 %v1901
      %v1913 = vunpack.c.l.b16 %v1902
      %v1914 = vunpack.c.h.b16 %v1902
      %v1915 = vpack.c.b16 %v1907, %v1907
      %v1916 = vpack.c.b16 %v1908, %v1908
      %v1917 = vpack.c.b16 %v1909, %v1909
      %v1918 = vpack.c.b16 %v1910, %v1910
      %v1919 = vpack.c.b16 %v1911, %v1911
      %v1920 = vpack.c.b16 %v1912, %v1912
      %v1921 = vpack.c.b16 %v1913, %v1913
      %v1922 = vpack.c.b16 %v1914, %v1914
      %1931 = vst [vmem:[%s266] sm:$0xf] %v1915
      %1932 = vst [vmem:[%s266 + $0x4] sm:$0xf] %v1916
      %1933 = vst [vmem:[%s266 + $0x8] sm:$0xf] %v1917
      %1934 = vst [vmem:[%s266 + $0xc] sm:$0xf] %v1918
      %1935 = vst [vmem:[%s266 + $0x10] sm:$0xf] %v1919
      %1936 = vst [vmem:[%s266 + $0x14] sm:$0xf] %v1920
      %1937 = vst [vmem:[%s266 + $0x18] sm:$0xf] %v1921
      %1938 = vst [vmem:[%s266 + $0x1c] sm:$0xf] %v1922
      %s1939 = smul.u32 8, %s20
      %p1940 = scmp.lt.s32.totalorder %s19, 1
      %s1941 = scalar_select %p1940, %s19, 1
      %p1942 = scmp.lt.s32.totalorder %s1939, 7
      %s1943 = scalar_select %p1942, %s1939, 7
      %s1944 = smul.addr %s1941, 8
      %s1945 = sadd.s32 %s1943, %s1944
      %s1946 = smul.addr %s1945, 4
      %s1947 = scalar_lea.vmem %s4, %s1946
      // Predicated region
      $region37: #{discriminator_forward.10} parent=35 // pred_check
        %p1948 = pneg %p146
      $region38: #{discriminator_forward.10} parent=35 // pred_check_branch
        %1950 = sbr.rel (%p1948) target = $region40
      $region39: #{discriminator_forward.10} parent=35 // pred_region
        %s1951 = smul.u32 8, %s20
      $region40: #{discriminator_forward.10} parent=35 // pred_fallthru
        _
    $region36: #{discriminator_forward.10} parent=5 // pred_fallthru
      _
    %p1952 = scmp.le.s32.totalorder 2, %s10
    // Predicated region
    $region41: #{discriminator_forward.10} parent=5 // pred_check
      %p1953 = pneg %p1952
    $region42: #{discriminator_forward.10} parent=5 // pred_check_branch
      %1955 = sbr.rel (%p1953) target = $region44
    $region43: #{discriminator_forward.10} parent=5 // pred_region
      %s1956 = ssub.s32 %s10, 2
      // Predicated region
      $region45: #{discriminator_forward.10} parent=43 // pred_check
        %p1957 = pneg %p152
      $region46: #{discriminator_forward.10} parent=43 // pred_check_branch
        %1959 = sbr.rel (%p1957) target = $region48
      $region47: #{discriminator_forward.10} parent=43 // pred_region
        %s1960 = smul.u32 8, %s22
        %p1961 = scmp.lt.s32.totalorder %s21, 1
        %s1962 = scalar_select %p1961, %s21, 1
        %p1963 = scmp.lt.s32.totalorder %s1960, 7
        %s1964 = scalar_select %p1963, %s1960, 7
        %s1965 = smul.addr %s1962, 8
        %s1966 = sadd.s32 %s1964, %s1965
        %s1967 = smul.addr %s1966, 4
        %s1968 = scalar_lea.vmem %s4, %s1967
      $region48: #{discriminator_forward.10} parent=43 // pred_fallthru
        _
    $region44: #{discriminator_forward.10} parent=5 // pred_fallthru
      _
  $region6: #{discriminator_forward.10} parent=0 // loop_footer
    %s14 = sadd.s32 1, %s10
  $region7: #{discriminator_forward.10} parent=0 // loop_footer_branch
    %9 = sbr.rel target = $region3
  $region8: #{discriminator_forward.10} parent=0 // loop_exit
    _

// kernel: discriminator_forward.11
$region0: #{discriminator_forward.11}
  #allocation0 [shape = 'u32[]', space=smem, size = 0x4, offset = 0x4, fixed_abs, tag = 'smem constant byte address 0x4 - core index']
  #allocation1 [shape = 'u32[144,128]{1,0:T(1,128)}', space=vmem, size = 0x12000, scoped, tag = 'internal scratch']
  #allocation2 [shape = 'bf16[1024,128]{1,0:T(16,128)(2,1)}', space=vmem, size = 0x40000, scoped, tag = 'scratch operand']
  #allocation3 [shape = 'f32[1,1]{1,0:T(1,128)S(1)}', space=vmem, size = 0x200, scoped, tag = 'scoped memory for discriminator_forward.11']
  %s0 = inlined_call_operand.vmem [shape: bf16[2,64,149], index: 0, kind: input, shape index: {}]
  %s1 = inlined_call_operand.vmem [shape: bf16[1,1024], index: 1, kind: input, shape index: {}]
  %s2 = inlined_call_operand.<no memory space> [shape: f32[1,1], index: 2, kind: input, shape index: {}]
  %s3 = inlined_call_operand.vmem [shape: f32[1,128], index: 3, kind: input, shape index: {}]
  %s4 = inlined_call_operand.vmem [shape: f32[2,1,128], index: 4, kind: output, shape index: {}]
  %s5 = sld [smem:[#allocation0]]
  $region49: #{discriminator_forward.11} parent=0
    _
  %s7 = ssub.s32 1, %s5
  %s8 = scalar_select 0, %s7, %s5
  %v9 = vstv %s2
  %10 = vst [vmem:[#allocation3] sm:$0x1] %v9
  loop: start=0, step=1, limit=4
  $region2: #{discriminator_forward.11} parent=0 // loop_pre_header
    _
  $region3: #{discriminator_forward.11} parent=0 // loop_header
    %s12 = sphi 0, %s16
    %p13 = scmp.ge.s32.totalorder %s12, 4
    %s19 = sphi 0, %s31
    %s20 = sphi 0, %s27
    %s21 = sphi 0, %s19
    %s22 = sphi 0, %s20
    %s23 = sphi 0, %s21
    %s24 = sphi 0, %s22
    %s34 = sphi 0, %s36
    %s37 = sphi 0, %s34
    %s38 = sphi 0, %s37
    %s54 = sphi 0, %s38
    %s60 = sphi 0, %s62
    %s63 = sphi 0, %s60
    %s64 = sphi 0, %s63
    %s80 = sphi 0, %s64
    %s86 = sphi 0, %s88
    %s89 = sphi 0, %s86
    %s90 = sphi 0, %s89
    %s106 = sphi 0, %s90
    %s110 = sphi 0, %s110
    %s112 = sphi 0, %s110
    %s113 = sphi 0, %s112
    %s127 = sphi 0, %s113
    %s135 = sphi 0, %s137
    %s138 = sphi 0, %s135
    %s139 = sphi 0, %s138
    %s155 = sphi 0, %s139
  $region4: #{discriminator_forward.11} parent=0 // loop_header_branch
    %15 = sbr.rel (%p13) target = $region8
  $region5: #{discriminator_forward.11} parent=0 // loop_body
    %s17 = ssub.s32 %s12, 1
    %s18 = ssub.s32 %s12, 2
    %s25 = sadd.s32 1, %s20
    %p26 = scmp.ge.s32.totalorder %s25, 1
    %s27 = scalar_select %p26, 0, %s25
    %s28 = sadd.s32 1, %s19
    %s29 = scalar_select %p26, %s28, %s19
    %p30 = scmp.ge.s32.totalorder %s29, 2
    %s31 = scalar_select %p30, 0, %s29
    %s32 = ssub.s32 %s19, %s31
    %p33 = scmp.eq.s32.totalorder %s32, 0
    %s35 = sadd.s32 %s34, 1
    %s36 = scalar_select %p33, %s34, %s35
    %p39 = pneg %p33
    %p40 = scmp.eq.s32.totalorder %s12, 1
    %p41 = por %p39, %p40
    %p42 = scmp.ne.s32.totalorder %s34, %s37
    %p43 = scmp.eq.s32.totalorder %s12, 0
    %p44 = por %p42, %p43
    %p45 = scmp.ne.s32.totalorder %s34, %s37
    %p46 = scmp.eq.s32.totalorder %s17, 1
    %p47 = por %p45, %p46
    %p48 = scmp.ne.s32.totalorder %s37, %s38
    %p49 = scmp.eq.s32.totalorder %s17, 0
    %p50 = por %p48, %p49
    %p51 = scmp.ne.s32.totalorder %s37, %s38
    %p52 = scmp.eq.s32.totalorder %s18, 1
    %p53 = por %p51, %p52
    %p55 = scmp.ne.s32.totalorder %s38, %s54
    %p56 = scmp.eq.s32.totalorder %s18, 0
    %p57 = por %p55, %p56
    %s58 = ssub.s32 %s20, %s27
    %p59 = scmp.eq.s32.totalorder %s58, 0
    %s61 = sadd.s32 %s60, 1
    %s62 = scalar_select %p59, %s60, %s61
    %p65 = pneg %p59
    %p66 = scmp.eq.s32.totalorder %s12, 1
    %p67 = por %p65, %p66
    %p68 = scmp.ne.s32.totalorder %s60, %s63
    %p69 = scmp.eq.s32.totalorder %s12, 0
    %p70 = por %p68, %p69
    %p71 = scmp.ne.s32.totalorder %s60, %s63
    %p72 = scmp.eq.s32.totalorder %s17, 1
    %p73 = por %p71, %p72
    %p74 = scmp.ne.s32.totalorder %s63, %s64
    %p75 = scmp.eq.s32.totalorder %s17, 0
    %p76 = por %p74, %p75
    %p77 = scmp.ne.s32.totalorder %s63, %s64
    %p78 = scmp.eq.s32.totalorder %s18, 1
    %p79 = por %p77, %p78
    %p81 = scmp.ne.s32.totalorder %s64, %s80
    %p82 = scmp.eq.s32.totalorder %s18, 0
    %p83 = por %p81, %p82
    %s84 = ssub.s32 %s20, %s27
    %p85 = scmp.eq.s32.totalorder %s84, 0
    %s87 = sadd.s32 %s86, 1
    %s88 = scalar_select %p85, %s86, %s87
    %p91 = pneg %p85
    %p92 = scmp.eq.s32.totalorder %s12, 1
    %p93 = por %p91, %p92
    %p94 = scmp.ne.s32.totalorder %s86, %s89
    %p95 = scmp.eq.s32.totalorder %s12, 0
    %p96 = por %p94, %p95
    %p97 = scmp.ne.s32.totalorder %s86, %s89
    %p98 = scmp.eq.s32.totalorder %s17, 1
    %p99 = por %p97, %p98
    %p100 = scmp.ne.s32.totalorder %s89, %s90
    %p101 = scmp.eq.s32.totalorder %s17, 0
    %p102 = por %p100, %p101
    %p103 = scmp.ne.s32.totalorder %s89, %s90
    %p104 = scmp.eq.s32.totalorder %s18, 1
    %p105 = por %p103, %p104
    %p107 = scmp.ne.s32.totalorder %s90, %s106
    %p108 = scmp.eq.s32.totalorder %s18, 0
    %p109 = por %p107, %p108
    %s111 = sadd.s32 %s110, 1
    %p114 = scmp.eq.s32.totalorder %s12, 1
    %p115 = scmp.ne.s32.totalorder %s110, %s112
    %p116 = scmp.eq.s32.totalorder %s12, 0
    %p117 = por %p115, %p116
    %p118 = scmp.ne.s32.totalorder %s110, %s112
    %p119 = scmp.eq.s32.totalorder %s17, 1
    %p120 = por %p118, %p119
    %p121 = scmp.ne.s32.totalorder %s112, %s113
    %p122 = scmp.eq.s32.totalorder %s17, 0
    %p123 = por %p121, %p122
    %p124 = scmp.ne.s32.totalorder %s112, %s113
    %p125 = scmp.eq.s32.totalorder %s18, 1
    %p126 = por %p124, %p125
    %p128 = scmp.ne.s32.totalorder %s113, %s127
    %p129 = scmp.eq.s32.totalorder %s18, 0
    %p130 = por %p128, %p129
    %s131 = ssub.s32 %s19, %s31
    %s132 = ssub.s32 %s20, %s27
    %s133 = sor.u32 %s131, %s132
    %p134 = scmp.eq.s32.totalorder %s133, 0
    %s136 = sadd.s32 %s135, 1
    %s137 = scalar_select %p134, %s135, %s136
    %p140 = pneg %p134
    %p141 = scmp.eq.s32.totalorder %s12, 1
    %p142 = por %p140, %p141
    %p143 = scmp.ne.s32.totalorder %s135, %s138
    %p144 = scmp.eq.s32.totalorder %s12, 0
    %p145 = por %p143, %p144
    %p146 = scmp.ne.s32.totalorder %s135, %s138
    %p147 = scmp.eq.s32.totalorder %s17, 1
    %p148 = por %p146, %p147
    %p149 = scmp.ne.s32.totalorder %s138, %s139
    %p150 = scmp.eq.s32.totalorder %s17, 0
    %p151 = por %p149, %p150
    %p152 = scmp.ne.s32.totalorder %s138, %s139
    %p153 = scmp.eq.s32.totalorder %s18, 1
    %p154 = por %p152, %p153
    %p156 = scmp.ne.s32.totalorder %s139, %s155
    %p157 = scmp.eq.s32.totalorder %s18, 0
    %p158 = por %p156, %p157
    %p159 = scmp.le.s32.totalorder 1, %s12
    %p160 = scmp.lt.s32.totalorder %s12, 3
    %p161 = pnand %p159, %p160
    %p162 = pneg %p161
    // Predicated region
    $region9: #{discriminator_forward.11} parent=5 // pred_check
      _
    $region10: #{discriminator_forward.11} parent=5 // pred_check_branch
      %164 = sbr.rel (%p161) target = $region12
    $region11: #{discriminator_forward.11} parent=5 // pred_region
      %s165 = ssub.s32 %s12, 1
      // Predicated region
      $region13: #{discriminator_forward.11} parent=11 // pred_check
        %p166 = pneg %p76
      $region14: #{discriminator_forward.11} parent=11 // pred_check_branch
        %168 = sbr.rel (%p166) target = $region16
      $region15: #{discriminator_forward.11} parent=11 // pred_region
        %p169 = scmp.lt.s32.totalorder %s22, 0
        %s170 = scalar_select %p169, %s22, 0
        %s171 = smul.addr %s170, 8
        %s172 = scalar_lea.vmem %s1, %s171
      $region16: #{discriminator_forward.11} parent=11 // pred_fallthru
        _
      // Predicated region
      $region17: #{discriminator_forward.11} parent=11 // pred_check
        %p173 = pneg %p102
      $region18: #{discriminator_forward.11} parent=11 // pred_check_branch
        %175 = sbr.rel (%p173) target = $region20
      $region19: #{discriminator_forward.11} parent=11 // pred_region
        %p176 = scmp.lt.s32.totalorder %s22, 0
        %s177 = scalar_select %p176, %s22, 0
        %s178 = scalar_lea.vmem [#allocation3], %s177
      $region20: #{discriminator_forward.11} parent=11 // pred_fallthru
        _
      // Predicated region
      $region21: #{discriminator_forward.11} parent=11 // pred_check
        %p179 = pneg %p123
      $region22: #{discriminator_forward.11} parent=11 // pred_check_branch
        %181 = sbr.rel (%p179) target = $region24
      $region23: #{discriminator_forward.11} parent=11 // pred_region
        _
      $region24: #{discriminator_forward.11} parent=11 // pred_fallthru
        _
    $region12: #{discriminator_forward.11} parent=5 // pred_fallthru
      _
    %p182 = scmp.lt.s32.totalorder %s12, 2
    // Predicated region
    $region25: #{discriminator_forward.11} parent=5 // pred_check
      %p183 = pneg %p182
    $region26: #{discriminator_forward.11} parent=5 // pred_check_branch
      %185 = sbr.rel (%p183) target = $region28
    $region27: #{discriminator_forward.11} parent=5 // pred_region
      // Predicated region
      $region29: #{discriminator_forward.11} parent=27 // pred_check
        %p186 = pneg %p44
      $region30: #{discriminator_forward.11} parent=27 // pred_check_branch
        %188 = sbr.rel (%p186) target = $region32
      $region31: #{discriminator_forward.11} parent=27 // pred_region
        %p189 = scmp.lt.s32.totalorder %s19, 1
        %s190 = scalar_select %p189, %s19, 1
        %s191 = smul.addr %s190, 16
        %s192 = smul.addr %s191, 4
        %s193 = scalar_lea.vmem %s0, %s192
      $region32: #{discriminator_forward.11} parent=27 // pred_fallthru
        _
    $region28: #{discriminator_forward.11} parent=5 // pred_fallthru
      _
    %p194 = scmp.le.s32.totalorder 1, %s12
    %p195 = scmp.lt.s32.totalorder %s12, 3
    %p196 = pnand %p194, %p195
    %p197 = pneg %p196
    // Predicated region
    $region33: #{discriminator_forward.11} parent=5 // pred_check
      _
    $region34: #{discriminator_forward.11} parent=5 // pred_check_branch
      %199 = sbr.rel (%p196) target = $region36
    $region35: #{discriminator_forward.11} parent=5 // pred_region
      %s200 = ssub.s32 %s12, 1
      %p201 = scmp.lt.s32.totalorder %s21, 1
      %s202 = scalar_select %p201, %s21, 1
      %s203 = smul.addr %s202, 16
      %s204 = smul.addr %s203, 4
      %s205 = scalar_lea.vmem %s0, %s204
      %p206 = pneg %p50
      %p207 = pneg %p47
      %p208 = scmp.lt.s32.totalorder %s22, 0
      %s209 = scalar_select %p208, %s22, 0
      %s210 = smul.addr %s209, 8
      %s211 = scalar_lea.vmem %s1, %s210
      %p212 = pneg %p76
      %p213 = pneg %p73
      %p214 = scmp.lt.s32.totalorder %s22, 0
      %s215 = scalar_select %p214, %s22, 0
      %s216 = scalar_lea.vmem [#allocation3], %s215
      %p217 = pneg %p102
      %p218 = pneg %p99
      %p219 = pneg %p123
      %p220 = pneg %p120
      %p221 = pneg %p151
      %p222 = pneg %p148
      %p223 = scmp.lt.s32.totalorder %s21, 1
      %s224 = scalar_select %p223, %s21, 1
      %p225 = scmp.lt.s32.totalorder %s22, 0
      %s226 = scalar_select %p225, %s22, 0
      %s227 = sadd.s32 %s226, %s224
      %s228 = scalar_lea.vmem %s4, %s227
      %p229 = scmp.lt.s32.totalorder %s21, 1
      %s230 = scalar_select %p229, %s21, 1
      %s231 = smul.addr %s230, 16
      %s232 = smul.addr %s231, 4
      %s233 = scalar_lea.vmem %s0, %s232
      %p234 = scmp.lt.s32.totalorder %s22, 0
      %s235 = scalar_select %p234, %s22, 0
      %s236 = smul.addr %s235, 8
      %s237 = scalar_lea.vmem %s1, %s236
      %p238 = scmp.lt.s32.totalorder %s22, 0
      %s239 = scalar_select %p238, %s22, 0
      %s240 = scalar_lea.vmem [#allocation3], %s239
      %p241 = scmp.lt.s32.totalorder %s21, 1
      %s242 = scalar_select %p241, %s21, 1
      %p243 = scmp.lt.s32.totalorder %s22, 0
      %s244 = scalar_select %p243, %s22, 0
      %s245 = sadd.s32 %s244, %s242
      %s246 = scalar_lea.vmem %s4, %s245
      %v248 = vld [vmem:[%s237] sm:$0xff]
      %v249 = vld [vmem:[%s233] sm:$0xf]
      %v250 = vld [vmem:[%s233 + $0x8] sm:$0xf]
      %v251 = vld [vmem:[%s233 + $0x10] sm:$0xf]
      %v252 = vld [vmem:[%s233 + $0x18] sm:$0xf]
      %v253 = vld [vmem:[%s233 + $0x20] sm:$0xf]
      %v254 = vld [vmem:[%s233 + $0x28] sm:$0xf]
      %v255 = vld [vmem:[%s233 + $0x30] sm:$0xf]
      %v256 = vld [vmem:[%s233 + $0x38] sm:$0xf]
      %v265 = vunpack.c.l.b16 %v249
      %v266 = vunpack.c.l.b16 %v250
      %v267 = vunpack.c.l.b16 %v251
      %v268 = vunpack.c.l.b16 %v252
      %v269 = vunpack.c.l.b16 %v253
      %v270 = vunpack.c.l.b16 %v254
      %v271 = vunpack.c.l.b16 %v255
      %v272 = vunpack.c.l.b16 %v256
      %v273 = vpack.c.b16 %v266, %v265
      %v274 = vpack.c.b16 %v268, %v267
      %v275 = vpack.c.b16 %v270, %v269
      %v276 = vpack.c.b16 %v272, %v271
      %281 = vst [vmem:[#allocation2] sm:$0xff] %v273
      %282 = vst [vmem:[#allocation2 + $0x8] sm:$0xff] %v274
      %283 = vst [vmem:[#allocation2 + $0x10] sm:$0xff] %v275
      %284 = vst [vmem:[#allocation2 + $0x18] sm:$0xff] %v276
      %v285 = vld [vmem:[%s233] sm:$0xff]
      %v286 = vld [vmem:[%s233 + $0x8] sm:$0xff]
      %v287 = vld [vmem:[%s233 + $0x10] sm:$0xff]
      %v288 = vld [vmem:[%s233 + $0x18] sm:$0xff]
      %v289 = vld [vmem:[%s233 + $0x20] sm:$0xff]
      %v290 = vld [vmem:[%s233 + $0x28] sm:$0xff]
      %v291 = vld [vmem:[%s233 + $0x30] sm:$0xff]
      %v292 = vld [vmem:[%s233 + $0x38] sm:$0xff]
      %v301 = vunpack.c.l.b16 %v285
      %v302 = vunpack.c.h.b16 %v285
      %v303 = vunpack.c.l.b16 %v286
      %v304 = vunpack.c.h.b16 %v286
      %v305 = vunpack.c.l.b16 %v287
      %v306 = vunpack.c.h.b16 %v287
      %v307 = vunpack.c.l.b16 %v288
      %v308 = vunpack.c.h.b16 %v288
      %v309 = vunpack.c.l.b16 %v289
      %v310 = vunpack.c.h.b16 %v289
      %v311 = vunpack.c.l.b16 %v290
      %v312 = vunpack.c.h.b16 %v290
      %v313 = vunpack.c.l.b16 %v291
      %v314 = vunpack.c.h.b16 %v291
      %v315 = vunpack.c.l.b16 %v292
      %v316 = vunpack.c.h.b16 %v292
      %v317 = vpack.c.b16 %v303, %v301
      %v318 = vpack.c.b16 %v304, %v302
      %v319 = vpack.c.b16 %v307, %v305
      %v320 = vpack.c.b16 %v308, %v306
      %v321 = vpack.c.b16 %v311, %v309
      %v322 = vpack.c.b16 %v312, %v310
      %v323 = vpack.c.b16 %v315, %v313
      %v324 = vpack.c.b16 %v316, %v314
      %325 = vrot.lane.b32.xlu0 %v317, 127
      %v326 = vpop.permute.xlu0 %325
      %327 = vrot.lane.b32.xlu0 %v318, 127
      %v328 = vpop.permute.xlu0 %327
      %329 = vrot.lane.b32.xlu0 %v319, 127
      %v330 = vpop.permute.xlu0 %329
      %331 = vrot.lane.b32.xlu0 %v320, 127
      %v332 = vpop.permute.xlu0 %331
      %333 = vrot.lane.b32.xlu0 %v321, 127
      %v334 = vpop.permute.xlu0 %333
      %335 = vrot.lane.b32.xlu0 %v322, 127
      %v336 = vpop.permute.xlu0 %335
      %337 = vrot.lane.b32.xlu0 %v323, 127
      %v338 = vpop.permute.xlu0 %337
      %339 = vrot.lane.b32.xlu0 %v324, 127
      %v340 = vpop.permute.xlu0 %339
      %vm341 = vcmask 1039360
      %v342 = vsel %vm341, %v326, %v328
      %v343 = vsel %vm341, %v330, %v332
      %v344 = vsel %vm341, %v334, %v336
      %v345 = vsel %vm341, %v338, %v340
      %350 = vst [vmem:[#allocation2 + $0x20] sm:$0xff] %v342
      %351 = vst [vmem:[#allocation2 + $0x28] sm:$0xff] %v343
      %352 = vst [vmem:[#allocation2 + $0x30] sm:$0xff] %v344
      %353 = vst [vmem:[#allocation2 + $0x38] sm:$0xff] %v345
      %v354 = vld [vmem:[%s233] sm:$0xff]
      %v355 = vld [vmem:[%s233 + $0x8] sm:$0xff]
      %v356 = vld [vmem:[%s233 + $0x10] sm:$0xff]
      %v357 = vld [vmem:[%s233 + $0x18] sm:$0xff]
      %v358 = vld [vmem:[%s233 + $0x20] sm:$0xff]
      %v359 = vld [vmem:[%s233 + $0x28] sm:$0xff]
      %v360 = vld [vmem:[%s233 + $0x30] sm:$0xff]
      %v361 = vld [vmem:[%s233 + $0x38] sm:$0xff]
      %v370 = vunpack.c.l.b16 %v354
      %v371 = vunpack.c.h.b16 %v354
      %v372 = vunpack.c.l.b16 %v355
      %v373 = vunpack.c.h.b16 %v355
      %v374 = vunpack.c.l.b16 %v356
      %v375 = vunpack.c.h.b16 %v356
      %v376 = vunpack.c.l.b16 %v357
      %v377 = vunpack.c.h.b16 %v357
      %v378 = vunpack.c.l.b16 %v358
      %v379 = vunpack.c.h.b16 %v358
      %v380 = vunpack.c.l.b16 %v359
      %v381 = vunpack.c.h.b16 %v359
      %v382 = vunpack.c.l.b16 %v360
      %v383 = vunpack.c.h.b16 %v360
      %v384 = vunpack.c.l.b16 %v361
      %v385 = vunpack.c.h.b16 %v361
      %v386 = vpack.c.b16 %v372, %v370
      %v387 = vpack.c.b16 %v373, %v371
      %v388 = vpack.c.b16 %v376, %v374
      %v389 = vpack.c.b16 %v377, %v375
      %v390 = vpack.c.b16 %v380, %v378
      %v391 = vpack.c.b16 %v381, %v379
      %v392 = vpack.c.b16 %v384, %v382
      %v393 = vpack.c.b16 %v385, %v383
      %394 = vrot.lane.b32.xlu0 %v386, 126
      %v395 = vpop.permute.xlu0 %394
      %396 = vrot.lane.b32.xlu0 %v387, 126
      %v397 = vpop.permute.xlu0 %396
      %398 = vrot.lane.b32.xlu0 %v388, 126
      %v399 = vpop.permute.xlu0 %398
      %400 = vrot.lane.b32.xlu0 %v389, 126
      %v401 = vpop.permute.xlu0 %400
      %402 = vrot.lane.b32.xlu0 %v390, 126
      %v403 = vpop.permute.xlu0 %402
      %404 = vrot.lane.b32.xlu0 %v391, 126
      %v405 = vpop.permute.xlu0 %404
      %406 = vrot.lane.b32.xlu0 %v392, 126
      %v407 = vpop.permute.xlu0 %406
      %408 = vrot.lane.b32.xlu0 %v393, 126
      %v409 = vpop.permute.xlu0 %408
      %vm410 = vcmask 1031168
      %v411 = vsel %vm410, %v395, %v397
      %v412 = vsel %vm410, %v399, %v401
      %v413 = vsel %vm410, %v403, %v405
      %v414 = vsel %vm410, %v407, %v409
      %419 = vst [vmem:[#allocation2 + $0x40] sm:$0xff] %v411
      %420 = vst [vmem:[#allocation2 + $0x48] sm:$0xff] %v412
      %421 = vst [vmem:[#allocation2 + $0x50] sm:$0xff] %v413
      %422 = vst [vmem:[#allocation2 + $0x58] sm:$0xff] %v414
      %v423 = vld [vmem:[%s233] sm:$0xff]
      %v424 = vld [vmem:[%s233 + $0x8] sm:$0xff]
      %v425 = vld [vmem:[%s233 + $0x10] sm:$0xff]
      %v426 = vld [vmem:[%s233 + $0x18] sm:$0xff]
      %v427 = vld [vmem:[%s233 + $0x20] sm:$0xff]
      %v428 = vld [vmem:[%s233 + $0x28] sm:$0xff]
      %v429 = vld [vmem:[%s233 + $0x30] sm:$0xff]
      %v430 = vld [vmem:[%s233 + $0x38] sm:$0xff]
      %v439 = vunpack.c.l.b16 %v423
      %v440 = vunpack.c.h.b16 %v423
      %v441 = vunpack.c.l.b16 %v424
      %v442 = vunpack.c.h.b16 %v424
      %v443 = vunpack.c.l.b16 %v425
      %v444 = vunpack.c.h.b16 %v425
      %v445 = vunpack.c.l.b16 %v426
      %v446 = vunpack.c.h.b16 %v426
      %v447 = vunpack.c.l.b16 %v427
      %v448 = vunpack.c.h.b16 %v427
      %v449 = vunpack.c.l.b16 %v428
      %v450 = vunpack.c.h.b16 %v428
      %v451 = vunpack.c.l.b16 %v429
      %v452 = vunpack.c.h.b16 %v429
      %v453 = vunpack.c.l.b16 %v430
      %v454 = vunpack.c.h.b16 %v430
      %v455 = vpack.c.b16 %v441, %v439
      %v456 = vpack.c.b16 %v442, %v440
      %v457 = vpack.c.b16 %v445, %v443
      %v458 = vpack.c.b16 %v446, %v444
      %v459 = vpack.c.b16 %v449, %v447
      %v460 = vpack.c.b16 %v450, %v448
      %v461 = vpack.c.b16 %v453, %v451
      %v462 = vpack.c.b16 %v454, %v452
      %463 = vrot.lane.b32.xlu0 %v455, 125
      %v464 = vpop.permute.xlu0 %463
      %465 = vrot.lane.b32.xlu0 %v456, 125
      %v466 = vpop.permute.xlu0 %465
      %467 = vrot.lane.b32.xlu0 %v457, 125
      %v468 = vpop.permute.xlu0 %467
      %469 = vrot.lane.b32.xlu0 %v458, 125
      %v470 = vpop.permute.xlu0 %469
      %471 = vrot.lane.b32.xlu0 %v459, 125
      %v472 = vpop.permute.xlu0 %471
      %473 = vrot.lane.b32.xlu0 %v460, 125
      %v474 = vpop.permute.xlu0 %473
      %475 = vrot.lane.b32.xlu0 %v461, 125
      %v476 = vpop.permute.xlu0 %475
      %477 = vrot.lane.b32.xlu0 %v462, 125
      %v478 = vpop.permute.xlu0 %477
      %vm479 = vcmask 1022976
      %v480 = vsel %vm479, %v464, %v466
      %v481 = vsel %vm479, %v468, %v470
      %v482 = vsel %vm479, %v472, %v474
      %v483 = vsel %vm479, %v476, %v478
      %488 = vst [vmem:[#allocation2 + $0x60] sm:$0xff] %v480
      %489 = vst [vmem:[#allocation2 + $0x68] sm:$0xff] %v481
      %490 = vst [vmem:[#allocation2 + $0x70] sm:$0xff] %v482
      %491 = vst [vmem:[#allocation2 + $0x78] sm:$0xff] %v483
      %v492 = vld [vmem:[%s233] sm:$0xff]
      %v493 = vld [vmem:[%s233 + $0x8] sm:$0xff]
      %v494 = vld [vmem:[%s233 + $0x10] sm:$0xff]
      %v495 = vld [vmem:[%s233 + $0x18] sm:$0xff]
      %v496 = vld [vmem:[%s233 + $0x20] sm:$0xff]
      %v497 = vld [vmem:[%s233 + $0x28] sm:$0xff]
      %v498 = vld [vmem:[%s233 + $0x30] sm:$0xff]
      %v499 = vld [vmem:[%s233 + $0x38] sm:$0xff]
      %v508 = vunpack.c.l.b16 %v492
      %v509 = vunpack.c.h.b16 %v492
      %v510 = vunpack.c.l.b16 %v493
      %v511 = vunpack.c.h.b16 %v493
      %v512 = vunpack.c.l.b16 %v494
      %v513 = vunpack.c.h.b16 %v494
      %v514 = vunpack.c.l.b16 %v495
      %v515 = vunpack.c.h.b16 %v495
      %v516 = vunpack.c.l.b16 %v496
      %v517 = vunpack.c.h.b16 %v496
      %v518 = vunpack.c.l.b16 %v497
      %v519 = vunpack.c.h.b16 %v497
      %v520 = vunpack.c.l.b16 %v498
      %v521 = vunpack.c.h.b16 %v498
      %v522 = vunpack.c.l.b16 %v499
      %v523 = vunpack.c.h.b16 %v499
      %v524 = vpack.c.b16 %v510, %v508
      %v525 = vpack.c.b16 %v511, %v509
      %v526 = vpack.c.b16 %v514, %v512
      %v527 = vpack.c.b16 %v515, %v513
      %v528 = vpack.c.b16 %v518, %v516
      %v529 = vpack.c.b16 %v519, %v517
      %v530 = vpack.c.b16 %v522, %v520
      %v531 = vpack.c.b16 %v523, %v521
      %532 = vrot.lane.b32.xlu0 %v524, 122
      %v533 = vpop.permute.xlu0 %532
      %534 = vrot.lane.b32.xlu0 %v525, 122
      %v535 = vpop.permute.xlu0 %534
      %536 = vrot.lane.b32.xlu0 %v526, 122
      %v537 = vpop.permute.xlu0 %536
      %538 = vrot.lane.b32.xlu0 %v527, 122
      %v539 = vpop.permute.xlu0 %538
      %540 = vrot.lane.b32.xlu0 %v528, 122
      %v541 = vpop.permute.xlu0 %540
      %542 = vrot.lane.b32.xlu0 %v529, 122
      %v543 = vpop.permute.xlu0 %542
      %544 = vrot.lane.b32.xlu0 %v530, 122
      %v545 = vpop.permute.xlu0 %544
      %546 = vrot.lane.b32.xlu0 %v531, 122
      %v547 = vpop.permute.xlu0 %546
      %vm548 = vcmask 998400
      %v549 = vsel %vm548, %v533, %v535
      %v550 = vsel %vm548, %v537, %v539
      %v551 = vsel %vm548, %v541, %v543
      %v552 = vsel %vm548, %v545, %v547
      %557 = vst [vmem:[#allocation2 + $0x80] sm:$0xff] %v549
      %558 = vst [vmem:[#allocation2 + $0x88] sm:$0xff] %v550
      %559 = vst [vmem:[#allocation2 + $0x90] sm:$0xff] %v551
      %560 = vst [vmem:[#allocation2 + $0x98] sm:$0xff] %v552
      %v561 = vld [vmem:[%s233] sm:$0xff]
      %v562 = vld [vmem:[%s233 + $0x8] sm:$0xff]
      %v563 = vld [vmem:[%s233 + $0x10] sm:$0xff]
      %v564 = vld [vmem:[%s233 + $0x18] sm:$0xff]
      %v565 = vld [vmem:[%s233 + $0x20] sm:$0xff]
      %v566 = vld [vmem:[%s233 + $0x28] sm:$0xff]
      %v567 = vld [vmem:[%s233 + $0x30] sm:$0xff]
      %v568 = vld [vmem:[%s233 + $0x38] sm:$0xff]
      %v577 = vunpack.c.l.b16 %v561
      %v578 = vunpack.c.h.b16 %v561
      %v579 = vunpack.c.l.b16 %v562
      %v580 = vunpack.c.h.b16 %v562
      %v581 = vunpack.c.l.b16 %v563
      %v582 = vunpack.c.h.b16 %v563
      %v583 = vunpack.c.l.b16 %v564
      %v584 = vunpack.c.h.b16 %v564
      %v585 = vunpack.c.l.b16 %v565
      %v586 = vunpack.c.h.b16 %v565
      %v587 = vunpack.c.l.b16 %v566
      %v588 = vunpack.c.h.b16 %v566
      %v589 = vunpack.c.l.b16 %v567
      %v590 = vunpack.c.h.b16 %v567
      %v591 = vunpack.c.l.b16 %v568
      %v592 = vunpack.c.h.b16 %v568
      %v593 = vpack.c.b16 %v579, %v577
      %v594 = vpack.c.b16 %v580, %v578
      %v595 = vpack.c.b16 %v583, %v581
      %v596 = vpack.c.b16 %v584, %v582
      %v597 = vpack.c.b16 %v587, %v585
      %v598 = vpack.c.b16 %v588, %v586
      %v599 = vpack.c.b16 %v591, %v589
      %v600 = vpack.c.b16 %v592, %v590
      %601 = vrot.lane.b32.xlu0 %v593, 121
      %v602 = vpop.permute.xlu0 %601
      %603 = vrot.lane.b32.xlu0 %v594, 121
      %v604 = vpop.permute.xlu0 %603
      %605 = vrot.lane.b32.xlu0 %v595, 121
      %v606 = vpop.permute.xlu0 %605
      %607 = vrot.lane.b32.xlu0 %v596, 121
      %v608 = vpop.permute.xlu0 %607
      %609 = vrot.lane.b32.xlu0 %v597, 121
      %v610 = vpop.permute.xlu0 %609
      %611 = vrot.lane.b32.xlu0 %v598, 121
      %v612 = vpop.permute.xlu0 %611
      %613 = vrot.lane.b32.xlu0 %v599, 121
      %v614 = vpop.permute.xlu0 %613
      %615 = vrot.lane.b32.xlu0 %v600, 121
      %v616 = vpop.permute.xlu0 %615
      %vm617 = vcmask 990208
      %v618 = vsel %vm617, %v602, %v604
      %v619 = vsel %vm617, %v606, %v608
      %v620 = vsel %vm617, %v610, %v612
      %v621 = vsel %vm617, %v614, %v616
      %626 = vst [vmem:[#allocation2 + $0xa0] sm:$0xff] %v618
      %627 = vst [vmem:[#allocation2 + $0xa8] sm:$0xff] %v619
      %628 = vst [vmem:[#allocation2 + $0xb0] sm:$0xff] %v620
      %629 = vst [vmem:[#allocation2 + $0xb8] sm:$0xff] %v621
      %v630 = vld [vmem:[%s233] sm:$0xff]
      %v631 = vld [vmem:[%s233 + $0x8] sm:$0xff]
      %v632 = vld [vmem:[%s233 + $0x10] sm:$0xff]
      %v633 = vld [vmem:[%s233 + $0x18] sm:$0xff]
      %v634 = vld [vmem:[%s233 + $0x20] sm:$0xff]
      %v635 = vld [vmem:[%s233 + $0x28] sm:$0xff]
      %v636 = vld [vmem:[%s233 + $0x30] sm:$0xff]
      %v637 = vld [vmem:[%s233 + $0x38] sm:$0xff]
      %v646 = vunpack.c.l.b16 %v630
      %v647 = vunpack.c.h.b16 %v630
      %v648 = vunpack.c.l.b16 %v631
      %v649 = vunpack.c.h.b16 %v631
      %v650 = vunpack.c.l.b16 %v632
      %v651 = vunpack.c.h.b16 %v632
      %v652 = vunpack.c.l.b16 %v633
      %v653 = vunpack.c.h.b16 %v633
      %v654 = vunpack.c.l.b16 %v634
      %v655 = vunpack.c.h.b16 %v634
      %v656 = vunpack.c.l.b16 %v635
      %v657 = vunpack.c.h.b16 %v635
      %v658 = vunpack.c.l.b16 %v636
      %v659 = vunpack.c.h.b16 %v636
      %v660 = vunpack.c.l.b16 %v637
      %v661 = vunpack.c.h.b16 %v637
      %v662 = vpack.c.b16 %v648, %v646
      %v663 = vpack.c.b16 %v649, %v647
      %v664 = vpack.c.b16 %v652, %v650
      %v665 = vpack.c.b16 %v653, %v651
      %v666 = vpack.c.b16 %v656, %v654
      %v667 = vpack.c.b16 %v657, %v655
      %v668 = vpack.c.b16 %v660, %v658
      %v669 = vpack.c.b16 %v661, %v659
      %670 = vrot.lane.b32.xlu0 %v662, 120
      %v671 = vpop.permute.xlu0 %670
      %672 = vrot.lane.b32.xlu0 %v663, 120
      %v673 = vpop.permute.xlu0 %672
      %674 = vrot.lane.b32.xlu0 %v664, 120
      %v675 = vpop.permute.xlu0 %674
      %676 = vrot.lane.b32.xlu0 %v665, 120
      %v677 = vpop.permute.xlu0 %676
      %678 = vrot.lane.b32.xlu0 %v666, 120
      %v679 = vpop.permute.xlu0 %678
      %680 = vrot.lane.b32.xlu0 %v667, 120
      %v681 = vpop.permute.xlu0 %680
      %682 = vrot.lane.b32.xlu0 %v668, 120
      %v683 = vpop.permute.xlu0 %682
      %684 = vrot.lane.b32.xlu0 %v669, 120
      %v685 = vpop.permute.xlu0 %684
      %vm686 = vcmask 982016
      %v687 = vsel %vm686, %v671, %v673
      %v688 = vsel %vm686, %v675, %v677
      %v689 = vsel %vm686, %v679, %v681
      %v690 = vsel %vm686, %v683, %v685
      %695 = vst [vmem:[#allocation2 + $0xc0] sm:$0xff] %v687
      %696 = vst [vmem:[#allocation2 + $0xc8] sm:$0xff] %v688
      %697 = vst [vmem:[#allocation2 + $0xd0] sm:$0xff] %v689
      %698 = vst [vmem:[#allocation2 + $0xd8] sm:$0xff] %v690
      %v699 = vld [vmem:[%s233] sm:$0xff]
      %v700 = vld [vmem:[%s233 + $0x8] sm:$0xff]
      %v701 = vld [vmem:[%s233 + $0x10] sm:$0xff]
      %v702 = vld [vmem:[%s233 + $0x18] sm:$0xff]
      %v703 = vld [vmem:[%s233 + $0x20] sm:$0xff]
      %v704 = vld [vmem:[%s233 + $0x28] sm:$0xff]
      %v705 = vld [vmem:[%s233 + $0x30] sm:$0xff]
      %v706 = vld [vmem:[%s233 + $0x38] sm:$0xff]
      %v715 = vunpack.c.l.b16 %v699
      %v716 = vunpack.c.h.b16 %v699
      %v717 = vunpack.c.l.b16 %v700
      %v718 = vunpack.c.h.b16 %v700
      %v719 = vunpack.c.l.b16 %v701
      %v720 = vunpack.c.h.b16 %v701
      %v721 = vunpack.c.l.b16 %v702
      %v722 = vunpack.c.h.b16 %v702
      %v723 = vunpack.c.l.b16 %v703
      %v724 = vunpack.c.h.b16 %v703
      %v725 = vunpack.c.l.b16 %v704
      %v726 = vunpack.c.h.b16 %v704
      %v727 = vunpack.c.l.b16 %v705
      %v728 = vunpack.c.h.b16 %v705
      %v729 = vunpack.c.l.b16 %v706
      %v730 = vunpack.c.h.b16 %v706
      %v731 = vpack.c.b16 %v717, %v715
      %v732 = vpack.c.b16 %v718, %v716
      %v733 = vpack.c.b16 %v721, %v719
      %v734 = vpack.c.b16 %v722, %v720
      %v735 = vpack.c.b16 %v725, %v723
      %v736 = vpack.c.b16 %v726, %v724
      %v737 = vpack.c.b16 %v729, %v727
      %v738 = vpack.c.b16 %v730, %v728
      %739 = vrot.lane.b32.xlu0 %v731, 119
      %v740 = vpop.permute.xlu0 %739
      %741 = vrot.lane.b32.xlu0 %v732, 119
      %v742 = vpop.permute.xlu0 %741
      %743 = vrot.lane.b32.xlu0 %v733, 119
      %v744 = vpop.permute.xlu0 %743
      %745 = vrot.lane.b32.xlu0 %v734, 119
      %v746 = vpop.permute.xlu0 %745
      %747 = vrot.lane.b32.xlu0 %v735, 119
      %v748 = vpop.permute.xlu0 %747
      %749 = vrot.lane.b32.xlu0 %v736, 119
      %v750 = vpop.permute.xlu0 %749
      %751 = vrot.lane.b32.xlu0 %v737, 119
      %v752 = vpop.permute.xlu0 %751
      %753 = vrot.lane.b32.xlu0 %v738, 119
      %v754 = vpop.permute.xlu0 %753
      %vm755 = vcmask 973824
      %v756 = vsel %vm755, %v740, %v742
      %v757 = vsel %vm755, %v744, %v746
      %v758 = vsel %vm755, %v748, %v750
      %v759 = vsel %vm755, %v752, %v754
      %764 = vst [vmem:[#allocation2 + $0xe0] sm:$0xff] %v756
      %765 = vst [vmem:[#allocation2 + $0xe8] sm:$0xff] %v757
      %766 = vst [vmem:[#allocation2 + $0xf0] sm:$0xff] %v758
      %767 = vst [vmem:[#allocation2 + $0xf8] sm:$0xff] %v759
      %v768 = vld [vmem:[%s233] sm:$0xff]
      %v769 = vld [vmem:[%s233 + $0x8] sm:$0xff]
      %v770 = vld [vmem:[%s233 + $0x10] sm:$0xff]
      %v771 = vld [vmem:[%s233 + $0x18] sm:$0xff]
      %v772 = vld [vmem:[%s233 + $0x20] sm:$0xff]
      %v773 = vld [vmem:[%s233 + $0x28] sm:$0xff]
      %v774 = vld [vmem:[%s233 + $0x30] sm:$0xff]
      %v775 = vld [vmem:[%s233 + $0x38] sm:$0xff]
      %v784 = vunpack.c.l.b16 %v768
      %v785 = vunpack.c.h.b16 %v768
      %v786 = vunpack.c.l.b16 %v769
      %v787 = vunpack.c.h.b16 %v769
      %v788 = vunpack.c.l.b16 %v770
      %v789 = vunpack.c.h.b16 %v770
      %v790 = vunpack.c.l.b16 %v771
      %v791 = vunpack.c.h.b16 %v771
      %v792 = vunpack.c.l.b16 %v772
      %v793 = vunpack.c.h.b16 %v772
      %v794 = vunpack.c.l.b16 %v773
      %v795 = vunpack.c.h.b16 %v773
      %v796 = vunpack.c.l.b16 %v774
      %v797 = vunpack.c.h.b16 %v774
      %v798 = vunpack.c.l.b16 %v775
      %v799 = vunpack.c.h.b16 %v775
      %v800 = vpack.c.b16 %v786, %v784
      %v801 = vpack.c.b16 %v787, %v785
      %v802 = vpack.c.b16 %v790, %v788
      %v803 = vpack.c.b16 %v791, %v789
      %v804 = vpack.c.b16 %v794, %v792
      %v805 = vpack.c.b16 %v795, %v793
      %v806 = vpack.c.b16 %v798, %v796
      %v807 = vpack.c.b16 %v799, %v797
      %808 = vrot.lane.b32.xlu0 %v800, 116
      %v809 = vpop.permute.xlu0 %808
      %810 = vrot.lane.b32.xlu0 %v801, 116
      %v811 = vpop.permute.xlu0 %810
      %812 = vrot.lane.b32.xlu0 %v802, 116
      %v813 = vpop.permute.xlu0 %812
      %814 = vrot.lane.b32.xlu0 %v803, 116
      %v815 = vpop.permute.xlu0 %814
      %816 = vrot.lane.b32.xlu0 %v804, 116
      %v817 = vpop.permute.xlu0 %816
      %818 = vrot.lane.b32.xlu0 %v805, 116
      %v819 = vpop.permute.xlu0 %818
      %820 = vrot.lane.b32.xlu0 %v806, 116
      %v821 = vpop.permute.xlu0 %820
      %822 = vrot.lane.b32.xlu0 %v807, 116
      %v823 = vpop.permute.xlu0 %822
      %vm824 = vcmask 949248
      %v825 = vsel %vm824, %v809, %v811
      %v826 = vsel %vm824, %v813, %v815
      %v827 = vsel %vm824, %v817, %v819
      %v828 = vsel %vm824, %v821, %v823
      %833 = vst [vmem:[#allocation2 + $0x100] sm:$0xff] %v825
      %834 = vst [vmem:[#allocation2 + $0x108] sm:$0xff] %v826
      %835 = vst [vmem:[#allocation2 + $0x110] sm:$0xff] %v827
      %836 = vst [vmem:[#allocation2 + $0x118] sm:$0xff] %v828
      %v837 = vld [vmem:[%s233] sm:$0xff]
      %v838 = vld [vmem:[%s233 + $0x8] sm:$0xff]
      %v839 = vld [vmem:[%s233 + $0x10] sm:$0xff]
      %v840 = vld [vmem:[%s233 + $0x18] sm:$0xff]
      %v841 = vld [vmem:[%s233 + $0x20] sm:$0xff]
      %v842 = vld [vmem:[%s233 + $0x28] sm:$0xff]
      %v843 = vld [vmem:[%s233 + $0x30] sm:$0xff]
      %v844 = vld [vmem:[%s233 + $0x38] sm:$0xff]
      %v853 = vunpack.c.l.b16 %v837
      %v854 = vunpack.c.h.b16 %v837
      %v855 = vunpack.c.l.b16 %v838
      %v856 = vunpack.c.h.b16 %v838
      %v857 = vunpack.c.l.b16 %v839
      %v858 = vunpack.c.h.b16 %v839
      %v859 = vunpack.c.l.b16 %v840
      %v860 = vunpack.c.h.b16 %v840
      %v861 = vunpack.c.l.b16 %v841
      %v862 = vunpack.c.h.b16 %v841
      %v863 = vunpack.c.l.b16 %v842
      %v864 = vunpack.c.h.b16 %v842
      %v865 = vunpack.c.l.b16 %v843
      %v866 = vunpack.c.h.b16 %v843
      %v867 = vunpack.c.l.b16 %v844
      %v868 = vunpack.c.h.b16 %v844
      %v869 = vpack.c.b16 %v855, %v853
      %v870 = vpack.c.b16 %v856, %v854
      %v871 = vpack.c.b16 %v859, %v857
      %v872 = vpack.c.b16 %v860, %v858
      %v873 = vpack.c.b16 %v863, %v861
      %v874 = vpack.c.b16 %v864, %v862
      %v875 = vpack.c.b16 %v867, %v865
      %v876 = vpack.c.b16 %v868, %v866
      %877 = vrot.lane.b32.xlu0 %v869, 115
      %v878 = vpop.permute.xlu0 %877
      %879 = vrot.lane.b32.xlu0 %v870, 115
      %v880 = vpop.permute.xlu0 %879
      %881 = vrot.lane.b32.xlu0 %v871, 115
      %v882 = vpop.permute.xlu0 %881
      %883 = vrot.lane.b32.xlu0 %v872, 115
      %v884 = vpop.permute.xlu0 %883
      %885 = vrot.lane.b32.xlu0 %v873, 115
      %v886 = vpop.permute.xlu0 %885
      %887 = vrot.lane.b32.xlu0 %v874, 115
      %v888 = vpop.permute.xlu0 %887
      %889 = vrot.lane.b32.xlu0 %v875, 115
      %v890 = vpop.permute.xlu0 %889
      %891 = vrot.lane.b32.xlu0 %v876, 115
      %v892 = vpop.permute.xlu0 %891
      %vm893 = vcmask 941056
      %v894 = vsel %vm893, %v878, %v880
      %v895 = vsel %vm893, %v882, %v884
      %v896 = vsel %vm893, %v886, %v888
      %v897 = vsel %vm893, %v890, %v892
      %902 = vst [vmem:[#allocation2 + $0x120] sm:$0xff] %v894
      %903 = vst [vmem:[#allocation2 + $0x128] sm:$0xff] %v895
      %904 = vst [vmem:[#allocation2 + $0x130] sm:$0xff] %v896
      %905 = vst [vmem:[#allocation2 + $0x138] sm:$0xff] %v897
      %v906 = vld [vmem:[%s233] sm:$0xff]
      %v907 = vld [vmem:[%s233 + $0x8] sm:$0xff]
      %v908 = vld [vmem:[%s233 + $0x10] sm:$0xff]
      %v909 = vld [vmem:[%s233 + $0x18] sm:$0xff]
      %v910 = vld [vmem:[%s233 + $0x20] sm:$0xff]
      %v911 = vld [vmem:[%s233 + $0x28] sm:$0xff]
      %v912 = vld [vmem:[%s233 + $0x30] sm:$0xff]
      %v913 = vld [vmem:[%s233 + $0x38] sm:$0xff]
      %v922 = vunpack.c.l.b16 %v906
      %v923 = vunpack.c.h.b16 %v906
      %v924 = vunpack.c.l.b16 %v907
      %v925 = vunpack.c.h.b16 %v907
      %v926 = vunpack.c.l.b16 %v908
      %v927 = vunpack.c.h.b16 %v908
      %v928 = vunpack.c.l.b16 %v909
      %v929 = vunpack.c.h.b16 %v909
      %v930 = vunpack.c.l.b16 %v910
      %v931 = vunpack.c.h.b16 %v910
      %v932 = vunpack.c.l.b16 %v911
      %v933 = vunpack.c.h.b16 %v911
      %v934 = vunpack.c.l.b16 %v912
      %v935 = vunpack.c.h.b16 %v912
      %v936 = vunpack.c.l.b16 %v913
      %v937 = vunpack.c.h.b16 %v913
      %v938 = vpack.c.b16 %v924, %v922
      %v939 = vpack.c.b16 %v925, %v923
      %v940 = vpack.c.b16 %v928, %v926
      %v941 = vpack.c.b16 %v929, %v927
      %v942 = vpack.c.b16 %v932, %v930
      %v943 = vpack.c.b16 %v933, %v931
      %v944 = vpack.c.b16 %v936, %v934
      %v945 = vpack.c.b16 %v937, %v935
      %946 = vrot.lane.b32.xlu0 %v938, 114
      %v947 = vpop.permute.xlu0 %946
      %948 = vrot.lane.b32.xlu0 %v939, 114
      %v949 = vpop.permute.xlu0 %948
      %950 = vrot.lane.b32.xlu0 %v940, 114
      %v951 = vpop.permute.xlu0 %950
      %952 = vrot.lane.b32.xlu0 %v941, 114
      %v953 = vpop.permute.xlu0 %952
      %954 = vrot.lane.b32.xlu0 %v942, 114
      %v955 = vpop.permute.xlu0 %954
      %956 = vrot.lane.b32.xlu0 %v943, 114
      %v957 = vpop.permute.xlu0 %956
      %958 = vrot.lane.b32.xlu0 %v944, 114
      %v959 = vpop.permute.xlu0 %958
      %960 = vrot.lane.b32.xlu0 %v945, 114
      %v961 = vpop.permute.xlu0 %960
      %vm962 = vcmask 932864
      %v963 = vsel %vm962, %v947, %v949
      %v964 = vsel %vm962, %v951, %v953
      %v965 = vsel %vm962, %v955, %v957
      %v966 = vsel %vm962, %v959, %v961
      %971 = vst [vmem:[#allocation2 + $0x140] sm:$0xff] %v963
      %972 = vst [vmem:[#allocation2 + $0x148] sm:$0xff] %v964
      %973 = vst [vmem:[#allocation2 + $0x150] sm:$0xff] %v965
      %974 = vst [vmem:[#allocation2 + $0x158] sm:$0xff] %v966
      %v975 = vld [vmem:[%s233] sm:$0xff]
      %v976 = vld [vmem:[%s233 + $0x8] sm:$0xff]
      %v977 = vld [vmem:[%s233 + $0x10] sm:$0xff]
      %v978 = vld [vmem:[%s233 + $0x18] sm:$0xff]
      %v979 = vld [vmem:[%s233 + $0x20] sm:$0xff]
      %v980 = vld [vmem:[%s233 + $0x28] sm:$0xff]
      %v981 = vld [vmem:[%s233 + $0x30] sm:$0xff]
      %v982 = vld [vmem:[%s233 + $0x38] sm:$0xff]
      %v991 = vunpack.c.l.b16 %v975
      %v992 = vunpack.c.h.b16 %v975
      %v993 = vunpack.c.l.b16 %v976
      %v994 = vunpack.c.h.b16 %v976
      %v995 = vunpack.c.l.b16 %v977
      %v996 = vunpack.c.h.b16 %v977
      %v997 = vunpack.c.l.b16 %v978
      %v998 = vunpack.c.h.b16 %v978
      %v999 = vunpack.c.l.b16 %v979
      %v1000 = vunpack.c.h.b16 %v979
      %v1001 = vunpack.c.l.b16 %v980
      %v1002 = vunpack.c.h.b16 %v980
      %v1003 = vunpack.c.l.b16 %v981
      %v1004 = vunpack.c.h.b16 %v981
      %v1005 = vunpack.c.l.b16 %v982
      %v1006 = vunpack.c.h.b16 %v982
      %v1007 = vpack.c.b16 %v993, %v991
      %v1008 = vpack.c.b16 %v994, %v992
      %v1009 = vpack.c.b16 %v997, %v995
      %v1010 = vpack.c.b16 %v998, %v996
      %v1011 = vpack.c.b16 %v1001, %v999
      %v1012 = vpack.c.b16 %v1002, %v1000
      %v1013 = vpack.c.b16 %v1005, %v1003
      %v1014 = vpack.c.b16 %v1006, %v1004
      %1015 = vrot.lane.b32.xlu0 %v1007, 113
      %v1016 = vpop.permute.xlu0 %1015
      %1017 = vrot.lane.b32.xlu0 %v1008, 113
      %v1018 = vpop.permute.xlu0 %1017
      %1019 = vrot.lane.b32.xlu0 %v1009, 113
      %v1020 = vpop.permute.xlu0 %1019
      %1021 = vrot.lane.b32.xlu0 %v1010, 113
      %v1022 = vpop.permute.xlu0 %1021
      %1023 = vrot.lane.b32.xlu0 %v1011, 113
      %v1024 = vpop.permute.xlu0 %1023
      %1025 = vrot.lane.b32.xlu0 %v1012, 113
      %v1026 = vpop.permute.xlu0 %1025
      %1027 = vrot.lane.b32.xlu0 %v1013, 113
      %v1028 = vpop.permute.xlu0 %1027
      %1029 = vrot.lane.b32.xlu0 %v1014, 113
      %v1030 = vpop.permute.xlu0 %1029
      %vm1031 = vcmask 924672
      %v1032 = vsel %vm1031, %v1016, %v1018
      %v1033 = vsel %vm1031, %v1020, %v1022
      %v1034 = vsel %vm1031, %v1024, %v1026
      %v1035 = vsel %vm1031, %v1028, %v1030
      %1040 = vst [vmem:[#allocation2 + $0x160] sm:$0xff] %v1032
      %1041 = vst [vmem:[#allocation2 + $0x168] sm:$0xff] %v1033
      %1042 = vst [vmem:[#allocation2 + $0x170] sm:$0xff] %v1034
      %1043 = vst [vmem:[#allocation2 + $0x178] sm:$0xff] %v1035
      %v1044 = vld [vmem:[%s233] sm:$0xff]
      %v1045 = vld [vmem:[%s233 + $0x8] sm:$0xff]
      %v1046 = vld [vmem:[%s233 + $0x10] sm:$0xff]
      %v1047 = vld [vmem:[%s233 + $0x18] sm:$0xff]
      %v1048 = vld [vmem:[%s233 + $0x20] sm:$0xff]
      %v1049 = vld [vmem:[%s233 + $0x28] sm:$0xff]
      %v1050 = vld [vmem:[%s233 + $0x30] sm:$0xff]
      %v1051 = vld [vmem:[%s233 + $0x38] sm:$0xff]
      %v1060 = vunpack.c.l.b16 %v1044
      %v1061 = vunpack.c.h.b16 %v1044
      %v1062 = vunpack.c.l.b16 %v1045
      %v1063 = vunpack.c.h.b16 %v1045
      %v1064 = vunpack.c.l.b16 %v1046
      %v1065 = vunpack.c.h.b16 %v1046
      %v1066 = vunpack.c.l.b16 %v1047
      %v1067 = vunpack.c.h.b16 %v1047
      %v1068 = vunpack.c.l.b16 %v1048
      %v1069 = vunpack.c.h.b16 %v1048
      %v1070 = vunpack.c.l.b16 %v1049
      %v1071 = vunpack.c.h.b16 %v1049
      %v1072 = vunpack.c.l.b16 %v1050
      %v1073 = vunpack.c.h.b16 %v1050
      %v1074 = vunpack.c.l.b16 %v1051
      %v1075 = vunpack.c.h.b16 %v1051
      %v1076 = vpack.c.b16 %v1062, %v1060
      %v1077 = vpack.c.b16 %v1063, %v1061
      %v1078 = vpack.c.b16 %v1066, %v1064
      %v1079 = vpack.c.b16 %v1067, %v1065
      %v1080 = vpack.c.b16 %v1070, %v1068
      %v1081 = vpack.c.b16 %v1071, %v1069
      %v1082 = vpack.c.b16 %v1074, %v1072
      %v1083 = vpack.c.b16 %v1075, %v1073
      %1084 = vrot.lane.b32.xlu0 %v1076, 110
      %v1085 = vpop.permute.xlu0 %1084
      %1086 = vrot.lane.b32.xlu0 %v1077, 110
      %v1087 = vpop.permute.xlu0 %1086
      %1088 = vrot.lane.b32.xlu0 %v1078, 110
      %v1089 = vpop.permute.xlu0 %1088
      %1090 = vrot.lane.b32.xlu0 %v1079, 110
      %v1091 = vpop.permute.xlu0 %1090
      %1092 = vrot.lane.b32.xlu0 %v1080, 110
      %v1093 = vpop.permute.xlu0 %1092
      %1094 = vrot.lane.b32.xlu0 %v1081, 110
      %v1095 = vpop.permute.xlu0 %1094
      %1096 = vrot.lane.b32.xlu0 %v1082, 110
      %v1097 = vpop.permute.xlu0 %1096
      %1098 = vrot.lane.b32.xlu0 %v1083, 110
      %v1099 = vpop.permute.xlu0 %1098
      %vm1100 = vcmask 900096
      %v1101 = vsel %vm1100, %v1085, %v1087
      %v1102 = vsel %vm1100, %v1089, %v1091
      %v1103 = vsel %vm1100, %v1093, %v1095
      %v1104 = vsel %vm1100, %v1097, %v1099
      %1109 = vst [vmem:[#allocation2 + $0x180] sm:$0xff] %v1101
      %1110 = vst [vmem:[#allocation2 + $0x188] sm:$0xff] %v1102
      %1111 = vst [vmem:[#allocation2 + $0x190] sm:$0xff] %v1103
      %1112 = vst [vmem:[#allocation2 + $0x198] sm:$0xff] %v1104
      %v1113 = vld [vmem:[%s233] sm:$0xff]
      %v1114 = vld [vmem:[%s233 + $0x8] sm:$0xff]
      %v1115 = vld [vmem:[%s233 + $0x10] sm:$0xff]
      %v1116 = vld [vmem:[%s233 + $0x18] sm:$0xff]
      %v1117 = vld [vmem:[%s233 + $0x20] sm:$0xff]
      %v1118 = vld [vmem:[%s233 + $0x28] sm:$0xff]
      %v1119 = vld [vmem:[%s233 + $0x30] sm:$0xff]
      %v1120 = vld [vmem:[%s233 + $0x38] sm:$0xff]
      %v1129 = vunpack.c.l.b16 %v1113
      %v1130 = vunpack.c.h.b16 %v1113
      %v1131 = vunpack.c.l.b16 %v1114
      %v1132 = vunpack.c.h.b16 %v1114
      %v1133 = vunpack.c.l.b16 %v1115
      %v1134 = vunpack.c.h.b16 %v1115
      %v1135 = vunpack.c.l.b16 %v1116
      %v1136 = vunpack.c.h.b16 %v1116
      %v1137 = vunpack.c.l.b16 %v1117
      %v1138 = vunpack.c.h.b16 %v1117
      %v1139 = vunpack.c.l.b16 %v1118
      %v1140 = vunpack.c.h.b16 %v1118
      %v1141 = vunpack.c.l.b16 %v1119
      %v1142 = vunpack.c.h.b16 %v1119
      %v1143 = vunpack.c.l.b16 %v1120
      %v1144 = vunpack.c.h.b16 %v1120
      %v1145 = vpack.c.b16 %v1131, %v1129
      %v1146 = vpack.c.b16 %v1132, %v1130
      %v1147 = vpack.c.b16 %v1135, %v1133
      %v1148 = vpack.c.b16 %v1136, %v1134
      %v1149 = vpack.c.b16 %v1139, %v1137
      %v1150 = vpack.c.b16 %v1140, %v1138
      %v1151 = vpack.c.b16 %v1143, %v1141
      %v1152 = vpack.c.b16 %v1144, %v1142
      %1153 = vrot.lane.b32.xlu0 %v1145, 109
      %v1154 = vpop.permute.xlu0 %1153
      %1155 = vrot.lane.b32.xlu0 %v1146, 109
      %v1156 = vpop.permute.xlu0 %1155
      %1157 = vrot.lane.b32.xlu0 %v1147, 109
      %v1158 = vpop.permute.xlu0 %1157
      %1159 = vrot.lane.b32.xlu0 %v1148, 109
      %v1160 = vpop.permute.xlu0 %1159
      %1161 = vrot.lane.b32.xlu0 %v1149, 109
      %v1162 = vpop.permute.xlu0 %1161
      %1163 = vrot.lane.b32.xlu0 %v1150, 109
      %v1164 = vpop.permute.xlu0 %1163
      %1165 = vrot.lane.b32.xlu0 %v1151, 109
      %v1166 = vpop.permute.xlu0 %1165
      %1167 = vrot.lane.b32.xlu0 %v1152, 109
      %v1168 = vpop.permute.xlu0 %1167
      %vm1169 = vcmask 891904
      %v1170 = vsel %vm1169, %v1154, %v1156
      %v1171 = vsel %vm1169, %v1158, %v1160
      %v1172 = vsel %vm1169, %v1162, %v1164
      %v1173 = vsel %vm1169, %v1166, %v1168
      %1178 = vst [vmem:[#allocation2 + $0x1a0] sm:$0xff] %v1170
      %1179 = vst [vmem:[#allocation2 + $0x1a8] sm:$0xff] %v1171
      %1180 = vst [vmem:[#allocation2 + $0x1b0] sm:$0xff] %v1172
      %1181 = vst [vmem:[#allocation2 + $0x1b8] sm:$0xff] %v1173
      %v1182 = vld [vmem:[%s233] sm:$0xff]
      %v1183 = vld [vmem:[%s233 + $0x8] sm:$0xff]
      %v1184 = vld [vmem:[%s233 + $0x10] sm:$0xff]
      %v1185 = vld [vmem:[%s233 + $0x18] sm:$0xff]
      %v1186 = vld [vmem:[%s233 + $0x20] sm:$0xff]
      %v1187 = vld [vmem:[%s233 + $0x28] sm:$0xff]
      %v1188 = vld [vmem:[%s233 + $0x30] sm:$0xff]
      %v1189 = vld [vmem:[%s233 + $0x38] sm:$0xff]
      %v1198 = vunpack.c.l.b16 %v1182
      %v1199 = vunpack.c.h.b16 %v1182
      %v1200 = vunpack.c.l.b16 %v1183
      %v1201 = vunpack.c.h.b16 %v1183
      %v1202 = vunpack.c.l.b16 %v1184
      %v1203 = vunpack.c.h.b16 %v1184
      %v1204 = vunpack.c.l.b16 %v1185
      %v1205 = vunpack.c.h.b16 %v1185
      %v1206 = vunpack.c.l.b16 %v1186
      %v1207 = vunpack.c.h.b16 %v1186
      %v1208 = vunpack.c.l.b16 %v1187
      %v1209 = vunpack.c.h.b16 %v1187
      %v1210 = vunpack.c.l.b16 %v1188
      %v1211 = vunpack.c.h.b16 %v1188
      %v1212 = vunpack.c.l.b16 %v1189
      %v1213 = vunpack.c.h.b16 %v1189
      %v1214 = vpack.c.b16 %v1200, %v1198
      %v1215 = vpack.c.b16 %v1201, %v1199
      %v1216 = vpack.c.b16 %v1204, %v1202
      %v1217 = vpack.c.b16 %v1205, %v1203
      %v1218 = vpack.c.b16 %v1208, %v1206
      %v1219 = vpack.c.b16 %v1209, %v1207
      %v1220 = vpack.c.b16 %v1212, %v1210
      %v1221 = vpack.c.b16 %v1213, %v1211
      %1222 = vrot.lane.b32.xlu0 %v1214, 108
      %v1223 = vpop.permute.xlu0 %1222
      %1224 = vrot.lane.b32.xlu0 %v1215, 108
      %v1225 = vpop.permute.xlu0 %1224
      %1226 = vrot.lane.b32.xlu0 %v1216, 108
      %v1227 = vpop.permute.xlu0 %1226
      %1228 = vrot.lane.b32.xlu0 %v1217, 108
      %v1229 = vpop.permute.xlu0 %1228
      %1230 = vrot.lane.b32.xlu0 %v1218, 108
      %v1231 = vpop.permute.xlu0 %1230
      %1232 = vrot.lane.b32.xlu0 %v1219, 108
      %v1233 = vpop.permute.xlu0 %1232
      %1234 = vrot.lane.b32.xlu0 %v1220, 108
      %v1235 = vpop.permute.xlu0 %1234
      %1236 = vrot.lane.b32.xlu0 %v1221, 108
      %v1237 = vpop.permute.xlu0 %1236
      %vm1238 = vcmask 883712
      %v1239 = vsel %vm1238, %v1223, %v1225
      %v1240 = vsel %vm1238, %v1227, %v1229
      %v1241 = vsel %vm1238, %v1231, %v1233
      %v1242 = vsel %vm1238, %v1235, %v1237
      %1247 = vst [vmem:[#allocation2 + $0x1c0] sm:$0xff] %v1239
      %1248 = vst [vmem:[#allocation2 + $0x1c8] sm:$0xff] %v1240
      %1249 = vst [vmem:[#allocation2 + $0x1d0] sm:$0xff] %v1241
      %1250 = vst [vmem:[#allocation2 + $0x1d8] sm:$0xff] %v1242
      %v1251 = vld [vmem:[%s233] sm:$0xff]
      %v1252 = vld [vmem:[%s233 + $0x8] sm:$0xff]
      %v1253 = vld [vmem:[%s233 + $0x10] sm:$0xff]
      %v1254 = vld [vmem:[%s233 + $0x18] sm:$0xff]
      %v1255 = vld [vmem:[%s233 + $0x20] sm:$0xff]
      %v1256 = vld [vmem:[%s233 + $0x28] sm:$0xff]
      %v1257 = vld [vmem:[%s233 + $0x30] sm:$0xff]
      %v1258 = vld [vmem:[%s233 + $0x38] sm:$0xff]
      %v1267 = vunpack.c.l.b16 %v1251
      %v1268 = vunpack.c.h.b16 %v1251
      %v1269 = vunpack.c.l.b16 %v1252
      %v1270 = vunpack.c.h.b16 %v1252
      %v1271 = vunpack.c.l.b16 %v1253
      %v1272 = vunpack.c.h.b16 %v1253
      %v1273 = vunpack.c.l.b16 %v1254
      %v1274 = vunpack.c.h.b16 %v1254
      %v1275 = vunpack.c.l.b16 %v1255
      %v1276 = vunpack.c.h.b16 %v1255
      %v1277 = vunpack.c.l.b16 %v1256
      %v1278 = vunpack.c.h.b16 %v1256
      %v1279 = vunpack.c.l.b16 %v1257
      %v1280 = vunpack.c.h.b16 %v1257
      %v1281 = vunpack.c.l.b16 %v1258
      %v1282 = vunpack.c.h.b16 %v1258
      %v1283 = vpack.c.b16 %v1269, %v1267
      %v1284 = vpack.c.b16 %v1270, %v1268
      %v1285 = vpack.c.b16 %v1273, %v1271
      %v1286 = vpack.c.b16 %v1274, %v1272
      %v1287 = vpack.c.b16 %v1277, %v1275
      %v1288 = vpack.c.b16 %v1278, %v1276
      %v1289 = vpack.c.b16 %v1281, %v1279
      %v1290 = vpack.c.b16 %v1282, %v1280
      %1291 = vrot.lane.b32.xlu0 %v1283, 107
      %v1292 = vpop.permute.xlu0 %1291
      %1293 = vrot.lane.b32.xlu0 %v1284, 107
      %v1294 = vpop.permute.xlu0 %1293
      %1295 = vrot.lane.b32.xlu0 %v1285, 107
      %v1296 = vpop.permute.xlu0 %1295
      %1297 = vrot.lane.b32.xlu0 %v1286, 107
      %v1298 = vpop.permute.xlu0 %1297
      %1299 = vrot.lane.b32.xlu0 %v1287, 107
      %v1300 = vpop.permute.xlu0 %1299
      %1301 = vrot.lane.b32.xlu0 %v1288, 107
      %v1302 = vpop.permute.xlu0 %1301
      %1303 = vrot.lane.b32.xlu0 %v1289, 107
      %v1304 = vpop.permute.xlu0 %1303
      %1305 = vrot.lane.b32.xlu0 %v1290, 107
      %v1306 = vpop.permute.xlu0 %1305
      %vm1307 = vcmask 875520
      %v1308 = vsel %vm1307, %v1292, %v1294
      %v1309 = vsel %vm1307, %v1296, %v1298
      %v1310 = vsel %vm1307, %v1300, %v1302
      %v1311 = vsel %vm1307, %v1304, %v1306
      %1316 = vst [vmem:[#allocation2 + $0x1e0] sm:$0xff] %v1308
      %1317 = vst [vmem:[#allocation2 + $0x1e8] sm:$0xff] %v1309
      %1318 = vst [vmem:[#allocation2 + $0x1f0] sm:$0xff] %v1310
      %1319 = vst [vmem:[#allocation2 + $0x1f8] sm:$0xff] %v1311
      %v1320 = vld [vmem:[#allocation2] sm:$0xff]
      %v1321 = vld [vmem:[#allocation2 + $0x8] sm:$0xff]
      %v1322 = vld [vmem:[#allocation2 + $0x10] sm:$0xff]
      %v1323 = vld [vmem:[#allocation2 + $0x18] sm:$0xff]
      %v1324 = vld [vmem:[#allocation2 + $0x20] sm:$0xff]
      %v1325 = vld [vmem:[#allocation2 + $0x28] sm:$0xff]
      %v1326 = vld [vmem:[#allocation2 + $0x30] sm:$0xff]
      %v1327 = vld [vmem:[#allocation2 + $0x38] sm:$0xff]
      %v1328 = vld [vmem:[#allocation2 + $0x40] sm:$0xff]
      %v1329 = vld [vmem:[#allocation2 + $0x48] sm:$0xff]
      %v1330 = vld [vmem:[#allocation2 + $0x50] sm:$0xff]
      %v1331 = vld [vmem:[#allocation2 + $0x58] sm:$0xff]
      %v1332 = vld [vmem:[#allocation2 + $0x60] sm:$0xff]
      %v1333 = vld [vmem:[#allocation2 + $0x68] sm:$0xff]
      %v1334 = vld [vmem:[#allocation2 + $0x70] sm:$0xff]
      %v1335 = vld [vmem:[#allocation2 + $0x78] sm:$0xff]
      %v1336 = vld [vmem:[#allocation2 + $0x80] sm:$0xff]
      %v1337 = vld [vmem:[#allocation2 + $0x88] sm:$0xff]
      %v1338 = vld [vmem:[#allocation2 + $0x90] sm:$0xff]
      %v1339 = vld [vmem:[#allocation2 + $0x98] sm:$0xff]
      %v1340 = vld [vmem:[#allocation2 + $0xa0] sm:$0xff]
      %v1341 = vld [vmem:[#allocation2 + $0xa8] sm:$0xff]
      %v1342 = vld [vmem:[#allocation2 + $0xb0] sm:$0xff]
      %v1343 = vld [vmem:[#allocation2 + $0xb8] sm:$0xff]
      %v1344 = vld [vmem:[#allocation2 + $0xc0] sm:$0xff]
      %v1345 = vld [vmem:[#allocation2 + $0xc8] sm:$0xff]
      %v1346 = vld [vmem:[#allocation2 + $0xd0] sm:$0xff]
      %v1347 = vld [vmem:[#allocation2 + $0xd8] sm:$0xff]
      %v1348 = vld [vmem:[#allocation2 + $0xe0] sm:$0xff]
      %v1349 = vld [vmem:[#allocation2 + $0xe8] sm:$0xff]
      %v1350 = vld [vmem:[#allocation2 + $0xf0] sm:$0xff]
      %v1351 = vld [vmem:[#allocation2 + $0xf8] sm:$0xff]
      %v1352 = vld [vmem:[#allocation2 + $0x100] sm:$0xff]
      %v1353 = vld [vmem:[#allocation2 + $0x108] sm:$0xff]
      %v1354 = vld [vmem:[#allocation2 + $0x110] sm:$0xff]
      %v1355 = vld [vmem:[#allocation2 + $0x118] sm:$0xff]
      %v1356 = vld [vmem:[#allocation2 + $0x120] sm:$0xff]
      %v1357 = vld [vmem:[#allocation2 + $0x128] sm:$0xff]
      %v1358 = vld [vmem:[#allocation2 + $0x130] sm:$0xff]
      %v1359 = vld [vmem:[#allocation2 + $0x138] sm:$0xff]
      %v1360 = vld [vmem:[#allocation2 + $0x140] sm:$0xff]
      %v1361 = vld [vmem:[#allocation2 + $0x148] sm:$0xff]
      %v1362 = vld [vmem:[#allocation2 + $0x150] sm:$0xff]
      %v1363 = vld [vmem:[#allocation2 + $0x158] sm:$0xff]
      %v1364 = vld [vmem:[#allocation2 + $0x160] sm:$0xff]
      %v1365 = vld [vmem:[#allocation2 + $0x168] sm:$0xff]
      %v1366 = vld [vmem:[#allocation2 + $0x170] sm:$0xff]
      %v1367 = vld [vmem:[#allocation2 + $0x178] sm:$0xff]
      %v1368 = vld [vmem:[#allocation2 + $0x180] sm:$0xff]
      %v1369 = vld [vmem:[#allocation2 + $0x188] sm:$0xff]
      %v1370 = vld [vmem:[#allocation2 + $0x190] sm:$0xff]
      %v1371 = vld [vmem:[#allocation2 + $0x198] sm:$0xff]
      %v1372 = vld [vmem:[#allocation2 + $0x1a0] sm:$0xff]
      %v1373 = vld [vmem:[#allocation2 + $0x1a8] sm:$0xff]
      %v1374 = vld [vmem:[#allocation2 + $0x1b0] sm:$0xff]
      %v1375 = vld [vmem:[#allocation2 + $0x1b8] sm:$0xff]
      %v1376 = vld [vmem:[#allocation2 + $0x1c0] sm:$0xff]
      %v1377 = vld [vmem:[#allocation2 + $0x1c8] sm:$0xff]
      %v1378 = vld [vmem:[#allocation2 + $0x1d0] sm:$0xff]
      %v1379 = vld [vmem:[#allocation2 + $0x1d8] sm:$0xff]
      %v1380 = vld [vmem:[#allocation2 + $0x1e0] sm:$0xff]
      %v1381 = vld [vmem:[#allocation2 + $0x1e8] sm:$0xff]
      %v1382 = vld [vmem:[#allocation2 + $0x1f0] sm:$0xff]
      %v1383 = vld [vmem:[#allocation2 + $0x1f8] sm:$0xff]
      %v1384 = vld [vmem:[%s240] sm:$0x1]
      %1386 = vset.pattern.permute.xlu0 0
      %1387 = vperm.xlu0 %1386, %v1384
      %v1388 = vpop.permute.xlu0 %1387
      %v1390 = vlaneseq
      %v1391 = vshrl.u32 %v1390, 7
      %v1392 = vsub.s32 0, %v1391
      %v1393 = vrot.slane %v1388, %v1392
      %v1395 = vcombine.high %v248, %v248
      %v1397 = vunpack.c.l.s4 1966171168
      %v1398 = vunpack.c.0.s8 %v1397
      %v1399 = vlaneseq
      %v1400 = vshrl.u32 %v1399, 7
      %v1401 = vsub.s32 %v1398, %v1400
      %v1402 = vrot.slane %v248, %v1401
      %v1404 = vunpack.c.l.s4 1966171168
      %v1405 = vunpack.c.0.s8 %v1404
      %v1406 = vlaneseq
      %v1407 = vshrl.u32 %v1406, 7
      %v1408 = vsub.s32 %v1405, %v1407
      %v1409 = vrot.slane %v1395, %v1408
      %v1410 = vcombine.high %v1402, %v1402
      %v1411 = vcombine.high %v1409, %v1409
      %v1413 = vunpack.c.l.s4 1966171168
      %v1414 = vunpack.c.0.s8 %v1413
      %v1415 = vlaneseq
      %v1416 = vshrl.u32 %v1415, 7
      %v1417 = vsub.s32 %v1414, %v1416
      %v1418 = vrot.slane %v1402, %v1417
      %v1420 = vunpack.c.l.s4 1966171168
      %v1421 = vunpack.c.0.s8 %v1420
      %v1422 = vlaneseq
      %v1423 = vshrl.u32 %v1422, 7
      %v1424 = vsub.s32 %v1421, %v1423
      %v1425 = vrot.slane %v1409, %v1424
      %v1427 = vunpack.c.l.s4 1966171168
      %v1428 = vunpack.c.0.s8 %v1427
      %v1429 = vlaneseq
      %v1430 = vshrl.u32 %v1429, 7
      %v1431 = vsub.s32 %v1428, %v1430
      %v1432 = vrot.slane %v1410, %v1431
      %v1434 = vunpack.c.l.s4 1966171168
      %v1435 = vunpack.c.0.s8 %v1434
      %v1436 = vlaneseq
      %v1437 = vshrl.u32 %v1436, 7
      %v1438 = vsub.s32 %v1435, %v1437
      %v1439 = vrot.slane %v1411, %v1438
      %v1440 = vcombine.high %v1418, %v1418
      %v1441 = vcombine.high %v1425, %v1425
      %v1442 = vcombine.high %v1432, %v1432
      %v1443 = vcombine.high %v1439, %v1439
      %1452 = vmatprep.subr.bf16.mxu0 0
      %1453 = vmatpush1.bf16.msra.mxu0 %v1320
      %1454 = vmatprep.subr.bf16.mxu0 0
      %1455 = vmatpush1.bf16.msra.mxu0 %v1321
      %1456 = vmatprep.subr.bf16.mxu0 0
      %1457 = vmatpush1.bf16.msra.mxu0 %v1322
      %1458 = vmatprep.subr.bf16.mxu0 0
      %1459 = vmatpush1.bf16.msra.mxu0 %v1323
      %1460 = vmatprep.subr.bf16.mxu0 0
      %1461 = vmatpush1.bf16.msra.mxu0 %v1324
      %1462 = vmatprep.subr.bf16.mxu0 0
      %1463 = vmatpush1.bf16.msra.mxu0 %v1325
      %1464 = vmatprep.subr.bf16.mxu0 0
      %1465 = vmatpush1.bf16.msra.mxu0 %v1326
      %1466 = vmatprep.subr.bf16.mxu0 0
      %1467 = vmatpush1.bf16.msra.mxu0 %v1327
      %1468 = vmatprep.subr.bf16.mxu0 0
      %1469 = vmatpush1.bf16.msra.mxu0 %v1328
      %1470 = vmatprep.subr.bf16.mxu0 0
      %1471 = vmatpush1.bf16.msra.mxu0 %v1329
      %1472 = vmatprep.subr.bf16.mxu0 0
      %1473 = vmatpush1.bf16.msra.mxu0 %v1330
      %1474 = vmatprep.subr.bf16.mxu0 0
      %1475 = vmatpush1.bf16.msra.mxu0 %v1331
      %1476 = vmatprep.subr.bf16.mxu0 0
      %1477 = vmatpush1.bf16.msra.mxu0 %v1332
      %1478 = vmatprep.subr.bf16.mxu0 0
      %1479 = vmatpush1.bf16.msra.mxu0 %v1333
      %1480 = vmatprep.subr.bf16.mxu0 0
      %1481 = vmatpush1.bf16.msra.mxu0 %v1334
      %1482 = vmatprep.subr.bf16.mxu0 0
      %1483 = vmatpush1.bf16.msra.mxu0 %v1335
      %1484 = vmatprep.mubr.bf16.mxu0 %v1432
      %1485 = vmatmul.mubr.bf16.gmra.mrb[0].mxu0 %v1418
      %v1486 = vpop.f32.mrb[0].mxu0
      %v1487 = vadd.f32 %v1393, %v1486
      %v1488 = vpop.f32.mrb[0].mxu0
      %v1489 = vpop.f32.mrb[0].mxu0
      %v1490 = vpop.f32.mrb[0].mxu0
      %1491 = vdwg.mxu0
      %1492 = vmatprep.subr.bf16.mxu0 0
      %1493 = vmatpush1.bf16.msra.mxu0 %v1336
      %1494 = vmatprep.subr.bf16.mxu0 0
      %1495 = vmatpush1.bf16.msra.mxu0 %v1337
      %1496 = vmatprep.subr.bf16.mxu0 0
      %1497 = vmatpush1.bf16.msra.mxu0 %v1338
      %1498 = vmatprep.subr.bf16.mxu0 0
      %1499 = vmatpush1.bf16.msra.mxu0 %v1339
      %1500 = vmatprep.subr.bf16.mxu0 0
      %1501 = vmatpush1.bf16.msra.mxu0 %v1340
      %1502 = vmatprep.subr.bf16.mxu0 0
      %1503 = vmatpush1.bf16.msra.mxu0 %v1341
      %1504 = vmatprep.subr.bf16.mxu0 0
      %1505 = vmatpush1.bf16.msra.mxu0 %v1342
      %1506 = vmatprep.subr.bf16.mxu0 0
      %1507 = vmatpush1.bf16.msra.mxu0 %v1343
      %1508 = vmatprep.subr.bf16.mxu0 0
      %1509 = vmatpush1.bf16.msra.mxu0 %v1344
      %1510 = vmatprep.subr.bf16.mxu0 0
      %1511 = vmatpush1.bf16.msra.mxu0 %v1345
      %1512 = vmatprep.subr.bf16.mxu0 0
      %1513 = vmatpush1.bf16.msra.mxu0 %v1346
      %1514 = vmatprep.subr.bf16.mxu0 0
      %1515 = vmatpush1.bf16.msra.mxu0 %v1347
      %1516 = vmatprep.subr.bf16.mxu0 0
      %1517 = vmatpush1.bf16.msra.mxu0 %v1348
      %1518 = vmatprep.subr.bf16.mxu0 0
      %1519 = vmatpush1.bf16.msra.mxu0 %v1349
      %1520 = vmatprep.subr.bf16.mxu0 0
      %1521 = vmatpush1.bf16.msra.mxu0 %v1350
      %1522 = vmatprep.subr.bf16.mxu0 0
      %1523 = vmatpush1.bf16.msra.mxu0 %v1351
      %1524 = vmatprep.mubr.bf16.mxu0 %v1442
      %1525 = vmatmul.mubr.bf16.gmra.mrb[0].mxu0 %v1440
      %v1526 = vpop.f32.mrb[0].mxu0
      %v1527 = vadd.f32 %v1487, %v1526
      %v1528 = vpop.f32.mrb[0].mxu0
      %v1529 = vpop.f32.mrb[0].mxu0
      %v1530 = vpop.f32.mrb[0].mxu0
      %1531 = vdwg.mxu0
      %1532 = vmatprep.subr.bf16.mxu0 0
      %1533 = vmatpush1.bf16.msra.mxu0 %v1352
      %1534 = vmatprep.subr.bf16.mxu0 0
      %1535 = vmatpush1.bf16.msra.mxu0 %v1353
      %1536 = vmatprep.subr.bf16.mxu0 0
      %1537 = vmatpush1.bf16.msra.mxu0 %v1354
      %1538 = vmatprep.subr.bf16.mxu0 0
      %1539 = vmatpush1.bf16.msra.mxu0 %v1355
      %1540 = vmatprep.subr.bf16.mxu0 0
      %1541 = vmatpush1.bf16.msra.mxu0 %v1356
      %1542 = vmatprep.subr.bf16.mxu0 0
      %1543 = vmatpush1.bf16.msra.mxu0 %v1357
      %1544 = vmatprep.subr.bf16.mxu0 0
      %1545 = vmatpush1.bf16.msra.mxu0 %v1358
      %1546 = vmatprep.subr.bf16.mxu0 0
      %1547 = vmatpush1.bf16.msra.mxu0 %v1359
      %1548 = vmatprep.subr.bf16.mxu0 0
      %1549 = vmatpush1.bf16.msra.mxu0 %v1360
      %1550 = vmatprep.subr.bf16.mxu0 0
      %1551 = vmatpush1.bf16.msra.mxu0 %v1361
      %1552 = vmatprep.subr.bf16.mxu0 0
      %1553 = vmatpush1.bf16.msra.mxu0 %v1362
      %1554 = vmatprep.subr.bf16.mxu0 0
      %1555 = vmatpush1.bf16.msra.mxu0 %v1363
      %1556 = vmatprep.subr.bf16.mxu0 0
      %1557 = vmatpush1.bf16.msra.mxu0 %v1364
      %1558 = vmatprep.subr.bf16.mxu0 0
      %1559 = vmatpush1.bf16.msra.mxu0 %v1365
      %1560 = vmatprep.subr.bf16.mxu0 0
      %1561 = vmatpush1.bf16.msra.mxu0 %v1366
      %1562 = vmatprep.subr.bf16.mxu0 0
      %1563 = vmatpush1.bf16.msra.mxu0 %v1367
      %1564 = vmatprep.mubr.bf16.mxu0 %v1439
      %1565 = vmatmul.mubr.bf16.gmra.mrb[0].mxu0 %v1425
      %v1566 = vpop.f32.mrb[0].mxu0
      %v1567 = vadd.f32 %v1527, %v1566
      %v1568 = vpop.f32.mrb[0].mxu0
      %v1569 = vpop.f32.mrb[0].mxu0
      %v1570 = vpop.f32.mrb[0].mxu0
      %1571 = vdwg.mxu0
      %1572 = vmatprep.subr.bf16.mxu0 0
      %1573 = vmatpush1.bf16.msra.mxu0 %v1368
      %1574 = vmatprep.subr.bf16.mxu0 0
      %1575 = vmatpush1.bf16.msra.mxu0 %v1369
      %1576 = vmatprep.subr.bf16.mxu0 0
      %1577 = vmatpush1.bf16.msra.mxu0 %v1370
      %1578 = vmatprep.subr.bf16.mxu0 0
      %1579 = vmatpush1.bf16.msra.mxu0 %v1371
      %1580 = vmatprep.subr.bf16.mxu0 0
      %1581 = vmatpush1.bf16.msra.mxu0 %v1372
      %1582 = vmatprep.subr.bf16.mxu0 0
      %1583 = vmatpush1.bf16.msra.mxu0 %v1373
      %1584 = vmatprep.subr.bf16.mxu0 0
      %1585 = vmatpush1.bf16.msra.mxu0 %v1374
      %1586 = vmatprep.subr.bf16.mxu0 0
      %1587 = vmatpush1.bf16.msra.mxu0 %v1375
      %1588 = vmatprep.subr.bf16.mxu0 0
      %1589 = vmatpush1.bf16.msra.mxu0 %v1376
      %1590 = vmatprep.subr.bf16.mxu0 0
      %1591 = vmatpush1.bf16.msra.mxu0 %v1377
      %1592 = vmatprep.subr.bf16.mxu0 0
      %1593 = vmatpush1.bf16.msra.mxu0 %v1378
      %1594 = vmatprep.subr.bf16.mxu0 0
      %1595 = vmatpush1.bf16.msra.mxu0 %v1379
      %1596 = vmatprep.subr.bf16.mxu0 0
      %1597 = vmatpush1.bf16.msra.mxu0 %v1380
      %1598 = vmatprep.subr.bf16.mxu0 0
      %1599 = vmatpush1.bf16.msra.mxu0 %v1381
      %1600 = vmatprep.subr.bf16.mxu0 0
      %1601 = vmatpush1.bf16.msra.mxu0 %v1382
      %1602 = vmatprep.subr.bf16.mxu0 0
      %1603 = vmatpush1.bf16.msra.mxu0 %v1383
      %1604 = vmatprep.mubr.bf16.mxu0 %v1443
      %1605 = vmatmul.mubr.bf16.gmra.mrb[0].mxu0 %v1441
      %v1606 = vpop.f32.mrb[0].mxu0
      %v1607 = vadd.f32 %v1567, %v1606
      %v1608 = vpop.f32.mrb[0].mxu0
      %v1609 = vpop.f32.mrb[0].mxu0
      %v1610 = vpop.f32.mrb[0].mxu0
      %1611 = vdwg.mxu0
      %v1612 = vxor.u32 %v1607, 2147483648
      %v1613 = vmul.f32 %v1612, 1.442695
      %v1614 = vpow.pop %v1613
      %v1615 = vadd.f32 %v1614, 1.0
      %v1616 = vrcp.pop %v1615
      %v1617 = vmul.f32 1.0, %v1616
      %1618 = vst [vmem:[%s246] sm:$0x1] %v1617
      %p1619 = scmp.lt.s32.totalorder %s21, 1
      %s1620 = scalar_select %p1619, %s21, 1
      %p1621 = scmp.lt.s32.totalorder %s22, 0
      %s1622 = scalar_select %p1621, %s22, 0
      %s1623 = sadd.s32 %s1622, %s1620
      %s1624 = scalar_lea.vmem %s4, %s1623
      // Predicated region
      $region37: #{discriminator_forward.11} parent=35 // pred_check
        %p1625 = pneg %p148
      $region38: #{discriminator_forward.11} parent=35 // pred_check_branch
        %1627 = sbr.rel (%p1625) target = $region40
      $region39: #{discriminator_forward.11} parent=35 // pred_region
        _
      $region40: #{discriminator_forward.11} parent=35 // pred_fallthru
        _
    $region36: #{discriminator_forward.11} parent=5 // pred_fallthru
      _
    %p1628 = scmp.le.s32.totalorder 2, %s12
    // Predicated region
    $region41: #{discriminator_forward.11} parent=5 // pred_check
      %p1629 = pneg %p1628
    $region42: #{discriminator_forward.11} parent=5 // pred_check_branch
      %1631 = sbr.rel (%p1629) target = $region44
    $region43: #{discriminator_forward.11} parent=5 // pred_region
      %s1632 = ssub.s32 %s12, 2
      // Predicated region
      $region45: #{discriminator_forward.11} parent=43 // pred_check
        %p1633 = pneg %p154
      $region46: #{discriminator_forward.11} parent=43 // pred_check_branch
        %1635 = sbr.rel (%p1633) target = $region48
      $region47: #{discriminator_forward.11} parent=43 // pred_region
        %p1636 = scmp.lt.s32.totalorder %s23, 1
        %s1637 = scalar_select %p1636, %s23, 1
        %p1638 = scmp.lt.s32.totalorder %s24, 0
        %s1639 = scalar_select %p1638, %s24, 0
        %s1640 = sadd.s32 %s1639, %s1637
        %s1641 = scalar_lea.vmem %s4, %s1640
      $region48: #{discriminator_forward.11} parent=43 // pred_fallthru
        _
    $region44: #{discriminator_forward.11} parent=5 // pred_fallthru
      _
  $region6: #{discriminator_forward.11} parent=0 // loop_footer
    %s16 = sadd.s32 1, %s12
  $region7: #{discriminator_forward.11} parent=0 // loop_footer_branch
    %11 = sbr.rel target = $region3
  $region8: #{discriminator_forward.11} parent=0 // loop_exit
    _

</llo_original>
